<compile_context>
chip_gen: v7x
topology: tpu7x:2x2x1
jax: 0.10.0
libtpu: 0.0.40
codegen_flags: <defaults>
</compile_context>

<pallas_src>
import functools

import jax
import jax.numpy as jnp
from jax.experimental import pallas as pl
from jax.experimental.pallas import tpu as pltpu


LANE = 128
_VMEM_LIMIT_BYTES = 32 * 1024 * 1024   # explicit scoped-VMEM budget (all gens)


def _round_up(x, m):
    return ((x + m - 1) // m) * m


# --------------------------------------------------------------------------
# Conv2d 3x3, stride 1, pad 1, fused bias + ReLU (+ optional fused 2x2 maxpool)
# One image per grid step; 9 accumulated per-tap MXU matmuls (K = Cin).
# --------------------------------------------------------------------------
def _conv3x3_relu_kernel(x_ref, w_ref, b_ref, o_ref, xp_ref, acc_ref, *, pool):
    # x_ref  : (1, H, W, Cin)     bf16, one image (Cin = padded except layer 0)
    # w_ref  : (9, Cin, Cout)     bf16, tap-major weights; Cout % 128 == 0
    # b_ref  : (1, Cout)          f32
    # o_ref  : (1, Ho, Wo, Cout)  bf16  (Ho, Wo = H/2, W/2 if pool else H, W)
    # xp_ref : (H+2, W+2, Cin)    bf16 VMEM scratch (zero halo + image interior)
    # acc_ref: (H*W, Cout)        f32 VMEM accumulator
    _, H, W, Cin = x_ref.shape
    Cout = o_ref.shape[-1]

    # pad=1 entirely in VMEM: zero ONLY the 1-px halo every step (interior is
    # fully overwritten below).  Never gate this on program_id: with
    # ("parallel",) each TensorCore owns a private scratch.
    zrow = jnp.zeros((1, W + 2, Cin), xp_ref.dtype)
    zcol = jnp.zeros((H + 2, 1, Cin), xp_ref.dtype)
    xp_ref[pl.ds(0, 1), :, :] = zrow
    xp_ref[pl.ds(H + 1, 1), :, :] = zrow
    xp_ref[:, pl.ds(0, 1), :] = zcol
    xp_ref[:, pl.ds(W + 1, 1), :] = zcol
    xp_ref[pl.ds(1, H), pl.ds(1, W), :] = x_ref[0]

    # 9 per-tap matmuls accumulated in f32 VMEM -- no 9x im2col buffer, no
    # lane-axis concatenation/relayout.  With channel-padded Cin (=128) each
    # tap already fills the MXU contraction depth on v5e.
    for t in range(9):
        kh, kw = t // 3, t % 3
        tap = xp_ref[pl.ds(kh, H), pl.ds(kw, W), :].reshape(H * W, Cin)
        contrib = jnp.dot(tap, w_ref[t], preferred_element_type=jnp.float32)
        if t == 0:
            acc_ref[...] = contrib
        else:
            acc_ref[...] += contrib

    # Epilogue in f32 (v5e VPU has no bf16): bias + ReLU (+ fused 2x2/s2
    # maxpool), single bf16 cast at the lane-dense store.
    acc = jnp.maximum(acc_ref[...] + b_ref[...], 0.0)
    if pool:
        Ho, Wo = H // 2, W // 2
        a = acc.reshape(H, Wo, 2, Cout)                   # split W; lanes intact
        a = jnp.maximum(a[:, :, 0, :], a[:, :, 1, :])     # (H, Wo, Cout)
        a = a.reshape(Ho, 2, Wo, Cout)                    # split H (leading dim)
        a = jnp.maximum(a[:, 0], a[:, 1])                 # (Ho, Wo, Cout)
        o_ref[...] = a.reshape(1, Ho, Wo, Cout).astype(o_ref.dtype)
    else:
        o_ref[...] = acc.reshape(1, H, W, Cout).astype(o_ref.dtype)


def conv3x3_relu(x, w, b, *, pool):
    """x: (N,H,W,Cin) bf16; w: (9,Cin,Cout) bf16; b: (1,Cout) f32; Cout%128==0."""
    N, H, W, Cin = x.shape
    Cout = w.shape[-1]
    assert Cout % LANE == 0, Cout
    if pool:
        assert H % 2 == 0 and W % 2 == 0, (H, W)
        Ho, Wo = H // 2, W // 2
    else:
        Ho, Wo = H, W
    return pl.pallas_call(
        functools.partial(_conv3x3_relu_kernel, pool=pool),
        out_shape=jax.ShapeDtypeStruct((N, Ho, Wo, Cout), jnp.bfloat16),
        grid=(N,),
        in_specs=[
            pl.BlockSpec((1, H, W, Cin), lambda n: (n, 0, 0, 0)),
            pl.BlockSpec((9, Cin, Cout), lambda n: (0, 0, 0)),
            pl.BlockSpec((1, Cout), lambda n: (0, 0)),
        ],
        out_specs=pl.BlockSpec((1, Ho, Wo, Cout), lambda n: (n, 0, 0, 0)),
        scratch_shapes=[
            pltpu.VMEM((H + 2, W + 2, Cin), jnp.bfloat16),
            pltpu.VMEM((H * W, Cout), jnp.float32),
        ],
        compiler_params=pltpu.CompilerParams(
            dimension_semantics=("parallel",),
            vmem_limit_bytes=_VMEM_LIMIT_BYTES),
    )(x, w, b)


# --------------------------------------------------------------------------
# Fused classifier: Linear+ReLU -> Linear+ReLU -> Linear (Dropout == identity
# at inference).  K-tiled over the (dominant) first-linear contraction with an
# f32 VMEM accumulator; batch axis is the parallel grid axis.  All widths are
# 128-padded so every store is lane-dense.
# --------------------------------------------------------------------------
def _classifier_kernel(x_ref, w1_ref, b1_ref, w2_ref, b2_ref, w3_ref, b3_ref,
                       o_ref, acc_ref):
    k = pl.program_id(1)

    @pl.when(k == 0)
    def _init():
        acc_ref[...] = jnp.zeros_like(acc_ref)

    acc_ref[...] += jnp.dot(x_ref[...], w1_ref[...],
                            preferred_element_type=jnp.float32)

    @pl.when(k == pl.num_programs(1) - 1)
    def _finalize():
        h = jnp.maximum(acc_ref[...] + b1_ref[...], 0.0)
        h = jnp.dot(h.astype(w2_ref.dtype), w2_ref[...],
                    preferred_element_type=jnp.float32)
        h = jnp.maximum(h + b2_ref[...], 0.0)
        y = jnp.dot(h.astype(w3_ref.dtype), w3_ref[...],
                    preferred_element_type=jnp.float32)
        o_ref[...] = (y + b3_ref[...]).astype(o_ref.dtype)


def classifier_fused(x, w1, b1, w2, b2, w3, b3):
    """x: (N, K) bf16; w*: bf16 (128-padded); b*: f32; returns (N, Dpad) f32."""
    N, K = x.shape
    Dh = w1.shape[1]
    Dout = w3.shape[1]
    # K tile ~512 (v7x-friendly; v5e/v6e tolerate larger -- these shapes are
    # tiny anyway).  N tile = whole (small) batch; at real batch sizes this
    # would be a 128/256-row tile.
    kb = 512 if K % 512 == 0 else K
    nb = N
    grid = (N // nb, K // kb)
    return pl.pallas_call(
        _classifier_kernel,
        out_shape=jax.ShapeDtypeStruct((N, Dout), jnp.float32),
        grid=grid,
        in_specs=[
            pl.BlockSpec((nb, kb), lambda n, k: (n, k)),
            pl.BlockSpec((kb, Dh), lambda n, k: (k, 0)),
            pl.BlockSpec((1, Dh), lambda n, k: (0, 0)),
            pl.BlockSpec((Dh, Dh), lambda n, k: (0, 0)),
            pl.BlockSpec((1, Dh), lambda n, k: (0, 0)),
            pl.BlockSpec((Dh, Dout), lambda n, k: (0, 0)),
            pl.BlockSpec((1, Dout), lambda n, k: (0, 0)),
        ],
        out_specs=pl.BlockSpec((nb, Dout), lambda n, k: (n, 0)),
        scratch_shapes=[pltpu.VMEM((nb, Dh), jnp.float32)],
        compiler_params=pltpu.CompilerParams(
            dimension_semantics=("parallel", "arbitrary"),
            vmem_limit_bytes=_VMEM_LIMIT_BYTES),
    )(x, w1, b1, w2, b2, w3, b3)


# --------------------------------------------------------------------------
# Parameter init (matches _initialize_weights: xavier_uniform_, bias = 0)
# --------------------------------------------------------------------------
def _xavier_uniform(key, shape, fan_in, fan_out):
    a = (6.0 / (fan_in + fan_out)) ** 0.5
    return jax.random.uniform(key, shape, jnp.float32, minval=-a, maxval=a)


class VGGPallas:
    """VGG with a configurable `features` stack (ints = 3x3 conv + ReLU,
    'M' = 2x2 maxpool fused into the preceding conv) and the 3-layer
    classifier of the reference module, scaled to small synthetic dims.
    All channel / hidden / class widths are zero-padded to multiples of 128 at
    init time (lane-dense stores, full MXU contraction); padded slots stay
    exactly zero so the real outputs are unchanged."""

    def __init__(self, cfg, in_channels, spatial, hidden, num_class, key):
        self.num_class = num_class

        # Parse cfg into conv blocks, fusing each 'M' into the preceding conv.
        blocks = []                                  # [cout_torch, pool_after]
        for c in cfg:
            if c == 'M':
                if not blocks or blocks[-1][1]:
                    # TODO(synk): a standalone/leading maxpool is never needed
                    # for standard VGG configs and is not implemented.
                    raise NotImplementedError("'M' must directly follow a conv")
                blocks[-1][1] = True
            else:
                blocks.append([int(c), False])

        keys = jax.random.split(key, len(blocks) + 3)
        ki = 0

        # features: tap-major (9, Cin_pad, Cout_pad) bf16 weights, zero-padded
        # so padded channels contribute / receive exact zeros.
        self.conv_layers = []                        # (w bf16, b f32, pool)
        c_in_t, c_in_p, hw = in_channels, in_channels, spatial
        for c_out_t, pool in blocks:
            c_out_p = _round_up(c_out_t, LANE)
            w = _xavier_uniform(keys[ki], (3, 3, c_in_t, c_out_t),
                                c_in_t * 9, c_out_t * 9)
            wp = jnp.zeros((3, 3, c_in_p, c_out_p), jnp.float32)
            wp = wp.at[:, :, :c_in_t, :c_out_t].set(w)
            w9 = wp.reshape(9, c_in_p, c_out_p).astype(jnp.bfloat16)
            b = jnp.zeros((1, c_out_p), jnp.float32)
            self.conv_layers.append((w9, b, pool))
            c_in_t, c_in_p = c_out_t, c_out_p
            ki += 1
            if pool:
                hw //= 2

        # classifier: Dropout, Linear(flat, hidden), ReLU, Dropout,
        #             Linear(hidden, hidden), ReLU, Linear(hidden, num_class).
        dh_pad = _round_up(hidden, LANE)
        dout_pad = _round_up(num_class, LANE)
        flat_t = c_in_t * hw * hw                     # torch flatten length

        # Fold the reference's NCHW flatten ordering AND the channel padding
        # into w1 (one-time): torch row j = c*hw*hw + h*hw + w; our runtime
        # flatten is NHWC over padded channels -> j' = h*hw*Cp + w*Cp + c.
        w1 = _xavier_uniform(keys[ki], (flat_t, hidden), flat_t, hidden); ki += 1
        w1 = w1.reshape(c_in_t, hw, hw, hidden)       # (c, h, w, out)
        w1 = jnp.transpose(w1, (1, 2, 0, 3))          # (h, w, c, out)
        w1p = jnp.zeros((hw, hw, c_in_p, dh_pad), jnp.float32)
        w1p = w1p.at[:, :, :c_in_t, :hidden].set(w1)
        w1p = w1p.reshape(hw * hw * c_in_p, dh_pad)

        w2 = _xavier_uniform(keys[ki], (hidden, hidden), hidden, hidden); ki += 1
        w2p = jnp.zeros((dh_pad, dh_pad), jnp.float32)
        w2p = w2p.at[:hidden, :hidden].set(w2)

        w3 = _xavier_uniform(keys[ki], (hidden, num_class),
                             hidden, num_class); ki += 1
        w3p = jnp.zeros((dh_pad, dout_pad), jnp.float32)
        w3p = w3p.at[:hidden, :num_class].set(w3)

        self.fc_params = (
            w1p.astype(jnp.bfloat16), jnp.zeros((1, dh_pad), jnp.float32),
            w2p.astype(jnp.bfloat16), jnp.zeros((1, dh_pad), jnp.float32),
            w3p.astype(jnp.bfloat16), jnp.zeros((1, dout_pad), jnp.float32),
        )

    def __call__(self, x_nchw):
        N = x_nchw.shape[0]
        # NCHW (PyTorch) -> NHWC bf16, once at the boundary.
        x = jnp.transpose(x_nchw, (0, 2, 3, 1)).astype(jnp.bfloat16)

        # features (conv + ReLU, pool fused into the conv epilogue)
        for w9, b, pool in self.conv_layers:
            x = conv3x3_relu(x, w9, b, pool=pool)

        # NHWC flatten; NCHW ordering + channel padding are folded into w1.
        x = x.reshape(N, -1)

        # classifier (Dropout == identity at inference); lane-padded, sliced.
        y = classifier_fused(x, *self.fc_params)
        return y[:, :self.num_class]


if __name__ == "__main__":
    key = jax.random.PRNGKey(0)
    k_x, k_p = jax.random.split(key)

    # Small synthetic shapes consistent with the module: batch=2, C=4, 16x16.
    x = jax.random.normal(k_x, (2, 4, 16, 16), jnp.float32)   # NCHW like torch

    # Small VGG-style feature config (conv+ReLU blocks with 3 maxpools).
    cfg = [8, 'M', 16, 'M', 32, 32, 'M']
    model = VGGPallas(cfg, in_channels=4, spatial=16, hidden=64,
                      num_class=10, key=k_p)

    out = model(x)
    jax.block_until_ready(out)
    assert out.shape == (2, 10), out.shape
    assert bool(jnp.all(jnp.isfinite(out)))
    print("KERNEL_OK")
</pallas_src>

<mosaic_0001>
module attributes {stable_mosaic.version = 11 : i64} {
  func.func @_conv3x3_relu_kernel(%arg0: i32, %arg1: memref<1x16x16x4xbf16, #tpu.memory_space<vmem>>, %arg2: memref<9x4x128xbf16, #tpu.memory_space<vmem>>, %arg3: memref<1x128xf32, #tpu.memory_space<vmem>>, %arg4: memref<1x8x8x128xbf16, #tpu.memory_space<vmem>>, %arg5: memref<18x18x4xbf16, #tpu.memory_space<vmem>>, %arg6: memref<256x128xf32, #tpu.memory_space<vmem>>) attributes {dimension_semantics = [#tpu.dimension_semantics<parallel>], iteration_bounds = array<i64: 2>, scalar_prefetch = 0 : i64, scratch_operands = 2 : i64, tpu.core_type = #tpu.core_type<tc>, window_params = [{transform_indices = @transform_0, window_bounds = array<i64: 1, 16, 16, 4>}, {pipeline_mode = #tpu.pipeline_mode<synchronous>, transform_indices = @transform_1, window_bounds = array<i64: 9, 4, 128>}, {pipeline_mode = #tpu.pipeline_mode<synchronous>, transform_indices = @transform_2, window_bounds = array<i64: 1, 128>}, {transform_indices = @transform_3, window_bounds = array<i64: 1, 8, 8, 128>}]} {
    %cst = arith.constant 0.000000e+00 : bf16
    %0 = vector.broadcast %cst : bf16 to vector<1x18x4xbf16>
    %cst_0 = arith.constant 0.000000e+00 : bf16
    %1 = vector.broadcast %cst_0 : bf16 to vector<18x1x4xbf16>
    %c0 = arith.constant 0 : index
    %c0_1 = arith.constant 0 : index
    %c0_2 = arith.constant 0 : index
    %2 = vector.load %arg5[%c0, %c0_1, %c0_2] : memref<18x18x4xbf16, #tpu.memory_space<vmem>>, vector<1x18x4xbf16>
    tpu.vector_store %arg5[%c0, %c0_1, %c0_2], %0 {strides = array<i32>} : memref<18x18x4xbf16, #tpu.memory_space<vmem>>, vector<1x18x4xbf16>,
    %c17 = arith.constant 17 : index
    %c0_3 = arith.constant 0 : index
    %c0_4 = arith.constant 0 : index
    %3 = vector.load %arg5[%c17, %c0_3, %c0_4] : memref<18x18x4xbf16, #tpu.memory_space<vmem>>, vector<1x18x4xbf16>
    tpu.vector_store %arg5[%c17, %c0_3, %c0_4], %0 {strides = array<i32>} : memref<18x18x4xbf16, #tpu.memory_space<vmem>>, vector<1x18x4xbf16>,
    %c0_5 = arith.constant 0 : index
    %c0_6 = arith.constant 0 : index
    %c0_7 = arith.constant 0 : index
    %4 = vector.load %arg5[%c0_5, %c0_6, %c0_7] : memref<18x18x4xbf16, #tpu.memory_space<vmem>>, vector<18x1x4xbf16>
    tpu.vector_store %arg5[%c0_5, %c0_6, %c0_7], %1 {strides = array<i32>} : memref<18x18x4xbf16, #tpu.memory_space<vmem>>, vector<18x1x4xbf16>,
    %c0_8 = arith.constant 0 : index
    %c17_9 = arith.constant 17 : index
    %c0_10 = arith.constant 0 : index
    %5 = vector.load %arg5[%c0_8, %c17_9, %c0_10] : memref<18x18x4xbf16, #tpu.memory_space<vmem>>, vector<18x1x4xbf16>
    tpu.vector_store %arg5[%c0_8, %c17_9, %c0_10], %1 {strides = array<i32>} : memref<18x18x4xbf16, #tpu.memory_space<vmem>>, vector<18x1x4xbf16>,
    %c0_11 = arith.constant 0 : index
    %c0_12 = arith.constant 0 : index
    %c0_13 = arith.constant 0 : index
    %c0_14 = arith.constant 0 : index
    %6 = vector.load %arg1[%c0_11, %c0_12, %c0_13, %c0_14] : memref<1x16x16x4xbf16, #tpu.memory_space<vmem>>, vector<1x16x16x4xbf16>
    %7 = vector.shape_cast %6 : vector<1x16x16x4xbf16> to vector<16x16x4xbf16>
    %c1 = arith.constant 1 : index
    %c1_15 = arith.constant 1 : index
    %c0_16 = arith.constant 0 : index
    %8 = vector.load %arg5[%c1, %c1_15, %c0_16] : memref<18x18x4xbf16, #tpu.memory_space<vmem>>, vector<16x16x4xbf16>
    tpu.vector_store %arg5[%c1, %c1_15, %c0_16], %7 {strides = array<i32>} : memref<18x18x4xbf16, #tpu.memory_space<vmem>>, vector<16x16x4xbf16>,
    %c0_17 = arith.constant 0 : index
    %c0_18 = arith.constant 0 : index
    %c0_19 = arith.constant 0 : index
    %9 = vector.load %arg5[%c0_17, %c0_18, %c0_19] : memref<18x18x4xbf16, #tpu.memory_space<vmem>>, vector<16x16x4xbf16>
    %10 = vector.shape_cast %9 : vector<16x16x4xbf16> to vector<256x4xbf16>
    %c0_20 = arith.constant 0 : index
    %c0_21 = arith.constant 0 : index
    %c0_22 = arith.constant 0 : index
    %11 = vector.load %arg2[%c0_20, %c0_21, %c0_22] : memref<9x4x128xbf16, #tpu.memory_space<vmem>>, vector<1x4x128xbf16>
    %12 = vector.shape_cast %11 : vector<1x4x128xbf16> to vector<4x128xbf16>
    %cst_23 = arith.constant dense<0.000000e+00> : vector<256x128xf32>
    %13 = tpu.matmul %10, %12, %cst_23 {dimension_numbers = #tpu.dot_dimension_numbers<[1], [0], [0], [1], [0, 0, 1, 1], [], []>} : vector<256x4xbf16>, vector<4x128xbf16>, vector<256x128xf32> -> vector<256x128xf32>
    %c0_24 = arith.constant 0 : index
    %c0_25 = arith.constant 0 : index
    %14 = vector.load %arg6[%c0_24, %c0_25] : memref<256x128xf32, #tpu.memory_space<vmem>>, vector<256x128xf32>
    tpu.vector_store %arg6[%c0_24, %c0_25], %13 {strides = array<i32>} : memref<256x128xf32, #tpu.memory_space<vmem>>, vector<256x128xf32>,
    %c0_26 = arith.constant 0 : index
    %c1_27 = arith.constant 1 : index
    %c0_28 = arith.constant 0 : index
    %15 = vector.load %arg5[%c0_26, %c1_27, %c0_28] : memref<18x18x4xbf16, #tpu.memory_space<vmem>>, vector<16x16x4xbf16>
    %16 = vector.shape_cast %15 : vector<16x16x4xbf16> to vector<256x4xbf16>
    %c1_29 = arith.constant 1 : index
    %c0_30 = arith.constant 0 : index
    %c0_31 = arith.constant 0 : index
    %17 = vector.load %arg2[%c1_29, %c0_30, %c0_31] : memref<9x4x128xbf16, #tpu.memory_space<vmem>>, vector<1x4x128xbf16>
    %18 = vector.shape_cast %17 : vector<1x4x128xbf16> to vector<4x128xbf16>
    %cst_32 = arith.constant dense<0.000000e+00> : vector<256x128xf32>
    %19 = tpu.matmul %16, %18, %cst_32 {dimension_numbers = #tpu.dot_dimension_numbers<[1], [0], [0], [1], [0, 0, 1, 1], [], []>} : vector<256x4xbf16>, vector<4x128xbf16>, vector<256x128xf32> -> vector<256x128xf32>
    %c0_33 = arith.constant 0 : index
    %c0_34 = arith.constant 0 : index
    %20 = vector.load %arg6[%c0_33, %c0_34] : memref<256x128xf32, #tpu.memory_space<vmem>>, vector<256x128xf32>
    %21 = arith.addf %20, %19 : vector<256x128xf32>
    %c0_35 = arith.constant 0 : index
    %c0_36 = arith.constant 0 : index
    %22 = vector.load %arg6[%c0_35, %c0_36] : memref<256x128xf32, #tpu.memory_space<vmem>>, vector<256x128xf32>
    tpu.vector_store %arg6[%c0_35, %c0_36], %21 {strides = array<i32>} : memref<256x128xf32, #tpu.memory_space<vmem>>, vector<256x128xf32>,
    %c0_37 = arith.constant 0 : index
    %c2 = arith.constant 2 : index
    %c0_38 = arith.constant 0 : index
    %23 = vector.load %arg5[%c0_37, %c2, %c0_38] : memref<18x18x4xbf16, #tpu.memory_space<vmem>>, vector<16x16x4xbf16>
    %24 = vector.shape_cast %23 : vector<16x16x4xbf16> to vector<256x4xbf16>
    %c2_39 = arith.constant 2 : index
    %c0_40 = arith.constant 0 : index
    %c0_41 = arith.constant 0 : index
    %25 = vector.load %arg2[%c2_39, %c0_40, %c0_41] : memref<9x4x128xbf16, #tpu.memory_space<vmem>>, vector<1x4x128xbf16>
    %26 = vector.shape_cast %25 : vector<1x4x128xbf16> to vector<4x128xbf16>
    %cst_42 = arith.constant dense<0.000000e+00> : vector<256x128xf32>
    %27 = tpu.matmul %24, %26, %cst_42 {dimension_numbers = #tpu.dot_dimension_numbers<[1], [0], [0], [1], [0, 0, 1, 1], [], []>} : vector<256x4xbf16>, vector<4x128xbf16>, vector<256x128xf32> -> vector<256x128xf32>
    %c0_43 = arith.constant 0 : index
    %c0_44 = arith.constant 0 : index
    %28 = vector.load %arg6[%c0_43, %c0_44] : memref<256x128xf32, #tpu.memory_space<vmem>>, vector<256x128xf32>
    %29 = arith.addf %28, %27 : vector<256x128xf32>
    %c0_45 = arith.constant 0 : index
    %c0_46 = arith.constant 0 : index
    %30 = vector.load %arg6[%c0_45, %c0_46] : memref<256x128xf32, #tpu.memory_space<vmem>>, vector<256x128xf32>
    tpu.vector_store %arg6[%c0_45, %c0_46], %29 {strides = array<i32>} : memref<256x128xf32, #tpu.memory_space<vmem>>, vector<256x128xf32>,
    %c1_47 = arith.constant 1 : index
    %c0_48 = arith.constant 0 : index
    %c0_49 = arith.constant 0 : index
    %31 = vector.load %arg5[%c1_47, %c0_48, %c0_49] : memref<18x18x4xbf16, #tpu.memory_space<vmem>>, vector<16x16x4xbf16>
    %32 = vector.shape_cast %31 : vector<16x16x4xbf16> to vector<256x4xbf16>
    %c3 = arith.constant 3 : index
    %c0_50 = arith.constant 0 : index
    %c0_51 = arith.constant 0 : index
    %33 = vector.load %arg2[%c3, %c0_50, %c0_51] : memref<9x4x128xbf16, #tpu.memory_space<vmem>>, vector<1x4x128xbf16>
    %34 = vector.shape_cast %33 : vector<1x4x128xbf16> to vector<4x128xbf16>
    %cst_52 = arith.constant dense<0.000000e+00> : vector<256x128xf32>
    %35 = tpu.matmul %32, %34, %cst_52 {dimension_numbers = #tpu.dot_dimension_numbers<[1], [0], [0], [1], [0, 0, 1, 1], [], []>} : vector<256x4xbf16>, vector<4x128xbf16>, vector<256x128xf32> -> vector<256x128xf32>
    %c0_53 = arith.constant 0 : index
    %c0_54 = arith.constant 0 : index
    %36 = vector.load %arg6[%c0_53, %c0_54] : memref<256x128xf32, #tpu.memory_space<vmem>>, vector<256x128xf32>
    %37 = arith.addf %36, %35 : vector<256x128xf32>
    %c0_55 = arith.constant 0 : index
    %c0_56 = arith.constant 0 : index
    %38 = vector.load %arg6[%c0_55, %c0_56] : memref<256x128xf32, #tpu.memory_space<vmem>>, vector<256x128xf32>
    tpu.vector_store %arg6[%c0_55, %c0_56], %37 {strides = array<i32>} : memref<256x128xf32, #tpu.memory_space<vmem>>, vector<256x128xf32>,
    %c1_57 = arith.constant 1 : index
    %c1_58 = arith.constant 1 : index
    %c0_59 = arith.constant 0 : index
    %39 = vector.load %arg5[%c1_57, %c1_58, %c0_59] : memref<18x18x4xbf16, #tpu.memory_space<vmem>>, vector<16x16x4xbf16>
    %40 = vector.shape_cast %39 : vector<16x16x4xbf16> to vector<256x4xbf16>
    %c4 = arith.constant 4 : index
    %c0_60 = arith.constant 0 : index
    %c0_61 = arith.constant 0 : index
    %41 = vector.load %arg2[%c4, %c0_60, %c0_61] : memref<9x4x128xbf16, #tpu.memory_space<vmem>>, vector<1x4x128xbf16>
    %42 = vector.shape_cast %41 : vector<1x4x128xbf16> to vector<4x128xbf16>
    %cst_62 = arith.constant dense<0.000000e+00> : vector<256x128xf32>
    %43 = tpu.matmul %40, %42, %cst_62 {dimension_numbers = #tpu.dot_dimension_numbers<[1], [0], [0], [1], [0, 0, 1, 1], [], []>} : vector<256x4xbf16>, vector<4x128xbf16>, vector<256x128xf32> -> vector<256x128xf32>
    %c0_63 = arith.constant 0 : index
    %c0_64 = arith.constant 0 : index
    %44 = vector.load %arg6[%c0_63, %c0_64] : memref<256x128xf32, #tpu.memory_space<vmem>>, vector<256x128xf32>
    %45 = arith.addf %44, %43 : vector<256x128xf32>
    %c0_65 = arith.constant 0 : index
    %c0_66 = arith.constant 0 : index
    %46 = vector.load %arg6[%c0_65, %c0_66] : memref<256x128xf32, #tpu.memory_space<vmem>>, vector<256x128xf32>
    tpu.vector_store %arg6[%c0_65, %c0_66], %45 {strides = array<i32>} : memref<256x128xf32, #tpu.memory_space<vmem>>, vector<256x128xf32>,
    %c1_67 = arith.constant 1 : index
    %c2_68 = arith.constant 2 : index
    %c0_69 = arith.constant 0 : index
    %47 = vector.load %arg5[%c1_67, %c2_68, %c0_69] : memref<18x18x4xbf16, #tpu.memory_space<vmem>>, vector<16x16x4xbf16>
    %48 = vector.shape_cast %47 : vector<16x16x4xbf16> to vector<256x4xbf16>
    %c5 = arith.constant 5 : index
    %c0_70 = arith.constant 0 : index
    %c0_71 = arith.constant 0 : index
    %49 = vector.load %arg2[%c5, %c0_70, %c0_71] : memref<9x4x128xbf16, #tpu.memory_space<vmem>>, vector<1x4x128xbf16>
    %50 = vector.shape_cast %49 : vector<1x4x128xbf16> to vector<4x128xbf16>
    %cst_72 = arith.constant dense<0.000000e+00> : vector<256x128xf32>
    %51 = tpu.matmul %48, %50, %cst_72 {dimension_numbers = #tpu.dot_dimension_numbers<[1], [0], [0], [1], [0, 0, 1, 1], [], []>} : vector<256x4xbf16>, vector<4x128xbf16>, vector<256x128xf32> -> vector<256x128xf32>
    %c0_73 = arith.constant 0 : index
    %c0_74 = arith.constant 0 : index
    %52 = vector.load %arg6[%c0_73, %c0_74] : memref<256x128xf32, #tpu.memory_space<vmem>>, vector<256x128xf32>
    %53 = arith.addf %52, %51 : vector<256x128xf32>
    %c0_75 = arith.constant 0 : index
    %c0_76 = arith.constant 0 : index
    %54 = vector.load %arg6[%c0_75, %c0_76] : memref<256x128xf32, #tpu.memory_space<vmem>>, vector<256x128xf32>
    tpu.vector_store %arg6[%c0_75, %c0_76], %53 {strides = array<i32>} : memref<256x128xf32, #tpu.memory_space<vmem>>, vector<256x128xf32>,
    %c2_77 = arith.constant 2 : index
    %c0_78 = arith.constant 0 : index
    %c0_79 = arith.constant 0 : index
    %55 = vector.load %arg5[%c2_77, %c0_78, %c0_79] : memref<18x18x4xbf16, #tpu.memory_space<vmem>>, vector<16x16x4xbf16>
    %56 = vector.shape_cast %55 : vector<16x16x4xbf16> to vector<256x4xbf16>
    %c6 = arith.constant 6 : index
    %c0_80 = arith.constant 0 : index
    %c0_81 = arith.constant 0 : index
    %57 = vector.load %arg2[%c6, %c0_80, %c0_81] : memref<9x4x128xbf16, #tpu.memory_space<vmem>>, vector<1x4x128xbf16>
    %58 = vector.shape_cast %57 : vector<1x4x128xbf16> to vector<4x128xbf16>
    %cst_82 = arith.constant dense<0.000000e+00> : vector<256x128xf32>
    %59 = tpu.matmul %56, %58, %cst_82 {dimension_numbers = #tpu.dot_dimension_numbers<[1], [0], [0], [1], [0, 0, 1, 1], [], []>} : vector<256x4xbf16>, vector<4x128xbf16>, vector<256x128xf32> -> vector<256x128xf32>
    %c0_83 = arith.constant 0 : index
    %c0_84 = arith.constant 0 : index
    %60 = vector.load %arg6[%c0_83, %c0_84] : memref<256x128xf32, #tpu.memory_space<vmem>>, vector<256x128xf32>
    %61 = arith.addf %60, %59 : vector<256x128xf32>
    %c0_85 = arith.constant 0 : index
    %c0_86 = arith.constant 0 : index
    %62 = vector.load %arg6[%c0_85, %c0_86] : memref<256x128xf32, #tpu.memory_space<vmem>>, vector<256x128xf32>
    tpu.vector_store %arg6[%c0_85, %c0_86], %61 {strides = array<i32>} : memref<256x128xf32, #tpu.memory_space<vmem>>, vector<256x128xf32>,
    %c2_87 = arith.constant 2 : index
    %c1_88 = arith.constant 1 : index
    %c0_89 = arith.constant 0 : index
    %63 = vector.load %arg5[%c2_87, %c1_88, %c0_89] : memref<18x18x4xbf16, #tpu.memory_space<vmem>>, vector<16x16x4xbf16>
    %64 = vector.shape_cast %63 : vector<16x16x4xbf16> to vector<256x4xbf16>
    %c7 = arith.constant 7 : index
    %c0_90 = arith.constant 0 : index
    %c0_91 = arith.constant 0 : index
    %65 = vector.load %arg2[%c7, %c0_90, %c0_91] : memref<9x4x128xbf16, #tpu.memory_space<vmem>>, vector<1x4x128xbf16>
    %66 = vector.shape_cast %65 : vector<1x4x128xbf16> to vector<4x128xbf16>
    %cst_92 = arith.constant dense<0.000000e+00> : vector<256x128xf32>
    %67 = tpu.matmul %64, %66, %cst_92 {dimension_numbers = #tpu.dot_dimension_numbers<[1], [0], [0], [1], [0, 0, 1, 1], [], []>} : vector<256x4xbf16>, vector<4x128xbf16>, vector<256x128xf32> -> vector<256x128xf32>
    %c0_93 = arith.constant 0 : index
    %c0_94 = arith.constant 0 : index
    %68 = vector.load %arg6[%c0_93, %c0_94] : memref<256x128xf32, #tpu.memory_space<vmem>>, vector<256x128xf32>
    %69 = arith.addf %68, %67 : vector<256x128xf32>
    %c0_95 = arith.constant 0 : index
    %c0_96 = arith.constant 0 : index
    %70 = vector.load %arg6[%c0_95, %c0_96] : memref<256x128xf32, #tpu.memory_space<vmem>>, vector<256x128xf32>
    tpu.vector_store %arg6[%c0_95, %c0_96], %69 {strides = array<i32>} : memref<256x128xf32, #tpu.memory_space<vmem>>, vector<256x128xf32>,
    %c2_97 = arith.constant 2 : index
    %c2_98 = arith.constant 2 : index
    %c0_99 = arith.constant 0 : index
    %71 = vector.load %arg5[%c2_97, %c2_98, %c0_99] : memref<18x18x4xbf16, #tpu.memory_space<vmem>>, vector<16x16x4xbf16>
    %72 = vector.shape_cast %71 : vector<16x16x4xbf16> to vector<256x4xbf16>
    %c8 = arith.constant 8 : index
    %c0_100 = arith.constant 0 : index
    %c0_101 = arith.constant 0 : index
    %73 = vector.load %arg2[%c8, %c0_100, %c0_101] : memref<9x4x128xbf16, #tpu.memory_space<vmem>>, vector<1x4x128xbf16>
    %74 = vector.shape_cast %73 : vector<1x4x128xbf16> to vector<4x128xbf16>
    %cst_102 = arith.constant dense<0.000000e+00> : vector<256x128xf32>
    %75 = tpu.matmul %72, %74, %cst_102 {dimension_numbers = #tpu.dot_dimension_numbers<[1], [0], [0], [1], [0, 0, 1, 1], [], []>} : vector<256x4xbf16>, vector<4x128xbf16>, vector<256x128xf32> -> vector<256x128xf32>
    %c0_103 = arith.constant 0 : index
    %c0_104 = arith.constant 0 : index
    %76 = vector.load %arg6[%c0_103, %c0_104] : memref<256x128xf32, #tpu.memory_space<vmem>>, vector<256x128xf32>
    %77 = arith.addf %76, %75 : vector<256x128xf32>
    %c0_105 = arith.constant 0 : index
    %c0_106 = arith.constant 0 : index
    %78 = vector.load %arg6[%c0_105, %c0_106] : memref<256x128xf32, #tpu.memory_space<vmem>>, vector<256x128xf32>
    tpu.vector_store %arg6[%c0_105, %c0_106], %77 {strides = array<i32>} : memref<256x128xf32, #tpu.memory_space<vmem>>, vector<256x128xf32>,
    %c0_107 = arith.constant 0 : index
    %c0_108 = arith.constant 0 : index
    %79 = vector.load %arg6[%c0_107, %c0_108] : memref<256x128xf32, #tpu.memory_space<vmem>>, vector<256x128xf32>
    %c0_109 = arith.constant 0 : index
    %c0_110 = arith.constant 0 : index
    %80 = vector.load %arg3[%c0_109, %c0_110] : memref<1x128xf32, #tpu.memory_space<vmem>>, vector<1x128xf32>
    %81 = vector.broadcast %80 : vector<1x128xf32> to vector<256x128xf32>
    %82 = arith.addf %79, %81 : vector<256x128xf32>
    %cst_111 = arith.constant 0.000000e+00 : f32
    %83 = vector.broadcast %cst_111 : f32 to vector<256x128xf32>
    %84 = arith.maximumf %82, %83 : vector<256x128xf32>
    %85 = vector.shape_cast %84 : vector<256x128xf32> to vector<16x8x2x128xf32>
    %86 = vector.extract_strided_slice %85 {offsets = [0, 0, 0, 0], sizes = [16, 8, 1, 128], strides = [1, 1, 1, 1]} : vector<16x8x2x128xf32> to vector<16x8x1x128xf32>
    %87 = vector.shape_cast %86 : vector<16x8x1x128xf32> to vector<16x8x128xf32>
    %88 = vector.extract_strided_slice %85 {offsets = [0, 0, 1, 0], sizes = [16, 8, 1, 128], strides = [1, 1, 1, 1]} : vector<16x8x2x128xf32> to vector<16x8x1x128xf32>
    %89 = vector.shape_cast %88 : vector<16x8x1x128xf32> to vector<16x8x128xf32>
    %90 = arith.maximumf %87, %89 : vector<16x8x128xf32>
    %91 = vector.shape_cast %90 : vector<16x8x128xf32> to vector<8x2x8x128xf32>
    %92 = vector.extract_strided_slice %91 {offsets = [0, 0, 0, 0], sizes = [8, 1, 8, 128], strides = [1, 1, 1, 1]} : vector<8x2x8x128xf32> to vector<8x1x8x128xf32>
    %93 = vector.shape_cast %92 : vector<8x1x8x128xf32> to vector<8x8x128xf32>
    %94 = vector.extract_strided_slice %91 {offsets = [0, 1, 0, 0], sizes = [8, 1, 8, 128], strides = [1, 1, 1, 1]} : vector<8x2x8x128xf32> to vector<8x1x8x128xf32>
    %95 = vector.shape_cast %94 : vector<8x1x8x128xf32> to vector<8x8x128xf32>
    %96 = arith.maximumf %93, %95 : vector<8x8x128xf32>
    %97 = vector.shape_cast %96 : vector<8x8x128xf32> to vector<1x8x8x128xf32>
    %98 = arith.truncf %97 : vector<1x8x8x128xf32> to vector<1x8x8x128xbf16>
    %c0_112 = arith.constant 0 : index
    %c0_113 = arith.constant 0 : index
    %c0_114 = arith.constant 0 : index
    %c0_115 = arith.constant 0 : index
    %99 = vector.load %arg4[%c0_112, %c0_113, %c0_114, %c0_115] : memref<1x8x8x128xbf16, #tpu.memory_space<vmem>>, vector<1x8x8x128xbf16>
    tpu.vector_store %arg4[%c0_112, %c0_113, %c0_114, %c0_115], %98 {strides = array<i32>} : memref<1x8x8x128xbf16, #tpu.memory_space<vmem>>, vector<1x8x8x128xbf16>,
    return
  }
  func.func @transform_0(%arg0: i32) -> (i32, i32, i32, i32) {
    %c0_i32 = arith.constant 0 : i32
    %c0_i32_0 = arith.constant 0 : i32
    %c0_i32_1 = arith.constant 0 : i32
    %c0_i32_2 = arith.constant 0 : i32
    return %arg0, %c0_i32, %c0_i32_0, %c0_i32_1 : i32, i32, i32, i32
  }
  func.func @transform_1(%arg0: i32) -> (i32, i32, i32) {
    %c0_i32 = arith.constant 0 : i32
    %c0_i32_0 = arith.constant 0 : i32
    %c0_i32_1 = arith.constant 0 : i32
    %c0_i32_2 = arith.constant 0 : i32
    return %c0_i32, %c0_i32_0, %c0_i32_1 : i32, i32, i32
  }
  func.func @transform_2(%arg0: i32) -> (i32, i32) {
    %c0_i32 = arith.constant 0 : i32
    %c0_i32_0 = arith.constant 0 : i32
    %c0_i32_1 = arith.constant 0 : i32
    return %c0_i32, %c0_i32_0 : i32, i32
  }
  func.func @transform_3(%arg0: i32) -> (i32, i32, i32, i32) {
    %c0_i32 = arith.constant 0 : i32
    %c0_i32_0 = arith.constant 0 : i32
    %c0_i32_1 = arith.constant 0 : i32
    %c0_i32_2 = arith.constant 0 : i32
    return %arg0, %c0_i32, %c0_i32_0, %c0_i32_1 : i32, i32, i32, i32
  }
}

</mosaic_0001>

<llo_original>
// kernel: tpu_custom_call.1
$region0: #{tpu_custom_call.1}
  #allocation0 [shape = 'u32[]', space=smem, size = 0x4, offset = 0x4, fixed_abs, tag = 'smem constant byte address 0x4 - core index']
  #allocation1 [shape = 'u32[144,128]{1,0:T(1,128)}', space=vmem, size = 0x12000, scoped, tag = 'internal scratch']
  #allocation2 [shape = 'bf16[18,18,4]{2,1,0:T(8,128)(2,1)}', space=vmem, size = 0x1b000, scoped, tag = 'scratch operand']
  #allocation3 [shape = 'f32[256,128]{1,0:T(8,128)}', space=vmem, size = 0x20000, scoped, tag = 'scratch operand']
  %s0 = inlined_call_operand.vmem [shape: bf16[2,16,16,4], index: 0, kind: input, shape index: {}]
  %s1 = inlined_call_operand.vmem [shape: bf16[9,4,128], index: 1, kind: input, shape index: {}]
  %s2 = inlined_call_operand.vmem [shape: f32[1,128], index: 2, kind: input, shape index: {}]
  %s3 = inlined_call_operand.hbm [shape: bf16[2,8,8,128], index: 3, kind: output, shape index: {}]
  %s4 = sld [smem:[#allocation0]]
  $region45: #{tpu_custom_call.1} parent=0
    _
  %s6 = ssub.s32 1, %s4
  %s7 = scalar_select 0, %s6, %s4
  $region1: #{tpu_custom_call.1} parent=0
    #allocation4 [shape = 'u8[32768]{0}', space=vmem, size = 0x8000, scoped, tag = 'output window, operand 0']
    #allocation5 [shape = 's32[2]{0}', space=sflag, size = 0x8, scoped, tag = 'scoped memory for tpu_custom_call.1']
    %8 = vsyncpa [#allocation5], 0
    %s9 = scalar_lea.sflag [#allocation5], 1
    %10 = vsyncpa %s9, 0
    loop: start=0, step=1, limit=4
    $region2: #{tpu_custom_call.1} parent=1 // loop_pre_header
      _
    $region3: #{tpu_custom_call.1} parent=1 // loop_header
      %s12 = sphi 0, %s16
      %p13 = scmp.ge.s32.totalorder %s12, 4
      %s22 = sphi 0, %s24
      %s25 = sphi 0, %s22
      %s26 = sphi 0, %s25
      %s42 = sphi 0, %s26
      %s46 = sphi 0, %s46
      %s48 = sphi 0, %s46
      %s49 = sphi 0, %s48
      %s63 = sphi 0, %s49
      %s67 = sphi 0, %s67
      %s69 = sphi 0, %s67
      %s70 = sphi 0, %s69
      %s84 = sphi 0, %s70
      %s90 = sphi 0, %s92
      %s93 = sphi 0, %s90
      %s94 = sphi 0, %s93
      %s110 = sphi 0, %s94
    $region4: #{tpu_custom_call.1} parent=1 // loop_header_branch
      %15 = sbr.rel (%p13) target = $region8
    $region5: #{tpu_custom_call.1} parent=1 // loop_body
      %s17 = ssub.s32 %s12, 1
      %s18 = ssub.s32 %s12, 2
      %s19 = sadd.s32 %s12, 1
      %s20 = ssub.s32 %s12, %s19
      %p21 = scmp.eq.s32.totalorder %s20, 0
      %s23 = sadd.s32 %s22, 1
      %s24 = scalar_select %p21, %s22, %s23
      %p27 = pneg %p21
      %p28 = scmp.eq.s32.totalorder %s12, 1
      %p29 = por %p27, %p28
      %p30 = scmp.ne.s32.totalorder %s22, %s25
      %p31 = scmp.eq.s32.totalorder %s12, 0
      %p32 = por %p30, %p31
      %p33 = scmp.ne.s32.totalorder %s22, %s25
      %p34 = scmp.eq.s32.totalorder %s17, 1
      %p35 = por %p33, %p34
      %p36 = scmp.ne.s32.totalorder %s25, %s26
      %p37 = scmp.eq.s32.totalorder %s17, 0
      %p38 = por %p36, %p37
      %p39 = scmp.ne.s32.totalorder %s25, %s26
      %p40 = scmp.eq.s32.totalorder %s18, 1
      %p41 = por %p39, %p40
      %p43 = scmp.ne.s32.totalorder %s26, %s42
      %p44 = scmp.eq.s32.totalorder %s18, 0
      %p45 = por %p43, %p44
      %s47 = sadd.s32 %s46, 1
      %p50 = scmp.eq.s32.totalorder %s12, 1
      %p51 = scmp.ne.s32.totalorder %s46, %s48
      %p52 = scmp.eq.s32.totalorder %s12, 0
      %p53 = por %p51, %p52
      %p54 = scmp.ne.s32.totalorder %s46, %s48
      %p55 = scmp.eq.s32.totalorder %s17, 1
      %p56 = por %p54, %p55
      %p57 = scmp.ne.s32.totalorder %s48, %s49
      %p58 = scmp.eq.s32.totalorder %s17, 0
      %p59 = por %p57, %p58
      %p60 = scmp.ne.s32.totalorder %s48, %s49
      %p61 = scmp.eq.s32.totalorder %s18, 1
      %p62 = por %p60, %p61
      %p64 = scmp.ne.s32.totalorder %s49, %s63
      %p65 = scmp.eq.s32.totalorder %s18, 0
      %p66 = por %p64, %p65
      %s68 = sadd.s32 %s67, 1
      %p71 = scmp.eq.s32.totalorder %s12, 1
      %p72 = scmp.ne.s32.totalorder %s67, %s69
      %p73 = scmp.eq.s32.totalorder %s12, 0
      %p74 = por %p72, %p73
      %p75 = scmp.ne.s32.totalorder %s67, %s69
      %p76 = scmp.eq.s32.totalorder %s17, 1
      %p77 = por %p75, %p76
      %p78 = scmp.ne.s32.totalorder %s69, %s70
      %p79 = scmp.eq.s32.totalorder %s17, 0
      %p80 = por %p78, %p79
      %p81 = scmp.ne.s32.totalorder %s69, %s70
      %p82 = scmp.eq.s32.totalorder %s18, 1
      %p83 = por %p81, %p82
      %p85 = scmp.ne.s32.totalorder %s70, %s84
      %p86 = scmp.eq.s32.totalorder %s18, 0
      %p87 = por %p85, %p86
      %s88 = ssub.s32 %s12, %s19
      %p89 = scmp.eq.s32.totalorder %s88, 0
      %s91 = sadd.s32 %s90, 1
      %s92 = scalar_select %p89, %s90, %s91
      %p95 = pneg %p89
      %p96 = scmp.eq.s32.totalorder %s12, 1
      %p97 = por %p95, %p96
      %p98 = scmp.ne.s32.totalorder %s90, %s93
      %p99 = scmp.eq.s32.totalorder %s12, 0
      %p100 = por %p98, %p99
      %p101 = scmp.ne.s32.totalorder %s90, %s93
      %p102 = scmp.eq.s32.totalorder %s17, 1
      %p103 = por %p101, %p102
      %p104 = scmp.ne.s32.totalorder %s93, %s94
      %p105 = scmp.eq.s32.totalorder %s17, 0
      %p106 = por %p104, %p105
      %p107 = scmp.ne.s32.totalorder %s93, %s94
      %p108 = scmp.eq.s32.totalorder %s18, 1
      %p109 = por %p107, %p108
      %p111 = scmp.ne.s32.totalorder %s94, %s110
      %p112 = scmp.eq.s32.totalorder %s18, 0
      %p113 = por %p111, %p112
      %p114 = scmp.le.s32.totalorder 1, %s12
      %p115 = scmp.lt.s32.totalorder %s12, 3
      %p116 = pnand %p114, %p115
      %p117 = pneg %p116
      // Predicated region
      $region9: #{tpu_custom_call.1} parent=5 // pred_check
        _
      $region10: #{tpu_custom_call.1} parent=5 // pred_check_branch
        %119 = sbr.rel (%p116) target = $region12
      $region11: #{tpu_custom_call.1} parent=5 // pred_region
        %s120 = ssub.s32 %s12, 1
        // Predicated region
        $region13: #{tpu_custom_call.1} parent=11 // pred_check
          %p121 = pneg %p59
        $region14: #{tpu_custom_call.1} parent=11 // pred_check_branch
          %123 = sbr.rel (%p121) target = $region16
        $region15: #{tpu_custom_call.1} parent=11 // pred_region
          _
        $region16: #{tpu_custom_call.1} parent=11 // pred_fallthru
          _
        // Predicated region
        $region17: #{tpu_custom_call.1} parent=11 // pred_check
          %p124 = pneg %p80
        $region18: #{tpu_custom_call.1} parent=11 // pred_check_branch
          %126 = sbr.rel (%p124) target = $region20
        $region19: #{tpu_custom_call.1} parent=11 // pred_region
          _
        $region20: #{tpu_custom_call.1} parent=11 // pred_fallthru
          _
      $region12: #{tpu_custom_call.1} parent=5 // pred_fallthru
        _
      %p127 = scmp.lt.s32.totalorder %s12, 2
      // Predicated region
      $region21: #{tpu_custom_call.1} parent=5 // pred_check
        %p128 = pneg %p127
      $region22: #{tpu_custom_call.1} parent=5 // pred_check_branch
        %130 = sbr.rel (%p128) target = $region24
      $region23: #{tpu_custom_call.1} parent=5 // pred_region
        // Predicated region
        $region25: #{tpu_custom_call.1} parent=23 // pred_check
          %p131 = pneg %p32
        $region26: #{tpu_custom_call.1} parent=23 // pred_check_branch
          %133 = sbr.rel (%p131) target = $region28
        $region27: #{tpu_custom_call.1} parent=23 // pred_region
          %p134 = scmp.lt.s32.totalorder %s12, 1
          %s135 = scalar_select %p134, %s12, 1
          %s136 = smul.addr %s135, 32
          %s137 = smul.addr %s136, 4
          %s138 = scalar_lea.vmem %s0, %s137
        $region28: #{tpu_custom_call.1} parent=23 // pred_fallthru
          _
      $region24: #{tpu_custom_call.1} parent=5 // pred_fallthru
        _
      %p139 = scmp.le.s32.totalorder 1, %s12
      %p140 = scmp.lt.s32.totalorder %s12, 3
      %p141 = pnand %p139, %p140
      %p142 = pneg %p141
      // Predicated region
      $region29: #{tpu_custom_call.1} parent=5 // pred_check
        _
      $region30: #{tpu_custom_call.1} parent=5 // pred_check_branch
        %144 = sbr.rel (%p141) target = $region32
      $region31: #{tpu_custom_call.1} parent=5 // pred_region
        %s145 = ssub.s32 %s12, 1
        %p146 = scmp.lt.s32.totalorder %s17, 1
        %s147 = scalar_select %p146, %s17, 1
        %s148 = smul.addr %s147, 32
        %s149 = smul.addr %s148, 4
        %s150 = scalar_lea.vmem %s0, %s149
        %p151 = pneg %p38
        %p152 = pneg %p35
        %p153 = pneg %p59
        %p154 = pneg %p56
        %p155 = pneg %p80
        %p156 = pneg %p77
        %p157 = pneg %p106
        %p158 = pneg %p103
        %s159 = sand.u32 %s93, 1
        %s160 = scalar_lea.sflag [#allocation5], %s159
        %s161 = sand.u32 %s93, 1
        %s162 = smul.addr %s161, 32
        %s163 = scalar_lea.vmem [#allocation4], %s162
        %p164 = scmp.lt.s32.totalorder %s17, 1
        %s165 = scalar_select %p164, %s17, 1
        %s166 = smul.addr %s165, 32
        %s167 = smul.addr %s166, 4
        %s168 = scalar_lea.vmem %s0, %s167
        %vm170 = vcmask 27648
        %171 = vst.msk [vmem:[#allocation2] sm:$0xf] %vm170, 0
        %172 = vst.msk [vmem:[#allocation2 + $0x4] sm:$0xf] %vm170, 0
        %vm173 = vcmask 24576
        %174 = vst.msk [vmem:[#allocation2 + $0x8] sm:$0x1] %vm173, 0
        %s175 = scalar_lea.vmem [#allocation2], 204
        %176 = vst.msk [vmem:[%s175] sm:$0xf] %vm170, 0
        %177 = vst.msk [vmem:[%s175 + $0x4] sm:$0xf] %vm170, 0
        %178 = vst.msk [vmem:[%s175 + $0x8] sm:$0x1] %vm173, 0
        %vm179 = vcmask 24576
        %vm180 = vsmask.f32 256
        %vm181 = vmand %vm179, %vm180
        %v182 = vld [vmem:[#allocation2] sm:$0x1]
        %v183 = vsel %vm181, 0, %v182
        %184 = vst [vmem:[#allocation2] sm:$0x1] %v183
        %v185 = vld [vmem:[#allocation2 + $0xc] sm:$0x1]
        %v186 = vsel %vm181, 0, %v185
        %187 = vst [vmem:[#allocation2 + $0xc] sm:$0x1] %v186
        %v188 = vld [vmem:[#allocation2 + $0x18] sm:$0x1]
        %v189 = vsel %vm181, 0, %v188
        %190 = vst [vmem:[#allocation2 + $0x18] sm:$0x1] %v189
        %v191 = vld [vmem:[#allocation2 + $0x24] sm:$0x1]
        %v192 = vsel %vm181, 0, %v191
        %193 = vst [vmem:[#allocation2 + $0x24] sm:$0x1] %v192
        %v194 = vld [vmem:[#allocation2 + $0x30] sm:$0x1]
        %v195 = vsel %vm181, 0, %v194
        %196 = vst [vmem:[#allocation2 + $0x30] sm:$0x1] %v195
        %v197 = vld [vmem:[#allocation2 + $0x3c] sm:$0x1]
        %v198 = vsel %vm181, 0, %v197
        %199 = vst [vmem:[#allocation2 + $0x3c] sm:$0x1] %v198
        %v200 = vld [vmem:[#allocation2 + $0x48] sm:$0x1]
        %v201 = vsel %vm181, 0, %v200
        %202 = vst [vmem:[#allocation2 + $0x48] sm:$0x1] %v201
        %v203 = vld [vmem:[#allocation2 + $0x54] sm:$0x1]
        %v204 = vsel %vm181, 0, %v203
        %205 = vst [vmem:[#allocation2 + $0x54] sm:$0x1] %v204
        %v206 = vld [vmem:[#allocation2 + $0x60] sm:$0x1]
        %v207 = vsel %vm181, 0, %v206
        %208 = vst [vmem:[#allocation2 + $0x60] sm:$0x1] %v207
        %v209 = vld [vmem:[#allocation2 + $0x6c] sm:$0x1]
        %v210 = vsel %vm181, 0, %v209
        %211 = vst [vmem:[#allocation2 + $0x6c] sm:$0x1] %v210
        %v212 = vld [vmem:[#allocation2 + $0x78] sm:$0x1]
        %v213 = vsel %vm181, 0, %v212
        %214 = vst [vmem:[#allocation2 + $0x78] sm:$0x1] %v213
        %v215 = vld [vmem:[#allocation2 + $0x84] sm:$0x1]
        %v216 = vsel %vm181, 0, %v215
        %217 = vst [vmem:[#allocation2 + $0x84] sm:$0x1] %v216
        %v218 = vld [vmem:[#allocation2 + $0x90] sm:$0x1]
        %v219 = vsel %vm181, 0, %v218
        %220 = vst [vmem:[#allocation2 + $0x90] sm:$0x1] %v219
        %v221 = vld [vmem:[#allocation2 + $0x9c] sm:$0x1]
        %v222 = vsel %vm181, 0, %v221
        %223 = vst [vmem:[#allocation2 + $0x9c] sm:$0x1] %v222
        %v224 = vld [vmem:[#allocation2 + $0xa8] sm:$0x1]
        %v225 = vsel %vm181, 0, %v224
        %226 = vst [vmem:[#allocation2 + $0xa8] sm:$0x1] %v225
        %v227 = vld [vmem:[#allocation2 + $0xb4] sm:$0x1]
        %v228 = vsel %vm181, 0, %v227
        %229 = vst [vmem:[#allocation2 + $0xb4] sm:$0x1] %v228
        %v230 = vld [vmem:[#allocation2 + $0xc0] sm:$0x1]
        %v231 = vsel %vm181, 0, %v230
        %232 = vst [vmem:[#allocation2 + $0xc0] sm:$0x1] %v231
        %v233 = vld [vmem:[#allocation2 + $0xcc] sm:$0x1]
        %v234 = vsel %vm181, 0, %v233
        %235 = vst [vmem:[#allocation2 + $0xcc] sm:$0x1] %v234
        %vm236 = vsmask.f32 7938
        %vm237 = vmand %vm179, %vm236
        %v238 = vld [vmem:[#allocation2 + $0x8] sm:$0x1]
        %v239 = vsel %vm237, 0, %v238
        %240 = vst [vmem:[#allocation2 + $0x8] sm:$0x1] %v239
        %v241 = vld [vmem:[#allocation2 + $0x14] sm:$0x1]
        %v242 = vsel %vm237, 0, %v241
        %243 = vst [vmem:[#allocation2 + $0x14] sm:$0x1] %v242
        %v244 = vld [vmem:[#allocation2 + $0x20] sm:$0x1]
        %v245 = vsel %vm237, 0, %v244
        %246 = vst [vmem:[#allocation2 + $0x20] sm:$0x1] %v245
        %v247 = vld [vmem:[#allocation2 + $0x2c] sm:$0x1]
        %v248 = vsel %vm237, 0, %v247
        %249 = vst [vmem:[#allocation2 + $0x2c] sm:$0x1] %v248
        %v250 = vld [vmem:[#allocation2 + $0x38] sm:$0x1]
        %v251 = vsel %vm237, 0, %v250
        %252 = vst [vmem:[#allocation2 + $0x38] sm:$0x1] %v251
        %v253 = vld [vmem:[#allocation2 + $0x44] sm:$0x1]
        %v254 = vsel %vm237, 0, %v253
        %255 = vst [vmem:[#allocation2 + $0x44] sm:$0x1] %v254
        %v256 = vld [vmem:[#allocation2 + $0x50] sm:$0x1]
        %v257 = vsel %vm237, 0, %v256
        %258 = vst [vmem:[#allocation2 + $0x50] sm:$0x1] %v257
        %v259 = vld [vmem:[#allocation2 + $0x5c] sm:$0x1]
        %v260 = vsel %vm237, 0, %v259
        %261 = vst [vmem:[#allocation2 + $0x5c] sm:$0x1] %v260
        %v262 = vld [vmem:[#allocation2 + $0x68] sm:$0x1]
        %v263 = vsel %vm237, 0, %v262
        %264 = vst [vmem:[#allocation2 + $0x68] sm:$0x1] %v263
        %v265 = vld [vmem:[#allocation2 + $0x74] sm:$0x1]
        %v266 = vsel %vm237, 0, %v265
        %267 = vst [vmem:[#allocation2 + $0x74] sm:$0x1] %v266
        %v268 = vld [vmem:[#allocation2 + $0x80] sm:$0x1]
        %v269 = vsel %vm237, 0, %v268
        %270 = vst [vmem:[#allocation2 + $0x80] sm:$0x1] %v269
        %v271 = vld [vmem:[#allocation2 + $0x8c] sm:$0x1]
        %v272 = vsel %vm237, 0, %v271
        %273 = vst [vmem:[#allocation2 + $0x8c] sm:$0x1] %v272
        %v274 = vld [vmem:[#allocation2 + $0x98] sm:$0x1]
        %v275 = vsel %vm237, 0, %v274
        %276 = vst [vmem:[#allocation2 + $0x98] sm:$0x1] %v275
        %v277 = vld [vmem:[#allocation2 + $0xa4] sm:$0x1]
        %v278 = vsel %vm237, 0, %v277
        %279 = vst [vmem:[#allocation2 + $0xa4] sm:$0x1] %v278
        %v280 = vld [vmem:[#allocation2 + $0xb0] sm:$0x1]
        %v281 = vsel %vm237, 0, %v280
        %282 = vst [vmem:[#allocation2 + $0xb0] sm:$0x1] %v281
        %v283 = vld [vmem:[#allocation2 + $0xbc] sm:$0x1]
        %v284 = vsel %vm237, 0, %v283
        %285 = vst [vmem:[#allocation2 + $0xbc] sm:$0x1] %v284
        %v286 = vld [vmem:[#allocation2 + $0xc8] sm:$0x1]
        %v287 = vsel %vm237, 0, %v286
        %288 = vst [vmem:[#allocation2 + $0xc8] sm:$0x1] %v287
        %v289 = vld [vmem:[#allocation2 + $0xd4] sm:$0x1]
        %v290 = vsel %vm237, 0, %v289
        %291 = vst [vmem:[#allocation2 + $0xd4] sm:$0x1] %v290
        %v292 = vld [vmem:[%s168] sm:$0xf]
        %v293 = vld [vmem:[%s168 + $0x4] sm:$0xf]
        %v294 = vld [vmem:[%s168 + $0x8] sm:$0xf]
        %v295 = vld [vmem:[%s168 + $0xc] sm:$0xf]
        %v296 = vld [vmem:[%s168 + $0x10] sm:$0xf]
        %v297 = vld [vmem:[%s168 + $0x14] sm:$0xf]
        %v298 = vld [vmem:[%s168 + $0x18] sm:$0xf]
        %v299 = vld [vmem:[%s168 + $0x1c] sm:$0xf]
        %v300 = vld [vmem:[%s168 + $0x20] sm:$0xf]
        %v301 = vld [vmem:[%s168 + $0x24] sm:$0xf]
        %v302 = vld [vmem:[%s168 + $0x28] sm:$0xf]
        %v303 = vld [vmem:[%s168 + $0x2c] sm:$0xf]
        %v304 = vld [vmem:[%s168 + $0x30] sm:$0xf]
        %v305 = vld [vmem:[%s168 + $0x34] sm:$0xf]
        %v306 = vld [vmem:[%s168 + $0x38] sm:$0xf]
        %v307 = vld [vmem:[%s168 + $0x3c] sm:$0xf]
        %v308 = vld [vmem:[%s168 + $0x40] sm:$0xf]
        %v309 = vld [vmem:[%s168 + $0x44] sm:$0xf]
        %v310 = vld [vmem:[%s168 + $0x48] sm:$0xf]
        %v311 = vld [vmem:[%s168 + $0x4c] sm:$0xf]
        %v312 = vld [vmem:[%s168 + $0x50] sm:$0xf]
        %v313 = vld [vmem:[%s168 + $0x54] sm:$0xf]
        %v314 = vld [vmem:[%s168 + $0x58] sm:$0xf]
        %v315 = vld [vmem:[%s168 + $0x5c] sm:$0xf]
        %v316 = vld [vmem:[%s168 + $0x60] sm:$0xf]
        %v317 = vld [vmem:[%s168 + $0x64] sm:$0xf]
        %v318 = vld [vmem:[%s168 + $0x68] sm:$0xf]
        %v319 = vld [vmem:[%s168 + $0x6c] sm:$0xf]
        %v320 = vld [vmem:[%s168 + $0x70] sm:$0xf]
        %v321 = vld [vmem:[%s168 + $0x74] sm:$0xf]
        %v322 = vld [vmem:[%s168 + $0x78] sm:$0xf]
        %v323 = vld [vmem:[%s168 + $0x7c] sm:$0xf]
        %vm324 = vsmask.f32 4368
        %vm325 = vmor %vm180, %vm324
        %v327 = vshrl.u32 %v292, 16
        %v329 = vrot.slane %v327, 7
        %v330 = vshll.u32 %v292, 16
        %v332 = vor.u32 %v329, %v330
        %v333 = vrot.slane %v329, 4
        %v335 = vshrl.u32 %v293, 16
        %v337 = vrot.slane %v335, 7
        %v338 = vshll.u32 %v293, 16
        %v340 = vor.u32 %v337, %v338
        %v341 = vsel %vm325, %v333, %v340
        %v342 = vrot.slane %v337, 4
        %v344 = vshrl.u32 %v294, 16
        %v346 = vrot.slane %v344, 7
        %v347 = vshll.u32 %v294, 16
        %v349 = vor.u32 %v346, %v347
        %v350 = vrot.slane %v346, 4
        %v352 = vshrl.u32 %v295, 16
        %v354 = vrot.slane %v352, 7
        %v355 = vshll.u32 %v295, 16
        %v357 = vor.u32 %v354, %v355
        %v358 = vsel %vm325, %v350, %v357
        %v359 = vrot.slane %v354, 4
        %v361 = vshrl.u32 %v296, 16
        %v363 = vrot.slane %v361, 7
        %v364 = vshll.u32 %v296, 16
        %v366 = vor.u32 %v363, %v364
        %v367 = vrot.slane %v363, 4
        %v369 = vshrl.u32 %v297, 16
        %v371 = vrot.slane %v369, 7
        %v372 = vshll.u32 %v297, 16
        %v374 = vor.u32 %v371, %v372
        %v375 = vsel %vm325, %v367, %v374
        %v376 = vrot.slane %v371, 4
        %v378 = vshrl.u32 %v298, 16
        %v380 = vrot.slane %v378, 7
        %v381 = vshll.u32 %v298, 16
        %v383 = vor.u32 %v380, %v381
        %v384 = vrot.slane %v380, 4
        %v386 = vshrl.u32 %v299, 16
        %v388 = vrot.slane %v386, 7
        %v389 = vshll.u32 %v299, 16
        %v391 = vor.u32 %v388, %v389
        %v392 = vsel %vm325, %v384, %v391
        %v393 = vrot.slane %v388, 4
        %v395 = vshrl.u32 %v300, 16
        %v397 = vrot.slane %v395, 7
        %v398 = vshll.u32 %v300, 16
        %v400 = vor.u32 %v397, %v398
        %v401 = vrot.slane %v397, 4
        %v403 = vshrl.u32 %v301, 16
        %v405 = vrot.slane %v403, 7
        %v406 = vshll.u32 %v301, 16
        %v408 = vor.u32 %v405, %v406
        %v409 = vsel %vm325, %v401, %v408
        %v410 = vrot.slane %v405, 4
        %v412 = vshrl.u32 %v302, 16
        %v414 = vrot.slane %v412, 7
        %v415 = vshll.u32 %v302, 16
        %v417 = vor.u32 %v414, %v415
        %v418 = vrot.slane %v414, 4
        %v420 = vshrl.u32 %v303, 16
        %v422 = vrot.slane %v420, 7
        %v423 = vshll.u32 %v303, 16
        %v425 = vor.u32 %v422, %v423
        %v426 = vsel %vm325, %v418, %v425
        %v427 = vrot.slane %v422, 4
        %v429 = vshrl.u32 %v304, 16
        %v431 = vrot.slane %v429, 7
        %v432 = vshll.u32 %v304, 16
        %v434 = vor.u32 %v431, %v432
        %v435 = vrot.slane %v431, 4
        %v437 = vshrl.u32 %v305, 16
        %v439 = vrot.slane %v437, 7
        %v440 = vshll.u32 %v305, 16
        %v442 = vor.u32 %v439, %v440
        %v443 = vsel %vm325, %v435, %v442
        %v444 = vrot.slane %v439, 4
        %v446 = vshrl.u32 %v306, 16
        %v448 = vrot.slane %v446, 7
        %v449 = vshll.u32 %v306, 16
        %v451 = vor.u32 %v448, %v449
        %v452 = vrot.slane %v448, 4
        %v454 = vshrl.u32 %v307, 16
        %v456 = vrot.slane %v454, 7
        %v457 = vshll.u32 %v307, 16
        %v459 = vor.u32 %v456, %v457
        %v460 = vsel %vm325, %v452, %v459
        %v461 = vrot.slane %v456, 4
        %v463 = vshrl.u32 %v308, 16
        %v465 = vrot.slane %v463, 7
        %v466 = vshll.u32 %v308, 16
        %v468 = vor.u32 %v465, %v466
        %v469 = vrot.slane %v465, 4
        %v471 = vshrl.u32 %v309, 16
        %v473 = vrot.slane %v471, 7
        %v474 = vshll.u32 %v309, 16
        %v476 = vor.u32 %v473, %v474
        %v477 = vsel %vm325, %v469, %v476
        %v478 = vrot.slane %v473, 4
        %v480 = vshrl.u32 %v310, 16
        %v482 = vrot.slane %v480, 7
        %v483 = vshll.u32 %v310, 16
        %v485 = vor.u32 %v482, %v483
        %v486 = vrot.slane %v482, 4
        %v488 = vshrl.u32 %v311, 16
        %v490 = vrot.slane %v488, 7
        %v491 = vshll.u32 %v311, 16
        %v493 = vor.u32 %v490, %v491
        %v494 = vsel %vm325, %v486, %v493
        %v495 = vrot.slane %v490, 4
        %v497 = vshrl.u32 %v312, 16
        %v499 = vrot.slane %v497, 7
        %v500 = vshll.u32 %v312, 16
        %v502 = vor.u32 %v499, %v500
        %v503 = vrot.slane %v499, 4
        %v505 = vshrl.u32 %v313, 16
        %v507 = vrot.slane %v505, 7
        %v508 = vshll.u32 %v313, 16
        %v510 = vor.u32 %v507, %v508
        %v511 = vsel %vm325, %v503, %v510
        %v512 = vrot.slane %v507, 4
        %v514 = vshrl.u32 %v314, 16
        %v516 = vrot.slane %v514, 7
        %v517 = vshll.u32 %v314, 16
        %v519 = vor.u32 %v516, %v517
        %v520 = vrot.slane %v516, 4
        %v522 = vshrl.u32 %v315, 16
        %v524 = vrot.slane %v522, 7
        %v525 = vshll.u32 %v315, 16
        %v527 = vor.u32 %v524, %v525
        %v528 = vsel %vm325, %v520, %v527
        %v529 = vrot.slane %v524, 4
        %v531 = vshrl.u32 %v316, 16
        %v533 = vrot.slane %v531, 7
        %v534 = vshll.u32 %v316, 16
        %v536 = vor.u32 %v533, %v534
        %v537 = vrot.slane %v533, 4
        %v539 = vshrl.u32 %v317, 16
        %v541 = vrot.slane %v539, 7
        %v542 = vshll.u32 %v317, 16
        %v544 = vor.u32 %v541, %v542
        %v545 = vsel %vm325, %v537, %v544
        %v546 = vrot.slane %v541, 4
        %v548 = vshrl.u32 %v318, 16
        %v550 = vrot.slane %v548, 7
        %v551 = vshll.u32 %v318, 16
        %v553 = vor.u32 %v550, %v551
        %v554 = vrot.slane %v550, 4
        %v556 = vshrl.u32 %v319, 16
        %v558 = vrot.slane %v556, 7
        %v559 = vshll.u32 %v319, 16
        %v561 = vor.u32 %v558, %v559
        %v562 = vsel %vm325, %v554, %v561
        %v563 = vrot.slane %v558, 4
        %v565 = vshrl.u32 %v320, 16
        %v567 = vrot.slane %v565, 7
        %v568 = vshll.u32 %v320, 16
        %v570 = vor.u32 %v567, %v568
        %v571 = vrot.slane %v567, 4
        %v573 = vshrl.u32 %v321, 16
        %v575 = vrot.slane %v573, 7
        %v576 = vshll.u32 %v321, 16
        %v578 = vor.u32 %v575, %v576
        %v579 = vsel %vm325, %v571, %v578
        %v580 = vrot.slane %v575, 4
        %v582 = vshrl.u32 %v322, 16
        %v584 = vrot.slane %v582, 7
        %v585 = vshll.u32 %v322, 16
        %v587 = vor.u32 %v584, %v585
        %v588 = vrot.slane %v584, 4
        %v590 = vshrl.u32 %v323, 16
        %v592 = vrot.slane %v590, 7
        %v593 = vshll.u32 %v323, 16
        %v595 = vor.u32 %v592, %v593
        %v596 = vsel %vm325, %v588, %v595
        %v597 = vrot.slane %v592, 4
        %s646 = scalar_lea.vmem [#allocation2], 12
        %vm647 = vcmask 27648
        %vm648 = vmand %vm647, %vm236
        %v649 = vld [vmem:[%s646] sm:$0xf]
        %v650 = vsel %vm648, %v332, %v649
        %651 = vst [vmem:[%s646] sm:$0xf] %v650
        %652 = vst.msk [vmem:[%s646 + $0x4] sm:$0xf] %vm170, %v341
        %v653 = vld [vmem:[%s646 + $0x8] sm:$0x1]
        %v654 = vsel %vm181, %v342, %v653
        %655 = vst [vmem:[%s646 + $0x8] sm:$0x1] %v654
        %v656 = vld [vmem:[%s646 + $0xc] sm:$0xf]
        %v657 = vsel %vm648, %v349, %v656
        %658 = vst [vmem:[%s646 + $0xc] sm:$0xf] %v657
        %659 = vst.msk [vmem:[%s646 + $0x10] sm:$0xf] %vm170, %v358
        %v660 = vld [vmem:[%s646 + $0x14] sm:$0x1]
        %v661 = vsel %vm181, %v359, %v660
        %662 = vst [vmem:[%s646 + $0x14] sm:$0x1] %v661
        %v663 = vld [vmem:[%s646 + $0x18] sm:$0xf]
        %v664 = vsel %vm648, %v366, %v663
        %665 = vst [vmem:[%s646 + $0x18] sm:$0xf] %v664
        %666 = vst.msk [vmem:[%s646 + $0x1c] sm:$0xf] %vm170, %v375
        %v667 = vld [vmem:[%s646 + $0x20] sm:$0x1]
        %v668 = vsel %vm181, %v376, %v667
        %669 = vst [vmem:[%s646 + $0x20] sm:$0x1] %v668
        %v670 = vld [vmem:[%s646 + $0x24] sm:$0xf]
        %v671 = vsel %vm648, %v383, %v670
        %672 = vst [vmem:[%s646 + $0x24] sm:$0xf] %v671
        %673 = vst.msk [vmem:[%s646 + $0x28] sm:$0xf] %vm170, %v392
        %v674 = vld [vmem:[%s646 + $0x2c] sm:$0x1]
        %v675 = vsel %vm181, %v393, %v674
        %676 = vst [vmem:[%s646 + $0x2c] sm:$0x1] %v675
        %v677 = vld [vmem:[%s646 + $0x30] sm:$0xf]
        %v678 = vsel %vm648, %v400, %v677
        %679 = vst [vmem:[%s646 + $0x30] sm:$0xf] %v678
        %680 = vst.msk [vmem:[%s646 + $0x34] sm:$0xf] %vm170, %v409
        %v681 = vld [vmem:[%s646 + $0x38] sm:$0x1]
        %v682 = vsel %vm181, %v410, %v681
        %683 = vst [vmem:[%s646 + $0x38] sm:$0x1] %v682
        %v684 = vld [vmem:[%s646 + $0x3c] sm:$0xf]
        %v685 = vsel %vm648, %v417, %v684
        %686 = vst [vmem:[%s646 + $0x3c] sm:$0xf] %v685
        %687 = vst.msk [vmem:[%s646 + $0x40] sm:$0xf] %vm170, %v426
        %v688 = vld [vmem:[%s646 + $0x44] sm:$0x1]
        %v689 = vsel %vm181, %v427, %v688
        %690 = vst [vmem:[%s646 + $0x44] sm:$0x1] %v689
        %v691 = vld [vmem:[%s646 + $0x48] sm:$0xf]
        %v692 = vsel %vm648, %v434, %v691
        %693 = vst [vmem:[%s646 + $0x48] sm:$0xf] %v692
        %694 = vst.msk [vmem:[%s646 + $0x4c] sm:$0xf] %vm170, %v443
        %v695 = vld [vmem:[%s646 + $0x50] sm:$0x1]
        %v696 = vsel %vm181, %v444, %v695
        %697 = vst [vmem:[%s646 + $0x50] sm:$0x1] %v696
        %v698 = vld [vmem:[%s646 + $0x54] sm:$0xf]
        %v699 = vsel %vm648, %v451, %v698
        %700 = vst [vmem:[%s646 + $0x54] sm:$0xf] %v699
        %701 = vst.msk [vmem:[%s646 + $0x58] sm:$0xf] %vm170, %v460
        %v702 = vld [vmem:[%s646 + $0x5c] sm:$0x1]
        %v703 = vsel %vm181, %v461, %v702
        %704 = vst [vmem:[%s646 + $0x5c] sm:$0x1] %v703
        %v705 = vld [vmem:[%s646 + $0x60] sm:$0xf]
        %v706 = vsel %vm648, %v468, %v705
        %707 = vst [vmem:[%s646 + $0x60] sm:$0xf] %v706
        %708 = vst.msk [vmem:[%s646 + $0x64] sm:$0xf] %vm170, %v477
        %v709 = vld [vmem:[%s646 + $0x68] sm:$0x1]
        %v710 = vsel %vm181, %v478, %v709
        %711 = vst [vmem:[%s646 + $0x68] sm:$0x1] %v710
        %v712 = vld [vmem:[%s646 + $0x6c] sm:$0xf]
        %v713 = vsel %vm648, %v485, %v712
        %714 = vst [vmem:[%s646 + $0x6c] sm:$0xf] %v713
        %715 = vst.msk [vmem:[%s646 + $0x70] sm:$0xf] %vm170, %v494
        %v716 = vld [vmem:[%s646 + $0x74] sm:$0x1]
        %v717 = vsel %vm181, %v495, %v716
        %718 = vst [vmem:[%s646 + $0x74] sm:$0x1] %v717
        %v719 = vld [vmem:[%s646 + $0x78] sm:$0xf]
        %v720 = vsel %vm648, %v502, %v719
        %721 = vst [vmem:[%s646 + $0x78] sm:$0xf] %v720
        %722 = vst.msk [vmem:[%s646 + $0x7c] sm:$0xf] %vm170, %v511
        %v723 = vld [vmem:[%s646 + $0x80] sm:$0x1]
        %v724 = vsel %vm181, %v512, %v723
        %725 = vst [vmem:[%s646 + $0x80] sm:$0x1] %v724
        %v726 = vld [vmem:[%s646 + $0x84] sm:$0xf]
        %v727 = vsel %vm648, %v519, %v726
        %728 = vst [vmem:[%s646 + $0x84] sm:$0xf] %v727
        %729 = vst.msk [vmem:[%s646 + $0x88] sm:$0xf] %vm170, %v528
        %v730 = vld [vmem:[%s646 + $0x8c] sm:$0x1]
        %v731 = vsel %vm181, %v529, %v730
        %732 = vst [vmem:[%s646 + $0x8c] sm:$0x1] %v731
        %v733 = vld [vmem:[%s646 + $0x90] sm:$0xf]
        %v734 = vsel %vm648, %v536, %v733
        %735 = vst [vmem:[%s646 + $0x90] sm:$0xf] %v734
        %736 = vst.msk [vmem:[%s646 + $0x94] sm:$0xf] %vm170, %v545
        %v737 = vld [vmem:[%s646 + $0x98] sm:$0x1]
        %v738 = vsel %vm181, %v546, %v737
        %739 = vst [vmem:[%s646 + $0x98] sm:$0x1] %v738
        %v740 = vld [vmem:[%s646 + $0x9c] sm:$0xf]
        %v741 = vsel %vm648, %v553, %v740
        %742 = vst [vmem:[%s646 + $0x9c] sm:$0xf] %v741
        %743 = vst.msk [vmem:[%s646 + $0xa0] sm:$0xf] %vm170, %v562
        %v744 = vld [vmem:[%s646 + $0xa4] sm:$0x1]
        %v745 = vsel %vm181, %v563, %v744
        %746 = vst [vmem:[%s646 + $0xa4] sm:$0x1] %v745
        %v747 = vld [vmem:[%s646 + $0xa8] sm:$0xf]
        %v748 = vsel %vm648, %v570, %v747
        %749 = vst [vmem:[%s646 + $0xa8] sm:$0xf] %v748
        %750 = vst.msk [vmem:[%s646 + $0xac] sm:$0xf] %vm170, %v579
        %v751 = vld [vmem:[%s646 + $0xb0] sm:$0x1]
        %v752 = vsel %vm181, %v580, %v751
        %753 = vst [vmem:[%s646 + $0xb0] sm:$0x1] %v752
        %v754 = vld [vmem:[%s646 + $0xb4] sm:$0xf]
        %v755 = vsel %vm648, %v587, %v754
        %756 = vst [vmem:[%s646 + $0xb4] sm:$0xf] %v755
        %757 = vst.msk [vmem:[%s646 + $0xb8] sm:$0xf] %vm170, %v596
        %v758 = vld [vmem:[%s646 + $0xbc] sm:$0x1]
        %v759 = vsel %vm181, %v597, %v758
        %760 = vst [vmem:[%s646 + $0xbc] sm:$0x1] %v759
        %v761 = vld [vmem:[#allocation2] sm:$0xf]
        %v762 = vld [vmem:[#allocation2 + $0x4] sm:$0xf]
        %v763 = vld [vmem:[#allocation2 + $0xc] sm:$0xf]
        %v764 = vld [vmem:[#allocation2 + $0x10] sm:$0xf]
        %v765 = vld [vmem:[#allocation2 + $0x18] sm:$0xf]
        %v766 = vld [vmem:[#allocation2 + $0x1c] sm:$0xf]
        %v767 = vld [vmem:[#allocation2 + $0x24] sm:$0xf]
        %v768 = vld [vmem:[#allocation2 + $0x28] sm:$0xf]
        %v769 = vld [vmem:[#allocation2 + $0x30] sm:$0xf]
        %v770 = vld [vmem:[#allocation2 + $0x34] sm:$0xf]
        %v771 = vld [vmem:[#allocation2 + $0x3c] sm:$0xf]
        %v772 = vld [vmem:[#allocation2 + $0x40] sm:$0xf]
        %v773 = vld [vmem:[#allocation2 + $0x48] sm:$0xf]
        %v774 = vld [vmem:[#allocation2 + $0x4c] sm:$0xf]
        %v775 = vld [vmem:[#allocation2 + $0x54] sm:$0xf]
        %v776 = vld [vmem:[#allocation2 + $0x58] sm:$0xf]
        %v777 = vld [vmem:[#allocation2 + $0x60] sm:$0xf]
        %v778 = vld [vmem:[#allocation2 + $0x64] sm:$0xf]
        %v779 = vld [vmem:[#allocation2 + $0x6c] sm:$0xf]
        %v780 = vld [vmem:[#allocation2 + $0x70] sm:$0xf]
        %v781 = vld [vmem:[#allocation2 + $0x78] sm:$0xf]
        %v782 = vld [vmem:[#allocation2 + $0x7c] sm:$0xf]
        %v783 = vld [vmem:[#allocation2 + $0x84] sm:$0xf]
        %v784 = vld [vmem:[#allocation2 + $0x88] sm:$0xf]
        %v785 = vld [vmem:[#allocation2 + $0x90] sm:$0xf]
        %v786 = vld [vmem:[#allocation2 + $0x94] sm:$0xf]
        %v787 = vld [vmem:[#allocation2 + $0x9c] sm:$0xf]
        %v788 = vld [vmem:[#allocation2 + $0xa0] sm:$0xf]
        %v789 = vld [vmem:[#allocation2 + $0xa8] sm:$0xf]
        %v790 = vld [vmem:[#allocation2 + $0xac] sm:$0xf]
        %v791 = vld [vmem:[#allocation2 + $0xb4] sm:$0xf]
        %v792 = vld [vmem:[#allocation2 + $0xb8] sm:$0xf]
        %v793 = vld [vmem:[%s1] sm:$0x3]
        %v826 = vunpack.c.l.b16 %v761
        %v827 = vunpack.c.l.b16 %v762
        %v828 = vunpack.c.l.b16 %v763
        %v829 = vunpack.c.l.b16 %v764
        %v830 = vunpack.c.l.b16 %v765
        %v831 = vunpack.c.l.b16 %v766
        %v832 = vunpack.c.l.b16 %v767
        %v833 = vunpack.c.l.b16 %v768
        %v834 = vunpack.c.l.b16 %v769
        %v835 = vunpack.c.l.b16 %v770
        %v836 = vunpack.c.l.b16 %v771
        %v837 = vunpack.c.l.b16 %v772
        %v838 = vunpack.c.l.b16 %v773
        %v839 = vunpack.c.l.b16 %v774
        %v840 = vunpack.c.l.b16 %v775
        %v841 = vunpack.c.l.b16 %v776
        %v842 = vunpack.c.l.b16 %v777
        %v843 = vunpack.c.l.b16 %v778
        %v844 = vunpack.c.l.b16 %v779
        %v845 = vunpack.c.l.b16 %v780
        %v846 = vunpack.c.l.b16 %v781
        %v847 = vunpack.c.l.b16 %v782
        %v848 = vunpack.c.l.b16 %v783
        %v849 = vunpack.c.l.b16 %v784
        %v850 = vunpack.c.l.b16 %v785
        %v851 = vunpack.c.l.b16 %v786
        %v852 = vunpack.c.l.b16 %v787
        %v853 = vunpack.c.l.b16 %v788
        %v854 = vunpack.c.l.b16 %v789
        %v855 = vunpack.c.l.b16 %v790
        %v856 = vunpack.c.l.b16 %v791
        %v857 = vunpack.c.l.b16 %v792
        %v858 = vpack.c.b16 %v827, %v826
        %v859 = vpack.c.b16 %v829, %v828
        %v860 = vpack.c.b16 %v831, %v830
        %v861 = vpack.c.b16 %v833, %v832
        %v862 = vpack.c.b16 %v835, %v834
        %v863 = vpack.c.b16 %v837, %v836
        %v864 = vpack.c.b16 %v839, %v838
        %v865 = vpack.c.b16 %v841, %v840
        %v866 = vpack.c.b16 %v843, %v842
        %v867 = vpack.c.b16 %v845, %v844
        %v868 = vpack.c.b16 %v847, %v846
        %v869 = vpack.c.b16 %v849, %v848
        %v870 = vpack.c.b16 %v851, %v850
        %v871 = vpack.c.b16 %v853, %v852
        %v872 = vpack.c.b16 %v855, %v854
        %v873 = vpack.c.b16 %v857, %v856
        %vm874 = vcmask 31744
        %v876 = vsel %vm874, %v858, 0
        %v879 = vsel %vm874, %v859, 0
        %v882 = vsel %vm874, %v860, 0
        %v885 = vsel %vm874, %v861, 0
        %v888 = vsel %vm874, %v862, 0
        %v891 = vsel %vm874, %v863, 0
        %v894 = vsel %vm874, %v864, 0
        %v897 = vsel %vm874, %v865, 0
        %v900 = vsel %vm874, %v866, 0
        %v903 = vsel %vm874, %v867, 0
        %v906 = vsel %vm874, %v868, 0
        %v909 = vsel %vm874, %v869, 0
        %v912 = vsel %vm874, %v870, 0
        %v915 = vsel %vm874, %v871, 0
        %v918 = vsel %vm874, %v872, 0
        %v921 = vsel %vm874, %v873, 0
        %vm923 = vcmask 1041408
        %v925 = vsel %vm923, %v793, 0
        %927 = vmatprep.subr.bf16.mxu0 0
        %928 = vmatpush1.bf16.msra.mxu0 %v925
        %929 = vmatprep.subr.bf16.mxu0 0
        %930 = vmatpush1.bf16.msra.mxu0 0
        %931 = vmatprep.subr.bf16.mxu0 0
        %932 = vmatpush1.bf16.msra.mxu0 0
        %933 = vmatprep.subr.bf16.mxu0 0
        %934 = vmatpush1.bf16.msra.mxu0 0
        %935 = vmatprep.subr.bf16.mxu0 0
        %936 = vmatpush1.bf16.msra.mxu0 0
        %937 = vmatprep.subr.bf16.mxu0 0
        %938 = vmatpush1.bf16.msra.mxu0 0
        %939 = vmatprep.subr.bf16.mxu0 0
        %940 = vmatpush1.bf16.msra.mxu0 0
        %941 = vmatprep.subr.bf16.mxu0 0
        %942 = vmatpush1.bf16.msra.mxu0 0
        %943 = vmatprep.subr.bf16.mxu0 0
        %944 = vmatpush1.bf16.msra.mxu0 0
        %945 = vmatprep.subr.bf16.mxu0 0
        %946 = vmatpush1.bf16.msra.mxu0 0
        %947 = vmatprep.subr.bf16.mxu0 0
        %948 = vmatpush1.bf16.msra.mxu0 0
        %949 = vmatprep.subr.bf16.mxu0 0
        %950 = vmatpush1.bf16.msra.mxu0 0
        %951 = vmatprep.subr.bf16.mxu0 0
        %952 = vmatpush1.bf16.msra.mxu0 0
        %953 = vmatprep.subr.bf16.mxu0 0
        %954 = vmatpush1.bf16.msra.mxu0 0
        %955 = vmatprep.subr.bf16.mxu0 0
        %956 = vmatpush1.bf16.msra.mxu0 0
        %957 = vmatprep.subr.bf16.mxu0 0
        %958 = vmatpush1.bf16.msra.mxu0 0
        %959 = vmatprep.mubr.bf16.mxu0 0
        %960 = vmatmul.mubr.bf16.gmra.mrb[0].mxu0 %v876
        %v961 = vpop.f32.mrb[0].mxu0
        %v962 = vadd.f32 0.0, %v961
        %v963 = vpop.f32.mrb[0].mxu0
        %v964 = vpop.f32.mrb[0].mxu0
        %v965 = vadd.f32 0.0, %v964
        %v966 = vpop.f32.mrb[0].mxu0
        %967 = vmatprep.mubr.bf16.mxu0 0
        %968 = vmatmul.mubr.bf16.gmra.mrb[0].mxu0 %v879
        %v969 = vpop.f32.mrb[0].mxu0
        %v970 = vadd.f32 0.0, %v969
        %v971 = vpop.f32.mrb[0].mxu0
        %v972 = vpop.f32.mrb[0].mxu0
        %v973 = vadd.f32 0.0, %v972
        %v974 = vpop.f32.mrb[0].mxu0
        %975 = vmatprep.mubr.bf16.mxu0 0
        %976 = vmatmul.mubr.bf16.gmra.mrb[0].mxu0 %v882
        %v977 = vpop.f32.mrb[0].mxu0
        %v978 = vadd.f32 0.0, %v977
        %v979 = vpop.f32.mrb[0].mxu0
        %v980 = vpop.f32.mrb[0].mxu0
        %v981 = vadd.f32 0.0, %v980
        %v982 = vpop.f32.mrb[0].mxu0
        %983 = vmatprep.mubr.bf16.mxu0 0
        %984 = vmatmul.mubr.bf16.gmra.mrb[0].mxu0 %v885
        %v985 = vpop.f32.mrb[0].mxu0
        %v986 = vadd.f32 0.0, %v985
        %v987 = vpop.f32.mrb[0].mxu0
        %v988 = vpop.f32.mrb[0].mxu0
        %v989 = vadd.f32 0.0, %v988
        %v990 = vpop.f32.mrb[0].mxu0
        %991 = vmatprep.mubr.bf16.mxu0 0
        %992 = vmatmul.mubr.bf16.gmra.mrb[0].mxu0 %v888
        %v993 = vpop.f32.mrb[0].mxu0
        %v994 = vadd.f32 0.0, %v993
        %v995 = vpop.f32.mrb[0].mxu0
        %v996 = vpop.f32.mrb[0].mxu0
        %v997 = vadd.f32 0.0, %v996
        %v998 = vpop.f32.mrb[0].mxu0
        %999 = vmatprep.mubr.bf16.mxu0 0
        %1000 = vmatmul.mubr.bf16.gmra.mrb[0].mxu0 %v891
        %v1001 = vpop.f32.mrb[0].mxu0
        %v1002 = vadd.f32 0.0, %v1001
        %v1003 = vpop.f32.mrb[0].mxu0
        %v1004 = vpop.f32.mrb[0].mxu0
        %v1005 = vadd.f32 0.0, %v1004
        %v1006 = vpop.f32.mrb[0].mxu0
        %1007 = vmatprep.mubr.bf16.mxu0 0
        %1008 = vmatmul.mubr.bf16.gmra.mrb[0].mxu0 %v894
        %v1009 = vpop.f32.mrb[0].mxu0
        %v1010 = vadd.f32 0.0, %v1009
        %v1011 = vpop.f32.mrb[0].mxu0
        %v1012 = vpop.f32.mrb[0].mxu0
        %v1013 = vadd.f32 0.0, %v1012
        %v1014 = vpop.f32.mrb[0].mxu0
        %1015 = vmatprep.mubr.bf16.mxu0 0
        %1016 = vmatmul.mubr.bf16.gmra.mrb[0].mxu0 %v897
        %v1017 = vpop.f32.mrb[0].mxu0
        %v1018 = vadd.f32 0.0, %v1017
        %v1019 = vpop.f32.mrb[0].mxu0
        %v1020 = vpop.f32.mrb[0].mxu0
        %v1021 = vadd.f32 0.0, %v1020
        %v1022 = vpop.f32.mrb[0].mxu0
        %1023 = vmatprep.mubr.bf16.mxu0 0
        %1024 = vmatmul.mubr.bf16.gmra.mrb[0].mxu0 %v900
        %v1025 = vpop.f32.mrb[0].mxu0
        %v1026 = vadd.f32 0.0, %v1025
        %v1027 = vpop.f32.mrb[0].mxu0
        %v1028 = vpop.f32.mrb[0].mxu0
        %v1029 = vadd.f32 0.0, %v1028
        %v1030 = vpop.f32.mrb[0].mxu0
        %1031 = vmatprep.mubr.bf16.mxu0 0
        %1032 = vmatmul.mubr.bf16.gmra.mrb[0].mxu0 %v903
        %v1033 = vpop.f32.mrb[0].mxu0
        %v1034 = vadd.f32 0.0, %v1033
        %v1035 = vpop.f32.mrb[0].mxu0
        %v1036 = vpop.f32.mrb[0].mxu0
        %v1037 = vadd.f32 0.0, %v1036
        %v1038 = vpop.f32.mrb[0].mxu0
        %1039 = vmatprep.mubr.bf16.mxu0 0
        %1040 = vmatmul.mubr.bf16.gmra.mrb[0].mxu0 %v906
        %v1041 = vpop.f32.mrb[0].mxu0
        %v1042 = vadd.f32 0.0, %v1041
        %v1043 = vpop.f32.mrb[0].mxu0
        %v1044 = vpop.f32.mrb[0].mxu0
        %v1045 = vadd.f32 0.0, %v1044
        %v1046 = vpop.f32.mrb[0].mxu0
        %1047 = vmatprep.mubr.bf16.mxu0 0
        %1048 = vmatmul.mubr.bf16.gmra.mrb[0].mxu0 %v909
        %v1049 = vpop.f32.mrb[0].mxu0
        %v1050 = vadd.f32 0.0, %v1049
        %v1051 = vpop.f32.mrb[0].mxu0
        %v1052 = vpop.f32.mrb[0].mxu0
        %v1053 = vadd.f32 0.0, %v1052
        %v1054 = vpop.f32.mrb[0].mxu0
        %1055 = vmatprep.mubr.bf16.mxu0 0
        %1056 = vmatmul.mubr.bf16.gmra.mrb[0].mxu0 %v912
        %v1057 = vpop.f32.mrb[0].mxu0
        %v1058 = vadd.f32 0.0, %v1057
        %v1059 = vpop.f32.mrb[0].mxu0
        %v1060 = vpop.f32.mrb[0].mxu0
        %v1061 = vadd.f32 0.0, %v1060
        %v1062 = vpop.f32.mrb[0].mxu0
        %1063 = vmatprep.mubr.bf16.mxu0 0
        %1064 = vmatmul.mubr.bf16.gmra.mrb[0].mxu0 %v915
        %v1065 = vpop.f32.mrb[0].mxu0
        %v1066 = vadd.f32 0.0, %v1065
        %v1067 = vpop.f32.mrb[0].mxu0
        %v1068 = vpop.f32.mrb[0].mxu0
        %v1069 = vadd.f32 0.0, %v1068
        %v1070 = vpop.f32.mrb[0].mxu0
        %1071 = vmatprep.mubr.bf16.mxu0 0
        %1072 = vmatmul.mubr.bf16.gmra.mrb[0].mxu0 %v918
        %v1073 = vpop.f32.mrb[0].mxu0
        %v1074 = vadd.f32 0.0, %v1073
        %v1075 = vpop.f32.mrb[0].mxu0
        %v1076 = vpop.f32.mrb[0].mxu0
        %v1077 = vadd.f32 0.0, %v1076
        %v1078 = vpop.f32.mrb[0].mxu0
        %1079 = vmatprep.mubr.bf16.mxu0 0
        %1080 = vmatmul.mubr.bf16.gmra.mrb[0].mxu0 %v921
        %v1081 = vpop.f32.mrb[0].mxu0
        %v1082 = vadd.f32 0.0, %v1081
        %v1083 = vpop.f32.mrb[0].mxu0
        %v1084 = vpop.f32.mrb[0].mxu0
        %v1085 = vadd.f32 0.0, %v1084
        %v1086 = vpop.f32.mrb[0].mxu0
        %1087 = vdwg.mxu0
        %1088 = vst [vmem:[#allocation3] sm:$0xff] %v962
        %1089 = vst [vmem:[#allocation3 + $0x8] sm:$0xff] %v965
        %1090 = vst [vmem:[#allocation3 + $0x10] sm:$0xff] %v970
        %1091 = vst [vmem:[#allocation3 + $0x18] sm:$0xff] %v973
        %1092 = vst [vmem:[#allocation3 + $0x20] sm:$0xff] %v978
        %1093 = vst [vmem:[#allocation3 + $0x28] sm:$0xff] %v981
        %1094 = vst [vmem:[#allocation3 + $0x30] sm:$0xff] %v986
        %1095 = vst [vmem:[#allocation3 + $0x38] sm:$0xff] %v989
        %1096 = vst [vmem:[#allocation3 + $0x40] sm:$0xff] %v994
        %1097 = vst [vmem:[#allocation3 + $0x48] sm:$0xff] %v997
        %1098 = vst [vmem:[#allocation3 + $0x50] sm:$0xff] %v1002
        %1099 = vst [vmem:[#allocation3 + $0x58] sm:$0xff] %v1005
        %1100 = vst [vmem:[#allocation3 + $0x60] sm:$0xff] %v1010
        %1101 = vst [vmem:[#allocation3 + $0x68] sm:$0xff] %v1013
        %1102 = vst [vmem:[#allocation3 + $0x70] sm:$0xff] %v1018
        %1103 = vst [vmem:[#allocation3 + $0x78] sm:$0xff] %v1021
        %1104 = vst [vmem:[#allocation3 + $0x80] sm:$0xff] %v1026
        %1105 = vst [vmem:[#allocation3 + $0x88] sm:$0xff] %v1029
        %1106 = vst [vmem:[#allocation3 + $0x90] sm:$0xff] %v1034
        %1107 = vst [vmem:[#allocation3 + $0x98] sm:$0xff] %v1037
        %1108 = vst [vmem:[#allocation3 + $0xa0] sm:$0xff] %v1042
        %1109 = vst [vmem:[#allocation3 + $0xa8] sm:$0xff] %v1045
        %1110 = vst [vmem:[#allocation3 + $0xb0] sm:$0xff] %v1050
        %1111 = vst [vmem:[#allocation3 + $0xb8] sm:$0xff] %v1053
        %1112 = vst [vmem:[#allocation3 + $0xc0] sm:$0xff] %v1058
        %1113 = vst [vmem:[#allocation3 + $0xc8] sm:$0xff] %v1061
        %1114 = vst [vmem:[#allocation3 + $0xd0] sm:$0xff] %v1066
        %1115 = vst [vmem:[#allocation3 + $0xd8] sm:$0xff] %v1069
        %1116 = vst [vmem:[#allocation3 + $0xe0] sm:$0xff] %v1074
        %1117 = vst [vmem:[#allocation3 + $0xe8] sm:$0xff] %v1077
        %1118 = vst [vmem:[#allocation3 + $0xf0] sm:$0xff] %v1082
        %1119 = vst [vmem:[#allocation3 + $0xf8] sm:$0xff] %v1085
        %v1120 = vld [vmem:[#allocation2] sm:$0xf]
        %v1121 = vld [vmem:[#allocation2 + $0x4] sm:$0xf]
        %v1122 = vld [vmem:[#allocation2 + $0x8] sm:$0x1]
        %v1123 = vld [vmem:[#allocation2 + $0xc] sm:$0xf]
        %v1124 = vld [vmem:[#allocation2 + $0x10] sm:$0xf]
        %v1125 = vld [vmem:[#allocation2 + $0x14] sm:$0x1]
        %v1126 = vld [vmem:[#allocation2 + $0x18] sm:$0xf]
        %v1127 = vld [vmem:[#allocation2 + $0x1c] sm:$0xf]
        %v1128 = vld [vmem:[#allocation2 + $0x20] sm:$0x1]
        %v1129 = vld [vmem:[#allocation2 + $0x24] sm:$0xf]
        %v1130 = vld [vmem:[#allocation2 + $0x28] sm:$0xf]
        %v1131 = vld [vmem:[#allocation2 + $0x2c] sm:$0x1]
        %v1132 = vld [vmem:[#allocation2 + $0x30] sm:$0xf]
        %v1133 = vld [vmem:[#allocation2 + $0x34] sm:$0xf]
        %v1134 = vld [vmem:[#allocation2 + $0x38] sm:$0x1]
        %v1135 = vld [vmem:[#allocation2 + $0x3c] sm:$0xf]
        %v1136 = vld [vmem:[#allocation2 + $0x40] sm:$0xf]
        %v1137 = vld [vmem:[#allocation2 + $0x44] sm:$0x1]
        %v1138 = vld [vmem:[#allocation2 + $0x48] sm:$0xf]
        %v1139 = vld [vmem:[#allocation2 + $0x4c] sm:$0xf]
        %v1140 = vld [vmem:[#allocation2 + $0x50] sm:$0x1]
        %v1141 = vld [vmem:[#allocation2 + $0x54] sm:$0xf]
        %v1142 = vld [vmem:[#allocation2 + $0x58] sm:$0xf]
        %v1143 = vld [vmem:[#allocation2 + $0x5c] sm:$0x1]
        %v1144 = vld [vmem:[#allocation2 + $0x60] sm:$0xf]
        %v1145 = vld [vmem:[#allocation2 + $0x64] sm:$0xf]
        %v1146 = vld [vmem:[#allocation2 + $0x68] sm:$0x1]
        %v1147 = vld [vmem:[#allocation2 + $0x6c] sm:$0xf]
        %v1148 = vld [vmem:[#allocation2 + $0x70] sm:$0xf]
        %v1149 = vld [vmem:[#allocation2 + $0x74] sm:$0x1]
        %v1150 = vld [vmem:[#allocation2 + $0x78] sm:$0xf]
        %v1151 = vld [vmem:[#allocation2 + $0x7c] sm:$0xf]
        %v1152 = vld [vmem:[#allocation2 + $0x80] sm:$0x1]
        %v1153 = vld [vmem:[#allocation2 + $0x84] sm:$0xf]
        %v1154 = vld [vmem:[#allocation2 + $0x88] sm:$0xf]
        %v1155 = vld [vmem:[#allocation2 + $0x8c] sm:$0x1]
        %v1156 = vld [vmem:[#allocation2 + $0x90] sm:$0xf]
        %v1157 = vld [vmem:[#allocation2 + $0x94] sm:$0xf]
        %v1158 = vld [vmem:[#allocation2 + $0x98] sm:$0x1]
        %v1159 = vld [vmem:[#allocation2 + $0x9c] sm:$0xf]
        %v1160 = vld [vmem:[#allocation2 + $0xa0] sm:$0xf]
        %v1161 = vld [vmem:[#allocation2 + $0xa4] sm:$0x1]
        %v1162 = vld [vmem:[#allocation2 + $0xa8] sm:$0xf]
        %v1163 = vld [vmem:[#allocation2 + $0xac] sm:$0xf]
        %v1164 = vld [vmem:[#allocation2 + $0xb0] sm:$0x1]
        %v1165 = vld [vmem:[#allocation2 + $0xb4] sm:$0xf]
        %v1166 = vld [vmem:[#allocation2 + $0xb8] sm:$0xf]
        %v1167 = vld [vmem:[#allocation2 + $0xbc] sm:$0x1]
        %vm1168 = vsmask.f32 3328
        %vm1169 = vsmask.f32 7440
        %vm1170 = vmor %vm1168, %vm1169
        %v1172 = vshrl.u32 %v1120, 16
        %v1174 = vrot.slane %v1172, 4
        %v1175 = vshll.u32 %v1120, 16
        %v1177 = vrot.slane %v1175, 5
        %v1178 = vor.u32 %v1174, %v1177
        %v1179 = vrot.slane %v1178, 4
        %v1181 = vshll.u32 %v1121, 16
        %v1183 = vrot.slane %v1181, 5
        %v1184 = vsel %vm1170, %v1179, %v1183
        %v1185 = vshrl.u32 %v1121, 16
        %v1187 = vrot.slane %v1185, 4
        %v1188 = vor.u32 %v1187, %v1183
        %v1189 = vrot.slane %v1188, 4
        %v1191 = vshll.u32 %v1122, 16
        %v1193 = vrot.slane %v1191, 5
        %v1194 = vsel %vm1170, %v1189, %v1193
        %v1196 = vshrl.u32 %v1123, 16
        %v1198 = vrot.slane %v1196, 4
        %v1199 = vshll.u32 %v1123, 16
        %v1201 = vrot.slane %v1199, 5
        %v1202 = vor.u32 %v1198, %v1201
        %v1203 = vrot.slane %v1202, 4
        %v1205 = vshll.u32 %v1124, 16
        %v1207 = vrot.slane %v1205, 5
        %v1208 = vsel %vm1170, %v1203, %v1207
        %v1209 = vshrl.u32 %v1124, 16
        %v1211 = vrot.slane %v1209, 4
        %v1212 = vor.u32 %v1211, %v1207
        %v1213 = vrot.slane %v1212, 4
        %v1215 = vshll.u32 %v1125, 16
        %v1217 = vrot.slane %v1215, 5
        %v1218 = vsel %vm1170, %v1213, %v1217
        %v1220 = vshrl.u32 %v1126, 16
        %v1222 = vrot.slane %v1220, 4
        %v1223 = vshll.u32 %v1126, 16
        %v1225 = vrot.slane %v1223, 5
        %v1226 = vor.u32 %v1222, %v1225
        %v1227 = vrot.slane %v1226, 4
        %v1229 = vshll.u32 %v1127, 16
        %v1231 = vrot.slane %v1229, 5
        %v1232 = vsel %vm1170, %v1227, %v1231
        %v1233 = vshrl.u32 %v1127, 16
        %v1235 = vrot.slane %v1233, 4
        %v1236 = vor.u32 %v1235, %v1231
        %v1237 = vrot.slane %v1236, 4
        %v1239 = vshll.u32 %v1128, 16
        %v1241 = vrot.slane %v1239, 5
        %v1242 = vsel %vm1170, %v1237, %v1241
        %v1244 = vshrl.u32 %v1129, 16
        %v1246 = vrot.slane %v1244, 4
        %v1247 = vshll.u32 %v1129, 16
        %v1249 = vrot.slane %v1247, 5
        %v1250 = vor.u32 %v1246, %v1249
        %v1251 = vrot.slane %v1250, 4
        %v1253 = vshll.u32 %v1130, 16
        %v1255 = vrot.slane %v1253, 5
        %v1256 = vsel %vm1170, %v1251, %v1255
        %v1257 = vshrl.u32 %v1130, 16
        %v1259 = vrot.slane %v1257, 4
        %v1260 = vor.u32 %v1259, %v1255
        %v1261 = vrot.slane %v1260, 4
        %v1263 = vshll.u32 %v1131, 16
        %v1265 = vrot.slane %v1263, 5
        %v1266 = vsel %vm1170, %v1261, %v1265
        %v1268 = vshrl.u32 %v1132, 16
        %v1270 = vrot.slane %v1268, 4
        %v1271 = vshll.u32 %v1132, 16
        %v1273 = vrot.slane %v1271, 5
        %v1274 = vor.u32 %v1270, %v1273
        %v1275 = vrot.slane %v1274, 4
        %v1277 = vshll.u32 %v1133, 16
        %v1279 = vrot.slane %v1277, 5
        %v1280 = vsel %vm1170, %v1275, %v1279
        %v1281 = vshrl.u32 %v1133, 16
        %v1283 = vrot.slane %v1281, 4
        %v1284 = vor.u32 %v1283, %v1279
        %v1285 = vrot.slane %v1284, 4
        %v1287 = vshll.u32 %v1134, 16
        %v1289 = vrot.slane %v1287, 5
        %v1290 = vsel %vm1170, %v1285, %v1289
        %v1292 = vshrl.u32 %v1135, 16
        %v1294 = vrot.slane %v1292, 4
        %v1295 = vshll.u32 %v1135, 16
        %v1297 = vrot.slane %v1295, 5
        %v1298 = vor.u32 %v1294, %v1297
        %v1299 = vrot.slane %v1298, 4
        %v1301 = vshll.u32 %v1136, 16
        %v1303 = vrot.slane %v1301, 5
        %v1304 = vsel %vm1170, %v1299, %v1303
        %v1305 = vshrl.u32 %v1136, 16
        %v1307 = vrot.slane %v1305, 4
        %v1308 = vor.u32 %v1307, %v1303
        %v1309 = vrot.slane %v1308, 4
        %v1311 = vshll.u32 %v1137, 16
        %v1313 = vrot.slane %v1311, 5
        %v1314 = vsel %vm1170, %v1309, %v1313
        %v1316 = vshrl.u32 %v1138, 16
        %v1318 = vrot.slane %v1316, 4
        %v1319 = vshll.u32 %v1138, 16
        %v1321 = vrot.slane %v1319, 5
        %v1322 = vor.u32 %v1318, %v1321
        %v1323 = vrot.slane %v1322, 4
        %v1325 = vshll.u32 %v1139, 16
        %v1327 = vrot.slane %v1325, 5
        %v1328 = vsel %vm1170, %v1323, %v1327
        %v1329 = vshrl.u32 %v1139, 16
        %v1331 = vrot.slane %v1329, 4
        %v1332 = vor.u32 %v1331, %v1327
        %v1333 = vrot.slane %v1332, 4
        %v1335 = vshll.u32 %v1140, 16
        %v1337 = vrot.slane %v1335, 5
        %v1338 = vsel %vm1170, %v1333, %v1337
        %v1340 = vshrl.u32 %v1141, 16
        %v1342 = vrot.slane %v1340, 4
        %v1343 = vshll.u32 %v1141, 16
        %v1345 = vrot.slane %v1343, 5
        %v1346 = vor.u32 %v1342, %v1345
        %v1347 = vrot.slane %v1346, 4
        %v1349 = vshll.u32 %v1142, 16
        %v1351 = vrot.slane %v1349, 5
        %v1352 = vsel %vm1170, %v1347, %v1351
        %v1353 = vshrl.u32 %v1142, 16
        %v1355 = vrot.slane %v1353, 4
        %v1356 = vor.u32 %v1355, %v1351
        %v1357 = vrot.slane %v1356, 4
        %v1359 = vshll.u32 %v1143, 16
        %v1361 = vrot.slane %v1359, 5
        %v1362 = vsel %vm1170, %v1357, %v1361
        %v1364 = vshrl.u32 %v1144, 16
        %v1366 = vrot.slane %v1364, 4
        %v1367 = vshll.u32 %v1144, 16
        %v1369 = vrot.slane %v1367, 5
        %v1370 = vor.u32 %v1366, %v1369
        %v1371 = vrot.slane %v1370, 4
        %v1373 = vshll.u32 %v1145, 16
        %v1375 = vrot.slane %v1373, 5
        %v1376 = vsel %vm1170, %v1371, %v1375
        %v1377 = vshrl.u32 %v1145, 16
        %v1379 = vrot.slane %v1377, 4
        %v1380 = vor.u32 %v1379, %v1375
        %v1381 = vrot.slane %v1380, 4
        %v1383 = vshll.u32 %v1146, 16
        %v1385 = vrot.slane %v1383, 5
        %v1386 = vsel %vm1170, %v1381, %v1385
        %v1388 = vshrl.u32 %v1147, 16
        %v1390 = vrot.slane %v1388, 4
        %v1391 = vshll.u32 %v1147, 16
        %v1393 = vrot.slane %v1391, 5
        %v1394 = vor.u32 %v1390, %v1393
        %v1395 = vrot.slane %v1394, 4
        %v1397 = vshll.u32 %v1148, 16
        %v1399 = vrot.slane %v1397, 5
        %v1400 = vsel %vm1170, %v1395, %v1399
        %v1401 = vshrl.u32 %v1148, 16
        %v1403 = vrot.slane %v1401, 4
        %v1404 = vor.u32 %v1403, %v1399
        %v1405 = vrot.slane %v1404, 4
        %v1407 = vshll.u32 %v1149, 16
        %v1409 = vrot.slane %v1407, 5
        %v1410 = vsel %vm1170, %v1405, %v1409
        %v1412 = vshrl.u32 %v1150, 16
        %v1414 = vrot.slane %v1412, 4
        %v1415 = vshll.u32 %v1150, 16
        %v1417 = vrot.slane %v1415, 5
        %v1418 = vor.u32 %v1414, %v1417
        %v1419 = vrot.slane %v1418, 4
        %v1421 = vshll.u32 %v1151, 16
        %v1423 = vrot.slane %v1421, 5
        %v1424 = vsel %vm1170, %v1419, %v1423
        %v1425 = vshrl.u32 %v1151, 16
        %v1427 = vrot.slane %v1425, 4
        %v1428 = vor.u32 %v1427, %v1423
        %v1429 = vrot.slane %v1428, 4
        %v1431 = vshll.u32 %v1152, 16
        %v1433 = vrot.slane %v1431, 5
        %v1434 = vsel %vm1170, %v1429, %v1433
        %v1436 = vshrl.u32 %v1153, 16
        %v1438 = vrot.slane %v1436, 4
        %v1439 = vshll.u32 %v1153, 16
        %v1441 = vrot.slane %v1439, 5
        %v1442 = vor.u32 %v1438, %v1441
        %v1443 = vrot.slane %v1442, 4
        %v1445 = vshll.u32 %v1154, 16
        %v1447 = vrot.slane %v1445, 5
        %v1448 = vsel %vm1170, %v1443, %v1447
        %v1449 = vshrl.u32 %v1154, 16
        %v1451 = vrot.slane %v1449, 4
        %v1452 = vor.u32 %v1451, %v1447
        %v1453 = vrot.slane %v1452, 4
        %v1455 = vshll.u32 %v1155, 16
        %v1457 = vrot.slane %v1455, 5
        %v1458 = vsel %vm1170, %v1453, %v1457
        %v1460 = vshrl.u32 %v1156, 16
        %v1462 = vrot.slane %v1460, 4
        %v1463 = vshll.u32 %v1156, 16
        %v1465 = vrot.slane %v1463, 5
        %v1466 = vor.u32 %v1462, %v1465
        %v1467 = vrot.slane %v1466, 4
        %v1469 = vshll.u32 %v1157, 16
        %v1471 = vrot.slane %v1469, 5
        %v1472 = vsel %vm1170, %v1467, %v1471
        %v1473 = vshrl.u32 %v1157, 16
        %v1475 = vrot.slane %v1473, 4
        %v1476 = vor.u32 %v1475, %v1471
        %v1477 = vrot.slane %v1476, 4
        %v1479 = vshll.u32 %v1158, 16
        %v1481 = vrot.slane %v1479, 5
        %v1482 = vsel %vm1170, %v1477, %v1481
        %v1484 = vshrl.u32 %v1159, 16
        %v1486 = vrot.slane %v1484, 4
        %v1487 = vshll.u32 %v1159, 16
        %v1489 = vrot.slane %v1487, 5
        %v1490 = vor.u32 %v1486, %v1489
        %v1491 = vrot.slane %v1490, 4
        %v1493 = vshll.u32 %v1160, 16
        %v1495 = vrot.slane %v1493, 5
        %v1496 = vsel %vm1170, %v1491, %v1495
        %v1497 = vshrl.u32 %v1160, 16
        %v1499 = vrot.slane %v1497, 4
        %v1500 = vor.u32 %v1499, %v1495
        %v1501 = vrot.slane %v1500, 4
        %v1503 = vshll.u32 %v1161, 16
        %v1505 = vrot.slane %v1503, 5
        %v1506 = vsel %vm1170, %v1501, %v1505
        %v1508 = vshrl.u32 %v1162, 16
        %v1510 = vrot.slane %v1508, 4
        %v1511 = vshll.u32 %v1162, 16
        %v1513 = vrot.slane %v1511, 5
        %v1514 = vor.u32 %v1510, %v1513
        %v1515 = vrot.slane %v1514, 4
        %v1517 = vshll.u32 %v1163, 16
        %v1519 = vrot.slane %v1517, 5
        %v1520 = vsel %vm1170, %v1515, %v1519
        %v1521 = vshrl.u32 %v1163, 16
        %v1523 = vrot.slane %v1521, 4
        %v1524 = vor.u32 %v1523, %v1519
        %v1525 = vrot.slane %v1524, 4
        %v1527 = vshll.u32 %v1164, 16
        %v1529 = vrot.slane %v1527, 5
        %v1530 = vsel %vm1170, %v1525, %v1529
        %v1532 = vshrl.u32 %v1165, 16
        %v1534 = vrot.slane %v1532, 4
        %v1535 = vshll.u32 %v1165, 16
        %v1537 = vrot.slane %v1535, 5
        %v1538 = vor.u32 %v1534, %v1537
        %v1539 = vrot.slane %v1538, 4
        %v1541 = vshll.u32 %v1166, 16
        %v1543 = vrot.slane %v1541, 5
        %v1544 = vsel %vm1170, %v1539, %v1543
        %v1545 = vshrl.u32 %v1166, 16
        %v1547 = vrot.slane %v1545, 4
        %v1548 = vor.u32 %v1547, %v1543
        %v1549 = vrot.slane %v1548, 4
        %v1551 = vshll.u32 %v1167, 16
        %v1553 = vrot.slane %v1551, 5
        %v1554 = vsel %vm1170, %v1549, %v1553
        %s1555 = scalar_lea.vmem %s1, 2
        %v1556 = vld [vmem:[%s1555] sm:$0x3]
        %v1557 = vunpack.c.l.b16 %v1184
        %v1558 = vunpack.c.l.b16 %v1194
        %v1559 = vunpack.c.l.b16 %v1208
        %v1560 = vunpack.c.l.b16 %v1218
        %v1561 = vunpack.c.l.b16 %v1232
        %v1562 = vunpack.c.l.b16 %v1242
        %v1563 = vunpack.c.l.b16 %v1256
        %v1564 = vunpack.c.l.b16 %v1266
        %v1565 = vunpack.c.l.b16 %v1280
        %v1566 = vunpack.c.l.b16 %v1290
        %v1567 = vunpack.c.l.b16 %v1304
        %v1568 = vunpack.c.l.b16 %v1314
        %v1569 = vunpack.c.l.b16 %v1328
        %v1570 = vunpack.c.l.b16 %v1338
        %v1571 = vunpack.c.l.b16 %v1352
        %v1572 = vunpack.c.l.b16 %v1362
        %v1573 = vunpack.c.l.b16 %v1376
        %v1574 = vunpack.c.l.b16 %v1386
        %v1575 = vunpack.c.l.b16 %v1400
        %v1576 = vunpack.c.l.b16 %v1410
        %v1577 = vunpack.c.l.b16 %v1424
        %v1578 = vunpack.c.l.b16 %v1434
        %v1579 = vunpack.c.l.b16 %v1448
        %v1580 = vunpack.c.l.b16 %v1458
        %v1581 = vunpack.c.l.b16 %v1472
        %v1582 = vunpack.c.l.b16 %v1482
        %v1583 = vunpack.c.l.b16 %v1496
        %v1584 = vunpack.c.l.b16 %v1506
        %v1585 = vunpack.c.l.b16 %v1520
        %v1586 = vunpack.c.l.b16 %v1530
        %v1587 = vunpack.c.l.b16 %v1544
        %v1588 = vunpack.c.l.b16 %v1554
        %v1589 = vpack.c.b16 %v1558, %v1557
        %v1590 = vpack.c.b16 %v1560, %v1559
        %v1591 = vpack.c.b16 %v1562, %v1561
        %v1592 = vpack.c.b16 %v1564, %v1563
        %v1593 = vpack.c.b16 %v1566, %v1565
        %v1594 = vpack.c.b16 %v1568, %v1567
        %v1595 = vpack.c.b16 %v1570, %v1569
        %v1596 = vpack.c.b16 %v1572, %v1571
        %v1597 = vpack.c.b16 %v1574, %v1573
        %v1598 = vpack.c.b16 %v1576, %v1575
        %v1599 = vpack.c.b16 %v1578, %v1577
        %v1600 = vpack.c.b16 %v1580, %v1579
        %v1601 = vpack.c.b16 %v1582, %v1581
        %v1602 = vpack.c.b16 %v1584, %v1583
        %v1603 = vpack.c.b16 %v1586, %v1585
        %v1604 = vpack.c.b16 %v1588, %v1587
        %v1606 = vsel %vm874, %v1589, 0
        %v1609 = vsel %vm874, %v1590, 0
        %v1612 = vsel %vm874, %v1591, 0
        %v1615 = vsel %vm874, %v1592, 0
        %v1618 = vsel %vm874, %v1593, 0
        %v1621 = vsel %vm874, %v1594, 0
        %v1624 = vsel %vm874, %v1595, 0
        %v1627 = vsel %vm874, %v1596, 0
        %v1630 = vsel %vm874, %v1597, 0
        %v1633 = vsel %vm874, %v1598, 0
        %v1636 = vsel %vm874, %v1599, 0
        %v1639 = vsel %vm874, %v1600, 0
        %v1642 = vsel %vm874, %v1601, 0
        %v1645 = vsel %vm874, %v1602, 0
        %v1648 = vsel %vm874, %v1603, 0
        %v1651 = vsel %vm874, %v1604, 0
        %v1654 = vsel %vm923, %v1556, 0
        %1656 = vmatprep.subr.bf16.mxu0 0
        %1657 = vmatpush1.bf16.msra.mxu0 %v1654
        %1658 = vmatprep.subr.bf16.mxu0 0
        %1659 = vmatpush1.bf16.msra.mxu0 0
        %1660 = vmatprep.subr.bf16.mxu0 0
        %1661 = vmatpush1.bf16.msra.mxu0 0
        %1662 = vmatprep.subr.bf16.mxu0 0
        %1663 = vmatpush1.bf16.msra.mxu0 0
        %1664 = vmatprep.subr.bf16.mxu0 0
        %1665 = vmatpush1.bf16.msra.mxu0 0
        %1666 = vmatprep.subr.bf16.mxu0 0
        %1667 = vmatpush1.bf16.msra.mxu0 0
        %1668 = vmatprep.subr.bf16.mxu0 0
        %1669 = vmatpush1.bf16.msra.mxu0 0
        %1670 = vmatprep.subr.bf16.mxu0 0
        %1671 = vmatpush1.bf16.msra.mxu0 0
        %1672 = vmatprep.subr.bf16.mxu0 0
        %1673 = vmatpush1.bf16.msra.mxu0 0
        %1674 = vmatprep.subr.bf16.mxu0 0
        %1675 = vmatpush1.bf16.msra.mxu0 0
        %1676 = vmatprep.subr.bf16.mxu0 0
        %1677 = vmatpush1.bf16.msra.mxu0 0
        %1678 = vmatprep.subr.bf16.mxu0 0
        %1679 = vmatpush1.bf16.msra.mxu0 0
        %1680 = vmatprep.subr.bf16.mxu0 0
        %1681 = vmatpush1.bf16.msra.mxu0 0
        %1682 = vmatprep.subr.bf16.mxu0 0
        %1683 = vmatpush1.bf16.msra.mxu0 0
        %1684 = vmatprep.subr.bf16.mxu0 0
        %1685 = vmatpush1.bf16.msra.mxu0 0
        %1686 = vmatprep.subr.bf16.mxu0 0
        %1687 = vmatpush1.bf16.msra.mxu0 0
        %1688 = vmatprep.mubr.bf16.mxu0 0
        %1689 = vmatmul.mubr.bf16.gmra.mrb[0].mxu0 %v1606
        %v1690 = vpop.f32.mrb[0].mxu0
        %v1691 = vadd.f32 0.0, %v1690
        %v1692 = vpop.f32.mrb[0].mxu0
        %v1693 = vpop.f32.mrb[0].mxu0
        %v1694 = vadd.f32 0.0, %v1693
        %v1695 = vpop.f32.mrb[0].mxu0
        %1696 = vmatprep.mubr.bf16.mxu0 0
        %1697 = vmatmul.mubr.bf16.gmra.mrb[0].mxu0 %v1609
        %v1698 = vpop.f32.mrb[0].mxu0
        %v1699 = vadd.f32 0.0, %v1698
        %v1700 = vpop.f32.mrb[0].mxu0
        %v1701 = vpop.f32.mrb[0].mxu0
        %v1702 = vadd.f32 0.0, %v1701
        %v1703 = vpop.f32.mrb[0].mxu0
        %1704 = vmatprep.mubr.bf16.mxu0 0
        %1705 = vmatmul.mubr.bf16.gmra.mrb[0].mxu0 %v1612
        %v1706 = vpop.f32.mrb[0].mxu0
        %v1707 = vadd.f32 0.0, %v1706
        %v1708 = vpop.f32.mrb[0].mxu0
        %v1709 = vpop.f32.mrb[0].mxu0
        %v1710 = vadd.f32 0.0, %v1709
        %v1711 = vpop.f32.mrb[0].mxu0
        %1712 = vmatprep.mubr.bf16.mxu0 0
        %1713 = vmatmul.mubr.bf16.gmra.mrb[0].mxu0 %v1615
        %v1714 = vpop.f32.mrb[0].mxu0
        %v1715 = vadd.f32 0.0, %v1714
        %v1716 = vpop.f32.mrb[0].mxu0
        %v1717 = vpop.f32.mrb[0].mxu0
        %v1718 = vadd.f32 0.0, %v1717
        %v1719 = vpop.f32.mrb[0].mxu0
        %1720 = vmatprep.mubr.bf16.mxu0 0
        %1721 = vmatmul.mubr.bf16.gmra.mrb[0].mxu0 %v1618
        %v1722 = vpop.f32.mrb[0].mxu0
        %v1723 = vadd.f32 0.0, %v1722
        %v1724 = vpop.f32.mrb[0].mxu0
        %v1725 = vpop.f32.mrb[0].mxu0
        %v1726 = vadd.f32 0.0, %v1725
        %v1727 = vpop.f32.mrb[0].mxu0
        %1728 = vmatprep.mubr.bf16.mxu0 0
        %1729 = vmatmul.mubr.bf16.gmra.mrb[0].mxu0 %v1621
        %v1730 = vpop.f32.mrb[0].mxu0
        %v1731 = vadd.f32 0.0, %v1730
        %v1732 = vpop.f32.mrb[0].mxu0
        %v1733 = vpop.f32.mrb[0].mxu0
        %v1734 = vadd.f32 0.0, %v1733
        %v1735 = vpop.f32.mrb[0].mxu0
        %1736 = vmatprep.mubr.bf16.mxu0 0
        %1737 = vmatmul.mubr.bf16.gmra.mrb[0].mxu0 %v1624
        %v1738 = vpop.f32.mrb[0].mxu0
        %v1739 = vadd.f32 0.0, %v1738
        %v1740 = vpop.f32.mrb[0].mxu0
        %v1741 = vpop.f32.mrb[0].mxu0
        %v1742 = vadd.f32 0.0, %v1741
        %v1743 = vpop.f32.mrb[0].mxu0
        %1744 = vmatprep.mubr.bf16.mxu0 0
        %1745 = vmatmul.mubr.bf16.gmra.mrb[0].mxu0 %v1627
        %v1746 = vpop.f32.mrb[0].mxu0
        %v1747 = vadd.f32 0.0, %v1746
        %v1748 = vpop.f32.mrb[0].mxu0
        %v1749 = vpop.f32.mrb[0].mxu0
        %v1750 = vadd.f32 0.0, %v1749
        %v1751 = vpop.f32.mrb[0].mxu0
        %1752 = vmatprep.mubr.bf16.mxu0 0
        %1753 = vmatmul.mubr.bf16.gmra.mrb[0].mxu0 %v1630
        %v1754 = vpop.f32.mrb[0].mxu0
        %v1755 = vadd.f32 0.0, %v1754
        %v1756 = vpop.f32.mrb[0].mxu0
        %v1757 = vpop.f32.mrb[0].mxu0
        %v1758 = vadd.f32 0.0, %v1757
        %v1759 = vpop.f32.mrb[0].mxu0
        %1760 = vmatprep.mubr.bf16.mxu0 0
        %1761 = vmatmul.mubr.bf16.gmra.mrb[0].mxu0 %v1633
        %v1762 = vpop.f32.mrb[0].mxu0
        %v1763 = vadd.f32 0.0, %v1762
        %v1764 = vpop.f32.mrb[0].mxu0
        %v1765 = vpop.f32.mrb[0].mxu0
        %v1766 = vadd.f32 0.0, %v1765
        %v1767 = vpop.f32.mrb[0].mxu0
        %1768 = vmatprep.mubr.bf16.mxu0 0
        %1769 = vmatmul.mubr.bf16.gmra.mrb[0].mxu0 %v1636
        %v1770 = vpop.f32.mrb[0].mxu0
        %v1771 = vadd.f32 0.0, %v1770
        %v1772 = vpop.f32.mrb[0].mxu0
        %v1773 = vpop.f32.mrb[0].mxu0
        %v1774 = vadd.f32 0.0, %v1773
        %v1775 = vpop.f32.mrb[0].mxu0
        %1776 = vmatprep.mubr.bf16.mxu0 0
        %1777 = vmatmul.mubr.bf16.gmra.mrb[0].mxu0 %v1639
        %v1778 = vpop.f32.mrb[0].mxu0
        %v1779 = vadd.f32 0.0, %v1778
        %v1780 = vpop.f32.mrb[0].mxu0
        %v1781 = vpop.f32.mrb[0].mxu0
        %v1782 = vadd.f32 0.0, %v1781
        %v1783 = vpop.f32.mrb[0].mxu0
        %1784 = vmatprep.mubr.bf16.mxu0 0
        %1785 = vmatmul.mubr.bf16.gmra.mrb[0].mxu0 %v1642
        %v1786 = vpop.f32.mrb[0].mxu0
        %v1787 = vadd.f32 0.0, %v1786
        %v1788 = vpop.f32.mrb[0].mxu0
        %v1789 = vpop.f32.mrb[0].mxu0
        %v1790 = vadd.f32 0.0, %v1789
        %v1791 = vpop.f32.mrb[0].mxu0
        %1792 = vmatprep.mubr.bf16.mxu0 0
        %1793 = vmatmul.mubr.bf16.gmra.mrb[0].mxu0 %v1645
        %v1794 = vpop.f32.mrb[0].mxu0
        %v1795 = vadd.f32 0.0, %v1794
        %v1796 = vpop.f32.mrb[0].mxu0
        %v1797 = vpop.f32.mrb[0].mxu0
        %v1798 = vadd.f32 0.0, %v1797
        %v1799 = vpop.f32.mrb[0].mxu0
        %1800 = vmatprep.mubr.bf16.mxu0 0
        %1801 = vmatmul.mubr.bf16.gmra.mrb[0].mxu0 %v1648
        %v1802 = vpop.f32.mrb[0].mxu0
        %v1803 = vadd.f32 0.0, %v1802
        %v1804 = vpop.f32.mrb[0].mxu0
        %v1805 = vpop.f32.mrb[0].mxu0
        %v1806 = vadd.f32 0.0, %v1805
        %v1807 = vpop.f32.mrb[0].mxu0
        %1808 = vmatprep.mubr.bf16.mxu0 0
        %1809 = vmatmul.mubr.bf16.gmra.mrb[0].mxu0 %v1651
        %v1810 = vpop.f32.mrb[0].mxu0
        %v1811 = vadd.f32 0.0, %v1810
        %v1812 = vpop.f32.mrb[0].mxu0
        %v1813 = vpop.f32.mrb[0].mxu0
        %v1814 = vadd.f32 0.0, %v1813
        %v1815 = vpop.f32.mrb[0].mxu0
        %1816 = vdwg.mxu0
        %v1817 = vld [vmem:[#allocation3] sm:$0xff]
        %v1818 = vld [vmem:[#allocation3 + $0x8] sm:$0xff]
        %v1819 = vld [vmem:[#allocation3 + $0x10] sm:$0xff]
        %v1820 = vld [vmem:[#allocation3 + $0x18] sm:$0xff]
        %v1821 = vld [vmem:[#allocation3 + $0x20] sm:$0xff]
        %v1822 = vld [vmem:[#allocation3 + $0x28] sm:$0xff]
        %v1823 = vld [vmem:[#allocation3 + $0x30] sm:$0xff]
        %v1824 = vld [vmem:[#allocation3 + $0x38] sm:$0xff]
        %v1825 = vld [vmem:[#allocation3 + $0x40] sm:$0xff]
        %v1826 = vld [vmem:[#allocation3 + $0x48] sm:$0xff]
        %v1827 = vld [vmem:[#allocation3 + $0x50] sm:$0xff]
        %v1828 = vld [vmem:[#allocation3 + $0x58] sm:$0xff]
        %v1829 = vld [vmem:[#allocation3 + $0x60] sm:$0xff]
        %v1830 = vld [vmem:[#allocation3 + $0x68] sm:$0xff]
        %v1831 = vld [vmem:[#allocation3 + $0x70] sm:$0xff]
        %v1832 = vld [vmem:[#allocation3 + $0x78] sm:$0xff]
        %v1833 = vld [vmem:[#allocation3 + $0x80] sm:$0xff]
        %v1834 = vld [vmem:[#allocation3 + $0x88] sm:$0xff]
        %v1835 = vld [vmem:[#allocation3 + $0x90] sm:$0xff]
        %v1836 = vld [vmem:[#allocation3 + $0x98] sm:$0xff]
        %v1837 = vld [vmem:[#allocation3 + $0xa0] sm:$0xff]
        %v1838 = vld [vmem:[#allocation3 + $0xa8] sm:$0xff]
        %v1839 = vld [vmem:[#allocation3 + $0xb0] sm:$0xff]
        %v1840 = vld [vmem:[#allocation3 + $0xb8] sm:$0xff]
        %v1841 = vld [vmem:[#allocation3 + $0xc0] sm:$0xff]
        %v1842 = vld [vmem:[#allocation3 + $0xc8] sm:$0xff]
        %v1843 = vld [vmem:[#allocation3 + $0xd0] sm:$0xff]
        %v1844 = vld [vmem:[#allocation3 + $0xd8] sm:$0xff]
        %v1845 = vld [vmem:[#allocation3 + $0xe0] sm:$0xff]
        %v1846 = vld [vmem:[#allocation3 + $0xe8] sm:$0xff]
        %v1847 = vld [vmem:[#allocation3 + $0xf0] sm:$0xff]
        %v1848 = vld [vmem:[#allocation3 + $0xf8] sm:$0xff]
        %v1849 = vadd.f32 %v1817, %v1691
        %v1850 = vadd.f32 %v1818, %v1694
        %v1851 = vadd.f32 %v1819, %v1699
        %v1852 = vadd.f32 %v1820, %v1702
        %v1853 = vadd.f32 %v1821, %v1707
        %v1854 = vadd.f32 %v1822, %v1710
        %v1855 = vadd.f32 %v1823, %v1715
        %v1856 = vadd.f32 %v1824, %v1718
        %v1857 = vadd.f32 %v1825, %v1723
        %v1858 = vadd.f32 %v1826, %v1726
        %v1859 = vadd.f32 %v1827, %v1731
        %v1860 = vadd.f32 %v1828, %v1734
        %v1861 = vadd.f32 %v1829, %v1739
        %v1862 = vadd.f32 %v1830, %v1742
        %v1863 = vadd.f32 %v1831, %v1747
        %v1864 = vadd.f32 %v1832, %v1750
        %v1865 = vadd.f32 %v1833, %v1755
        %v1866 = vadd.f32 %v1834, %v1758
        %v1867 = vadd.f32 %v1835, %v1763
        %v1868 = vadd.f32 %v1836, %v1766
        %v1869 = vadd.f32 %v1837, %v1771
        %v1870 = vadd.f32 %v1838, %v1774
        %v1871 = vadd.f32 %v1839, %v1779
        %v1872 = vadd.f32 %v1840, %v1782
        %v1873 = vadd.f32 %v1841, %v1787
        %v1874 = vadd.f32 %v1842, %v1790
        %v1875 = vadd.f32 %v1843, %v1795
        %v1876 = vadd.f32 %v1844, %v1798
        %v1877 = vadd.f32 %v1845, %v1803
        %v1878 = vadd.f32 %v1846, %v1806
        %v1879 = vadd.f32 %v1847, %v1811
        %v1880 = vadd.f32 %v1848, %v1814
        %1881 = vst [vmem:[#allocation3] sm:$0xff] %v1849
        %1882 = vst [vmem:[#allocation3 + $0x8] sm:$0xff] %v1850
        %1883 = vst [vmem:[#allocation3 + $0x10] sm:$0xff] %v1851
        %1884 = vst [vmem:[#allocation3 + $0x18] sm:$0xff] %v1852
        %1885 = vst [vmem:[#allocation3 + $0x20] sm:$0xff] %v1853
        %1886 = vst [vmem:[#allocation3 + $0x28] sm:$0xff] %v1854
        %1887 = vst [vmem:[#allocation3 + $0x30] sm:$0xff] %v1855
        %1888 = vst [vmem:[#allocation3 + $0x38] sm:$0xff] %v1856
        %1889 = vst [vmem:[#allocation3 + $0x40] sm:$0xff] %v1857
        %1890 = vst [vmem:[#allocation3 + $0x48] sm:$0xff] %v1858
        %1891 = vst [vmem:[#allocation3 + $0x50] sm:$0xff] %v1859
        %1892 = vst [vmem:[#allocation3 + $0x58] sm:$0xff] %v1860
        %1893 = vst [vmem:[#allocation3 + $0x60] sm:$0xff] %v1861
        %1894 = vst [vmem:[#allocation3 + $0x68] sm:$0xff] %v1862
        %1895 = vst [vmem:[#allocation3 + $0x70] sm:$0xff] %v1863
        %1896 = vst [vmem:[#allocation3 + $0x78] sm:$0xff] %v1864
        %1897 = vst [vmem:[#allocation3 + $0x80] sm:$0xff] %v1865
        %1898 = vst [vmem:[#allocation3 + $0x88] sm:$0xff] %v1866
        %1899 = vst [vmem:[#allocation3 + $0x90] sm:$0xff] %v1867
        %1900 = vst [vmem:[#allocation3 + $0x98] sm:$0xff] %v1868
        %1901 = vst [vmem:[#allocation3 + $0xa0] sm:$0xff] %v1869
        %1902 = vst [vmem:[#allocation3 + $0xa8] sm:$0xff] %v1870
        %1903 = vst [vmem:[#allocation3 + $0xb0] sm:$0xff] %v1871
        %1904 = vst [vmem:[#allocation3 + $0xb8] sm:$0xff] %v1872
        %1905 = vst [vmem:[#allocation3 + $0xc0] sm:$0xff] %v1873
        %1906 = vst [vmem:[#allocation3 + $0xc8] sm:$0xff] %v1874
        %1907 = vst [vmem:[#allocation3 + $0xd0] sm:$0xff] %v1875
        %1908 = vst [vmem:[#allocation3 + $0xd8] sm:$0xff] %v1876
        %1909 = vst [vmem:[#allocation3 + $0xe0] sm:$0xff] %v1877
        %1910 = vst [vmem:[#allocation3 + $0xe8] sm:$0xff] %v1878
        %1911 = vst [vmem:[#allocation3 + $0xf0] sm:$0xff] %v1879
        %1912 = vst [vmem:[#allocation3 + $0xf8] sm:$0xff] %v1880
        %v1913 = vld [vmem:[#allocation2] sm:$0xe]
        %v1914 = vld [vmem:[#allocation2 + $0x4] sm:$0xf]
        %v1915 = vld [vmem:[#allocation2 + $0x8] sm:$0x1]
        %v1916 = vld [vmem:[#allocation2 + $0xc] sm:$0xe]
        %v1917 = vld [vmem:[#allocation2 + $0x10] sm:$0xf]
        %v1918 = vld [vmem:[#allocation2 + $0x14] sm:$0x1]
        %v1919 = vld [vmem:[#allocation2 + $0x18] sm:$0xe]
        %v1920 = vld [vmem:[#allocation2 + $0x1c] sm:$0xf]
        %v1921 = vld [vmem:[#allocation2 + $0x20] sm:$0x1]
        %v1922 = vld [vmem:[#allocation2 + $0x24] sm:$0xe]
        %v1923 = vld [vmem:[#allocation2 + $0x28] sm:$0xf]
        %v1924 = vld [vmem:[#allocation2 + $0x2c] sm:$0x1]
        %v1925 = vld [vmem:[#allocation2 + $0x30] sm:$0xe]
        %v1926 = vld [vmem:[#allocation2 + $0x34] sm:$0xf]
        %v1927 = vld [vmem:[#allocation2 + $0x38] sm:$0x1]
        %v1928 = vld [vmem:[#allocation2 + $0x3c] sm:$0xe]
        %v1929 = vld [vmem:[#allocation2 + $0x40] sm:$0xf]
        %v1930 = vld [vmem:[#allocation2 + $0x44] sm:$0x1]
        %v1931 = vld [vmem:[#allocation2 + $0x48] sm:$0xe]
        %v1932 = vld [vmem:[#allocation2 + $0x4c] sm:$0xf]
        %v1933 = vld [vmem:[#allocation2 + $0x50] sm:$0x1]
        %v1934 = vld [vmem:[#allocation2 + $0x54] sm:$0xe]
        %v1935 = vld [vmem:[#allocation2 + $0x58] sm:$0xf]
        %v1936 = vld [vmem:[#allocation2 + $0x5c] sm:$0x1]
        %v1937 = vld [vmem:[#allocation2 + $0x60] sm:$0xe]
        %v1938 = vld [vmem:[#allocation2 + $0x64] sm:$0xf]
        %v1939 = vld [vmem:[#allocation2 + $0x68] sm:$0x1]
        %v1940 = vld [vmem:[#allocation2 + $0x6c] sm:$0xe]
        %v1941 = vld [vmem:[#allocation2 + $0x70] sm:$0xf]
        %v1942 = vld [vmem:[#allocation2 + $0x74] sm:$0x1]
        %v1943 = vld [vmem:[#allocation2 + $0x78] sm:$0xe]
        %v1944 = vld [vmem:[#allocation2 + $0x7c] sm:$0xf]
        %v1945 = vld [vmem:[#allocation2 + $0x80] sm:$0x1]
        %v1946 = vld [vmem:[#allocation2 + $0x84] sm:$0xe]
        %v1947 = vld [vmem:[#allocation2 + $0x88] sm:$0xf]
        %v1948 = vld [vmem:[#allocation2 + $0x8c] sm:$0x1]
        %v1949 = vld [vmem:[#allocation2 + $0x90] sm:$0xe]
        %v1950 = vld [vmem:[#allocation2 + $0x94] sm:$0xf]
        %v1951 = vld [vmem:[#allocation2 + $0x98] sm:$0x1]
        %v1952 = vld [vmem:[#allocation2 + $0x9c] sm:$0xe]
        %v1953 = vld [vmem:[#allocation2 + $0xa0] sm:$0xf]
        %v1954 = vld [vmem:[#allocation2 + $0xa4] sm:$0x1]
        %v1955 = vld [vmem:[#allocation2 + $0xa8] sm:$0xe]
        %v1956 = vld [vmem:[#allocation2 + $0xac] sm:$0xf]
        %v1957 = vld [vmem:[#allocation2 + $0xb0] sm:$0x1]
        %v1958 = vld [vmem:[#allocation2 + $0xb4] sm:$0xe]
        %v1959 = vld [vmem:[#allocation2 + $0xb8] sm:$0xf]
        %v1960 = vld [vmem:[#allocation2 + $0xbc] sm:$0x1]
        %vm2009 = vcmask 1042432
        %vm2010 = vcmask 1046532
        %vm2011 = vmor %vm2009, %vm2010
        %v2012 = vrot.slane %v1913, 5
        %v2013 = vrot.slane %v2012, 4
        %v2014 = vrot.slane %v1914, 5
        %v2015 = vsel %vm2011, %v2013, %v2014
        %v2016 = vrot.slane %v2014, 4
        %v2017 = vrot.slane %v1915, 5
        %v2018 = vsel %vm2011, %v2016, %v2017
        %v2019 = vrot.slane %v1916, 5
        %v2020 = vrot.slane %v2019, 4
        %v2021 = vrot.slane %v1917, 5
        %v2022 = vsel %vm2011, %v2020, %v2021
        %v2023 = vrot.slane %v2021, 4
        %v2024 = vrot.slane %v1918, 5
        %v2025 = vsel %vm2011, %v2023, %v2024
        %v2026 = vrot.slane %v1919, 5
        %v2027 = vrot.slane %v2026, 4
        %v2028 = vrot.slane %v1920, 5
        %v2029 = vsel %vm2011, %v2027, %v2028
        %v2030 = vrot.slane %v2028, 4
        %v2031 = vrot.slane %v1921, 5
        %v2032 = vsel %vm2011, %v2030, %v2031
        %v2033 = vrot.slane %v1922, 5
        %v2034 = vrot.slane %v2033, 4
        %v2035 = vrot.slane %v1923, 5
        %v2036 = vsel %vm2011, %v2034, %v2035
        %v2037 = vrot.slane %v2035, 4
        %v2038 = vrot.slane %v1924, 5
        %v2039 = vsel %vm2011, %v2037, %v2038
        %v2040 = vrot.slane %v1925, 5
        %v2041 = vrot.slane %v2040, 4
        %v2042 = vrot.slane %v1926, 5
        %v2043 = vsel %vm2011, %v2041, %v2042
        %v2044 = vrot.slane %v2042, 4
        %v2045 = vrot.slane %v1927, 5
        %v2046 = vsel %vm2011, %v2044, %v2045
        %v2047 = vrot.slane %v1928, 5
        %v2048 = vrot.slane %v2047, 4
        %v2049 = vrot.slane %v1929, 5
        %v2050 = vsel %vm2011, %v2048, %v2049
        %v2051 = vrot.slane %v2049, 4
        %v2052 = vrot.slane %v1930, 5
        %v2053 = vsel %vm2011, %v2051, %v2052
        %v2054 = vrot.slane %v1931, 5
        %v2055 = vrot.slane %v2054, 4
        %v2056 = vrot.slane %v1932, 5
        %v2057 = vsel %vm2011, %v2055, %v2056
        %v2058 = vrot.slane %v2056, 4
        %v2059 = vrot.slane %v1933, 5
        %v2060 = vsel %vm2011, %v2058, %v2059
        %v2061 = vrot.slane %v1934, 5
        %v2062 = vrot.slane %v2061, 4
        %v2063 = vrot.slane %v1935, 5
        %v2064 = vsel %vm2011, %v2062, %v2063
        %v2065 = vrot.slane %v2063, 4
        %v2066 = vrot.slane %v1936, 5
        %v2067 = vsel %vm2011, %v2065, %v2066
        %v2068 = vrot.slane %v1937, 5
        %v2069 = vrot.slane %v2068, 4
        %v2070 = vrot.slane %v1938, 5
        %v2071 = vsel %vm2011, %v2069, %v2070
        %v2072 = vrot.slane %v2070, 4
        %v2073 = vrot.slane %v1939, 5
        %v2074 = vsel %vm2011, %v2072, %v2073
        %v2075 = vrot.slane %v1940, 5
        %v2076 = vrot.slane %v2075, 4
        %v2077 = vrot.slane %v1941, 5
        %v2078 = vsel %vm2011, %v2076, %v2077
        %v2079 = vrot.slane %v2077, 4
        %v2080 = vrot.slane %v1942, 5
        %v2081 = vsel %vm2011, %v2079, %v2080
        %v2082 = vrot.slane %v1943, 5
        %v2083 = vrot.slane %v2082, 4
        %v2084 = vrot.slane %v1944, 5
        %v2085 = vsel %vm2011, %v2083, %v2084
        %v2086 = vrot.slane %v2084, 4
        %v2087 = vrot.slane %v1945, 5
        %v2088 = vsel %vm2011, %v2086, %v2087
        %v2089 = vrot.slane %v1946, 5
        %v2090 = vrot.slane %v2089, 4
        %v2091 = vrot.slane %v1947, 5
        %v2092 = vsel %vm2011, %v2090, %v2091
        %v2093 = vrot.slane %v2091, 4
        %v2094 = vrot.slane %v1948, 5
        %v2095 = vsel %vm2011, %v2093, %v2094
        %v2096 = vrot.slane %v1949, 5
        %v2097 = vrot.slane %v2096, 4
        %v2098 = vrot.slane %v1950, 5
        %v2099 = vsel %vm2011, %v2097, %v2098
        %v2100 = vrot.slane %v2098, 4
        %v2101 = vrot.slane %v1951, 5
        %v2102 = vsel %vm2011, %v2100, %v2101
        %v2103 = vrot.slane %v1952, 5
        %v2104 = vrot.slane %v2103, 4
        %v2105 = vrot.slane %v1953, 5
        %v2106 = vsel %vm2011, %v2104, %v2105
        %v2107 = vrot.slane %v2105, 4
        %v2108 = vrot.slane %v1954, 5
        %v2109 = vsel %vm2011, %v2107, %v2108
        %v2110 = vrot.slane %v1955, 5
        %v2111 = vrot.slane %v2110, 4
        %v2112 = vrot.slane %v1956, 5
        %v2113 = vsel %vm2011, %v2111, %v2112
        %v2114 = vrot.slane %v2112, 4
        %v2115 = vrot.slane %v1957, 5
        %v2116 = vsel %vm2011, %v2114, %v2115
        %v2117 = vrot.slane %v1958, 5
        %v2118 = vrot.slane %v2117, 4
        %v2119 = vrot.slane %v1959, 5
        %v2120 = vsel %vm2011, %v2118, %v2119
        %v2121 = vrot.slane %v2119, 4
        %v2122 = vrot.slane %v1960, 5
        %v2123 = vsel %vm2011, %v2121, %v2122
        %s2124 = scalar_lea.vmem %s1, 4
        %v2125 = vld [vmem:[%s2124] sm:$0x3]
        %v2126 = vunpack.c.l.b16 %v2015
        %v2127 = vunpack.c.l.b16 %v2018
        %v2128 = vunpack.c.l.b16 %v2022
        %v2129 = vunpack.c.l.b16 %v2025
        %v2130 = vunpack.c.l.b16 %v2029
        %v2131 = vunpack.c.l.b16 %v2032
        %v2132 = vunpack.c.l.b16 %v2036
        %v2133 = vunpack.c.l.b16 %v2039
        %v2134 = vunpack.c.l.b16 %v2043
        %v2135 = vunpack.c.l.b16 %v2046
        %v2136 = vunpack.c.l.b16 %v2050
        %v2137 = vunpack.c.l.b16 %v2053
        %v2138 = vunpack.c.l.b16 %v2057
        %v2139 = vunpack.c.l.b16 %v2060
        %v2140 = vunpack.c.l.b16 %v2064
        %v2141 = vunpack.c.l.b16 %v2067
        %v2142 = vunpack.c.l.b16 %v2071
        %v2143 = vunpack.c.l.b16 %v2074
        %v2144 = vunpack.c.l.b16 %v2078
        %v2145 = vunpack.c.l.b16 %v2081
        %v2146 = vunpack.c.l.b16 %v2085
        %v2147 = vunpack.c.l.b16 %v2088
        %v2148 = vunpack.c.l.b16 %v2092
        %v2149 = vunpack.c.l.b16 %v2095
        %v2150 = vunpack.c.l.b16 %v2099
        %v2151 = vunpack.c.l.b16 %v2102
        %v2152 = vunpack.c.l.b16 %v2106
        %v2153 = vunpack.c.l.b16 %v2109
        %v2154 = vunpack.c.l.b16 %v2113
        %v2155 = vunpack.c.l.b16 %v2116
        %v2156 = vunpack.c.l.b16 %v2120
        %v2157 = vunpack.c.l.b16 %v2123
        %v2158 = vpack.c.b16 %v2127, %v2126
        %v2159 = vpack.c.b16 %v2129, %v2128
        %v2160 = vpack.c.b16 %v2131, %v2130
        %v2161 = vpack.c.b16 %v2133, %v2132
        %v2162 = vpack.c.b16 %v2135, %v2134
        %v2163 = vpack.c.b16 %v2137, %v2136
        %v2164 = vpack.c.b16 %v2139, %v2138
        %v2165 = vpack.c.b16 %v2141, %v2140
        %v2166 = vpack.c.b16 %v2143, %v2142
        %v2167 = vpack.c.b16 %v2145, %v2144
        %v2168 = vpack.c.b16 %v2147, %v2146
        %v2169 = vpack.c.b16 %v2149, %v2148
        %v2170 = vpack.c.b16 %v2151, %v2150
        %v2171 = vpack.c.b16 %v2153, %v2152
        %v2172 = vpack.c.b16 %v2155, %v2154
        %v2173 = vpack.c.b16 %v2157, %v2156
        %v2175 = vsel %vm874, %v2158, 0
        %v2178 = vsel %vm874, %v2159, 0
        %v2181 = vsel %vm874, %v2160, 0
        %v2184 = vsel %vm874, %v2161, 0
        %v2187 = vsel %vm874, %v2162, 0
        %v2190 = vsel %vm874, %v2163, 0
        %v2193 = vsel %vm874, %v2164, 0
        %v2196 = vsel %vm874, %v2165, 0
        %v2199 = vsel %vm874, %v2166, 0
        %v2202 = vsel %vm874, %v2167, 0
        %v2205 = vsel %vm874, %v2168, 0
        %v2208 = vsel %vm874, %v2169, 0
        %v2211 = vsel %vm874, %v2170, 0
        %v2214 = vsel %vm874, %v2171, 0
        %v2217 = vsel %vm874, %v2172, 0
        %v2220 = vsel %vm874, %v2173, 0
        %v2223 = vsel %vm923, %v2125, 0
        %2225 = vmatprep.subr.bf16.mxu0 0
        %2226 = vmatpush1.bf16.msra.mxu0 %v2223
        %2227 = vmatprep.subr.bf16.mxu0 0
        %2228 = vmatpush1.bf16.msra.mxu0 0
        %2229 = vmatprep.subr.bf16.mxu0 0
        %2230 = vmatpush1.bf16.msra.mxu0 0
        %2231 = vmatprep.subr.bf16.mxu0 0
        %2232 = vmatpush1.bf16.msra.mxu0 0
        %2233 = vmatprep.subr.bf16.mxu0 0
        %2234 = vmatpush1.bf16.msra.mxu0 0
        %2235 = vmatprep.subr.bf16.mxu0 0
        %2236 = vmatpush1.bf16.msra.mxu0 0
        %2237 = vmatprep.subr.bf16.mxu0 0
        %2238 = vmatpush1.bf16.msra.mxu0 0
        %2239 = vmatprep.subr.bf16.mxu0 0
        %2240 = vmatpush1.bf16.msra.mxu0 0
        %2241 = vmatprep.subr.bf16.mxu0 0
        %2242 = vmatpush1.bf16.msra.mxu0 0
        %2243 = vmatprep.subr.bf16.mxu0 0
        %2244 = vmatpush1.bf16.msra.mxu0 0
        %2245 = vmatprep.subr.bf16.mxu0 0
        %2246 = vmatpush1.bf16.msra.mxu0 0
        %2247 = vmatprep.subr.bf16.mxu0 0
        %2248 = vmatpush1.bf16.msra.mxu0 0
        %2249 = vmatprep.subr.bf16.mxu0 0
        %2250 = vmatpush1.bf16.msra.mxu0 0
        %2251 = vmatprep.subr.bf16.mxu0 0
        %2252 = vmatpush1.bf16.msra.mxu0 0
        %2253 = vmatprep.subr.bf16.mxu0 0
        %2254 = vmatpush1.bf16.msra.mxu0 0
        %2255 = vmatprep.subr.bf16.mxu0 0
        %2256 = vmatpush1.bf16.msra.mxu0 0
        %2257 = vmatprep.mubr.bf16.mxu0 0
        %2258 = vmatmul.mubr.bf16.gmra.mrb[0].mxu0 %v2175
        %v2259 = vpop.f32.mrb[0].mxu0
        %v2260 = vadd.f32 0.0, %v2259
        %v2261 = vpop.f32.mrb[0].mxu0
        %v2262 = vpop.f32.mrb[0].mxu0
        %v2263 = vadd.f32 0.0, %v2262
        %v2264 = vpop.f32.mrb[0].mxu0
        %2265 = vmatprep.mubr.bf16.mxu0 0
        %2266 = vmatmul.mubr.bf16.gmra.mrb[0].mxu0 %v2178
        %v2267 = vpop.f32.mrb[0].mxu0
        %v2268 = vadd.f32 0.0, %v2267
        %v2269 = vpop.f32.mrb[0].mxu0
        %v2270 = vpop.f32.mrb[0].mxu0
        %v2271 = vadd.f32 0.0, %v2270
        %v2272 = vpop.f32.mrb[0].mxu0
        %2273 = vmatprep.mubr.bf16.mxu0 0
        %2274 = vmatmul.mubr.bf16.gmra.mrb[0].mxu0 %v2181
        %v2275 = vpop.f32.mrb[0].mxu0
        %v2276 = vadd.f32 0.0, %v2275
        %v2277 = vpop.f32.mrb[0].mxu0
        %v2278 = vpop.f32.mrb[0].mxu0
        %v2279 = vadd.f32 0.0, %v2278
        %v2280 = vpop.f32.mrb[0].mxu0
        %2281 = vmatprep.mubr.bf16.mxu0 0
        %2282 = vmatmul.mubr.bf16.gmra.mrb[0].mxu0 %v2184
        %v2283 = vpop.f32.mrb[0].mxu0
        %v2284 = vadd.f32 0.0, %v2283
        %v2285 = vpop.f32.mrb[0].mxu0
        %v2286 = vpop.f32.mrb[0].mxu0
        %v2287 = vadd.f32 0.0, %v2286
        %v2288 = vpop.f32.mrb[0].mxu0
        %2289 = vmatprep.mubr.bf16.mxu0 0
        %2290 = vmatmul.mubr.bf16.gmra.mrb[0].mxu0 %v2187
        %v2291 = vpop.f32.mrb[0].mxu0
        %v2292 = vadd.f32 0.0, %v2291
        %v2293 = vpop.f32.mrb[0].mxu0
        %v2294 = vpop.f32.mrb[0].mxu0
        %v2295 = vadd.f32 0.0, %v2294
        %v2296 = vpop.f32.mrb[0].mxu0
        %2297 = vmatprep.mubr.bf16.mxu0 0
        %2298 = vmatmul.mubr.bf16.gmra.mrb[0].mxu0 %v2190
        %v2299 = vpop.f32.mrb[0].mxu0
        %v2300 = vadd.f32 0.0, %v2299
        %v2301 = vpop.f32.mrb[0].mxu0
        %v2302 = vpop.f32.mrb[0].mxu0
        %v2303 = vadd.f32 0.0, %v2302
        %v2304 = vpop.f32.mrb[0].mxu0
        %2305 = vmatprep.mubr.bf16.mxu0 0
        %2306 = vmatmul.mubr.bf16.gmra.mrb[0].mxu0 %v2193
        %v2307 = vpop.f32.mrb[0].mxu0
        %v2308 = vadd.f32 0.0, %v2307
        %v2309 = vpop.f32.mrb[0].mxu0
        %v2310 = vpop.f32.mrb[0].mxu0
        %v2311 = vadd.f32 0.0, %v2310
        %v2312 = vpop.f32.mrb[0].mxu0
        %2313 = vmatprep.mubr.bf16.mxu0 0
        %2314 = vmatmul.mubr.bf16.gmra.mrb[0].mxu0 %v2196
        %v2315 = vpop.f32.mrb[0].mxu0
        %v2316 = vadd.f32 0.0, %v2315
        %v2317 = vpop.f32.mrb[0].mxu0
        %v2318 = vpop.f32.mrb[0].mxu0
        %v2319 = vadd.f32 0.0, %v2318
        %v2320 = vpop.f32.mrb[0].mxu0
        %2321 = vmatprep.mubr.bf16.mxu0 0
        %2322 = vmatmul.mubr.bf16.gmra.mrb[0].mxu0 %v2199
        %v2323 = vpop.f32.mrb[0].mxu0
        %v2324 = vadd.f32 0.0, %v2323
        %v2325 = vpop.f32.mrb[0].mxu0
        %v2326 = vpop.f32.mrb[0].mxu0
        %v2327 = vadd.f32 0.0, %v2326
        %v2328 = vpop.f32.mrb[0].mxu0
        %2329 = vmatprep.mubr.bf16.mxu0 0
        %2330 = vmatmul.mubr.bf16.gmra.mrb[0].mxu0 %v2202
        %v2331 = vpop.f32.mrb[0].mxu0
        %v2332 = vadd.f32 0.0, %v2331
        %v2333 = vpop.f32.mrb[0].mxu0
        %v2334 = vpop.f32.mrb[0].mxu0
        %v2335 = vadd.f32 0.0, %v2334
        %v2336 = vpop.f32.mrb[0].mxu0
        %2337 = vmatprep.mubr.bf16.mxu0 0
        %2338 = vmatmul.mubr.bf16.gmra.mrb[0].mxu0 %v2205
        %v2339 = vpop.f32.mrb[0].mxu0
        %v2340 = vadd.f32 0.0, %v2339
        %v2341 = vpop.f32.mrb[0].mxu0
        %v2342 = vpop.f32.mrb[0].mxu0
        %v2343 = vadd.f32 0.0, %v2342
        %v2344 = vpop.f32.mrb[0].mxu0
        %2345 = vmatprep.mubr.bf16.mxu0 0
        %2346 = vmatmul.mubr.bf16.gmra.mrb[0].mxu0 %v2208
        %v2347 = vpop.f32.mrb[0].mxu0
        %v2348 = vadd.f32 0.0, %v2347
        %v2349 = vpop.f32.mrb[0].mxu0
        %v2350 = vpop.f32.mrb[0].mxu0
        %v2351 = vadd.f32 0.0, %v2350
        %v2352 = vpop.f32.mrb[0].mxu0
        %2353 = vmatprep.mubr.bf16.mxu0 0
        %2354 = vmatmul.mubr.bf16.gmra.mrb[0].mxu0 %v2211
        %v2355 = vpop.f32.mrb[0].mxu0
        %v2356 = vadd.f32 0.0, %v2355
        %v2357 = vpop.f32.mrb[0].mxu0
        %v2358 = vpop.f32.mrb[0].mxu0
        %v2359 = vadd.f32 0.0, %v2358
        %v2360 = vpop.f32.mrb[0].mxu0
        %2361 = vmatprep.mubr.bf16.mxu0 0
        %2362 = vmatmul.mubr.bf16.gmra.mrb[0].mxu0 %v2214
        %v2363 = vpop.f32.mrb[0].mxu0
        %v2364 = vadd.f32 0.0, %v2363
        %v2365 = vpop.f32.mrb[0].mxu0
        %v2366 = vpop.f32.mrb[0].mxu0
        %v2367 = vadd.f32 0.0, %v2366
        %v2368 = vpop.f32.mrb[0].mxu0
        %2369 = vmatprep.mubr.bf16.mxu0 0
        %2370 = vmatmul.mubr.bf16.gmra.mrb[0].mxu0 %v2217
        %v2371 = vpop.f32.mrb[0].mxu0
        %v2372 = vadd.f32 0.0, %v2371
        %v2373 = vpop.f32.mrb[0].mxu0
        %v2374 = vpop.f32.mrb[0].mxu0
        %v2375 = vadd.f32 0.0, %v2374
        %v2376 = vpop.f32.mrb[0].mxu0
        %2377 = vmatprep.mubr.bf16.mxu0 0
        %2378 = vmatmul.mubr.bf16.gmra.mrb[0].mxu0 %v2220
        %v2379 = vpop.f32.mrb[0].mxu0
        %v2380 = vadd.f32 0.0, %v2379
        %v2381 = vpop.f32.mrb[0].mxu0
        %v2382 = vpop.f32.mrb[0].mxu0
        %v2383 = vadd.f32 0.0, %v2382
        %v2384 = vpop.f32.mrb[0].mxu0
        %2385 = vdwg.mxu0
        %v2386 = vld [vmem:[#allocation3] sm:$0xff]
        %v2387 = vld [vmem:[#allocation3 + $0x8] sm:$0xff]
        %v2388 = vld [vmem:[#allocation3 + $0x10] sm:$0xff]
        %v2389 = vld [vmem:[#allocation3 + $0x18] sm:$0xff]
        %v2390 = vld [vmem:[#allocation3 + $0x20] sm:$0xff]
        %v2391 = vld [vmem:[#allocation3 + $0x28] sm:$0xff]
        %v2392 = vld [vmem:[#allocation3 + $0x30] sm:$0xff]
        %v2393 = vld [vmem:[#allocation3 + $0x38] sm:$0xff]
        %v2394 = vld [vmem:[#allocation3 + $0x40] sm:$0xff]
        %v2395 = vld [vmem:[#allocation3 + $0x48] sm:$0xff]
        %v2396 = vld [vmem:[#allocation3 + $0x50] sm:$0xff]
        %v2397 = vld [vmem:[#allocation3 + $0x58] sm:$0xff]
        %v2398 = vld [vmem:[#allocation3 + $0x60] sm:$0xff]
        %v2399 = vld [vmem:[#allocation3 + $0x68] sm:$0xff]
        %v2400 = vld [vmem:[#allocation3 + $0x70] sm:$0xff]
        %v2401 = vld [vmem:[#allocation3 + $0x78] sm:$0xff]
        %v2402 = vld [vmem:[#allocation3 + $0x80] sm:$0xff]
        %v2403 = vld [vmem:[#allocation3 + $0x88] sm:$0xff]
        %v2404 = vld [vmem:[#allocation3 + $0x90] sm:$0xff]
        %v2405 = vld [vmem:[#allocation3 + $0x98] sm:$0xff]
        %v2406 = vld [vmem:[#allocation3 + $0xa0] sm:$0xff]
        %v2407 = vld [vmem:[#allocation3 + $0xa8] sm:$0xff]
        %v2408 = vld [vmem:[#allocation3 + $0xb0] sm:$0xff]
        %v2409 = vld [vmem:[#allocation3 + $0xb8] sm:$0xff]
        %v2410 = vld [vmem:[#allocation3 + $0xc0] sm:$0xff]
        %v2411 = vld [vmem:[#allocation3 + $0xc8] sm:$0xff]
        %v2412 = vld [vmem:[#allocation3 + $0xd0] sm:$0xff]
        %v2413 = vld [vmem:[#allocation3 + $0xd8] sm:$0xff]
        %v2414 = vld [vmem:[#allocation3 + $0xe0] sm:$0xff]
        %v2415 = vld [vmem:[#allocation3 + $0xe8] sm:$0xff]
        %v2416 = vld [vmem:[#allocation3 + $0xf0] sm:$0xff]
        %v2417 = vld [vmem:[#allocation3 + $0xf8] sm:$0xff]
        %v2418 = vadd.f32 %v2386, %v2260
        %v2419 = vadd.f32 %v2387, %v2263
        %v2420 = vadd.f32 %v2388, %v2268
        %v2421 = vadd.f32 %v2389, %v2271
        %v2422 = vadd.f32 %v2390, %v2276
        %v2423 = vadd.f32 %v2391, %v2279
        %v2424 = vadd.f32 %v2392, %v2284
        %v2425 = vadd.f32 %v2393, %v2287
        %v2426 = vadd.f32 %v2394, %v2292
        %v2427 = vadd.f32 %v2395, %v2295
        %v2428 = vadd.f32 %v2396, %v2300
        %v2429 = vadd.f32 %v2397, %v2303
        %v2430 = vadd.f32 %v2398, %v2308
        %v2431 = vadd.f32 %v2399, %v2311
        %v2432 = vadd.f32 %v2400, %v2316
        %v2433 = vadd.f32 %v2401, %v2319
        %v2434 = vadd.f32 %v2402, %v2324
        %v2435 = vadd.f32 %v2403, %v2327
        %v2436 = vadd.f32 %v2404, %v2332
        %v2437 = vadd.f32 %v2405, %v2335
        %v2438 = vadd.f32 %v2406, %v2340
        %v2439 = vadd.f32 %v2407, %v2343
        %v2440 = vadd.f32 %v2408, %v2348
        %v2441 = vadd.f32 %v2409, %v2351
        %v2442 = vadd.f32 %v2410, %v2356
        %v2443 = vadd.f32 %v2411, %v2359
        %v2444 = vadd.f32 %v2412, %v2364
        %v2445 = vadd.f32 %v2413, %v2367
        %v2446 = vadd.f32 %v2414, %v2372
        %v2447 = vadd.f32 %v2415, %v2375
        %v2448 = vadd.f32 %v2416, %v2380
        %v2449 = vadd.f32 %v2417, %v2383
        %2450 = vst [vmem:[#allocation3] sm:$0xff] %v2418
        %2451 = vst [vmem:[#allocation3 + $0x8] sm:$0xff] %v2419
        %2452 = vst [vmem:[#allocation3 + $0x10] sm:$0xff] %v2420
        %2453 = vst [vmem:[#allocation3 + $0x18] sm:$0xff] %v2421
        %2454 = vst [vmem:[#allocation3 + $0x20] sm:$0xff] %v2422
        %2455 = vst [vmem:[#allocation3 + $0x28] sm:$0xff] %v2423
        %2456 = vst [vmem:[#allocation3 + $0x30] sm:$0xff] %v2424
        %2457 = vst [vmem:[#allocation3 + $0x38] sm:$0xff] %v2425
        %2458 = vst [vmem:[#allocation3 + $0x40] sm:$0xff] %v2426
        %2459 = vst [vmem:[#allocation3 + $0x48] sm:$0xff] %v2427
        %2460 = vst [vmem:[#allocation3 + $0x50] sm:$0xff] %v2428
        %2461 = vst [vmem:[#allocation3 + $0x58] sm:$0xff] %v2429
        %2462 = vst [vmem:[#allocation3 + $0x60] sm:$0xff] %v2430
        %2463 = vst [vmem:[#allocation3 + $0x68] sm:$0xff] %v2431
        %2464 = vst [vmem:[#allocation3 + $0x70] sm:$0xff] %v2432
        %2465 = vst [vmem:[#allocation3 + $0x78] sm:$0xff] %v2433
        %2466 = vst [vmem:[#allocation3 + $0x80] sm:$0xff] %v2434
        %2467 = vst [vmem:[#allocation3 + $0x88] sm:$0xff] %v2435
        %2468 = vst [vmem:[#allocation3 + $0x90] sm:$0xff] %v2436
        %2469 = vst [vmem:[#allocation3 + $0x98] sm:$0xff] %v2437
        %2470 = vst [vmem:[#allocation3 + $0xa0] sm:$0xff] %v2438
        %2471 = vst [vmem:[#allocation3 + $0xa8] sm:$0xff] %v2439
        %2472 = vst [vmem:[#allocation3 + $0xb0] sm:$0xff] %v2440
        %2473 = vst [vmem:[#allocation3 + $0xb8] sm:$0xff] %v2441
        %2474 = vst [vmem:[#allocation3 + $0xc0] sm:$0xff] %v2442
        %2475 = vst [vmem:[#allocation3 + $0xc8] sm:$0xff] %v2443
        %2476 = vst [vmem:[#allocation3 + $0xd0] sm:$0xff] %v2444
        %2477 = vst [vmem:[#allocation3 + $0xd8] sm:$0xff] %v2445
        %2478 = vst [vmem:[#allocation3 + $0xe0] sm:$0xff] %v2446
        %2479 = vst [vmem:[#allocation3 + $0xe8] sm:$0xff] %v2447
        %2480 = vst [vmem:[#allocation3 + $0xf0] sm:$0xff] %v2448
        %2481 = vst [vmem:[#allocation3 + $0xf8] sm:$0xff] %v2449
        %v2482 = vld [vmem:[%s646] sm:$0xf]
        %v2483 = vld [vmem:[%s646 + $0x4] sm:$0xf]
        %v2484 = vld [vmem:[%s646 + $0xc] sm:$0xf]
        %v2485 = vld [vmem:[%s646 + $0x10] sm:$0xf]
        %v2486 = vld [vmem:[%s646 + $0x18] sm:$0xf]
        %v2487 = vld [vmem:[%s646 + $0x1c] sm:$0xf]
        %v2488 = vld [vmem:[%s646 + $0x24] sm:$0xf]
        %v2489 = vld [vmem:[%s646 + $0x28] sm:$0xf]
        %v2490 = vld [vmem:[%s646 + $0x30] sm:$0xf]
        %v2491 = vld [vmem:[%s646 + $0x34] sm:$0xf]
        %v2492 = vld [vmem:[%s646 + $0x3c] sm:$0xf]
        %v2493 = vld [vmem:[%s646 + $0x40] sm:$0xf]
        %v2494 = vld [vmem:[%s646 + $0x48] sm:$0xf]
        %v2495 = vld [vmem:[%s646 + $0x4c] sm:$0xf]
        %v2496 = vld [vmem:[%s646 + $0x54] sm:$0xf]
        %v2497 = vld [vmem:[%s646 + $0x58] sm:$0xf]
        %v2498 = vld [vmem:[%s646 + $0x60] sm:$0xf]
        %v2499 = vld [vmem:[%s646 + $0x64] sm:$0xf]
        %v2500 = vld [vmem:[%s646 + $0x6c] sm:$0xf]
        %v2501 = vld [vmem:[%s646 + $0x70] sm:$0xf]
        %v2502 = vld [vmem:[%s646 + $0x78] sm:$0xf]
        %v2503 = vld [vmem:[%s646 + $0x7c] sm:$0xf]
        %v2504 = vld [vmem:[%s646 + $0x84] sm:$0xf]
        %v2505 = vld [vmem:[%s646 + $0x88] sm:$0xf]
        %v2506 = vld [vmem:[%s646 + $0x90] sm:$0xf]
        %v2507 = vld [vmem:[%s646 + $0x94] sm:$0xf]
        %v2508 = vld [vmem:[%s646 + $0x9c] sm:$0xf]
        %v2509 = vld [vmem:[%s646 + $0xa0] sm:$0xf]
        %v2510 = vld [vmem:[%s646 + $0xa8] sm:$0xf]
        %v2511 = vld [vmem:[%s646 + $0xac] sm:$0xf]
        %v2512 = vld [vmem:[%s646 + $0xb4] sm:$0xf]
        %v2513 = vld [vmem:[%s646 + $0xb8] sm:$0xf]
        %s2514 = scalar_lea.vmem %s1, 6
        %v2515 = vld [vmem:[%s2514] sm:$0x3]
        %v2548 = vunpack.c.l.b16 %v2482
        %v2549 = vunpack.c.l.b16 %v2483
        %v2550 = vunpack.c.l.b16 %v2484
        %v2551 = vunpack.c.l.b16 %v2485
        %v2552 = vunpack.c.l.b16 %v2486
        %v2553 = vunpack.c.l.b16 %v2487
        %v2554 = vunpack.c.l.b16 %v2488
        %v2555 = vunpack.c.l.b16 %v2489
        %v2556 = vunpack.c.l.b16 %v2490
        %v2557 = vunpack.c.l.b16 %v2491
        %v2558 = vunpack.c.l.b16 %v2492
        %v2559 = vunpack.c.l.b16 %v2493
        %v2560 = vunpack.c.l.b16 %v2494
        %v2561 = vunpack.c.l.b16 %v2495
        %v2562 = vunpack.c.l.b16 %v2496
        %v2563 = vunpack.c.l.b16 %v2497
        %v2564 = vunpack.c.l.b16 %v2498
        %v2565 = vunpack.c.l.b16 %v2499
        %v2566 = vunpack.c.l.b16 %v2500
        %v2567 = vunpack.c.l.b16 %v2501
        %v2568 = vunpack.c.l.b16 %v2502
        %v2569 = vunpack.c.l.b16 %v2503
        %v2570 = vunpack.c.l.b16 %v2504
        %v2571 = vunpack.c.l.b16 %v2505
        %v2572 = vunpack.c.l.b16 %v2506
        %v2573 = vunpack.c.l.b16 %v2507
        %v2574 = vunpack.c.l.b16 %v2508
        %v2575 = vunpack.c.l.b16 %v2509
        %v2576 = vunpack.c.l.b16 %v2510
        %v2577 = vunpack.c.l.b16 %v2511
        %v2578 = vunpack.c.l.b16 %v2512
        %v2579 = vunpack.c.l.b16 %v2513
        %v2580 = vpack.c.b16 %v2549, %v2548
        %v2581 = vpack.c.b16 %v2551, %v2550
        %v2582 = vpack.c.b16 %v2553, %v2552
        %v2583 = vpack.c.b16 %v2555, %v2554
        %v2584 = vpack.c.b16 %v2557, %v2556
        %v2585 = vpack.c.b16 %v2559, %v2558
        %v2586 = vpack.c.b16 %v2561, %v2560
        %v2587 = vpack.c.b16 %v2563, %v2562
        %v2588 = vpack.c.b16 %v2565, %v2564
        %v2589 = vpack.c.b16 %v2567, %v2566
        %v2590 = vpack.c.b16 %v2569, %v2568
        %v2591 = vpack.c.b16 %v2571, %v2570
        %v2592 = vpack.c.b16 %v2573, %v2572
        %v2593 = vpack.c.b16 %v2575, %v2574
        %v2594 = vpack.c.b16 %v2577, %v2576
        %v2595 = vpack.c.b16 %v2579, %v2578
        %v2597 = vsel %vm874, %v2580, 0
        %v2600 = vsel %vm874, %v2581, 0
        %v2603 = vsel %vm874, %v2582, 0
        %v2606 = vsel %vm874, %v2583, 0
        %v2609 = vsel %vm874, %v2584, 0
        %v2612 = vsel %vm874, %v2585, 0
        %v2615 = vsel %vm874, %v2586, 0
        %v2618 = vsel %vm874, %v2587, 0
        %v2621 = vsel %vm874, %v2588, 0
        %v2624 = vsel %vm874, %v2589, 0
        %v2627 = vsel %vm874, %v2590, 0
        %v2630 = vsel %vm874, %v2591, 0
        %v2633 = vsel %vm874, %v2592, 0
        %v2636 = vsel %vm874, %v2593, 0
        %v2639 = vsel %vm874, %v2594, 0
        %v2642 = vsel %vm874, %v2595, 0
        %v2645 = vsel %vm923, %v2515, 0
        %2647 = vmatprep.subr.bf16.mxu0 0
        %2648 = vmatpush1.bf16.msra.mxu0 %v2645
        %2649 = vmatprep.subr.bf16.mxu0 0
        %2650 = vmatpush1.bf16.msra.mxu0 0
        %2651 = vmatprep.subr.bf16.mxu0 0
        %2652 = vmatpush1.bf16.msra.mxu0 0
        %2653 = vmatprep.subr.bf16.mxu0 0
        %2654 = vmatpush1.bf16.msra.mxu0 0
        %2655 = vmatprep.subr.bf16.mxu0 0
        %2656 = vmatpush1.bf16.msra.mxu0 0
        %2657 = vmatprep.subr.bf16.mxu0 0
        %2658 = vmatpush1.bf16.msra.mxu0 0
        %2659 = vmatprep.subr.bf16.mxu0 0
        %2660 = vmatpush1.bf16.msra.mxu0 0
        %2661 = vmatprep.subr.bf16.mxu0 0
        %2662 = vmatpush1.bf16.msra.mxu0 0
        %2663 = vmatprep.subr.bf16.mxu0 0
        %2664 = vmatpush1.bf16.msra.mxu0 0
        %2665 = vmatprep.subr.bf16.mxu0 0
        %2666 = vmatpush1.bf16.msra.mxu0 0
        %2667 = vmatprep.subr.bf16.mxu0 0
        %2668 = vmatpush1.bf16.msra.mxu0 0
        %2669 = vmatprep.subr.bf16.mxu0 0
        %2670 = vmatpush1.bf16.msra.mxu0 0
        %2671 = vmatprep.subr.bf16.mxu0 0
        %2672 = vmatpush1.bf16.msra.mxu0 0
        %2673 = vmatprep.subr.bf16.mxu0 0
        %2674 = vmatpush1.bf16.msra.mxu0 0
        %2675 = vmatprep.subr.bf16.mxu0 0
        %2676 = vmatpush1.bf16.msra.mxu0 0
        %2677 = vmatprep.subr.bf16.mxu0 0
        %2678 = vmatpush1.bf16.msra.mxu0 0
        %2679 = vmatprep.mubr.bf16.mxu0 0
        %2680 = vmatmul.mubr.bf16.gmra.mrb[0].mxu0 %v2597
        %v2681 = vpop.f32.mrb[0].mxu0
        %v2682 = vadd.f32 0.0, %v2681
        %v2683 = vpop.f32.mrb[0].mxu0
        %v2684 = vpop.f32.mrb[0].mxu0
        %v2685 = vadd.f32 0.0, %v2684
        %v2686 = vpop.f32.mrb[0].mxu0
        %2687 = vmatprep.mubr.bf16.mxu0 0
        %2688 = vmatmul.mubr.bf16.gmra.mrb[0].mxu0 %v2600
        %v2689 = vpop.f32.mrb[0].mxu0
        %v2690 = vadd.f32 0.0, %v2689
        %v2691 = vpop.f32.mrb[0].mxu0
        %v2692 = vpop.f32.mrb[0].mxu0
        %v2693 = vadd.f32 0.0, %v2692
        %v2694 = vpop.f32.mrb[0].mxu0
        %2695 = vmatprep.mubr.bf16.mxu0 0
        %2696 = vmatmul.mubr.bf16.gmra.mrb[0].mxu0 %v2603
        %v2697 = vpop.f32.mrb[0].mxu0
        %v2698 = vadd.f32 0.0, %v2697
        %v2699 = vpop.f32.mrb[0].mxu0
        %v2700 = vpop.f32.mrb[0].mxu0
        %v2701 = vadd.f32 0.0, %v2700
        %v2702 = vpop.f32.mrb[0].mxu0
        %2703 = vmatprep.mubr.bf16.mxu0 0
        %2704 = vmatmul.mubr.bf16.gmra.mrb[0].mxu0 %v2606
        %v2705 = vpop.f32.mrb[0].mxu0
        %v2706 = vadd.f32 0.0, %v2705
        %v2707 = vpop.f32.mrb[0].mxu0
        %v2708 = vpop.f32.mrb[0].mxu0
        %v2709 = vadd.f32 0.0, %v2708
        %v2710 = vpop.f32.mrb[0].mxu0
        %2711 = vmatprep.mubr.bf16.mxu0 0
        %2712 = vmatmul.mubr.bf16.gmra.mrb[0].mxu0 %v2609
        %v2713 = vpop.f32.mrb[0].mxu0
        %v2714 = vadd.f32 0.0, %v2713
        %v2715 = vpop.f32.mrb[0].mxu0
        %v2716 = vpop.f32.mrb[0].mxu0
        %v2717 = vadd.f32 0.0, %v2716
        %v2718 = vpop.f32.mrb[0].mxu0
        %2719 = vmatprep.mubr.bf16.mxu0 0
        %2720 = vmatmul.mubr.bf16.gmra.mrb[0].mxu0 %v2612
        %v2721 = vpop.f32.mrb[0].mxu0
        %v2722 = vadd.f32 0.0, %v2721
        %v2723 = vpop.f32.mrb[0].mxu0
        %v2724 = vpop.f32.mrb[0].mxu0
        %v2725 = vadd.f32 0.0, %v2724
        %v2726 = vpop.f32.mrb[0].mxu0
        %2727 = vmatprep.mubr.bf16.mxu0 0
        %2728 = vmatmul.mubr.bf16.gmra.mrb[0].mxu0 %v2615
        %v2729 = vpop.f32.mrb[0].mxu0
        %v2730 = vadd.f32 0.0, %v2729
        %v2731 = vpop.f32.mrb[0].mxu0
        %v2732 = vpop.f32.mrb[0].mxu0
        %v2733 = vadd.f32 0.0, %v2732
        %v2734 = vpop.f32.mrb[0].mxu0
        %2735 = vmatprep.mubr.bf16.mxu0 0
        %2736 = vmatmul.mubr.bf16.gmra.mrb[0].mxu0 %v2618
        %v2737 = vpop.f32.mrb[0].mxu0
        %v2738 = vadd.f32 0.0, %v2737
        %v2739 = vpop.f32.mrb[0].mxu0
        %v2740 = vpop.f32.mrb[0].mxu0
        %v2741 = vadd.f32 0.0, %v2740
        %v2742 = vpop.f32.mrb[0].mxu0
        %2743 = vmatprep.mubr.bf16.mxu0 0
        %2744 = vmatmul.mubr.bf16.gmra.mrb[0].mxu0 %v2621
        %v2745 = vpop.f32.mrb[0].mxu0
        %v2746 = vadd.f32 0.0, %v2745
        %v2747 = vpop.f32.mrb[0].mxu0
        %v2748 = vpop.f32.mrb[0].mxu0
        %v2749 = vadd.f32 0.0, %v2748
        %v2750 = vpop.f32.mrb[0].mxu0
        %2751 = vmatprep.mubr.bf16.mxu0 0
        %2752 = vmatmul.mubr.bf16.gmra.mrb[0].mxu0 %v2624
        %v2753 = vpop.f32.mrb[0].mxu0
        %v2754 = vadd.f32 0.0, %v2753
        %v2755 = vpop.f32.mrb[0].mxu0
        %v2756 = vpop.f32.mrb[0].mxu0
        %v2757 = vadd.f32 0.0, %v2756
        %v2758 = vpop.f32.mrb[0].mxu0
        %2759 = vmatprep.mubr.bf16.mxu0 0
        %2760 = vmatmul.mubr.bf16.gmra.mrb[0].mxu0 %v2627
        %v2761 = vpop.f32.mrb[0].mxu0
        %v2762 = vadd.f32 0.0, %v2761
        %v2763 = vpop.f32.mrb[0].mxu0
        %v2764 = vpop.f32.mrb[0].mxu0
        %v2765 = vadd.f32 0.0, %v2764
        %v2766 = vpop.f32.mrb[0].mxu0
        %2767 = vmatprep.mubr.bf16.mxu0 0
        %2768 = vmatmul.mubr.bf16.gmra.mrb[0].mxu0 %v2630
        %v2769 = vpop.f32.mrb[0].mxu0
        %v2770 = vadd.f32 0.0, %v2769
        %v2771 = vpop.f32.mrb[0].mxu0
        %v2772 = vpop.f32.mrb[0].mxu0
        %v2773 = vadd.f32 0.0, %v2772
        %v2774 = vpop.f32.mrb[0].mxu0
        %2775 = vmatprep.mubr.bf16.mxu0 0
        %2776 = vmatmul.mubr.bf16.gmra.mrb[0].mxu0 %v2633
        %v2777 = vpop.f32.mrb[0].mxu0
        %v2778 = vadd.f32 0.0, %v2777
        %v2779 = vpop.f32.mrb[0].mxu0
        %v2780 = vpop.f32.mrb[0].mxu0
        %v2781 = vadd.f32 0.0, %v2780
        %v2782 = vpop.f32.mrb[0].mxu0
        %2783 = vmatprep.mubr.bf16.mxu0 0
        %2784 = vmatmul.mubr.bf16.gmra.mrb[0].mxu0 %v2636
        %v2785 = vpop.f32.mrb[0].mxu0
        %v2786 = vadd.f32 0.0, %v2785
        %v2787 = vpop.f32.mrb[0].mxu0
        %v2788 = vpop.f32.mrb[0].mxu0
        %v2789 = vadd.f32 0.0, %v2788
        %v2790 = vpop.f32.mrb[0].mxu0
        %2791 = vmatprep.mubr.bf16.mxu0 0
        %2792 = vmatmul.mubr.bf16.gmra.mrb[0].mxu0 %v2639
        %v2793 = vpop.f32.mrb[0].mxu0
        %v2794 = vadd.f32 0.0, %v2793
        %v2795 = vpop.f32.mrb[0].mxu0
        %v2796 = vpop.f32.mrb[0].mxu0
        %v2797 = vadd.f32 0.0, %v2796
        %v2798 = vpop.f32.mrb[0].mxu0
        %2799 = vmatprep.mubr.bf16.mxu0 0
        %2800 = vmatmul.mubr.bf16.gmra.mrb[0].mxu0 %v2642
        %v2801 = vpop.f32.mrb[0].mxu0
        %v2802 = vadd.f32 0.0, %v2801
        %v2803 = vpop.f32.mrb[0].mxu0
        %v2804 = vpop.f32.mrb[0].mxu0
        %v2805 = vadd.f32 0.0, %v2804
        %v2806 = vpop.f32.mrb[0].mxu0
        %2807 = vdwg.mxu0
        %v2808 = vld [vmem:[#allocation3] sm:$0xff]
        %v2809 = vld [vmem:[#allocation3 + $0x8] sm:$0xff]
        %v2810 = vld [vmem:[#allocation3 + $0x10] sm:$0xff]
        %v2811 = vld [vmem:[#allocation3 + $0x18] sm:$0xff]
        %v2812 = vld [vmem:[#allocation3 + $0x20] sm:$0xff]
        %v2813 = vld [vmem:[#allocation3 + $0x28] sm:$0xff]
        %v2814 = vld [vmem:[#allocation3 + $0x30] sm:$0xff]
        %v2815 = vld [vmem:[#allocation3 + $0x38] sm:$0xff]
        %v2816 = vld [vmem:[#allocation3 + $0x40] sm:$0xff]
        %v2817 = vld [vmem:[#allocation3 + $0x48] sm:$0xff]
        %v2818 = vld [vmem:[#allocation3 + $0x50] sm:$0xff]
        %v2819 = vld [vmem:[#allocation3 + $0x58] sm:$0xff]
        %v2820 = vld [vmem:[#allocation3 + $0x60] sm:$0xff]
        %v2821 = vld [vmem:[#allocation3 + $0x68] sm:$0xff]
        %v2822 = vld [vmem:[#allocation3 + $0x70] sm:$0xff]
        %v2823 = vld [vmem:[#allocation3 + $0x78] sm:$0xff]
        %v2824 = vld [vmem:[#allocation3 + $0x80] sm:$0xff]
        %v2825 = vld [vmem:[#allocation3 + $0x88] sm:$0xff]
        %v2826 = vld [vmem:[#allocation3 + $0x90] sm:$0xff]
        %v2827 = vld [vmem:[#allocation3 + $0x98] sm:$0xff]
        %v2828 = vld [vmem:[#allocation3 + $0xa0] sm:$0xff]
        %v2829 = vld [vmem:[#allocation3 + $0xa8] sm:$0xff]
        %v2830 = vld [vmem:[#allocation3 + $0xb0] sm:$0xff]
        %v2831 = vld [vmem:[#allocation3 + $0xb8] sm:$0xff]
        %v2832 = vld [vmem:[#allocation3 + $0xc0] sm:$0xff]
        %v2833 = vld [vmem:[#allocation3 + $0xc8] sm:$0xff]
        %v2834 = vld [vmem:[#allocation3 + $0xd0] sm:$0xff]
        %v2835 = vld [vmem:[#allocation3 + $0xd8] sm:$0xff]
        %v2836 = vld [vmem:[#allocation3 + $0xe0] sm:$0xff]
        %v2837 = vld [vmem:[#allocation3 + $0xe8] sm:$0xff]
        %v2838 = vld [vmem:[#allocation3 + $0xf0] sm:$0xff]
        %v2839 = vld [vmem:[#allocation3 + $0xf8] sm:$0xff]
        %v2840 = vadd.f32 %v2808, %v2682
        %v2841 = vadd.f32 %v2809, %v2685
        %v2842 = vadd.f32 %v2810, %v2690
        %v2843 = vadd.f32 %v2811, %v2693
        %v2844 = vadd.f32 %v2812, %v2698
        %v2845 = vadd.f32 %v2813, %v2701
        %v2846 = vadd.f32 %v2814, %v2706
        %v2847 = vadd.f32 %v2815, %v2709
        %v2848 = vadd.f32 %v2816, %v2714
        %v2849 = vadd.f32 %v2817, %v2717
        %v2850 = vadd.f32 %v2818, %v2722
        %v2851 = vadd.f32 %v2819, %v2725
        %v2852 = vadd.f32 %v2820, %v2730
        %v2853 = vadd.f32 %v2821, %v2733
        %v2854 = vadd.f32 %v2822, %v2738
        %v2855 = vadd.f32 %v2823, %v2741
        %v2856 = vadd.f32 %v2824, %v2746
        %v2857 = vadd.f32 %v2825, %v2749
        %v2858 = vadd.f32 %v2826, %v2754
        %v2859 = vadd.f32 %v2827, %v2757
        %v2860 = vadd.f32 %v2828, %v2762
        %v2861 = vadd.f32 %v2829, %v2765
        %v2862 = vadd.f32 %v2830, %v2770
        %v2863 = vadd.f32 %v2831, %v2773
        %v2864 = vadd.f32 %v2832, %v2778
        %v2865 = vadd.f32 %v2833, %v2781
        %v2866 = vadd.f32 %v2834, %v2786
        %v2867 = vadd.f32 %v2835, %v2789
        %v2868 = vadd.f32 %v2836, %v2794
        %v2869 = vadd.f32 %v2837, %v2797
        %v2870 = vadd.f32 %v2838, %v2802
        %v2871 = vadd.f32 %v2839, %v2805
        %2872 = vst [vmem:[#allocation3] sm:$0xff] %v2840
        %2873 = vst [vmem:[#allocation3 + $0x8] sm:$0xff] %v2841
        %2874 = vst [vmem:[#allocation3 + $0x10] sm:$0xff] %v2842
        %2875 = vst [vmem:[#allocation3 + $0x18] sm:$0xff] %v2843
        %2876 = vst [vmem:[#allocation3 + $0x20] sm:$0xff] %v2844
        %2877 = vst [vmem:[#allocation3 + $0x28] sm:$0xff] %v2845
        %2878 = vst [vmem:[#allocation3 + $0x30] sm:$0xff] %v2846
        %2879 = vst [vmem:[#allocation3 + $0x38] sm:$0xff] %v2847
        %2880 = vst [vmem:[#allocation3 + $0x40] sm:$0xff] %v2848
        %2881 = vst [vmem:[#allocation3 + $0x48] sm:$0xff] %v2849
        %2882 = vst [vmem:[#allocation3 + $0x50] sm:$0xff] %v2850
        %2883 = vst [vmem:[#allocation3 + $0x58] sm:$0xff] %v2851
        %2884 = vst [vmem:[#allocation3 + $0x60] sm:$0xff] %v2852
        %2885 = vst [vmem:[#allocation3 + $0x68] sm:$0xff] %v2853
        %2886 = vst [vmem:[#allocation3 + $0x70] sm:$0xff] %v2854
        %2887 = vst [vmem:[#allocation3 + $0x78] sm:$0xff] %v2855
        %2888 = vst [vmem:[#allocation3 + $0x80] sm:$0xff] %v2856
        %2889 = vst [vmem:[#allocation3 + $0x88] sm:$0xff] %v2857
        %2890 = vst [vmem:[#allocation3 + $0x90] sm:$0xff] %v2858
        %2891 = vst [vmem:[#allocation3 + $0x98] sm:$0xff] %v2859
        %2892 = vst [vmem:[#allocation3 + $0xa0] sm:$0xff] %v2860
        %2893 = vst [vmem:[#allocation3 + $0xa8] sm:$0xff] %v2861
        %2894 = vst [vmem:[#allocation3 + $0xb0] sm:$0xff] %v2862
        %2895 = vst [vmem:[#allocation3 + $0xb8] sm:$0xff] %v2863
        %2896 = vst [vmem:[#allocation3 + $0xc0] sm:$0xff] %v2864
        %2897 = vst [vmem:[#allocation3 + $0xc8] sm:$0xff] %v2865
        %2898 = vst [vmem:[#allocation3 + $0xd0] sm:$0xff] %v2866
        %2899 = vst [vmem:[#allocation3 + $0xd8] sm:$0xff] %v2867
        %2900 = vst [vmem:[#allocation3 + $0xe0] sm:$0xff] %v2868
        %2901 = vst [vmem:[#allocation3 + $0xe8] sm:$0xff] %v2869
        %2902 = vst [vmem:[#allocation3 + $0xf0] sm:$0xff] %v2870
        %2903 = vst [vmem:[#allocation3 + $0xf8] sm:$0xff] %v2871
        %v2904 = vld [vmem:[%s646] sm:$0xf]
        %v2905 = vld [vmem:[%s646 + $0x4] sm:$0xf]
        %v2906 = vld [vmem:[%s646 + $0x8] sm:$0x1]
        %v2907 = vld [vmem:[%s646 + $0xc] sm:$0xf]
        %v2908 = vld [vmem:[%s646 + $0x10] sm:$0xf]
        %v2909 = vld [vmem:[%s646 + $0x14] sm:$0x1]
        %v2910 = vld [vmem:[%s646 + $0x18] sm:$0xf]
        %v2911 = vld [vmem:[%s646 + $0x1c] sm:$0xf]
        %v2912 = vld [vmem:[%s646 + $0x20] sm:$0x1]
        %v2913 = vld [vmem:[%s646 + $0x24] sm:$0xf]
        %v2914 = vld [vmem:[%s646 + $0x28] sm:$0xf]
        %v2915 = vld [vmem:[%s646 + $0x2c] sm:$0x1]
        %v2916 = vld [vmem:[%s646 + $0x30] sm:$0xf]
        %v2917 = vld [vmem:[%s646 + $0x34] sm:$0xf]
        %v2918 = vld [vmem:[%s646 + $0x38] sm:$0x1]
        %v2919 = vld [vmem:[%s646 + $0x3c] sm:$0xf]
        %v2920 = vld [vmem:[%s646 + $0x40] sm:$0xf]
        %v2921 = vld [vmem:[%s646 + $0x44] sm:$0x1]
        %v2922 = vld [vmem:[%s646 + $0x48] sm:$0xf]
        %v2923 = vld [vmem:[%s646 + $0x4c] sm:$0xf]
        %v2924 = vld [vmem:[%s646 + $0x50] sm:$0x1]
        %v2925 = vld [vmem:[%s646 + $0x54] sm:$0xf]
        %v2926 = vld [vmem:[%s646 + $0x58] sm:$0xf]
        %v2927 = vld [vmem:[%s646 + $0x5c] sm:$0x1]
        %v2928 = vld [vmem:[%s646 + $0x60] sm:$0xf]
        %v2929 = vld [vmem:[%s646 + $0x64] sm:$0xf]
        %v2930 = vld [vmem:[%s646 + $0x68] sm:$0x1]
        %v2931 = vld [vmem:[%s646 + $0x6c] sm:$0xf]
        %v2932 = vld [vmem:[%s646 + $0x70] sm:$0xf]
        %v2933 = vld [vmem:[%s646 + $0x74] sm:$0x1]
        %v2934 = vld [vmem:[%s646 + $0x78] sm:$0xf]
        %v2935 = vld [vmem:[%s646 + $0x7c] sm:$0xf]
        %v2936 = vld [vmem:[%s646 + $0x80] sm:$0x1]
        %v2937 = vld [vmem:[%s646 + $0x84] sm:$0xf]
        %v2938 = vld [vmem:[%s646 + $0x88] sm:$0xf]
        %v2939 = vld [vmem:[%s646 + $0x8c] sm:$0x1]
        %v2940 = vld [vmem:[%s646 + $0x90] sm:$0xf]
        %v2941 = vld [vmem:[%s646 + $0x94] sm:$0xf]
        %v2942 = vld [vmem:[%s646 + $0x98] sm:$0x1]
        %v2943 = vld [vmem:[%s646 + $0x9c] sm:$0xf]
        %v2944 = vld [vmem:[%s646 + $0xa0] sm:$0xf]
        %v2945 = vld [vmem:[%s646 + $0xa4] sm:$0x1]
        %v2946 = vld [vmem:[%s646 + $0xa8] sm:$0xf]
        %v2947 = vld [vmem:[%s646 + $0xac] sm:$0xf]
        %v2948 = vld [vmem:[%s646 + $0xb0] sm:$0x1]
        %v2949 = vld [vmem:[%s646 + $0xb4] sm:$0xf]
        %v2950 = vld [vmem:[%s646 + $0xb8] sm:$0xf]
        %v2951 = vld [vmem:[%s646 + $0xbc] sm:$0x1]
        %v2953 = vshrl.u32 %v2904, 16
        %v2955 = vrot.slane %v2953, 4
        %v2956 = vshll.u32 %v2904, 16
        %v2958 = vrot.slane %v2956, 5
        %v2959 = vor.u32 %v2955, %v2958
        %v2960 = vrot.slane %v2959, 4
        %v2962 = vshll.u32 %v2905, 16
        %v2964 = vrot.slane %v2962, 5
        %v2965 = vsel %vm1170, %v2960, %v2964
        %v2966 = vshrl.u32 %v2905, 16
        %v2968 = vrot.slane %v2966, 4
        %v2969 = vor.u32 %v2968, %v2964
        %v2970 = vrot.slane %v2969, 4
        %v2972 = vshll.u32 %v2906, 16
        %v2974 = vrot.slane %v2972, 5
        %v2975 = vsel %vm1170, %v2970, %v2974
        %v2977 = vshrl.u32 %v2907, 16
        %v2979 = vrot.slane %v2977, 4
        %v2980 = vshll.u32 %v2907, 16
        %v2982 = vrot.slane %v2980, 5
        %v2983 = vor.u32 %v2979, %v2982
        %v2984 = vrot.slane %v2983, 4
        %v2986 = vshll.u32 %v2908, 16
        %v2988 = vrot.slane %v2986, 5
        %v2989 = vsel %vm1170, %v2984, %v2988
        %v2990 = vshrl.u32 %v2908, 16
        %v2992 = vrot.slane %v2990, 4
        %v2993 = vor.u32 %v2992, %v2988
        %v2994 = vrot.slane %v2993, 4
        %v2996 = vshll.u32 %v2909, 16
        %v2998 = vrot.slane %v2996, 5
        %v2999 = vsel %vm1170, %v2994, %v2998
        %v3001 = vshrl.u32 %v2910, 16
        %v3003 = vrot.slane %v3001, 4
        %v3004 = vshll.u32 %v2910, 16
        %v3006 = vrot.slane %v3004, 5
        %v3007 = vor.u32 %v3003, %v3006
        %v3008 = vrot.slane %v3007, 4
        %v3010 = vshll.u32 %v2911, 16
        %v3012 = vrot.slane %v3010, 5
        %v3013 = vsel %vm1170, %v3008, %v3012
        %v3014 = vshrl.u32 %v2911, 16
        %v3016 = vrot.slane %v3014, 4
        %v3017 = vor.u32 %v3016, %v3012
        %v3018 = vrot.slane %v3017, 4
        %v3020 = vshll.u32 %v2912, 16
        %v3022 = vrot.slane %v3020, 5
        %v3023 = vsel %vm1170, %v3018, %v3022
        %v3025 = vshrl.u32 %v2913, 16
        %v3027 = vrot.slane %v3025, 4
        %v3028 = vshll.u32 %v2913, 16
        %v3030 = vrot.slane %v3028, 5
        %v3031 = vor.u32 %v3027, %v3030
        %v3032 = vrot.slane %v3031, 4
        %v3034 = vshll.u32 %v2914, 16
        %v3036 = vrot.slane %v3034, 5
        %v3037 = vsel %vm1170, %v3032, %v3036
        %v3038 = vshrl.u32 %v2914, 16
        %v3040 = vrot.slane %v3038, 4
        %v3041 = vor.u32 %v3040, %v3036
        %v3042 = vrot.slane %v3041, 4
        %v3044 = vshll.u32 %v2915, 16
        %v3046 = vrot.slane %v3044, 5
        %v3047 = vsel %vm1170, %v3042, %v3046
        %v3049 = vshrl.u32 %v2916, 16
        %v3051 = vrot.slane %v3049, 4
        %v3052 = vshll.u32 %v2916, 16
        %v3054 = vrot.slane %v3052, 5
        %v3055 = vor.u32 %v3051, %v3054
        %v3056 = vrot.slane %v3055, 4
        %v3058 = vshll.u32 %v2917, 16
        %v3060 = vrot.slane %v3058, 5
        %v3061 = vsel %vm1170, %v3056, %v3060
        %v3062 = vshrl.u32 %v2917, 16
        %v3064 = vrot.slane %v3062, 4
        %v3065 = vor.u32 %v3064, %v3060
        %v3066 = vrot.slane %v3065, 4
        %v3068 = vshll.u32 %v2918, 16
        %v3070 = vrot.slane %v3068, 5
        %v3071 = vsel %vm1170, %v3066, %v3070
        %v3073 = vshrl.u32 %v2919, 16
        %v3075 = vrot.slane %v3073, 4
        %v3076 = vshll.u32 %v2919, 16
        %v3078 = vrot.slane %v3076, 5
        %v3079 = vor.u32 %v3075, %v3078
        %v3080 = vrot.slane %v3079, 4
        %v3082 = vshll.u32 %v2920, 16
        %v3084 = vrot.slane %v3082, 5
        %v3085 = vsel %vm1170, %v3080, %v3084
        %v3086 = vshrl.u32 %v2920, 16
        %v3088 = vrot.slane %v3086, 4
        %v3089 = vor.u32 %v3088, %v3084
        %v3090 = vrot.slane %v3089, 4
        %v3092 = vshll.u32 %v2921, 16
        %v3094 = vrot.slane %v3092, 5
        %v3095 = vsel %vm1170, %v3090, %v3094
        %v3097 = vshrl.u32 %v2922, 16
        %v3099 = vrot.slane %v3097, 4
        %v3100 = vshll.u32 %v2922, 16
        %v3102 = vrot.slane %v3100, 5
        %v3103 = vor.u32 %v3099, %v3102
        %v3104 = vrot.slane %v3103, 4
        %v3106 = vshll.u32 %v2923, 16
        %v3108 = vrot.slane %v3106, 5
        %v3109 = vsel %vm1170, %v3104, %v3108
        %v3110 = vshrl.u32 %v2923, 16
        %v3112 = vrot.slane %v3110, 4
        %v3113 = vor.u32 %v3112, %v3108
        %v3114 = vrot.slane %v3113, 4
        %v3116 = vshll.u32 %v2924, 16
        %v3118 = vrot.slane %v3116, 5
        %v3119 = vsel %vm1170, %v3114, %v3118
        %v3121 = vshrl.u32 %v2925, 16
        %v3123 = vrot.slane %v3121, 4
        %v3124 = vshll.u32 %v2925, 16
        %v3126 = vrot.slane %v3124, 5
        %v3127 = vor.u32 %v3123, %v3126
        %v3128 = vrot.slane %v3127, 4
        %v3130 = vshll.u32 %v2926, 16
        %v3132 = vrot.slane %v3130, 5
        %v3133 = vsel %vm1170, %v3128, %v3132
        %v3134 = vshrl.u32 %v2926, 16
        %v3136 = vrot.slane %v3134, 4
        %v3137 = vor.u32 %v3136, %v3132
        %v3138 = vrot.slane %v3137, 4
        %v3140 = vshll.u32 %v2927, 16
        %v3142 = vrot.slane %v3140, 5
        %v3143 = vsel %vm1170, %v3138, %v3142
        %v3145 = vshrl.u32 %v2928, 16
        %v3147 = vrot.slane %v3145, 4
        %v3148 = vshll.u32 %v2928, 16
        %v3150 = vrot.slane %v3148, 5
        %v3151 = vor.u32 %v3147, %v3150
        %v3152 = vrot.slane %v3151, 4
        %v3154 = vshll.u32 %v2929, 16
        %v3156 = vrot.slane %v3154, 5
        %v3157 = vsel %vm1170, %v3152, %v3156
        %v3158 = vshrl.u32 %v2929, 16
        %v3160 = vrot.slane %v3158, 4
        %v3161 = vor.u32 %v3160, %v3156
        %v3162 = vrot.slane %v3161, 4
        %v3164 = vshll.u32 %v2930, 16
        %v3166 = vrot.slane %v3164, 5
        %v3167 = vsel %vm1170, %v3162, %v3166
        %v3169 = vshrl.u32 %v2931, 16
        %v3171 = vrot.slane %v3169, 4
        %v3172 = vshll.u32 %v2931, 16
        %v3174 = vrot.slane %v3172, 5
        %v3175 = vor.u32 %v3171, %v3174
        %v3176 = vrot.slane %v3175, 4
        %v3178 = vshll.u32 %v2932, 16
        %v3180 = vrot.slane %v3178, 5
        %v3181 = vsel %vm1170, %v3176, %v3180
        %v3182 = vshrl.u32 %v2932, 16
        %v3184 = vrot.slane %v3182, 4
        %v3185 = vor.u32 %v3184, %v3180
        %v3186 = vrot.slane %v3185, 4
        %v3188 = vshll.u32 %v2933, 16
        %v3190 = vrot.slane %v3188, 5
        %v3191 = vsel %vm1170, %v3186, %v3190
        %v3193 = vshrl.u32 %v2934, 16
        %v3195 = vrot.slane %v3193, 4
        %v3196 = vshll.u32 %v2934, 16
        %v3198 = vrot.slane %v3196, 5
        %v3199 = vor.u32 %v3195, %v3198
        %v3200 = vrot.slane %v3199, 4
        %v3202 = vshll.u32 %v2935, 16
        %v3204 = vrot.slane %v3202, 5
        %v3205 = vsel %vm1170, %v3200, %v3204
        %v3206 = vshrl.u32 %v2935, 16
        %v3208 = vrot.slane %v3206, 4
        %v3209 = vor.u32 %v3208, %v3204
        %v3210 = vrot.slane %v3209, 4
        %v3212 = vshll.u32 %v2936, 16
        %v3214 = vrot.slane %v3212, 5
        %v3215 = vsel %vm1170, %v3210, %v3214
        %v3217 = vshrl.u32 %v2937, 16
        %v3219 = vrot.slane %v3217, 4
        %v3220 = vshll.u32 %v2937, 16
        %v3222 = vrot.slane %v3220, 5
        %v3223 = vor.u32 %v3219, %v3222
        %v3224 = vrot.slane %v3223, 4
        %v3226 = vshll.u32 %v2938, 16
        %v3228 = vrot.slane %v3226, 5
        %v3229 = vsel %vm1170, %v3224, %v3228
        %v3230 = vshrl.u32 %v2938, 16
        %v3232 = vrot.slane %v3230, 4
        %v3233 = vor.u32 %v3232, %v3228
        %v3234 = vrot.slane %v3233, 4
        %v3236 = vshll.u32 %v2939, 16
        %v3238 = vrot.slane %v3236, 5
        %v3239 = vsel %vm1170, %v3234, %v3238
        %v3241 = vshrl.u32 %v2940, 16
        %v3243 = vrot.slane %v3241, 4
        %v3244 = vshll.u32 %v2940, 16
        %v3246 = vrot.slane %v3244, 5
        %v3247 = vor.u32 %v3243, %v3246
        %v3248 = vrot.slane %v3247, 4
        %v3250 = vshll.u32 %v2941, 16
        %v3252 = vrot.slane %v3250, 5
        %v3253 = vsel %vm1170, %v3248, %v3252
        %v3254 = vshrl.u32 %v2941, 16
        %v3256 = vrot.slane %v3254, 4
        %v3257 = vor.u32 %v3256, %v3252
        %v3258 = vrot.slane %v3257, 4
        %v3260 = vshll.u32 %v2942, 16
        %v3262 = vrot.slane %v3260, 5
        %v3263 = vsel %vm1170, %v3258, %v3262
        %v3265 = vshrl.u32 %v2943, 16
        %v3267 = vrot.slane %v3265, 4
        %v3268 = vshll.u32 %v2943, 16
        %v3270 = vrot.slane %v3268, 5
        %v3271 = vor.u32 %v3267, %v3270
        %v3272 = vrot.slane %v3271, 4
        %v3274 = vshll.u32 %v2944, 16
        %v3276 = vrot.slane %v3274, 5
        %v3277 = vsel %vm1170, %v3272, %v3276
        %v3278 = vshrl.u32 %v2944, 16
        %v3280 = vrot.slane %v3278, 4
        %v3281 = vor.u32 %v3280, %v3276
        %v3282 = vrot.slane %v3281, 4
        %v3284 = vshll.u32 %v2945, 16
        %v3286 = vrot.slane %v3284, 5
        %v3287 = vsel %vm1170, %v3282, %v3286
        %v3289 = vshrl.u32 %v2946, 16
        %v3291 = vrot.slane %v3289, 4
        %v3292 = vshll.u32 %v2946, 16
        %v3294 = vrot.slane %v3292, 5
        %v3295 = vor.u32 %v3291, %v3294
        %v3296 = vrot.slane %v3295, 4
        %v3298 = vshll.u32 %v2947, 16
        %v3300 = vrot.slane %v3298, 5
        %v3301 = vsel %vm1170, %v3296, %v3300
        %v3302 = vshrl.u32 %v2947, 16
        %v3304 = vrot.slane %v3302, 4
        %v3305 = vor.u32 %v3304, %v3300
        %v3306 = vrot.slane %v3305, 4
        %v3308 = vshll.u32 %v2948, 16
        %v3310 = vrot.slane %v3308, 5
        %v3311 = vsel %vm1170, %v3306, %v3310
        %v3313 = vshrl.u32 %v2949, 16
        %v3315 = vrot.slane %v3313, 4
        %v3316 = vshll.u32 %v2949, 16
        %v3318 = vrot.slane %v3316, 5
        %v3319 = vor.u32 %v3315, %v3318
        %v3320 = vrot.slane %v3319, 4
        %v3322 = vshll.u32 %v2950, 16
        %v3324 = vrot.slane %v3322, 5
        %v3325 = vsel %vm1170, %v3320, %v3324
        %v3326 = vshrl.u32 %v2950, 16
        %v3328 = vrot.slane %v3326, 4
        %v3329 = vor.u32 %v3328, %v3324
        %v3330 = vrot.slane %v3329, 4
        %v3332 = vshll.u32 %v2951, 16
        %v3334 = vrot.slane %v3332, 5
        %v3335 = vsel %vm1170, %v3330, %v3334
        %s3336 = scalar_lea.vmem %s1, 8
        %v3337 = vld [vmem:[%s3336] sm:$0x3]
        %v3338 = vunpack.c.l.b16 %v2965
        %v3339 = vunpack.c.l.b16 %v2975
        %v3340 = vunpack.c.l.b16 %v2989
        %v3341 = vunpack.c.l.b16 %v2999
        %v3342 = vunpack.c.l.b16 %v3013
        %v3343 = vunpack.c.l.b16 %v3023
        %v3344 = vunpack.c.l.b16 %v3037
        %v3345 = vunpack.c.l.b16 %v3047
        %v3346 = vunpack.c.l.b16 %v3061
        %v3347 = vunpack.c.l.b16 %v3071
        %v3348 = vunpack.c.l.b16 %v3085
        %v3349 = vunpack.c.l.b16 %v3095
        %v3350 = vunpack.c.l.b16 %v3109
        %v3351 = vunpack.c.l.b16 %v3119
        %v3352 = vunpack.c.l.b16 %v3133
        %v3353 = vunpack.c.l.b16 %v3143
        %v3354 = vunpack.c.l.b16 %v3157
        %v3355 = vunpack.c.l.b16 %v3167
        %v3356 = vunpack.c.l.b16 %v3181
        %v3357 = vunpack.c.l.b16 %v3191
        %v3358 = vunpack.c.l.b16 %v3205
        %v3359 = vunpack.c.l.b16 %v3215
        %v3360 = vunpack.c.l.b16 %v3229
        %v3361 = vunpack.c.l.b16 %v3239
        %v3362 = vunpack.c.l.b16 %v3253
        %v3363 = vunpack.c.l.b16 %v3263
        %v3364 = vunpack.c.l.b16 %v3277
        %v3365 = vunpack.c.l.b16 %v3287
        %v3366 = vunpack.c.l.b16 %v3301
        %v3367 = vunpack.c.l.b16 %v3311
        %v3368 = vunpack.c.l.b16 %v3325
        %v3369 = vunpack.c.l.b16 %v3335
        %v3370 = vpack.c.b16 %v3339, %v3338
        %v3371 = vpack.c.b16 %v3341, %v3340
        %v3372 = vpack.c.b16 %v3343, %v3342
        %v3373 = vpack.c.b16 %v3345, %v3344
        %v3374 = vpack.c.b16 %v3347, %v3346
        %v3375 = vpack.c.b16 %v3349, %v3348
        %v3376 = vpack.c.b16 %v3351, %v3350
        %v3377 = vpack.c.b16 %v3353, %v3352
        %v3378 = vpack.c.b16 %v3355, %v3354
        %v3379 = vpack.c.b16 %v3357, %v3356
        %v3380 = vpack.c.b16 %v3359, %v3358
        %v3381 = vpack.c.b16 %v3361, %v3360
        %v3382 = vpack.c.b16 %v3363, %v3362
        %v3383 = vpack.c.b16 %v3365, %v3364
        %v3384 = vpack.c.b16 %v3367, %v3366
        %v3385 = vpack.c.b16 %v3369, %v3368
        %v3387 = vsel %vm874, %v3370, 0
        %v3390 = vsel %vm874, %v3371, 0
        %v3393 = vsel %vm874, %v3372, 0
        %v3396 = vsel %vm874, %v3373, 0
        %v3399 = vsel %vm874, %v3374, 0
        %v3402 = vsel %vm874, %v3375, 0
        %v3405 = vsel %vm874, %v3376, 0
        %v3408 = vsel %vm874, %v3377, 0
        %v3411 = vsel %vm874, %v3378, 0
        %v3414 = vsel %vm874, %v3379, 0
        %v3417 = vsel %vm874, %v3380, 0
        %v3420 = vsel %vm874, %v3381, 0
        %v3423 = vsel %vm874, %v3382, 0
        %v3426 = vsel %vm874, %v3383, 0
        %v3429 = vsel %vm874, %v3384, 0
        %v3432 = vsel %vm874, %v3385, 0
        %v3435 = vsel %vm923, %v3337, 0
        %3437 = vmatprep.subr.bf16.mxu0 0
        %3438 = vmatpush1.bf16.msra.mxu0 %v3435
        %3439 = vmatprep.subr.bf16.mxu0 0
        %3440 = vmatpush1.bf16.msra.mxu0 0
        %3441 = vmatprep.subr.bf16.mxu0 0
        %3442 = vmatpush1.bf16.msra.mxu0 0
        %3443 = vmatprep.subr.bf16.mxu0 0
        %3444 = vmatpush1.bf16.msra.mxu0 0
        %3445 = vmatprep.subr.bf16.mxu0 0
        %3446 = vmatpush1.bf16.msra.mxu0 0
        %3447 = vmatprep.subr.bf16.mxu0 0
        %3448 = vmatpush1.bf16.msra.mxu0 0
        %3449 = vmatprep.subr.bf16.mxu0 0
        %3450 = vmatpush1.bf16.msra.mxu0 0
        %3451 = vmatprep.subr.bf16.mxu0 0
        %3452 = vmatpush1.bf16.msra.mxu0 0
        %3453 = vmatprep.subr.bf16.mxu0 0
        %3454 = vmatpush1.bf16.msra.mxu0 0
        %3455 = vmatprep.subr.bf16.mxu0 0
        %3456 = vmatpush1.bf16.msra.mxu0 0
        %3457 = vmatprep.subr.bf16.mxu0 0
        %3458 = vmatpush1.bf16.msra.mxu0 0
        %3459 = vmatprep.subr.bf16.mxu0 0
        %3460 = vmatpush1.bf16.msra.mxu0 0
        %3461 = vmatprep.subr.bf16.mxu0 0
        %3462 = vmatpush1.bf16.msra.mxu0 0
        %3463 = vmatprep.subr.bf16.mxu0 0
        %3464 = vmatpush1.bf16.msra.mxu0 0
        %3465 = vmatprep.subr.bf16.mxu0 0
        %3466 = vmatpush1.bf16.msra.mxu0 0
        %3467 = vmatprep.subr.bf16.mxu0 0
        %3468 = vmatpush1.bf16.msra.mxu0 0
        %3469 = vmatprep.mubr.bf16.mxu0 0
        %3470 = vmatmul.mubr.bf16.gmra.mrb[0].mxu0 %v3387
        %v3471 = vpop.f32.mrb[0].mxu0
        %v3472 = vadd.f32 0.0, %v3471
        %v3473 = vpop.f32.mrb[0].mxu0
        %v3474 = vpop.f32.mrb[0].mxu0
        %v3475 = vadd.f32 0.0, %v3474
        %v3476 = vpop.f32.mrb[0].mxu0
        %3477 = vmatprep.mubr.bf16.mxu0 0
        %3478 = vmatmul.mubr.bf16.gmra.mrb[0].mxu0 %v3390
        %v3479 = vpop.f32.mrb[0].mxu0
        %v3480 = vadd.f32 0.0, %v3479
        %v3481 = vpop.f32.mrb[0].mxu0
        %v3482 = vpop.f32.mrb[0].mxu0
        %v3483 = vadd.f32 0.0, %v3482
        %v3484 = vpop.f32.mrb[0].mxu0
        %3485 = vmatprep.mubr.bf16.mxu0 0
        %3486 = vmatmul.mubr.bf16.gmra.mrb[0].mxu0 %v3393
        %v3487 = vpop.f32.mrb[0].mxu0
        %v3488 = vadd.f32 0.0, %v3487
        %v3489 = vpop.f32.mrb[0].mxu0
        %v3490 = vpop.f32.mrb[0].mxu0
        %v3491 = vadd.f32 0.0, %v3490
        %v3492 = vpop.f32.mrb[0].mxu0
        %3493 = vmatprep.mubr.bf16.mxu0 0
        %3494 = vmatmul.mubr.bf16.gmra.mrb[0].mxu0 %v3396
        %v3495 = vpop.f32.mrb[0].mxu0
        %v3496 = vadd.f32 0.0, %v3495
        %v3497 = vpop.f32.mrb[0].mxu0
        %v3498 = vpop.f32.mrb[0].mxu0
        %v3499 = vadd.f32 0.0, %v3498
        %v3500 = vpop.f32.mrb[0].mxu0
        %3501 = vmatprep.mubr.bf16.mxu0 0
        %3502 = vmatmul.mubr.bf16.gmra.mrb[0].mxu0 %v3399
        %v3503 = vpop.f32.mrb[0].mxu0
        %v3504 = vadd.f32 0.0, %v3503
        %v3505 = vpop.f32.mrb[0].mxu0
        %v3506 = vpop.f32.mrb[0].mxu0
        %v3507 = vadd.f32 0.0, %v3506
        %v3508 = vpop.f32.mrb[0].mxu0
        %3509 = vmatprep.mubr.bf16.mxu0 0
        %3510 = vmatmul.mubr.bf16.gmra.mrb[0].mxu0 %v3402
        %v3511 = vpop.f32.mrb[0].mxu0
        %v3512 = vadd.f32 0.0, %v3511
        %v3513 = vpop.f32.mrb[0].mxu0
        %v3514 = vpop.f32.mrb[0].mxu0
        %v3515 = vadd.f32 0.0, %v3514
        %v3516 = vpop.f32.mrb[0].mxu0
        %3517 = vmatprep.mubr.bf16.mxu0 0
        %3518 = vmatmul.mubr.bf16.gmra.mrb[0].mxu0 %v3405
        %v3519 = vpop.f32.mrb[0].mxu0
        %v3520 = vadd.f32 0.0, %v3519
        %v3521 = vpop.f32.mrb[0].mxu0
        %v3522 = vpop.f32.mrb[0].mxu0
        %v3523 = vadd.f32 0.0, %v3522
        %v3524 = vpop.f32.mrb[0].mxu0
        %3525 = vmatprep.mubr.bf16.mxu0 0
        %3526 = vmatmul.mubr.bf16.gmra.mrb[0].mxu0 %v3408
        %v3527 = vpop.f32.mrb[0].mxu0
        %v3528 = vadd.f32 0.0, %v3527
        %v3529 = vpop.f32.mrb[0].mxu0
        %v3530 = vpop.f32.mrb[0].mxu0
        %v3531 = vadd.f32 0.0, %v3530
        %v3532 = vpop.f32.mrb[0].mxu0
        %3533 = vmatprep.mubr.bf16.mxu0 0
        %3534 = vmatmul.mubr.bf16.gmra.mrb[0].mxu0 %v3411
        %v3535 = vpop.f32.mrb[0].mxu0
        %v3536 = vadd.f32 0.0, %v3535
        %v3537 = vpop.f32.mrb[0].mxu0
        %v3538 = vpop.f32.mrb[0].mxu0
        %v3539 = vadd.f32 0.0, %v3538
        %v3540 = vpop.f32.mrb[0].mxu0
        %3541 = vmatprep.mubr.bf16.mxu0 0
        %3542 = vmatmul.mubr.bf16.gmra.mrb[0].mxu0 %v3414
        %v3543 = vpop.f32.mrb[0].mxu0
        %v3544 = vadd.f32 0.0, %v3543
        %v3545 = vpop.f32.mrb[0].mxu0
        %v3546 = vpop.f32.mrb[0].mxu0
        %v3547 = vadd.f32 0.0, %v3546
        %v3548 = vpop.f32.mrb[0].mxu0
        %3549 = vmatprep.mubr.bf16.mxu0 0
        %3550 = vmatmul.mubr.bf16.gmra.mrb[0].mxu0 %v3417
        %v3551 = vpop.f32.mrb[0].mxu0
        %v3552 = vadd.f32 0.0, %v3551
        %v3553 = vpop.f32.mrb[0].mxu0
        %v3554 = vpop.f32.mrb[0].mxu0
        %v3555 = vadd.f32 0.0, %v3554
        %v3556 = vpop.f32.mrb[0].mxu0
        %3557 = vmatprep.mubr.bf16.mxu0 0
        %3558 = vmatmul.mubr.bf16.gmra.mrb[0].mxu0 %v3420
        %v3559 = vpop.f32.mrb[0].mxu0
        %v3560 = vadd.f32 0.0, %v3559
        %v3561 = vpop.f32.mrb[0].mxu0
        %v3562 = vpop.f32.mrb[0].mxu0
        %v3563 = vadd.f32 0.0, %v3562
        %v3564 = vpop.f32.mrb[0].mxu0
        %3565 = vmatprep.mubr.bf16.mxu0 0
        %3566 = vmatmul.mubr.bf16.gmra.mrb[0].mxu0 %v3423
        %v3567 = vpop.f32.mrb[0].mxu0
        %v3568 = vadd.f32 0.0, %v3567
        %v3569 = vpop.f32.mrb[0].mxu0
        %v3570 = vpop.f32.mrb[0].mxu0
        %v3571 = vadd.f32 0.0, %v3570
        %v3572 = vpop.f32.mrb[0].mxu0
        %3573 = vmatprep.mubr.bf16.mxu0 0
        %3574 = vmatmul.mubr.bf16.gmra.mrb[0].mxu0 %v3426
        %v3575 = vpop.f32.mrb[0].mxu0
        %v3576 = vadd.f32 0.0, %v3575
        %v3577 = vpop.f32.mrb[0].mxu0
        %v3578 = vpop.f32.mrb[0].mxu0
        %v3579 = vadd.f32 0.0, %v3578
        %v3580 = vpop.f32.mrb[0].mxu0
        %3581 = vmatprep.mubr.bf16.mxu0 0
        %3582 = vmatmul.mubr.bf16.gmra.mrb[0].mxu0 %v3429
        %v3583 = vpop.f32.mrb[0].mxu0
        %v3584 = vadd.f32 0.0, %v3583
        %v3585 = vpop.f32.mrb[0].mxu0
        %v3586 = vpop.f32.mrb[0].mxu0
        %v3587 = vadd.f32 0.0, %v3586
        %v3588 = vpop.f32.mrb[0].mxu0
        %3589 = vmatprep.mubr.bf16.mxu0 0
        %3590 = vmatmul.mubr.bf16.gmra.mrb[0].mxu0 %v3432
        %v3591 = vpop.f32.mrb[0].mxu0
        %v3592 = vadd.f32 0.0, %v3591
        %v3593 = vpop.f32.mrb[0].mxu0
        %v3594 = vpop.f32.mrb[0].mxu0
        %v3595 = vadd.f32 0.0, %v3594
        %v3596 = vpop.f32.mrb[0].mxu0
        %3597 = vdwg.mxu0
        %v3598 = vld [vmem:[#allocation3] sm:$0xff]
        %v3599 = vld [vmem:[#allocation3 + $0x8] sm:$0xff]
        %v3600 = vld [vmem:[#allocation3 + $0x10] sm:$0xff]
        %v3601 = vld [vmem:[#allocation3 + $0x18] sm:$0xff]
        %v3602 = vld [vmem:[#allocation3 + $0x20] sm:$0xff]
        %v3603 = vld [vmem:[#allocation3 + $0x28] sm:$0xff]
        %v3604 = vld [vmem:[#allocation3 + $0x30] sm:$0xff]
        %v3605 = vld [vmem:[#allocation3 + $0x38] sm:$0xff]
        %v3606 = vld [vmem:[#allocation3 + $0x40] sm:$0xff]
        %v3607 = vld [vmem:[#allocation3 + $0x48] sm:$0xff]
        %v3608 = vld [vmem:[#allocation3 + $0x50] sm:$0xff]
        %v3609 = vld [vmem:[#allocation3 + $0x58] sm:$0xff]
        %v3610 = vld [vmem:[#allocation3 + $0x60] sm:$0xff]
        %v3611 = vld [vmem:[#allocation3 + $0x68] sm:$0xff]
        %v3612 = vld [vmem:[#allocation3 + $0x70] sm:$0xff]
        %v3613 = vld [vmem:[#allocation3 + $0x78] sm:$0xff]
        %v3614 = vld [vmem:[#allocation3 + $0x80] sm:$0xff]
        %v3615 = vld [vmem:[#allocation3 + $0x88] sm:$0xff]
        %v3616 = vld [vmem:[#allocation3 + $0x90] sm:$0xff]
        %v3617 = vld [vmem:[#allocation3 + $0x98] sm:$0xff]
        %v3618 = vld [vmem:[#allocation3 + $0xa0] sm:$0xff]
        %v3619 = vld [vmem:[#allocation3 + $0xa8] sm:$0xff]
        %v3620 = vld [vmem:[#allocation3 + $0xb0] sm:$0xff]
        %v3621 = vld [vmem:[#allocation3 + $0xb8] sm:$0xff]
        %v3622 = vld [vmem:[#allocation3 + $0xc0] sm:$0xff]
        %v3623 = vld [vmem:[#allocation3 + $0xc8] sm:$0xff]
        %v3624 = vld [vmem:[#allocation3 + $0xd0] sm:$0xff]
        %v3625 = vld [vmem:[#allocation3 + $0xd8] sm:$0xff]
        %v3626 = vld [vmem:[#allocation3 + $0xe0] sm:$0xff]
        %v3627 = vld [vmem:[#allocation3 + $0xe8] sm:$0xff]
        %v3628 = vld [vmem:[#allocation3 + $0xf0] sm:$0xff]
        %v3629 = vld [vmem:[#allocation3 + $0xf8] sm:$0xff]
        %v3630 = vadd.f32 %v3598, %v3472
        %v3631 = vadd.f32 %v3599, %v3475
        %v3632 = vadd.f32 %v3600, %v3480
        %v3633 = vadd.f32 %v3601, %v3483
        %v3634 = vadd.f32 %v3602, %v3488
        %v3635 = vadd.f32 %v3603, %v3491
        %v3636 = vadd.f32 %v3604, %v3496
        %v3637 = vadd.f32 %v3605, %v3499
        %v3638 = vadd.f32 %v3606, %v3504
        %v3639 = vadd.f32 %v3607, %v3507
        %v3640 = vadd.f32 %v3608, %v3512
        %v3641 = vadd.f32 %v3609, %v3515
        %v3642 = vadd.f32 %v3610, %v3520
        %v3643 = vadd.f32 %v3611, %v3523
        %v3644 = vadd.f32 %v3612, %v3528
        %v3645 = vadd.f32 %v3613, %v3531
        %v3646 = vadd.f32 %v3614, %v3536
        %v3647 = vadd.f32 %v3615, %v3539
        %v3648 = vadd.f32 %v3616, %v3544
        %v3649 = vadd.f32 %v3617, %v3547
        %v3650 = vadd.f32 %v3618, %v3552
        %v3651 = vadd.f32 %v3619, %v3555
        %v3652 = vadd.f32 %v3620, %v3560
        %v3653 = vadd.f32 %v3621, %v3563
        %v3654 = vadd.f32 %v3622, %v3568
        %v3655 = vadd.f32 %v3623, %v3571
        %v3656 = vadd.f32 %v3624, %v3576
        %v3657 = vadd.f32 %v3625, %v3579
        %v3658 = vadd.f32 %v3626, %v3584
        %v3659 = vadd.f32 %v3627, %v3587
        %v3660 = vadd.f32 %v3628, %v3592
        %v3661 = vadd.f32 %v3629, %v3595
        %3662 = vst [vmem:[#allocation3] sm:$0xff] %v3630
        %3663 = vst [vmem:[#allocation3 + $0x8] sm:$0xff] %v3631
        %3664 = vst [vmem:[#allocation3 + $0x10] sm:$0xff] %v3632
        %3665 = vst [vmem:[#allocation3 + $0x18] sm:$0xff] %v3633
        %3666 = vst [vmem:[#allocation3 + $0x20] sm:$0xff] %v3634
        %3667 = vst [vmem:[#allocation3 + $0x28] sm:$0xff] %v3635
        %3668 = vst [vmem:[#allocation3 + $0x30] sm:$0xff] %v3636
        %3669 = vst [vmem:[#allocation3 + $0x38] sm:$0xff] %v3637
        %3670 = vst [vmem:[#allocation3 + $0x40] sm:$0xff] %v3638
        %3671 = vst [vmem:[#allocation3 + $0x48] sm:$0xff] %v3639
        %3672 = vst [vmem:[#allocation3 + $0x50] sm:$0xff] %v3640
        %3673 = vst [vmem:[#allocation3 + $0x58] sm:$0xff] %v3641
        %3674 = vst [vmem:[#allocation3 + $0x60] sm:$0xff] %v3642
        %3675 = vst [vmem:[#allocation3 + $0x68] sm:$0xff] %v3643
        %3676 = vst [vmem:[#allocation3 + $0x70] sm:$0xff] %v3644
        %3677 = vst [vmem:[#allocation3 + $0x78] sm:$0xff] %v3645
        %3678 = vst [vmem:[#allocation3 + $0x80] sm:$0xff] %v3646
        %3679 = vst [vmem:[#allocation3 + $0x88] sm:$0xff] %v3647
        %3680 = vst [vmem:[#allocation3 + $0x90] sm:$0xff] %v3648
        %3681 = vst [vmem:[#allocation3 + $0x98] sm:$0xff] %v3649
        %3682 = vst [vmem:[#allocation3 + $0xa0] sm:$0xff] %v3650
        %3683 = vst [vmem:[#allocation3 + $0xa8] sm:$0xff] %v3651
        %3684 = vst [vmem:[#allocation3 + $0xb0] sm:$0xff] %v3652
        %3685 = vst [vmem:[#allocation3 + $0xb8] sm:$0xff] %v3653
        %3686 = vst [vmem:[#allocation3 + $0xc0] sm:$0xff] %v3654
        %3687 = vst [vmem:[#allocation3 + $0xc8] sm:$0xff] %v3655
        %3688 = vst [vmem:[#allocation3 + $0xd0] sm:$0xff] %v3656
        %3689 = vst [vmem:[#allocation3 + $0xd8] sm:$0xff] %v3657
        %3690 = vst [vmem:[#allocation3 + $0xe0] sm:$0xff] %v3658
        %3691 = vst [vmem:[#allocation3 + $0xe8] sm:$0xff] %v3659
        %3692 = vst [vmem:[#allocation3 + $0xf0] sm:$0xff] %v3660
        %3693 = vst [vmem:[#allocation3 + $0xf8] sm:$0xff] %v3661
        %v3694 = vld [vmem:[%s646] sm:$0xe]
        %v3695 = vld [vmem:[%s646 + $0x4] sm:$0xf]
        %v3696 = vld [vmem:[%s646 + $0x8] sm:$0x1]
        %v3697 = vld [vmem:[%s646 + $0xc] sm:$0xe]
        %v3698 = vld [vmem:[%s646 + $0x10] sm:$0xf]
        %v3699 = vld [vmem:[%s646 + $0x14] sm:$0x1]
        %v3700 = vld [vmem:[%s646 + $0x18] sm:$0xe]
        %v3701 = vld [vmem:[%s646 + $0x1c] sm:$0xf]
        %v3702 = vld [vmem:[%s646 + $0x20] sm:$0x1]
        %v3703 = vld [vmem:[%s646 + $0x24] sm:$0xe]
        %v3704 = vld [vmem:[%s646 + $0x28] sm:$0xf]
        %v3705 = vld [vmem:[%s646 + $0x2c] sm:$0x1]
        %v3706 = vld [vmem:[%s646 + $0x30] sm:$0xe]
        %v3707 = vld [vmem:[%s646 + $0x34] sm:$0xf]
        %v3708 = vld [vmem:[%s646 + $0x38] sm:$0x1]
        %v3709 = vld [vmem:[%s646 + $0x3c] sm:$0xe]
        %v3710 = vld [vmem:[%s646 + $0x40] sm:$0xf]
        %v3711 = vld [vmem:[%s646 + $0x44] sm:$0x1]
        %v3712 = vld [vmem:[%s646 + $0x48] sm:$0xe]
        %v3713 = vld [vmem:[%s646 + $0x4c] sm:$0xf]
        %v3714 = vld [vmem:[%s646 + $0x50] sm:$0x1]
        %v3715 = vld [vmem:[%s646 + $0x54] sm:$0xe]
        %v3716 = vld [vmem:[%s646 + $0x58] sm:$0xf]
        %v3717 = vld [vmem:[%s646 + $0x5c] sm:$0x1]
        %v3718 = vld [vmem:[%s646 + $0x60] sm:$0xe]
        %v3719 = vld [vmem:[%s646 + $0x64] sm:$0xf]
        %v3720 = vld [vmem:[%s646 + $0x68] sm:$0x1]
        %v3721 = vld [vmem:[%s646 + $0x6c] sm:$0xe]
        %v3722 = vld [vmem:[%s646 + $0x70] sm:$0xf]
        %v3723 = vld [vmem:[%s646 + $0x74] sm:$0x1]
        %v3724 = vld [vmem:[%s646 + $0x78] sm:$0xe]
        %v3725 = vld [vmem:[%s646 + $0x7c] sm:$0xf]
        %v3726 = vld [vmem:[%s646 + $0x80] sm:$0x1]
        %v3727 = vld [vmem:[%s646 + $0x84] sm:$0xe]
        %v3728 = vld [vmem:[%s646 + $0x88] sm:$0xf]
        %v3729 = vld [vmem:[%s646 + $0x8c] sm:$0x1]
        %v3730 = vld [vmem:[%s646 + $0x90] sm:$0xe]
        %v3731 = vld [vmem:[%s646 + $0x94] sm:$0xf]
        %v3732 = vld [vmem:[%s646 + $0x98] sm:$0x1]
        %v3733 = vld [vmem:[%s646 + $0x9c] sm:$0xe]
        %v3734 = vld [vmem:[%s646 + $0xa0] sm:$0xf]
        %v3735 = vld [vmem:[%s646 + $0xa4] sm:$0x1]
        %v3736 = vld [vmem:[%s646 + $0xa8] sm:$0xe]
        %v3737 = vld [vmem:[%s646 + $0xac] sm:$0xf]
        %v3738 = vld [vmem:[%s646 + $0xb0] sm:$0x1]
        %v3739 = vld [vmem:[%s646 + $0xb4] sm:$0xe]
        %v3740 = vld [vmem:[%s646 + $0xb8] sm:$0xf]
        %v3741 = vld [vmem:[%s646 + $0xbc] sm:$0x1]
        %v3790 = vrot.slane %v3694, 5
        %v3791 = vrot.slane %v3790, 4
        %v3792 = vrot.slane %v3695, 5
        %v3793 = vsel %vm2011, %v3791, %v3792
        %v3794 = vrot.slane %v3792, 4
        %v3795 = vrot.slane %v3696, 5
        %v3796 = vsel %vm2011, %v3794, %v3795
        %v3797 = vrot.slane %v3697, 5
        %v3798 = vrot.slane %v3797, 4
        %v3799 = vrot.slane %v3698, 5
        %v3800 = vsel %vm2011, %v3798, %v3799
        %v3801 = vrot.slane %v3799, 4
        %v3802 = vrot.slane %v3699, 5
        %v3803 = vsel %vm2011, %v3801, %v3802
        %v3804 = vrot.slane %v3700, 5
        %v3805 = vrot.slane %v3804, 4
        %v3806 = vrot.slane %v3701, 5
        %v3807 = vsel %vm2011, %v3805, %v3806
        %v3808 = vrot.slane %v3806, 4
        %v3809 = vrot.slane %v3702, 5
        %v3810 = vsel %vm2011, %v3808, %v3809
        %v3811 = vrot.slane %v3703, 5
        %v3812 = vrot.slane %v3811, 4
        %v3813 = vrot.slane %v3704, 5
        %v3814 = vsel %vm2011, %v3812, %v3813
        %v3815 = vrot.slane %v3813, 4
        %v3816 = vrot.slane %v3705, 5
        %v3817 = vsel %vm2011, %v3815, %v3816
        %v3818 = vrot.slane %v3706, 5
        %v3819 = vrot.slane %v3818, 4
        %v3820 = vrot.slane %v3707, 5
        %v3821 = vsel %vm2011, %v3819, %v3820
        %v3822 = vrot.slane %v3820, 4
        %v3823 = vrot.slane %v3708, 5
        %v3824 = vsel %vm2011, %v3822, %v3823
        %v3825 = vrot.slane %v3709, 5
        %v3826 = vrot.slane %v3825, 4
        %v3827 = vrot.slane %v3710, 5
        %v3828 = vsel %vm2011, %v3826, %v3827
        %v3829 = vrot.slane %v3827, 4
        %v3830 = vrot.slane %v3711, 5
        %v3831 = vsel %vm2011, %v3829, %v3830
        %v3832 = vrot.slane %v3712, 5
        %v3833 = vrot.slane %v3832, 4
        %v3834 = vrot.slane %v3713, 5
        %v3835 = vsel %vm2011, %v3833, %v3834
        %v3836 = vrot.slane %v3834, 4
        %v3837 = vrot.slane %v3714, 5
        %v3838 = vsel %vm2011, %v3836, %v3837
        %v3839 = vrot.slane %v3715, 5
        %v3840 = vrot.slane %v3839, 4
        %v3841 = vrot.slane %v3716, 5
        %v3842 = vsel %vm2011, %v3840, %v3841
        %v3843 = vrot.slane %v3841, 4
        %v3844 = vrot.slane %v3717, 5
        %v3845 = vsel %vm2011, %v3843, %v3844
        %v3846 = vrot.slane %v3718, 5
        %v3847 = vrot.slane %v3846, 4
        %v3848 = vrot.slane %v3719, 5
        %v3849 = vsel %vm2011, %v3847, %v3848
        %v3850 = vrot.slane %v3848, 4
        %v3851 = vrot.slane %v3720, 5
        %v3852 = vsel %vm2011, %v3850, %v3851
        %v3853 = vrot.slane %v3721, 5
        %v3854 = vrot.slane %v3853, 4
        %v3855 = vrot.slane %v3722, 5
        %v3856 = vsel %vm2011, %v3854, %v3855
        %v3857 = vrot.slane %v3855, 4
        %v3858 = vrot.slane %v3723, 5
        %v3859 = vsel %vm2011, %v3857, %v3858
        %v3860 = vrot.slane %v3724, 5
        %v3861 = vrot.slane %v3860, 4
        %v3862 = vrot.slane %v3725, 5
        %v3863 = vsel %vm2011, %v3861, %v3862
        %v3864 = vrot.slane %v3862, 4
        %v3865 = vrot.slane %v3726, 5
        %v3866 = vsel %vm2011, %v3864, %v3865
        %v3867 = vrot.slane %v3727, 5
        %v3868 = vrot.slane %v3867, 4
        %v3869 = vrot.slane %v3728, 5
        %v3870 = vsel %vm2011, %v3868, %v3869
        %v3871 = vrot.slane %v3869, 4
        %v3872 = vrot.slane %v3729, 5
        %v3873 = vsel %vm2011, %v3871, %v3872
        %v3874 = vrot.slane %v3730, 5
        %v3875 = vrot.slane %v3874, 4
        %v3876 = vrot.slane %v3731, 5
        %v3877 = vsel %vm2011, %v3875, %v3876
        %v3878 = vrot.slane %v3876, 4
        %v3879 = vrot.slane %v3732, 5
        %v3880 = vsel %vm2011, %v3878, %v3879
        %v3881 = vrot.slane %v3733, 5
        %v3882 = vrot.slane %v3881, 4
        %v3883 = vrot.slane %v3734, 5
        %v3884 = vsel %vm2011, %v3882, %v3883
        %v3885 = vrot.slane %v3883, 4
        %v3886 = vrot.slane %v3735, 5
        %v3887 = vsel %vm2011, %v3885, %v3886
        %v3888 = vrot.slane %v3736, 5
        %v3889 = vrot.slane %v3888, 4
        %v3890 = vrot.slane %v3737, 5
        %v3891 = vsel %vm2011, %v3889, %v3890
        %v3892 = vrot.slane %v3890, 4
        %v3893 = vrot.slane %v3738, 5
        %v3894 = vsel %vm2011, %v3892, %v3893
        %v3895 = vrot.slane %v3739, 5
        %v3896 = vrot.slane %v3895, 4
        %v3897 = vrot.slane %v3740, 5
        %v3898 = vsel %vm2011, %v3896, %v3897
        %v3899 = vrot.slane %v3897, 4
        %v3900 = vrot.slane %v3741, 5
        %v3901 = vsel %vm2011, %v3899, %v3900
        %s3902 = scalar_lea.vmem %s1, 10
        %v3903 = vld [vmem:[%s3902] sm:$0x3]
        %v3904 = vunpack.c.l.b16 %v3793
        %v3905 = vunpack.c.l.b16 %v3796
        %v3906 = vunpack.c.l.b16 %v3800
        %v3907 = vunpack.c.l.b16 %v3803
        %v3908 = vunpack.c.l.b16 %v3807
        %v3909 = vunpack.c.l.b16 %v3810
        %v3910 = vunpack.c.l.b16 %v3814
        %v3911 = vunpack.c.l.b16 %v3817
        %v3912 = vunpack.c.l.b16 %v3821
        %v3913 = vunpack.c.l.b16 %v3824
        %v3914 = vunpack.c.l.b16 %v3828
        %v3915 = vunpack.c.l.b16 %v3831
        %v3916 = vunpack.c.l.b16 %v3835
        %v3917 = vunpack.c.l.b16 %v3838
        %v3918 = vunpack.c.l.b16 %v3842
        %v3919 = vunpack.c.l.b16 %v3845
        %v3920 = vunpack.c.l.b16 %v3849
        %v3921 = vunpack.c.l.b16 %v3852
        %v3922 = vunpack.c.l.b16 %v3856
        %v3923 = vunpack.c.l.b16 %v3859
        %v3924 = vunpack.c.l.b16 %v3863
        %v3925 = vunpack.c.l.b16 %v3866
        %v3926 = vunpack.c.l.b16 %v3870
        %v3927 = vunpack.c.l.b16 %v3873
        %v3928 = vunpack.c.l.b16 %v3877
        %v3929 = vunpack.c.l.b16 %v3880
        %v3930 = vunpack.c.l.b16 %v3884
        %v3931 = vunpack.c.l.b16 %v3887
        %v3932 = vunpack.c.l.b16 %v3891
        %v3933 = vunpack.c.l.b16 %v3894
        %v3934 = vunpack.c.l.b16 %v3898
        %v3935 = vunpack.c.l.b16 %v3901
        %v3936 = vpack.c.b16 %v3905, %v3904
        %v3937 = vpack.c.b16 %v3907, %v3906
        %v3938 = vpack.c.b16 %v3909, %v3908
        %v3939 = vpack.c.b16 %v3911, %v3910
        %v3940 = vpack.c.b16 %v3913, %v3912
        %v3941 = vpack.c.b16 %v3915, %v3914
        %v3942 = vpack.c.b16 %v3917, %v3916
        %v3943 = vpack.c.b16 %v3919, %v3918
        %v3944 = vpack.c.b16 %v3921, %v3920
        %v3945 = vpack.c.b16 %v3923, %v3922
        %v3946 = vpack.c.b16 %v3925, %v3924
        %v3947 = vpack.c.b16 %v3927, %v3926
        %v3948 = vpack.c.b16 %v3929, %v3928
        %v3949 = vpack.c.b16 %v3931, %v3930
        %v3950 = vpack.c.b16 %v3933, %v3932
        %v3951 = vpack.c.b16 %v3935, %v3934
        %v3953 = vsel %vm874, %v3936, 0
        %v3956 = vsel %vm874, %v3937, 0
        %v3959 = vsel %vm874, %v3938, 0
        %v3962 = vsel %vm874, %v3939, 0
        %v3965 = vsel %vm874, %v3940, 0
        %v3968 = vsel %vm874, %v3941, 0
        %v3971 = vsel %vm874, %v3942, 0
        %v3974 = vsel %vm874, %v3943, 0
        %v3977 = vsel %vm874, %v3944, 0
        %v3980 = vsel %vm874, %v3945, 0
        %v3983 = vsel %vm874, %v3946, 0
        %v3986 = vsel %vm874, %v3947, 0
        %v3989 = vsel %vm874, %v3948, 0
        %v3992 = vsel %vm874, %v3949, 0
        %v3995 = vsel %vm874, %v3950, 0
        %v3998 = vsel %vm874, %v3951, 0
        %v4001 = vsel %vm923, %v3903, 0
        %4003 = vmatprep.subr.bf16.mxu0 0
        %4004 = vmatpush1.bf16.msra.mxu0 %v4001
        %4005 = vmatprep.subr.bf16.mxu0 0
        %4006 = vmatpush1.bf16.msra.mxu0 0
        %4007 = vmatprep.subr.bf16.mxu0 0
        %4008 = vmatpush1.bf16.msra.mxu0 0
        %4009 = vmatprep.subr.bf16.mxu0 0
        %4010 = vmatpush1.bf16.msra.mxu0 0
        %4011 = vmatprep.subr.bf16.mxu0 0
        %4012 = vmatpush1.bf16.msra.mxu0 0
        %4013 = vmatprep.subr.bf16.mxu0 0
        %4014 = vmatpush1.bf16.msra.mxu0 0
        %4015 = vmatprep.subr.bf16.mxu0 0
        %4016 = vmatpush1.bf16.msra.mxu0 0
        %4017 = vmatprep.subr.bf16.mxu0 0
        %4018 = vmatpush1.bf16.msra.mxu0 0
        %4019 = vmatprep.subr.bf16.mxu0 0
        %4020 = vmatpush1.bf16.msra.mxu0 0
        %4021 = vmatprep.subr.bf16.mxu0 0
        %4022 = vmatpush1.bf16.msra.mxu0 0
        %4023 = vmatprep.subr.bf16.mxu0 0
        %4024 = vmatpush1.bf16.msra.mxu0 0
        %4025 = vmatprep.subr.bf16.mxu0 0
        %4026 = vmatpush1.bf16.msra.mxu0 0
        %4027 = vmatprep.subr.bf16.mxu0 0
        %4028 = vmatpush1.bf16.msra.mxu0 0
        %4029 = vmatprep.subr.bf16.mxu0 0
        %4030 = vmatpush1.bf16.msra.mxu0 0
        %4031 = vmatprep.subr.bf16.mxu0 0
        %4032 = vmatpush1.bf16.msra.mxu0 0
        %4033 = vmatprep.subr.bf16.mxu0 0
        %4034 = vmatpush1.bf16.msra.mxu0 0
        %4035 = vmatprep.mubr.bf16.mxu0 0
        %4036 = vmatmul.mubr.bf16.gmra.mrb[0].mxu0 %v3953
        %v4037 = vpop.f32.mrb[0].mxu0
        %v4038 = vadd.f32 0.0, %v4037
        %v4039 = vpop.f32.mrb[0].mxu0
        %v4040 = vpop.f32.mrb[0].mxu0
        %v4041 = vadd.f32 0.0, %v4040
        %v4042 = vpop.f32.mrb[0].mxu0
        %4043 = vmatprep.mubr.bf16.mxu0 0
        %4044 = vmatmul.mubr.bf16.gmra.mrb[0].mxu0 %v3956
        %v4045 = vpop.f32.mrb[0].mxu0
        %v4046 = vadd.f32 0.0, %v4045
        %v4047 = vpop.f32.mrb[0].mxu0
        %v4048 = vpop.f32.mrb[0].mxu0
        %v4049 = vadd.f32 0.0, %v4048
        %v4050 = vpop.f32.mrb[0].mxu0
        %4051 = vmatprep.mubr.bf16.mxu0 0
        %4052 = vmatmul.mubr.bf16.gmra.mrb[0].mxu0 %v3959
        %v4053 = vpop.f32.mrb[0].mxu0
        %v4054 = vadd.f32 0.0, %v4053
        %v4055 = vpop.f32.mrb[0].mxu0
        %v4056 = vpop.f32.mrb[0].mxu0
        %v4057 = vadd.f32 0.0, %v4056
        %v4058 = vpop.f32.mrb[0].mxu0
        %4059 = vmatprep.mubr.bf16.mxu0 0
        %4060 = vmatmul.mubr.bf16.gmra.mrb[0].mxu0 %v3962
        %v4061 = vpop.f32.mrb[0].mxu0
        %v4062 = vadd.f32 0.0, %v4061
        %v4063 = vpop.f32.mrb[0].mxu0
        %v4064 = vpop.f32.mrb[0].mxu0
        %v4065 = vadd.f32 0.0, %v4064
        %v4066 = vpop.f32.mrb[0].mxu0
        %4067 = vmatprep.mubr.bf16.mxu0 0
        %4068 = vmatmul.mubr.bf16.gmra.mrb[0].mxu0 %v3965
        %v4069 = vpop.f32.mrb[0].mxu0
        %v4070 = vadd.f32 0.0, %v4069
        %v4071 = vpop.f32.mrb[0].mxu0
        %v4072 = vpop.f32.mrb[0].mxu0
        %v4073 = vadd.f32 0.0, %v4072
        %v4074 = vpop.f32.mrb[0].mxu0
        %4075 = vmatprep.mubr.bf16.mxu0 0
        %4076 = vmatmul.mubr.bf16.gmra.mrb[0].mxu0 %v3968
        %v4077 = vpop.f32.mrb[0].mxu0
        %v4078 = vadd.f32 0.0, %v4077
        %v4079 = vpop.f32.mrb[0].mxu0
        %v4080 = vpop.f32.mrb[0].mxu0
        %v4081 = vadd.f32 0.0, %v4080
        %v4082 = vpop.f32.mrb[0].mxu0
        %4083 = vmatprep.mubr.bf16.mxu0 0
        %4084 = vmatmul.mubr.bf16.gmra.mrb[0].mxu0 %v3971
        %v4085 = vpop.f32.mrb[0].mxu0
        %v4086 = vadd.f32 0.0, %v4085
        %v4087 = vpop.f32.mrb[0].mxu0
        %v4088 = vpop.f32.mrb[0].mxu0
        %v4089 = vadd.f32 0.0, %v4088
        %v4090 = vpop.f32.mrb[0].mxu0
        %4091 = vmatprep.mubr.bf16.mxu0 0
        %4092 = vmatmul.mubr.bf16.gmra.mrb[0].mxu0 %v3974
        %v4093 = vpop.f32.mrb[0].mxu0
        %v4094 = vadd.f32 0.0, %v4093
        %v4095 = vpop.f32.mrb[0].mxu0
        %v4096 = vpop.f32.mrb[0].mxu0
        %v4097 = vadd.f32 0.0, %v4096
        %v4098 = vpop.f32.mrb[0].mxu0
        %4099 = vmatprep.mubr.bf16.mxu0 0
        %4100 = vmatmul.mubr.bf16.gmra.mrb[0].mxu0 %v3977
        %v4101 = vpop.f32.mrb[0].mxu0
        %v4102 = vadd.f32 0.0, %v4101
        %v4103 = vpop.f32.mrb[0].mxu0
        %v4104 = vpop.f32.mrb[0].mxu0
        %v4105 = vadd.f32 0.0, %v4104
        %v4106 = vpop.f32.mrb[0].mxu0
        %4107 = vmatprep.mubr.bf16.mxu0 0
        %4108 = vmatmul.mubr.bf16.gmra.mrb[0].mxu0 %v3980
        %v4109 = vpop.f32.mrb[0].mxu0
        %v4110 = vadd.f32 0.0, %v4109
        %v4111 = vpop.f32.mrb[0].mxu0
        %v4112 = vpop.f32.mrb[0].mxu0
        %v4113 = vadd.f32 0.0, %v4112
        %v4114 = vpop.f32.mrb[0].mxu0
        %4115 = vmatprep.mubr.bf16.mxu0 0
        %4116 = vmatmul.mubr.bf16.gmra.mrb[0].mxu0 %v3983
        %v4117 = vpop.f32.mrb[0].mxu0
        %v4118 = vadd.f32 0.0, %v4117
        %v4119 = vpop.f32.mrb[0].mxu0
        %v4120 = vpop.f32.mrb[0].mxu0
        %v4121 = vadd.f32 0.0, %v4120
        %v4122 = vpop.f32.mrb[0].mxu0
        %4123 = vmatprep.mubr.bf16.mxu0 0
        %4124 = vmatmul.mubr.bf16.gmra.mrb[0].mxu0 %v3986
        %v4125 = vpop.f32.mrb[0].mxu0
        %v4126 = vadd.f32 0.0, %v4125
        %v4127 = vpop.f32.mrb[0].mxu0
        %v4128 = vpop.f32.mrb[0].mxu0
        %v4129 = vadd.f32 0.0, %v4128
        %v4130 = vpop.f32.mrb[0].mxu0
        %4131 = vmatprep.mubr.bf16.mxu0 0
        %4132 = vmatmul.mubr.bf16.gmra.mrb[0].mxu0 %v3989
        %v4133 = vpop.f32.mrb[0].mxu0
        %v4134 = vadd.f32 0.0, %v4133
        %v4135 = vpop.f32.mrb[0].mxu0
        %v4136 = vpop.f32.mrb[0].mxu0
        %v4137 = vadd.f32 0.0, %v4136
        %v4138 = vpop.f32.mrb[0].mxu0
        %4139 = vmatprep.mubr.bf16.mxu0 0
        %4140 = vmatmul.mubr.bf16.gmra.mrb[0].mxu0 %v3992
        %v4141 = vpop.f32.mrb[0].mxu0
        %v4142 = vadd.f32 0.0, %v4141
        %v4143 = vpop.f32.mrb[0].mxu0
        %v4144 = vpop.f32.mrb[0].mxu0
        %v4145 = vadd.f32 0.0, %v4144
        %v4146 = vpop.f32.mrb[0].mxu0
        %4147 = vmatprep.mubr.bf16.mxu0 0
        %4148 = vmatmul.mubr.bf16.gmra.mrb[0].mxu0 %v3995
        %v4149 = vpop.f32.mrb[0].mxu0
        %v4150 = vadd.f32 0.0, %v4149
        %v4151 = vpop.f32.mrb[0].mxu0
        %v4152 = vpop.f32.mrb[0].mxu0
        %v4153 = vadd.f32 0.0, %v4152
        %v4154 = vpop.f32.mrb[0].mxu0
        %4155 = vmatprep.mubr.bf16.mxu0 0
        %4156 = vmatmul.mubr.bf16.gmra.mrb[0].mxu0 %v3998
        %v4157 = vpop.f32.mrb[0].mxu0
        %v4158 = vadd.f32 0.0, %v4157
        %v4159 = vpop.f32.mrb[0].mxu0
        %v4160 = vpop.f32.mrb[0].mxu0
        %v4161 = vadd.f32 0.0, %v4160
        %v4162 = vpop.f32.mrb[0].mxu0
        %4163 = vdwg.mxu0
        %v4164 = vld [vmem:[#allocation3] sm:$0xff]
        %v4165 = vld [vmem:[#allocation3 + $0x8] sm:$0xff]
        %v4166 = vld [vmem:[#allocation3 + $0x10] sm:$0xff]
        %v4167 = vld [vmem:[#allocation3 + $0x18] sm:$0xff]
        %v4168 = vld [vmem:[#allocation3 + $0x20] sm:$0xff]
        %v4169 = vld [vmem:[#allocation3 + $0x28] sm:$0xff]
        %v4170 = vld [vmem:[#allocation3 + $0x30] sm:$0xff]
        %v4171 = vld [vmem:[#allocation3 + $0x38] sm:$0xff]
        %v4172 = vld [vmem:[#allocation3 + $0x40] sm:$0xff]
        %v4173 = vld [vmem:[#allocation3 + $0x48] sm:$0xff]
        %v4174 = vld [vmem:[#allocation3 + $0x50] sm:$0xff]
        %v4175 = vld [vmem:[#allocation3 + $0x58] sm:$0xff]
        %v4176 = vld [vmem:[#allocation3 + $0x60] sm:$0xff]
        %v4177 = vld [vmem:[#allocation3 + $0x68] sm:$0xff]
        %v4178 = vld [vmem:[#allocation3 + $0x70] sm:$0xff]
        %v4179 = vld [vmem:[#allocation3 + $0x78] sm:$0xff]
        %v4180 = vld [vmem:[#allocation3 + $0x80] sm:$0xff]
        %v4181 = vld [vmem:[#allocation3 + $0x88] sm:$0xff]
        %v4182 = vld [vmem:[#allocation3 + $0x90] sm:$0xff]
        %v4183 = vld [vmem:[#allocation3 + $0x98] sm:$0xff]
        %v4184 = vld [vmem:[#allocation3 + $0xa0] sm:$0xff]
        %v4185 = vld [vmem:[#allocation3 + $0xa8] sm:$0xff]
        %v4186 = vld [vmem:[#allocation3 + $0xb0] sm:$0xff]
        %v4187 = vld [vmem:[#allocation3 + $0xb8] sm:$0xff]
        %v4188 = vld [vmem:[#allocation3 + $0xc0] sm:$0xff]
        %v4189 = vld [vmem:[#allocation3 + $0xc8] sm:$0xff]
        %v4190 = vld [vmem:[#allocation3 + $0xd0] sm:$0xff]
        %v4191 = vld [vmem:[#allocation3 + $0xd8] sm:$0xff]
        %v4192 = vld [vmem:[#allocation3 + $0xe0] sm:$0xff]
        %v4193 = vld [vmem:[#allocation3 + $0xe8] sm:$0xff]
        %v4194 = vld [vmem:[#allocation3 + $0xf0] sm:$0xff]
        %v4195 = vld [vmem:[#allocation3 + $0xf8] sm:$0xff]
        %v4196 = vadd.f32 %v4164, %v4038
        %v4197 = vadd.f32 %v4165, %v4041
        %v4198 = vadd.f32 %v4166, %v4046
        %v4199 = vadd.f32 %v4167, %v4049
        %v4200 = vadd.f32 %v4168, %v4054
        %v4201 = vadd.f32 %v4169, %v4057
        %v4202 = vadd.f32 %v4170, %v4062
        %v4203 = vadd.f32 %v4171, %v4065
        %v4204 = vadd.f32 %v4172, %v4070
        %v4205 = vadd.f32 %v4173, %v4073
        %v4206 = vadd.f32 %v4174, %v4078
        %v4207 = vadd.f32 %v4175, %v4081
        %v4208 = vadd.f32 %v4176, %v4086
        %v4209 = vadd.f32 %v4177, %v4089
        %v4210 = vadd.f32 %v4178, %v4094
        %v4211 = vadd.f32 %v4179, %v4097
        %v4212 = vadd.f32 %v4180, %v4102
        %v4213 = vadd.f32 %v4181, %v4105
        %v4214 = vadd.f32 %v4182, %v4110
        %v4215 = vadd.f32 %v4183, %v4113
        %v4216 = vadd.f32 %v4184, %v4118
        %v4217 = vadd.f32 %v4185, %v4121
        %v4218 = vadd.f32 %v4186, %v4126
        %v4219 = vadd.f32 %v4187, %v4129
        %v4220 = vadd.f32 %v4188, %v4134
        %v4221 = vadd.f32 %v4189, %v4137
        %v4222 = vadd.f32 %v4190, %v4142
        %v4223 = vadd.f32 %v4191, %v4145
        %v4224 = vadd.f32 %v4192, %v4150
        %v4225 = vadd.f32 %v4193, %v4153
        %v4226 = vadd.f32 %v4194, %v4158
        %v4227 = vadd.f32 %v4195, %v4161
        %4228 = vst [vmem:[#allocation3] sm:$0xff] %v4196
        %4229 = vst [vmem:[#allocation3 + $0x8] sm:$0xff] %v4197
        %4230 = vst [vmem:[#allocation3 + $0x10] sm:$0xff] %v4198
        %4231 = vst [vmem:[#allocation3 + $0x18] sm:$0xff] %v4199
        %4232 = vst [vmem:[#allocation3 + $0x20] sm:$0xff] %v4200
        %4233 = vst [vmem:[#allocation3 + $0x28] sm:$0xff] %v4201
        %4234 = vst [vmem:[#allocation3 + $0x30] sm:$0xff] %v4202
        %4235 = vst [vmem:[#allocation3 + $0x38] sm:$0xff] %v4203
        %4236 = vst [vmem:[#allocation3 + $0x40] sm:$0xff] %v4204
        %4237 = vst [vmem:[#allocation3 + $0x48] sm:$0xff] %v4205
        %4238 = vst [vmem:[#allocation3 + $0x50] sm:$0xff] %v4206
        %4239 = vst [vmem:[#allocation3 + $0x58] sm:$0xff] %v4207
        %4240 = vst [vmem:[#allocation3 + $0x60] sm:$0xff] %v4208
        %4241 = vst [vmem:[#allocation3 + $0x68] sm:$0xff] %v4209
        %4242 = vst [vmem:[#allocation3 + $0x70] sm:$0xff] %v4210
        %4243 = vst [vmem:[#allocation3 + $0x78] sm:$0xff] %v4211
        %4244 = vst [vmem:[#allocation3 + $0x80] sm:$0xff] %v4212
        %4245 = vst [vmem:[#allocation3 + $0x88] sm:$0xff] %v4213
        %4246 = vst [vmem:[#allocation3 + $0x90] sm:$0xff] %v4214
        %4247 = vst [vmem:[#allocation3 + $0x98] sm:$0xff] %v4215
        %4248 = vst [vmem:[#allocation3 + $0xa0] sm:$0xff] %v4216
        %4249 = vst [vmem:[#allocation3 + $0xa8] sm:$0xff] %v4217
        %4250 = vst [vmem:[#allocation3 + $0xb0] sm:$0xff] %v4218
        %4251 = vst [vmem:[#allocation3 + $0xb8] sm:$0xff] %v4219
        %4252 = vst [vmem:[#allocation3 + $0xc0] sm:$0xff] %v4220
        %4253 = vst [vmem:[#allocation3 + $0xc8] sm:$0xff] %v4221
        %4254 = vst [vmem:[#allocation3 + $0xd0] sm:$0xff] %v4222
        %4255 = vst [vmem:[#allocation3 + $0xd8] sm:$0xff] %v4223
        %4256 = vst [vmem:[#allocation3 + $0xe0] sm:$0xff] %v4224
        %4257 = vst [vmem:[#allocation3 + $0xe8] sm:$0xff] %v4225
        %4258 = vst [vmem:[#allocation3 + $0xf0] sm:$0xff] %v4226
        %4259 = vst [vmem:[#allocation3 + $0xf8] sm:$0xff] %v4227
        %s4260 = scalar_lea.vmem [#allocation2], 24
        %v4261 = vld [vmem:[%s4260] sm:$0xf]
        %v4262 = vld [vmem:[%s4260 + $0x4] sm:$0xf]
        %v4263 = vld [vmem:[%s4260 + $0xc] sm:$0xf]
        %v4264 = vld [vmem:[%s4260 + $0x10] sm:$0xf]
        %v4265 = vld [vmem:[%s4260 + $0x18] sm:$0xf]
        %v4266 = vld [vmem:[%s4260 + $0x1c] sm:$0xf]
        %v4267 = vld [vmem:[%s4260 + $0x24] sm:$0xf]
        %v4268 = vld [vmem:[%s4260 + $0x28] sm:$0xf]
        %v4269 = vld [vmem:[%s4260 + $0x30] sm:$0xf]
        %v4270 = vld [vmem:[%s4260 + $0x34] sm:$0xf]
        %v4271 = vld [vmem:[%s4260 + $0x3c] sm:$0xf]
        %v4272 = vld [vmem:[%s4260 + $0x40] sm:$0xf]
        %v4273 = vld [vmem:[%s4260 + $0x48] sm:$0xf]
        %v4274 = vld [vmem:[%s4260 + $0x4c] sm:$0xf]
        %v4275 = vld [vmem:[%s4260 + $0x54] sm:$0xf]
        %v4276 = vld [vmem:[%s4260 + $0x58] sm:$0xf]
        %v4277 = vld [vmem:[%s4260 + $0x60] sm:$0xf]
        %v4278 = vld [vmem:[%s4260 + $0x64] sm:$0xf]
        %v4279 = vld [vmem:[%s4260 + $0x6c] sm:$0xf]
        %v4280 = vld [vmem:[%s4260 + $0x70] sm:$0xf]
        %v4281 = vld [vmem:[%s4260 + $0x78] sm:$0xf]
        %v4282 = vld [vmem:[%s4260 + $0x7c] sm:$0xf]
        %v4283 = vld [vmem:[%s4260 + $0x84] sm:$0xf]
        %v4284 = vld [vmem:[%s4260 + $0x88] sm:$0xf]
        %v4285 = vld [vmem:[%s4260 + $0x90] sm:$0xf]
        %v4286 = vld [vmem:[%s4260 + $0x94] sm:$0xf]
        %v4287 = vld [vmem:[%s4260 + $0x9c] sm:$0xf]
        %v4288 = vld [vmem:[%s4260 + $0xa0] sm:$0xf]
        %v4289 = vld [vmem:[%s4260 + $0xa8] sm:$0xf]
        %v4290 = vld [vmem:[%s4260 + $0xac] sm:$0xf]
        %v4291 = vld [vmem:[%s4260 + $0xb4] sm:$0xf]
        %v4292 = vld [vmem:[%s4260 + $0xb8] sm:$0xf]
        %s4293 = scalar_lea.vmem %s1, 12
        %v4294 = vld [vmem:[%s4293] sm:$0x3]
        %v4327 = vunpack.c.l.b16 %v4261
        %v4328 = vunpack.c.l.b16 %v4262
        %v4329 = vunpack.c.l.b16 %v4263
        %v4330 = vunpack.c.l.b16 %v4264
        %v4331 = vunpack.c.l.b16 %v4265
        %v4332 = vunpack.c.l.b16 %v4266
        %v4333 = vunpack.c.l.b16 %v4267
        %v4334 = vunpack.c.l.b16 %v4268
        %v4335 = vunpack.c.l.b16 %v4269
        %v4336 = vunpack.c.l.b16 %v4270
        %v4337 = vunpack.c.l.b16 %v4271
        %v4338 = vunpack.c.l.b16 %v4272
        %v4339 = vunpack.c.l.b16 %v4273
        %v4340 = vunpack.c.l.b16 %v4274
        %v4341 = vunpack.c.l.b16 %v4275
        %v4342 = vunpack.c.l.b16 %v4276
        %v4343 = vunpack.c.l.b16 %v4277
        %v4344 = vunpack.c.l.b16 %v4278
        %v4345 = vunpack.c.l.b16 %v4279
        %v4346 = vunpack.c.l.b16 %v4280
        %v4347 = vunpack.c.l.b16 %v4281
        %v4348 = vunpack.c.l.b16 %v4282
        %v4349 = vunpack.c.l.b16 %v4283
        %v4350 = vunpack.c.l.b16 %v4284
        %v4351 = vunpack.c.l.b16 %v4285
        %v4352 = vunpack.c.l.b16 %v4286
        %v4353 = vunpack.c.l.b16 %v4287
        %v4354 = vunpack.c.l.b16 %v4288
        %v4355 = vunpack.c.l.b16 %v4289
        %v4356 = vunpack.c.l.b16 %v4290
        %v4357 = vunpack.c.l.b16 %v4291
        %v4358 = vunpack.c.l.b16 %v4292
        %v4359 = vpack.c.b16 %v4328, %v4327
        %v4360 = vpack.c.b16 %v4330, %v4329
        %v4361 = vpack.c.b16 %v4332, %v4331
        %v4362 = vpack.c.b16 %v4334, %v4333
        %v4363 = vpack.c.b16 %v4336, %v4335
        %v4364 = vpack.c.b16 %v4338, %v4337
        %v4365 = vpack.c.b16 %v4340, %v4339
        %v4366 = vpack.c.b16 %v4342, %v4341
        %v4367 = vpack.c.b16 %v4344, %v4343
        %v4368 = vpack.c.b16 %v4346, %v4345
        %v4369 = vpack.c.b16 %v4348, %v4347
        %v4370 = vpack.c.b16 %v4350, %v4349
        %v4371 = vpack.c.b16 %v4352, %v4351
        %v4372 = vpack.c.b16 %v4354, %v4353
        %v4373 = vpack.c.b16 %v4356, %v4355
        %v4374 = vpack.c.b16 %v4358, %v4357
        %v4376 = vsel %vm874, %v4359, 0
        %v4379 = vsel %vm874, %v4360, 0
        %v4382 = vsel %vm874, %v4361, 0
        %v4385 = vsel %vm874, %v4362, 0
        %v4388 = vsel %vm874, %v4363, 0
        %v4391 = vsel %vm874, %v4364, 0
        %v4394 = vsel %vm874, %v4365, 0
        %v4397 = vsel %vm874, %v4366, 0
        %v4400 = vsel %vm874, %v4367, 0
        %v4403 = vsel %vm874, %v4368, 0
        %v4406 = vsel %vm874, %v4369, 0
        %v4409 = vsel %vm874, %v4370, 0
        %v4412 = vsel %vm874, %v4371, 0
        %v4415 = vsel %vm874, %v4372, 0
        %v4418 = vsel %vm874, %v4373, 0
        %v4421 = vsel %vm874, %v4374, 0
        %v4424 = vsel %vm923, %v4294, 0
        %4426 = vmatprep.subr.bf16.mxu0 0
        %4427 = vmatpush1.bf16.msra.mxu0 %v4424
        %4428 = vmatprep.subr.bf16.mxu0 0
        %4429 = vmatpush1.bf16.msra.mxu0 0
        %4430 = vmatprep.subr.bf16.mxu0 0
        %4431 = vmatpush1.bf16.msra.mxu0 0
        %4432 = vmatprep.subr.bf16.mxu0 0
        %4433 = vmatpush1.bf16.msra.mxu0 0
        %4434 = vmatprep.subr.bf16.mxu0 0
        %4435 = vmatpush1.bf16.msra.mxu0 0
        %4436 = vmatprep.subr.bf16.mxu0 0
        %4437 = vmatpush1.bf16.msra.mxu0 0
        %4438 = vmatprep.subr.bf16.mxu0 0
        %4439 = vmatpush1.bf16.msra.mxu0 0
        %4440 = vmatprep.subr.bf16.mxu0 0
        %4441 = vmatpush1.bf16.msra.mxu0 0
        %4442 = vmatprep.subr.bf16.mxu0 0
        %4443 = vmatpush1.bf16.msra.mxu0 0
        %4444 = vmatprep.subr.bf16.mxu0 0
        %4445 = vmatpush1.bf16.msra.mxu0 0
        %4446 = vmatprep.subr.bf16.mxu0 0
        %4447 = vmatpush1.bf16.msra.mxu0 0
        %4448 = vmatprep.subr.bf16.mxu0 0
        %4449 = vmatpush1.bf16.msra.mxu0 0
        %4450 = vmatprep.subr.bf16.mxu0 0
        %4451 = vmatpush1.bf16.msra.mxu0 0
        %4452 = vmatprep.subr.bf16.mxu0 0
        %4453 = vmatpush1.bf16.msra.mxu0 0
        %4454 = vmatprep.subr.bf16.mxu0 0
        %4455 = vmatpush1.bf16.msra.mxu0 0
        %4456 = vmatprep.subr.bf16.mxu0 0
        %4457 = vmatpush1.bf16.msra.mxu0 0
        %4458 = vmatprep.mubr.bf16.mxu0 0
        %4459 = vmatmul.mubr.bf16.gmra.mrb[0].mxu0 %v4376
        %v4460 = vpop.f32.mrb[0].mxu0
        %v4461 = vadd.f32 0.0, %v4460
        %v4462 = vpop.f32.mrb[0].mxu0
        %v4463 = vpop.f32.mrb[0].mxu0
        %v4464 = vadd.f32 0.0, %v4463
        %v4465 = vpop.f32.mrb[0].mxu0
        %4466 = vmatprep.mubr.bf16.mxu0 0
        %4467 = vmatmul.mubr.bf16.gmra.mrb[0].mxu0 %v4379
        %v4468 = vpop.f32.mrb[0].mxu0
        %v4469 = vadd.f32 0.0, %v4468
        %v4470 = vpop.f32.mrb[0].mxu0
        %v4471 = vpop.f32.mrb[0].mxu0
        %v4472 = vadd.f32 0.0, %v4471
        %v4473 = vpop.f32.mrb[0].mxu0
        %4474 = vmatprep.mubr.bf16.mxu0 0
        %4475 = vmatmul.mubr.bf16.gmra.mrb[0].mxu0 %v4382
        %v4476 = vpop.f32.mrb[0].mxu0
        %v4477 = vadd.f32 0.0, %v4476
        %v4478 = vpop.f32.mrb[0].mxu0
        %v4479 = vpop.f32.mrb[0].mxu0
        %v4480 = vadd.f32 0.0, %v4479
        %v4481 = vpop.f32.mrb[0].mxu0
        %4482 = vmatprep.mubr.bf16.mxu0 0
        %4483 = vmatmul.mubr.bf16.gmra.mrb[0].mxu0 %v4385
        %v4484 = vpop.f32.mrb[0].mxu0
        %v4485 = vadd.f32 0.0, %v4484
        %v4486 = vpop.f32.mrb[0].mxu0
        %v4487 = vpop.f32.mrb[0].mxu0
        %v4488 = vadd.f32 0.0, %v4487
        %v4489 = vpop.f32.mrb[0].mxu0
        %4490 = vmatprep.mubr.bf16.mxu0 0
        %4491 = vmatmul.mubr.bf16.gmra.mrb[0].mxu0 %v4388
        %v4492 = vpop.f32.mrb[0].mxu0
        %v4493 = vadd.f32 0.0, %v4492
        %v4494 = vpop.f32.mrb[0].mxu0
        %v4495 = vpop.f32.mrb[0].mxu0
        %v4496 = vadd.f32 0.0, %v4495
        %v4497 = vpop.f32.mrb[0].mxu0
        %4498 = vmatprep.mubr.bf16.mxu0 0
        %4499 = vmatmul.mubr.bf16.gmra.mrb[0].mxu0 %v4391
        %v4500 = vpop.f32.mrb[0].mxu0
        %v4501 = vadd.f32 0.0, %v4500
        %v4502 = vpop.f32.mrb[0].mxu0
        %v4503 = vpop.f32.mrb[0].mxu0
        %v4504 = vadd.f32 0.0, %v4503
        %v4505 = vpop.f32.mrb[0].mxu0
        %4506 = vmatprep.mubr.bf16.mxu0 0
        %4507 = vmatmul.mubr.bf16.gmra.mrb[0].mxu0 %v4394
        %v4508 = vpop.f32.mrb[0].mxu0
        %v4509 = vadd.f32 0.0, %v4508
        %v4510 = vpop.f32.mrb[0].mxu0
        %v4511 = vpop.f32.mrb[0].mxu0
        %v4512 = vadd.f32 0.0, %v4511
        %v4513 = vpop.f32.mrb[0].mxu0
        %4514 = vmatprep.mubr.bf16.mxu0 0
        %4515 = vmatmul.mubr.bf16.gmra.mrb[0].mxu0 %v4397
        %v4516 = vpop.f32.mrb[0].mxu0
        %v4517 = vadd.f32 0.0, %v4516
        %v4518 = vpop.f32.mrb[0].mxu0
        %v4519 = vpop.f32.mrb[0].mxu0
        %v4520 = vadd.f32 0.0, %v4519
        %v4521 = vpop.f32.mrb[0].mxu0
        %4522 = vmatprep.mubr.bf16.mxu0 0
        %4523 = vmatmul.mubr.bf16.gmra.mrb[0].mxu0 %v4400
        %v4524 = vpop.f32.mrb[0].mxu0
        %v4525 = vadd.f32 0.0, %v4524
        %v4526 = vpop.f32.mrb[0].mxu0
        %v4527 = vpop.f32.mrb[0].mxu0
        %v4528 = vadd.f32 0.0, %v4527
        %v4529 = vpop.f32.mrb[0].mxu0
        %4530 = vmatprep.mubr.bf16.mxu0 0
        %4531 = vmatmul.mubr.bf16.gmra.mrb[0].mxu0 %v4403
        %v4532 = vpop.f32.mrb[0].mxu0
        %v4533 = vadd.f32 0.0, %v4532
        %v4534 = vpop.f32.mrb[0].mxu0
        %v4535 = vpop.f32.mrb[0].mxu0
        %v4536 = vadd.f32 0.0, %v4535
        %v4537 = vpop.f32.mrb[0].mxu0
        %4538 = vmatprep.mubr.bf16.mxu0 0
        %4539 = vmatmul.mubr.bf16.gmra.mrb[0].mxu0 %v4406
        %v4540 = vpop.f32.mrb[0].mxu0
        %v4541 = vadd.f32 0.0, %v4540
        %v4542 = vpop.f32.mrb[0].mxu0
        %v4543 = vpop.f32.mrb[0].mxu0
        %v4544 = vadd.f32 0.0, %v4543
        %v4545 = vpop.f32.mrb[0].mxu0
        %4546 = vmatprep.mubr.bf16.mxu0 0
        %4547 = vmatmul.mubr.bf16.gmra.mrb[0].mxu0 %v4409
        %v4548 = vpop.f32.mrb[0].mxu0
        %v4549 = vadd.f32 0.0, %v4548
        %v4550 = vpop.f32.mrb[0].mxu0
        %v4551 = vpop.f32.mrb[0].mxu0
        %v4552 = vadd.f32 0.0, %v4551
        %v4553 = vpop.f32.mrb[0].mxu0
        %4554 = vmatprep.mubr.bf16.mxu0 0
        %4555 = vmatmul.mubr.bf16.gmra.mrb[0].mxu0 %v4412
        %v4556 = vpop.f32.mrb[0].mxu0
        %v4557 = vadd.f32 0.0, %v4556
        %v4558 = vpop.f32.mrb[0].mxu0
        %v4559 = vpop.f32.mrb[0].mxu0
        %v4560 = vadd.f32 0.0, %v4559
        %v4561 = vpop.f32.mrb[0].mxu0
        %4562 = vmatprep.mubr.bf16.mxu0 0
        %4563 = vmatmul.mubr.bf16.gmra.mrb[0].mxu0 %v4415
        %v4564 = vpop.f32.mrb[0].mxu0
        %v4565 = vadd.f32 0.0, %v4564
        %v4566 = vpop.f32.mrb[0].mxu0
        %v4567 = vpop.f32.mrb[0].mxu0
        %v4568 = vadd.f32 0.0, %v4567
        %v4569 = vpop.f32.mrb[0].mxu0
        %4570 = vmatprep.mubr.bf16.mxu0 0
        %4571 = vmatmul.mubr.bf16.gmra.mrb[0].mxu0 %v4418
        %v4572 = vpop.f32.mrb[0].mxu0
        %v4573 = vadd.f32 0.0, %v4572
        %v4574 = vpop.f32.mrb[0].mxu0
        %v4575 = vpop.f32.mrb[0].mxu0
        %v4576 = vadd.f32 0.0, %v4575
        %v4577 = vpop.f32.mrb[0].mxu0
        %4578 = vmatprep.mubr.bf16.mxu0 0
        %4579 = vmatmul.mubr.bf16.gmra.mrb[0].mxu0 %v4421
        %v4580 = vpop.f32.mrb[0].mxu0
        %v4581 = vadd.f32 0.0, %v4580
        %v4582 = vpop.f32.mrb[0].mxu0
        %v4583 = vpop.f32.mrb[0].mxu0
        %v4584 = vadd.f32 0.0, %v4583
        %v4585 = vpop.f32.mrb[0].mxu0
        %4586 = vdwg.mxu0
        %v4587 = vld [vmem:[#allocation3] sm:$0xff]
        %v4588 = vld [vmem:[#allocation3 + $0x8] sm:$0xff]
        %v4589 = vld [vmem:[#allocation3 + $0x10] sm:$0xff]
        %v4590 = vld [vmem:[#allocation3 + $0x18] sm:$0xff]
        %v4591 = vld [vmem:[#allocation3 + $0x20] sm:$0xff]
        %v4592 = vld [vmem:[#allocation3 + $0x28] sm:$0xff]
        %v4593 = vld [vmem:[#allocation3 + $0x30] sm:$0xff]
        %v4594 = vld [vmem:[#allocation3 + $0x38] sm:$0xff]
        %v4595 = vld [vmem:[#allocation3 + $0x40] sm:$0xff]
        %v4596 = vld [vmem:[#allocation3 + $0x48] sm:$0xff]
        %v4597 = vld [vmem:[#allocation3 + $0x50] sm:$0xff]
        %v4598 = vld [vmem:[#allocation3 + $0x58] sm:$0xff]
        %v4599 = vld [vmem:[#allocation3 + $0x60] sm:$0xff]
        %v4600 = vld [vmem:[#allocation3 + $0x68] sm:$0xff]
        %v4601 = vld [vmem:[#allocation3 + $0x70] sm:$0xff]
        %v4602 = vld [vmem:[#allocation3 + $0x78] sm:$0xff]
        %v4603 = vld [vmem:[#allocation3 + $0x80] sm:$0xff]
        %v4604 = vld [vmem:[#allocation3 + $0x88] sm:$0xff]
        %v4605 = vld [vmem:[#allocation3 + $0x90] sm:$0xff]
        %v4606 = vld [vmem:[#allocation3 + $0x98] sm:$0xff]
        %v4607 = vld [vmem:[#allocation3 + $0xa0] sm:$0xff]
        %v4608 = vld [vmem:[#allocation3 + $0xa8] sm:$0xff]
        %v4609 = vld [vmem:[#allocation3 + $0xb0] sm:$0xff]
        %v4610 = vld [vmem:[#allocation3 + $0xb8] sm:$0xff]
        %v4611 = vld [vmem:[#allocation3 + $0xc0] sm:$0xff]
        %v4612 = vld [vmem:[#allocation3 + $0xc8] sm:$0xff]
        %v4613 = vld [vmem:[#allocation3 + $0xd0] sm:$0xff]
        %v4614 = vld [vmem:[#allocation3 + $0xd8] sm:$0xff]
        %v4615 = vld [vmem:[#allocation3 + $0xe0] sm:$0xff]
        %v4616 = vld [vmem:[#allocation3 + $0xe8] sm:$0xff]
        %v4617 = vld [vmem:[#allocation3 + $0xf0] sm:$0xff]
        %v4618 = vld [vmem:[#allocation3 + $0xf8] sm:$0xff]
        %v4619 = vadd.f32 %v4587, %v4461
        %v4620 = vadd.f32 %v4588, %v4464
        %v4621 = vadd.f32 %v4589, %v4469
        %v4622 = vadd.f32 %v4590, %v4472
        %v4623 = vadd.f32 %v4591, %v4477
        %v4624 = vadd.f32 %v4592, %v4480
        %v4625 = vadd.f32 %v4593, %v4485
        %v4626 = vadd.f32 %v4594, %v4488
        %v4627 = vadd.f32 %v4595, %v4493
        %v4628 = vadd.f32 %v4596, %v4496
        %v4629 = vadd.f32 %v4597, %v4501
        %v4630 = vadd.f32 %v4598, %v4504
        %v4631 = vadd.f32 %v4599, %v4509
        %v4632 = vadd.f32 %v4600, %v4512
        %v4633 = vadd.f32 %v4601, %v4517
        %v4634 = vadd.f32 %v4602, %v4520
        %v4635 = vadd.f32 %v4603, %v4525
        %v4636 = vadd.f32 %v4604, %v4528
        %v4637 = vadd.f32 %v4605, %v4533
        %v4638 = vadd.f32 %v4606, %v4536
        %v4639 = vadd.f32 %v4607, %v4541
        %v4640 = vadd.f32 %v4608, %v4544
        %v4641 = vadd.f32 %v4609, %v4549
        %v4642 = vadd.f32 %v4610, %v4552
        %v4643 = vadd.f32 %v4611, %v4557
        %v4644 = vadd.f32 %v4612, %v4560
        %v4645 = vadd.f32 %v4613, %v4565
        %v4646 = vadd.f32 %v4614, %v4568
        %v4647 = vadd.f32 %v4615, %v4573
        %v4648 = vadd.f32 %v4616, %v4576
        %v4649 = vadd.f32 %v4617, %v4581
        %v4650 = vadd.f32 %v4618, %v4584
        %4651 = vst [vmem:[#allocation3] sm:$0xff] %v4619
        %4652 = vst [vmem:[#allocation3 + $0x8] sm:$0xff] %v4620
        %4653 = vst [vmem:[#allocation3 + $0x10] sm:$0xff] %v4621
        %4654 = vst [vmem:[#allocation3 + $0x18] sm:$0xff] %v4622
        %4655 = vst [vmem:[#allocation3 + $0x20] sm:$0xff] %v4623
        %4656 = vst [vmem:[#allocation3 + $0x28] sm:$0xff] %v4624
        %4657 = vst [vmem:[#allocation3 + $0x30] sm:$0xff] %v4625
        %4658 = vst [vmem:[#allocation3 + $0x38] sm:$0xff] %v4626
        %4659 = vst [vmem:[#allocation3 + $0x40] sm:$0xff] %v4627
        %4660 = vst [vmem:[#allocation3 + $0x48] sm:$0xff] %v4628
        %4661 = vst [vmem:[#allocation3 + $0x50] sm:$0xff] %v4629
        %4662 = vst [vmem:[#allocation3 + $0x58] sm:$0xff] %v4630
        %4663 = vst [vmem:[#allocation3 + $0x60] sm:$0xff] %v4631
        %4664 = vst [vmem:[#allocation3 + $0x68] sm:$0xff] %v4632
        %4665 = vst [vmem:[#allocation3 + $0x70] sm:$0xff] %v4633
        %4666 = vst [vmem:[#allocation3 + $0x78] sm:$0xff] %v4634
        %4667 = vst [vmem:[#allocation3 + $0x80] sm:$0xff] %v4635
        %4668 = vst [vmem:[#allocation3 + $0x88] sm:$0xff] %v4636
        %4669 = vst [vmem:[#allocation3 + $0x90] sm:$0xff] %v4637
        %4670 = vst [vmem:[#allocation3 + $0x98] sm:$0xff] %v4638
        %4671 = vst [vmem:[#allocation3 + $0xa0] sm:$0xff] %v4639
        %4672 = vst [vmem:[#allocation3 + $0xa8] sm:$0xff] %v4640
        %4673 = vst [vmem:[#allocation3 + $0xb0] sm:$0xff] %v4641
        %4674 = vst [vmem:[#allocation3 + $0xb8] sm:$0xff] %v4642
        %4675 = vst [vmem:[#allocation3 + $0xc0] sm:$0xff] %v4643
        %4676 = vst [vmem:[#allocation3 + $0xc8] sm:$0xff] %v4644
        %4677 = vst [vmem:[#allocation3 + $0xd0] sm:$0xff] %v4645
        %4678 = vst [vmem:[#allocation3 + $0xd8] sm:$0xff] %v4646
        %4679 = vst [vmem:[#allocation3 + $0xe0] sm:$0xff] %v4647
        %4680 = vst [vmem:[#allocation3 + $0xe8] sm:$0xff] %v4648
        %4681 = vst [vmem:[#allocation3 + $0xf0] sm:$0xff] %v4649
        %4682 = vst [vmem:[#allocation3 + $0xf8] sm:$0xff] %v4650
        %v4683 = vld [vmem:[%s4260] sm:$0xf]
        %v4684 = vld [vmem:[%s4260 + $0x4] sm:$0xf]
        %v4685 = vld [vmem:[%s4260 + $0x8] sm:$0x1]
        %v4686 = vld [vmem:[%s4260 + $0xc] sm:$0xf]
        %v4687 = vld [vmem:[%s4260 + $0x10] sm:$0xf]
        %v4688 = vld [vmem:[%s4260 + $0x14] sm:$0x1]
        %v4689 = vld [vmem:[%s4260 + $0x18] sm:$0xf]
        %v4690 = vld [vmem:[%s4260 + $0x1c] sm:$0xf]
        %v4691 = vld [vmem:[%s4260 + $0x20] sm:$0x1]
        %v4692 = vld [vmem:[%s4260 + $0x24] sm:$0xf]
        %v4693 = vld [vmem:[%s4260 + $0x28] sm:$0xf]
        %v4694 = vld [vmem:[%s4260 + $0x2c] sm:$0x1]
        %v4695 = vld [vmem:[%s4260 + $0x30] sm:$0xf]
        %v4696 = vld [vmem:[%s4260 + $0x34] sm:$0xf]
        %v4697 = vld [vmem:[%s4260 + $0x38] sm:$0x1]
        %v4698 = vld [vmem:[%s4260 + $0x3c] sm:$0xf]
        %v4699 = vld [vmem:[%s4260 + $0x40] sm:$0xf]
        %v4700 = vld [vmem:[%s4260 + $0x44] sm:$0x1]
        %v4701 = vld [vmem:[%s4260 + $0x48] sm:$0xf]
        %v4702 = vld [vmem:[%s4260 + $0x4c] sm:$0xf]
        %v4703 = vld [vmem:[%s4260 + $0x50] sm:$0x1]
        %v4704 = vld [vmem:[%s4260 + $0x54] sm:$0xf]
        %v4705 = vld [vmem:[%s4260 + $0x58] sm:$0xf]
        %v4706 = vld [vmem:[%s4260 + $0x5c] sm:$0x1]
        %v4707 = vld [vmem:[%s4260 + $0x60] sm:$0xf]
        %v4708 = vld [vmem:[%s4260 + $0x64] sm:$0xf]
        %v4709 = vld [vmem:[%s4260 + $0x68] sm:$0x1]
        %v4710 = vld [vmem:[%s4260 + $0x6c] sm:$0xf]
        %v4711 = vld [vmem:[%s4260 + $0x70] sm:$0xf]
        %v4712 = vld [vmem:[%s4260 + $0x74] sm:$0x1]
        %v4713 = vld [vmem:[%s4260 + $0x78] sm:$0xf]
        %v4714 = vld [vmem:[%s4260 + $0x7c] sm:$0xf]
        %v4715 = vld [vmem:[%s4260 + $0x80] sm:$0x1]
        %v4716 = vld [vmem:[%s4260 + $0x84] sm:$0xf]
        %v4717 = vld [vmem:[%s4260 + $0x88] sm:$0xf]
        %v4718 = vld [vmem:[%s4260 + $0x8c] sm:$0x1]
        %v4719 = vld [vmem:[%s4260 + $0x90] sm:$0xf]
        %v4720 = vld [vmem:[%s4260 + $0x94] sm:$0xf]
        %v4721 = vld [vmem:[%s4260 + $0x98] sm:$0x1]
        %v4722 = vld [vmem:[%s4260 + $0x9c] sm:$0xf]
        %v4723 = vld [vmem:[%s4260 + $0xa0] sm:$0xf]
        %v4724 = vld [vmem:[%s4260 + $0xa4] sm:$0x1]
        %v4725 = vld [vmem:[%s4260 + $0xa8] sm:$0xf]
        %v4726 = vld [vmem:[%s4260 + $0xac] sm:$0xf]
        %v4727 = vld [vmem:[%s4260 + $0xb0] sm:$0x1]
        %v4728 = vld [vmem:[%s4260 + $0xb4] sm:$0xf]
        %v4729 = vld [vmem:[%s4260 + $0xb8] sm:$0xf]
        %v4730 = vld [vmem:[%s4260 + $0xbc] sm:$0x1]
        %v4732 = vshrl.u32 %v4683, 16
        %v4734 = vrot.slane %v4732, 4
        %v4735 = vshll.u32 %v4683, 16
        %v4737 = vrot.slane %v4735, 5
        %v4738 = vor.u32 %v4734, %v4737
        %v4739 = vrot.slane %v4738, 4
        %v4741 = vshll.u32 %v4684, 16
        %v4743 = vrot.slane %v4741, 5
        %v4744 = vsel %vm1170, %v4739, %v4743
        %v4745 = vshrl.u32 %v4684, 16
        %v4747 = vrot.slane %v4745, 4
        %v4748 = vor.u32 %v4747, %v4743
        %v4749 = vrot.slane %v4748, 4
        %v4751 = vshll.u32 %v4685, 16
        %v4753 = vrot.slane %v4751, 5
        %v4754 = vsel %vm1170, %v4749, %v4753
        %v4756 = vshrl.u32 %v4686, 16
        %v4758 = vrot.slane %v4756, 4
        %v4759 = vshll.u32 %v4686, 16
        %v4761 = vrot.slane %v4759, 5
        %v4762 = vor.u32 %v4758, %v4761
        %v4763 = vrot.slane %v4762, 4
        %v4765 = vshll.u32 %v4687, 16
        %v4767 = vrot.slane %v4765, 5
        %v4768 = vsel %vm1170, %v4763, %v4767
        %v4769 = vshrl.u32 %v4687, 16
        %v4771 = vrot.slane %v4769, 4
        %v4772 = vor.u32 %v4771, %v4767
        %v4773 = vrot.slane %v4772, 4
        %v4775 = vshll.u32 %v4688, 16
        %v4777 = vrot.slane %v4775, 5
        %v4778 = vsel %vm1170, %v4773, %v4777
        %v4780 = vshrl.u32 %v4689, 16
        %v4782 = vrot.slane %v4780, 4
        %v4783 = vshll.u32 %v4689, 16
        %v4785 = vrot.slane %v4783, 5
        %v4786 = vor.u32 %v4782, %v4785
        %v4787 = vrot.slane %v4786, 4
        %v4789 = vshll.u32 %v4690, 16
        %v4791 = vrot.slane %v4789, 5
        %v4792 = vsel %vm1170, %v4787, %v4791
        %v4793 = vshrl.u32 %v4690, 16
        %v4795 = vrot.slane %v4793, 4
        %v4796 = vor.u32 %v4795, %v4791
        %v4797 = vrot.slane %v4796, 4
        %v4799 = vshll.u32 %v4691, 16
        %v4801 = vrot.slane %v4799, 5
        %v4802 = vsel %vm1170, %v4797, %v4801
        %v4804 = vshrl.u32 %v4692, 16
        %v4806 = vrot.slane %v4804, 4
        %v4807 = vshll.u32 %v4692, 16
        %v4809 = vrot.slane %v4807, 5
        %v4810 = vor.u32 %v4806, %v4809
        %v4811 = vrot.slane %v4810, 4
        %v4813 = vshll.u32 %v4693, 16
        %v4815 = vrot.slane %v4813, 5
        %v4816 = vsel %vm1170, %v4811, %v4815
        %v4817 = vshrl.u32 %v4693, 16
        %v4819 = vrot.slane %v4817, 4
        %v4820 = vor.u32 %v4819, %v4815
        %v4821 = vrot.slane %v4820, 4
        %v4823 = vshll.u32 %v4694, 16
        %v4825 = vrot.slane %v4823, 5
        %v4826 = vsel %vm1170, %v4821, %v4825
        %v4828 = vshrl.u32 %v4695, 16
        %v4830 = vrot.slane %v4828, 4
        %v4831 = vshll.u32 %v4695, 16
        %v4833 = vrot.slane %v4831, 5
        %v4834 = vor.u32 %v4830, %v4833
        %v4835 = vrot.slane %v4834, 4
        %v4837 = vshll.u32 %v4696, 16
        %v4839 = vrot.slane %v4837, 5
        %v4840 = vsel %vm1170, %v4835, %v4839
        %v4841 = vshrl.u32 %v4696, 16
        %v4843 = vrot.slane %v4841, 4
        %v4844 = vor.u32 %v4843, %v4839
        %v4845 = vrot.slane %v4844, 4
        %v4847 = vshll.u32 %v4697, 16
        %v4849 = vrot.slane %v4847, 5
        %v4850 = vsel %vm1170, %v4845, %v4849
        %v4852 = vshrl.u32 %v4698, 16
        %v4854 = vrot.slane %v4852, 4
        %v4855 = vshll.u32 %v4698, 16
        %v4857 = vrot.slane %v4855, 5
        %v4858 = vor.u32 %v4854, %v4857
        %v4859 = vrot.slane %v4858, 4
        %v4861 = vshll.u32 %v4699, 16
        %v4863 = vrot.slane %v4861, 5
        %v4864 = vsel %vm1170, %v4859, %v4863
        %v4865 = vshrl.u32 %v4699, 16
        %v4867 = vrot.slane %v4865, 4
        %v4868 = vor.u32 %v4867, %v4863
        %v4869 = vrot.slane %v4868, 4
        %v4871 = vshll.u32 %v4700, 16
        %v4873 = vrot.slane %v4871, 5
        %v4874 = vsel %vm1170, %v4869, %v4873
        %v4876 = vshrl.u32 %v4701, 16
        %v4878 = vrot.slane %v4876, 4
        %v4879 = vshll.u32 %v4701, 16
        %v4881 = vrot.slane %v4879, 5
        %v4882 = vor.u32 %v4878, %v4881
        %v4883 = vrot.slane %v4882, 4
        %v4885 = vshll.u32 %v4702, 16
        %v4887 = vrot.slane %v4885, 5
        %v4888 = vsel %vm1170, %v4883, %v4887
        %v4889 = vshrl.u32 %v4702, 16
        %v4891 = vrot.slane %v4889, 4
        %v4892 = vor.u32 %v4891, %v4887
        %v4893 = vrot.slane %v4892, 4
        %v4895 = vshll.u32 %v4703, 16
        %v4897 = vrot.slane %v4895, 5
        %v4898 = vsel %vm1170, %v4893, %v4897
        %v4900 = vshrl.u32 %v4704, 16
        %v4902 = vrot.slane %v4900, 4
        %v4903 = vshll.u32 %v4704, 16
        %v4905 = vrot.slane %v4903, 5
        %v4906 = vor.u32 %v4902, %v4905
        %v4907 = vrot.slane %v4906, 4
        %v4909 = vshll.u32 %v4705, 16
        %v4911 = vrot.slane %v4909, 5
        %v4912 = vsel %vm1170, %v4907, %v4911
        %v4913 = vshrl.u32 %v4705, 16
        %v4915 = vrot.slane %v4913, 4
        %v4916 = vor.u32 %v4915, %v4911
        %v4917 = vrot.slane %v4916, 4
        %v4919 = vshll.u32 %v4706, 16
        %v4921 = vrot.slane %v4919, 5
        %v4922 = vsel %vm1170, %v4917, %v4921
        %v4924 = vshrl.u32 %v4707, 16
        %v4926 = vrot.slane %v4924, 4
        %v4927 = vshll.u32 %v4707, 16
        %v4929 = vrot.slane %v4927, 5
        %v4930 = vor.u32 %v4926, %v4929
        %v4931 = vrot.slane %v4930, 4
        %v4933 = vshll.u32 %v4708, 16
        %v4935 = vrot.slane %v4933, 5
        %v4936 = vsel %vm1170, %v4931, %v4935
        %v4937 = vshrl.u32 %v4708, 16
        %v4939 = vrot.slane %v4937, 4
        %v4940 = vor.u32 %v4939, %v4935
        %v4941 = vrot.slane %v4940, 4
        %v4943 = vshll.u32 %v4709, 16
        %v4945 = vrot.slane %v4943, 5
        %v4946 = vsel %vm1170, %v4941, %v4945
        %v4948 = vshrl.u32 %v4710, 16
        %v4950 = vrot.slane %v4948, 4
        %v4951 = vshll.u32 %v4710, 16
        %v4953 = vrot.slane %v4951, 5
        %v4954 = vor.u32 %v4950, %v4953
        %v4955 = vrot.slane %v4954, 4
        %v4957 = vshll.u32 %v4711, 16
        %v4959 = vrot.slane %v4957, 5
        %v4960 = vsel %vm1170, %v4955, %v4959
        %v4961 = vshrl.u32 %v4711, 16
        %v4963 = vrot.slane %v4961, 4
        %v4964 = vor.u32 %v4963, %v4959
        %v4965 = vrot.slane %v4964, 4
        %v4967 = vshll.u32 %v4712, 16
        %v4969 = vrot.slane %v4967, 5
        %v4970 = vsel %vm1170, %v4965, %v4969
        %v4972 = vshrl.u32 %v4713, 16
        %v4974 = vrot.slane %v4972, 4
        %v4975 = vshll.u32 %v4713, 16
        %v4977 = vrot.slane %v4975, 5
        %v4978 = vor.u32 %v4974, %v4977
        %v4979 = vrot.slane %v4978, 4
        %v4981 = vshll.u32 %v4714, 16
        %v4983 = vrot.slane %v4981, 5
        %v4984 = vsel %vm1170, %v4979, %v4983
        %v4985 = vshrl.u32 %v4714, 16
        %v4987 = vrot.slane %v4985, 4
        %v4988 = vor.u32 %v4987, %v4983
        %v4989 = vrot.slane %v4988, 4
        %v4991 = vshll.u32 %v4715, 16
        %v4993 = vrot.slane %v4991, 5
        %v4994 = vsel %vm1170, %v4989, %v4993
        %v4996 = vshrl.u32 %v4716, 16
        %v4998 = vrot.slane %v4996, 4
        %v4999 = vshll.u32 %v4716, 16
        %v5001 = vrot.slane %v4999, 5
        %v5002 = vor.u32 %v4998, %v5001
        %v5003 = vrot.slane %v5002, 4
        %v5005 = vshll.u32 %v4717, 16
        %v5007 = vrot.slane %v5005, 5
        %v5008 = vsel %vm1170, %v5003, %v5007
        %v5009 = vshrl.u32 %v4717, 16
        %v5011 = vrot.slane %v5009, 4
        %v5012 = vor.u32 %v5011, %v5007
        %v5013 = vrot.slane %v5012, 4
        %v5015 = vshll.u32 %v4718, 16
        %v5017 = vrot.slane %v5015, 5
        %v5018 = vsel %vm1170, %v5013, %v5017
        %v5020 = vshrl.u32 %v4719, 16
        %v5022 = vrot.slane %v5020, 4
        %v5023 = vshll.u32 %v4719, 16
        %v5025 = vrot.slane %v5023, 5
        %v5026 = vor.u32 %v5022, %v5025
        %v5027 = vrot.slane %v5026, 4
        %v5029 = vshll.u32 %v4720, 16
        %v5031 = vrot.slane %v5029, 5
        %v5032 = vsel %vm1170, %v5027, %v5031
        %v5033 = vshrl.u32 %v4720, 16
        %v5035 = vrot.slane %v5033, 4
        %v5036 = vor.u32 %v5035, %v5031
        %v5037 = vrot.slane %v5036, 4
        %v5039 = vshll.u32 %v4721, 16
        %v5041 = vrot.slane %v5039, 5
        %v5042 = vsel %vm1170, %v5037, %v5041
        %v5044 = vshrl.u32 %v4722, 16
        %v5046 = vrot.slane %v5044, 4
        %v5047 = vshll.u32 %v4722, 16
        %v5049 = vrot.slane %v5047, 5
        %v5050 = vor.u32 %v5046, %v5049
        %v5051 = vrot.slane %v5050, 4
        %v5053 = vshll.u32 %v4723, 16
        %v5055 = vrot.slane %v5053, 5
        %v5056 = vsel %vm1170, %v5051, %v5055
        %v5057 = vshrl.u32 %v4723, 16
        %v5059 = vrot.slane %v5057, 4
        %v5060 = vor.u32 %v5059, %v5055
        %v5061 = vrot.slane %v5060, 4
        %v5063 = vshll.u32 %v4724, 16
        %v5065 = vrot.slane %v5063, 5
        %v5066 = vsel %vm1170, %v5061, %v5065
        %v5068 = vshrl.u32 %v4725, 16
        %v5070 = vrot.slane %v5068, 4
        %v5071 = vshll.u32 %v4725, 16
        %v5073 = vrot.slane %v5071, 5
        %v5074 = vor.u32 %v5070, %v5073
        %v5075 = vrot.slane %v5074, 4
        %v5077 = vshll.u32 %v4726, 16
        %v5079 = vrot.slane %v5077, 5
        %v5080 = vsel %vm1170, %v5075, %v5079
        %v5081 = vshrl.u32 %v4726, 16
        %v5083 = vrot.slane %v5081, 4
        %v5084 = vor.u32 %v5083, %v5079
        %v5085 = vrot.slane %v5084, 4
        %v5087 = vshll.u32 %v4727, 16
        %v5089 = vrot.slane %v5087, 5
        %v5090 = vsel %vm1170, %v5085, %v5089
        %v5092 = vshrl.u32 %v4728, 16
        %v5094 = vrot.slane %v5092, 4
        %v5095 = vshll.u32 %v4728, 16
        %v5097 = vrot.slane %v5095, 5
        %v5098 = vor.u32 %v5094, %v5097
        %v5099 = vrot.slane %v5098, 4
        %v5101 = vshll.u32 %v4729, 16
        %v5103 = vrot.slane %v5101, 5
        %v5104 = vsel %vm1170, %v5099, %v5103
        %v5105 = vshrl.u32 %v4729, 16
        %v5107 = vrot.slane %v5105, 4
        %v5108 = vor.u32 %v5107, %v5103
        %v5109 = vrot.slane %v5108, 4
        %v5111 = vshll.u32 %v4730, 16
        %v5113 = vrot.slane %v5111, 5
        %v5114 = vsel %vm1170, %v5109, %v5113
        %s5115 = scalar_lea.vmem %s1, 14
        %v5116 = vld [vmem:[%s5115] sm:$0x3]
        %v5117 = vunpack.c.l.b16 %v4744
        %v5118 = vunpack.c.l.b16 %v4754
        %v5119 = vunpack.c.l.b16 %v4768
        %v5120 = vunpack.c.l.b16 %v4778
        %v5121 = vunpack.c.l.b16 %v4792
        %v5122 = vunpack.c.l.b16 %v4802
        %v5123 = vunpack.c.l.b16 %v4816
        %v5124 = vunpack.c.l.b16 %v4826
        %v5125 = vunpack.c.l.b16 %v4840
        %v5126 = vunpack.c.l.b16 %v4850
        %v5127 = vunpack.c.l.b16 %v4864
        %v5128 = vunpack.c.l.b16 %v4874
        %v5129 = vunpack.c.l.b16 %v4888
        %v5130 = vunpack.c.l.b16 %v4898
        %v5131 = vunpack.c.l.b16 %v4912
        %v5132 = vunpack.c.l.b16 %v4922
        %v5133 = vunpack.c.l.b16 %v4936
        %v5134 = vunpack.c.l.b16 %v4946
        %v5135 = vunpack.c.l.b16 %v4960
        %v5136 = vunpack.c.l.b16 %v4970
        %v5137 = vunpack.c.l.b16 %v4984
        %v5138 = vunpack.c.l.b16 %v4994
        %v5139 = vunpack.c.l.b16 %v5008
        %v5140 = vunpack.c.l.b16 %v5018
        %v5141 = vunpack.c.l.b16 %v5032
        %v5142 = vunpack.c.l.b16 %v5042
        %v5143 = vunpack.c.l.b16 %v5056
        %v5144 = vunpack.c.l.b16 %v5066
        %v5145 = vunpack.c.l.b16 %v5080
        %v5146 = vunpack.c.l.b16 %v5090
        %v5147 = vunpack.c.l.b16 %v5104
        %v5148 = vunpack.c.l.b16 %v5114
        %v5149 = vpack.c.b16 %v5118, %v5117
        %v5150 = vpack.c.b16 %v5120, %v5119
        %v5151 = vpack.c.b16 %v5122, %v5121
        %v5152 = vpack.c.b16 %v5124, %v5123
        %v5153 = vpack.c.b16 %v5126, %v5125
        %v5154 = vpack.c.b16 %v5128, %v5127
        %v5155 = vpack.c.b16 %v5130, %v5129
        %v5156 = vpack.c.b16 %v5132, %v5131
        %v5157 = vpack.c.b16 %v5134, %v5133
        %v5158 = vpack.c.b16 %v5136, %v5135
        %v5159 = vpack.c.b16 %v5138, %v5137
        %v5160 = vpack.c.b16 %v5140, %v5139
        %v5161 = vpack.c.b16 %v5142, %v5141
        %v5162 = vpack.c.b16 %v5144, %v5143
        %v5163 = vpack.c.b16 %v5146, %v5145
        %v5164 = vpack.c.b16 %v5148, %v5147
        %v5166 = vsel %vm874, %v5149, 0
        %v5169 = vsel %vm874, %v5150, 0
        %v5172 = vsel %vm874, %v5151, 0
        %v5175 = vsel %vm874, %v5152, 0
        %v5178 = vsel %vm874, %v5153, 0
        %v5181 = vsel %vm874, %v5154, 0
        %v5184 = vsel %vm874, %v5155, 0
        %v5187 = vsel %vm874, %v5156, 0
        %v5190 = vsel %vm874, %v5157, 0
        %v5193 = vsel %vm874, %v5158, 0
        %v5196 = vsel %vm874, %v5159, 0
        %v5199 = vsel %vm874, %v5160, 0
        %v5202 = vsel %vm874, %v5161, 0
        %v5205 = vsel %vm874, %v5162, 0
        %v5208 = vsel %vm874, %v5163, 0
        %v5211 = vsel %vm874, %v5164, 0
        %v5214 = vsel %vm923, %v5116, 0
        %5216 = vmatprep.subr.bf16.mxu0 0
        %5217 = vmatpush1.bf16.msra.mxu0 %v5214
        %5218 = vmatprep.subr.bf16.mxu0 0
        %5219 = vmatpush1.bf16.msra.mxu0 0
        %5220 = vmatprep.subr.bf16.mxu0 0
        %5221 = vmatpush1.bf16.msra.mxu0 0
        %5222 = vmatprep.subr.bf16.mxu0 0
        %5223 = vmatpush1.bf16.msra.mxu0 0
        %5224 = vmatprep.subr.bf16.mxu0 0
        %5225 = vmatpush1.bf16.msra.mxu0 0
        %5226 = vmatprep.subr.bf16.mxu0 0
        %5227 = vmatpush1.bf16.msra.mxu0 0
        %5228 = vmatprep.subr.bf16.mxu0 0
        %5229 = vmatpush1.bf16.msra.mxu0 0
        %5230 = vmatprep.subr.bf16.mxu0 0
        %5231 = vmatpush1.bf16.msra.mxu0 0
        %5232 = vmatprep.subr.bf16.mxu0 0
        %5233 = vmatpush1.bf16.msra.mxu0 0
        %5234 = vmatprep.subr.bf16.mxu0 0
        %5235 = vmatpush1.bf16.msra.mxu0 0
        %5236 = vmatprep.subr.bf16.mxu0 0
        %5237 = vmatpush1.bf16.msra.mxu0 0
        %5238 = vmatprep.subr.bf16.mxu0 0
        %5239 = vmatpush1.bf16.msra.mxu0 0
        %5240 = vmatprep.subr.bf16.mxu0 0
        %5241 = vmatpush1.bf16.msra.mxu0 0
        %5242 = vmatprep.subr.bf16.mxu0 0
        %5243 = vmatpush1.bf16.msra.mxu0 0
        %5244 = vmatprep.subr.bf16.mxu0 0
        %5245 = vmatpush1.bf16.msra.mxu0 0
        %5246 = vmatprep.subr.bf16.mxu0 0
        %5247 = vmatpush1.bf16.msra.mxu0 0
        %5248 = vmatprep.mubr.bf16.mxu0 0
        %5249 = vmatmul.mubr.bf16.gmra.mrb[0].mxu0 %v5166
        %v5250 = vpop.f32.mrb[0].mxu0
        %v5251 = vadd.f32 0.0, %v5250
        %v5252 = vpop.f32.mrb[0].mxu0
        %v5253 = vpop.f32.mrb[0].mxu0
        %v5254 = vadd.f32 0.0, %v5253
        %v5255 = vpop.f32.mrb[0].mxu0
        %5256 = vmatprep.mubr.bf16.mxu0 0
        %5257 = vmatmul.mubr.bf16.gmra.mrb[0].mxu0 %v5169
        %v5258 = vpop.f32.mrb[0].mxu0
        %v5259 = vadd.f32 0.0, %v5258
        %v5260 = vpop.f32.mrb[0].mxu0
        %v5261 = vpop.f32.mrb[0].mxu0
        %v5262 = vadd.f32 0.0, %v5261
        %v5263 = vpop.f32.mrb[0].mxu0
        %5264 = vmatprep.mubr.bf16.mxu0 0
        %5265 = vmatmul.mubr.bf16.gmra.mrb[0].mxu0 %v5172
        %v5266 = vpop.f32.mrb[0].mxu0
        %v5267 = vadd.f32 0.0, %v5266
        %v5268 = vpop.f32.mrb[0].mxu0
        %v5269 = vpop.f32.mrb[0].mxu0
        %v5270 = vadd.f32 0.0, %v5269
        %v5271 = vpop.f32.mrb[0].mxu0
        %5272 = vmatprep.mubr.bf16.mxu0 0
        %5273 = vmatmul.mubr.bf16.gmra.mrb[0].mxu0 %v5175
        %v5274 = vpop.f32.mrb[0].mxu0
        %v5275 = vadd.f32 0.0, %v5274
        %v5276 = vpop.f32.mrb[0].mxu0
        %v5277 = vpop.f32.mrb[0].mxu0
        %v5278 = vadd.f32 0.0, %v5277
        %v5279 = vpop.f32.mrb[0].mxu0
        %5280 = vmatprep.mubr.bf16.mxu0 0
        %5281 = vmatmul.mubr.bf16.gmra.mrb[0].mxu0 %v5178
        %v5282 = vpop.f32.mrb[0].mxu0
        %v5283 = vadd.f32 0.0, %v5282
        %v5284 = vpop.f32.mrb[0].mxu0
        %v5285 = vpop.f32.mrb[0].mxu0
        %v5286 = vadd.f32 0.0, %v5285
        %v5287 = vpop.f32.mrb[0].mxu0
        %5288 = vmatprep.mubr.bf16.mxu0 0
        %5289 = vmatmul.mubr.bf16.gmra.mrb[0].mxu0 %v5181
        %v5290 = vpop.f32.mrb[0].mxu0
        %v5291 = vadd.f32 0.0, %v5290
        %v5292 = vpop.f32.mrb[0].mxu0
        %v5293 = vpop.f32.mrb[0].mxu0
        %v5294 = vadd.f32 0.0, %v5293
        %v5295 = vpop.f32.mrb[0].mxu0
        %5296 = vmatprep.mubr.bf16.mxu0 0
        %5297 = vmatmul.mubr.bf16.gmra.mrb[0].mxu0 %v5184
        %v5298 = vpop.f32.mrb[0].mxu0
        %v5299 = vadd.f32 0.0, %v5298
        %v5300 = vpop.f32.mrb[0].mxu0
        %v5301 = vpop.f32.mrb[0].mxu0
        %v5302 = vadd.f32 0.0, %v5301
        %v5303 = vpop.f32.mrb[0].mxu0
        %5304 = vmatprep.mubr.bf16.mxu0 0
        %5305 = vmatmul.mubr.bf16.gmra.mrb[0].mxu0 %v5187
        %v5306 = vpop.f32.mrb[0].mxu0
        %v5307 = vadd.f32 0.0, %v5306
        %v5308 = vpop.f32.mrb[0].mxu0
        %v5309 = vpop.f32.mrb[0].mxu0
        %v5310 = vadd.f32 0.0, %v5309
        %v5311 = vpop.f32.mrb[0].mxu0
        %5312 = vmatprep.mubr.bf16.mxu0 0
        %5313 = vmatmul.mubr.bf16.gmra.mrb[0].mxu0 %v5190
        %v5314 = vpop.f32.mrb[0].mxu0
        %v5315 = vadd.f32 0.0, %v5314
        %v5316 = vpop.f32.mrb[0].mxu0
        %v5317 = vpop.f32.mrb[0].mxu0
        %v5318 = vadd.f32 0.0, %v5317
        %v5319 = vpop.f32.mrb[0].mxu0
        %5320 = vmatprep.mubr.bf16.mxu0 0
        %5321 = vmatmul.mubr.bf16.gmra.mrb[0].mxu0 %v5193
        %v5322 = vpop.f32.mrb[0].mxu0
        %v5323 = vadd.f32 0.0, %v5322
        %v5324 = vpop.f32.mrb[0].mxu0
        %v5325 = vpop.f32.mrb[0].mxu0
        %v5326 = vadd.f32 0.0, %v5325
        %v5327 = vpop.f32.mrb[0].mxu0
        %5328 = vmatprep.mubr.bf16.mxu0 0
        %5329 = vmatmul.mubr.bf16.gmra.mrb[0].mxu0 %v5196
        %v5330 = vpop.f32.mrb[0].mxu0
        %v5331 = vadd.f32 0.0, %v5330
        %v5332 = vpop.f32.mrb[0].mxu0
        %v5333 = vpop.f32.mrb[0].mxu0
        %v5334 = vadd.f32 0.0, %v5333
        %v5335 = vpop.f32.mrb[0].mxu0
        %5336 = vmatprep.mubr.bf16.mxu0 0
        %5337 = vmatmul.mubr.bf16.gmra.mrb[0].mxu0 %v5199
        %v5338 = vpop.f32.mrb[0].mxu0
        %v5339 = vadd.f32 0.0, %v5338
        %v5340 = vpop.f32.mrb[0].mxu0
        %v5341 = vpop.f32.mrb[0].mxu0
        %v5342 = vadd.f32 0.0, %v5341
        %v5343 = vpop.f32.mrb[0].mxu0
        %5344 = vmatprep.mubr.bf16.mxu0 0
        %5345 = vmatmul.mubr.bf16.gmra.mrb[0].mxu0 %v5202
        %v5346 = vpop.f32.mrb[0].mxu0
        %v5347 = vadd.f32 0.0, %v5346
        %v5348 = vpop.f32.mrb[0].mxu0
        %v5349 = vpop.f32.mrb[0].mxu0
        %v5350 = vadd.f32 0.0, %v5349
        %v5351 = vpop.f32.mrb[0].mxu0
        %5352 = vmatprep.mubr.bf16.mxu0 0
        %5353 = vmatmul.mubr.bf16.gmra.mrb[0].mxu0 %v5205
        %v5354 = vpop.f32.mrb[0].mxu0
        %v5355 = vadd.f32 0.0, %v5354
        %v5356 = vpop.f32.mrb[0].mxu0
        %v5357 = vpop.f32.mrb[0].mxu0
        %v5358 = vadd.f32 0.0, %v5357
        %v5359 = vpop.f32.mrb[0].mxu0
        %5360 = vmatprep.mubr.bf16.mxu0 0
        %5361 = vmatmul.mubr.bf16.gmra.mrb[0].mxu0 %v5208
        %v5362 = vpop.f32.mrb[0].mxu0
        %v5363 = vadd.f32 0.0, %v5362
        %v5364 = vpop.f32.mrb[0].mxu0
        %v5365 = vpop.f32.mrb[0].mxu0
        %v5366 = vadd.f32 0.0, %v5365
        %v5367 = vpop.f32.mrb[0].mxu0
        %5368 = vmatprep.mubr.bf16.mxu0 0
        %5369 = vmatmul.mubr.bf16.gmra.mrb[0].mxu0 %v5211
        %v5370 = vpop.f32.mrb[0].mxu0
        %v5371 = vadd.f32 0.0, %v5370
        %v5372 = vpop.f32.mrb[0].mxu0
        %v5373 = vpop.f32.mrb[0].mxu0
        %v5374 = vadd.f32 0.0, %v5373
        %v5375 = vpop.f32.mrb[0].mxu0
        %5376 = vdwg.mxu0
        %v5377 = vld [vmem:[#allocation3] sm:$0xff]
        %v5378 = vld [vmem:[#allocation3 + $0x8] sm:$0xff]
        %v5379 = vld [vmem:[#allocation3 + $0x10] sm:$0xff]
        %v5380 = vld [vmem:[#allocation3 + $0x18] sm:$0xff]
        %v5381 = vld [vmem:[#allocation3 + $0x20] sm:$0xff]
        %v5382 = vld [vmem:[#allocation3 + $0x28] sm:$0xff]
        %v5383 = vld [vmem:[#allocation3 + $0x30] sm:$0xff]
        %v5384 = vld [vmem:[#allocation3 + $0x38] sm:$0xff]
        %v5385 = vld [vmem:[#allocation3 + $0x40] sm:$0xff]
        %v5386 = vld [vmem:[#allocation3 + $0x48] sm:$0xff]
        %v5387 = vld [vmem:[#allocation3 + $0x50] sm:$0xff]
        %v5388 = vld [vmem:[#allocation3 + $0x58] sm:$0xff]
        %v5389 = vld [vmem:[#allocation3 + $0x60] sm:$0xff]
        %v5390 = vld [vmem:[#allocation3 + $0x68] sm:$0xff]
        %v5391 = vld [vmem:[#allocation3 + $0x70] sm:$0xff]
        %v5392 = vld [vmem:[#allocation3 + $0x78] sm:$0xff]
        %v5393 = vld [vmem:[#allocation3 + $0x80] sm:$0xff]
        %v5394 = vld [vmem:[#allocation3 + $0x88] sm:$0xff]
        %v5395 = vld [vmem:[#allocation3 + $0x90] sm:$0xff]
        %v5396 = vld [vmem:[#allocation3 + $0x98] sm:$0xff]
        %v5397 = vld [vmem:[#allocation3 + $0xa0] sm:$0xff]
        %v5398 = vld [vmem:[#allocation3 + $0xa8] sm:$0xff]
        %v5399 = vld [vmem:[#allocation3 + $0xb0] sm:$0xff]
        %v5400 = vld [vmem:[#allocation3 + $0xb8] sm:$0xff]
        %v5401 = vld [vmem:[#allocation3 + $0xc0] sm:$0xff]
        %v5402 = vld [vmem:[#allocation3 + $0xc8] sm:$0xff]
        %v5403 = vld [vmem:[#allocation3 + $0xd0] sm:$0xff]
        %v5404 = vld [vmem:[#allocation3 + $0xd8] sm:$0xff]
        %v5405 = vld [vmem:[#allocation3 + $0xe0] sm:$0xff]
        %v5406 = vld [vmem:[#allocation3 + $0xe8] sm:$0xff]
        %v5407 = vld [vmem:[#allocation3 + $0xf0] sm:$0xff]
        %v5408 = vld [vmem:[#allocation3 + $0xf8] sm:$0xff]
        %v5409 = vadd.f32 %v5377, %v5251
        %v5410 = vadd.f32 %v5378, %v5254
        %v5411 = vadd.f32 %v5379, %v5259
        %v5412 = vadd.f32 %v5380, %v5262
        %v5413 = vadd.f32 %v5381, %v5267
        %v5414 = vadd.f32 %v5382, %v5270
        %v5415 = vadd.f32 %v5383, %v5275
        %v5416 = vadd.f32 %v5384, %v5278
        %v5417 = vadd.f32 %v5385, %v5283
        %v5418 = vadd.f32 %v5386, %v5286
        %v5419 = vadd.f32 %v5387, %v5291
        %v5420 = vadd.f32 %v5388, %v5294
        %v5421 = vadd.f32 %v5389, %v5299
        %v5422 = vadd.f32 %v5390, %v5302
        %v5423 = vadd.f32 %v5391, %v5307
        %v5424 = vadd.f32 %v5392, %v5310
        %v5425 = vadd.f32 %v5393, %v5315
        %v5426 = vadd.f32 %v5394, %v5318
        %v5427 = vadd.f32 %v5395, %v5323
        %v5428 = vadd.f32 %v5396, %v5326
        %v5429 = vadd.f32 %v5397, %v5331
        %v5430 = vadd.f32 %v5398, %v5334
        %v5431 = vadd.f32 %v5399, %v5339
        %v5432 = vadd.f32 %v5400, %v5342
        %v5433 = vadd.f32 %v5401, %v5347
        %v5434 = vadd.f32 %v5402, %v5350
        %v5435 = vadd.f32 %v5403, %v5355
        %v5436 = vadd.f32 %v5404, %v5358
        %v5437 = vadd.f32 %v5405, %v5363
        %v5438 = vadd.f32 %v5406, %v5366
        %v5439 = vadd.f32 %v5407, %v5371
        %v5440 = vadd.f32 %v5408, %v5374
        %5441 = vst [vmem:[#allocation3] sm:$0xff] %v5409
        %5442 = vst [vmem:[#allocation3 + $0x8] sm:$0xff] %v5410
        %5443 = vst [vmem:[#allocation3 + $0x10] sm:$0xff] %v5411
        %5444 = vst [vmem:[#allocation3 + $0x18] sm:$0xff] %v5412
        %5445 = vst [vmem:[#allocation3 + $0x20] sm:$0xff] %v5413
        %5446 = vst [vmem:[#allocation3 + $0x28] sm:$0xff] %v5414
        %5447 = vst [vmem:[#allocation3 + $0x30] sm:$0xff] %v5415
        %5448 = vst [vmem:[#allocation3 + $0x38] sm:$0xff] %v5416
        %5449 = vst [vmem:[#allocation3 + $0x40] sm:$0xff] %v5417
        %5450 = vst [vmem:[#allocation3 + $0x48] sm:$0xff] %v5418
        %5451 = vst [vmem:[#allocation3 + $0x50] sm:$0xff] %v5419
        %5452 = vst [vmem:[#allocation3 + $0x58] sm:$0xff] %v5420
        %5453 = vst [vmem:[#allocation3 + $0x60] sm:$0xff] %v5421
        %5454 = vst [vmem:[#allocation3 + $0x68] sm:$0xff] %v5422
        %5455 = vst [vmem:[#allocation3 + $0x70] sm:$0xff] %v5423
        %5456 = vst [vmem:[#allocation3 + $0x78] sm:$0xff] %v5424
        %5457 = vst [vmem:[#allocation3 + $0x80] sm:$0xff] %v5425
        %5458 = vst [vmem:[#allocation3 + $0x88] sm:$0xff] %v5426
        %5459 = vst [vmem:[#allocation3 + $0x90] sm:$0xff] %v5427
        %5460 = vst [vmem:[#allocation3 + $0x98] sm:$0xff] %v5428
        %5461 = vst [vmem:[#allocation3 + $0xa0] sm:$0xff] %v5429
        %5462 = vst [vmem:[#allocation3 + $0xa8] sm:$0xff] %v5430
        %5463 = vst [vmem:[#allocation3 + $0xb0] sm:$0xff] %v5431
        %5464 = vst [vmem:[#allocation3 + $0xb8] sm:$0xff] %v5432
        %5465 = vst [vmem:[#allocation3 + $0xc0] sm:$0xff] %v5433
        %5466 = vst [vmem:[#allocation3 + $0xc8] sm:$0xff] %v5434
        %5467 = vst [vmem:[#allocation3 + $0xd0] sm:$0xff] %v5435
        %5468 = vst [vmem:[#allocation3 + $0xd8] sm:$0xff] %v5436
        %5469 = vst [vmem:[#allocation3 + $0xe0] sm:$0xff] %v5437
        %5470 = vst [vmem:[#allocation3 + $0xe8] sm:$0xff] %v5438
        %5471 = vst [vmem:[#allocation3 + $0xf0] sm:$0xff] %v5439
        %5472 = vst [vmem:[#allocation3 + $0xf8] sm:$0xff] %v5440
        %v5473 = vld [vmem:[%s4260] sm:$0xe]
        %v5474 = vld [vmem:[%s4260 + $0x4] sm:$0xf]
        %v5475 = vld [vmem:[%s4260 + $0x8] sm:$0x1]
        %v5476 = vld [vmem:[%s4260 + $0xc] sm:$0xe]
        %v5477 = vld [vmem:[%s4260 + $0x10] sm:$0xf]
        %v5478 = vld [vmem:[%s4260 + $0x14] sm:$0x1]
        %v5479 = vld [vmem:[%s4260 + $0x18] sm:$0xe]
        %v5480 = vld [vmem:[%s4260 + $0x1c] sm:$0xf]
        %v5481 = vld [vmem:[%s4260 + $0x20] sm:$0x1]
        %v5482 = vld [vmem:[%s4260 + $0x24] sm:$0xe]
        %v5483 = vld [vmem:[%s4260 + $0x28] sm:$0xf]
        %v5484 = vld [vmem:[%s4260 + $0x2c] sm:$0x1]
        %v5485 = vld [vmem:[%s4260 + $0x30] sm:$0xe]
        %v5486 = vld [vmem:[%s4260 + $0x34] sm:$0xf]
        %v5487 = vld [vmem:[%s4260 + $0x38] sm:$0x1]
        %v5488 = vld [vmem:[%s4260 + $0x3c] sm:$0xe]
        %v5489 = vld [vmem:[%s4260 + $0x40] sm:$0xf]
        %v5490 = vld [vmem:[%s4260 + $0x44] sm:$0x1]
        %v5491 = vld [vmem:[%s4260 + $0x48] sm:$0xe]
        %v5492 = vld [vmem:[%s4260 + $0x4c] sm:$0xf]
        %v5493 = vld [vmem:[%s4260 + $0x50] sm:$0x1]
        %v5494 = vld [vmem:[%s4260 + $0x54] sm:$0xe]
        %v5495 = vld [vmem:[%s4260 + $0x58] sm:$0xf]
        %v5496 = vld [vmem:[%s4260 + $0x5c] sm:$0x1]
        %v5497 = vld [vmem:[%s4260 + $0x60] sm:$0xe]
        %v5498 = vld [vmem:[%s4260 + $0x64] sm:$0xf]
        %v5499 = vld [vmem:[%s4260 + $0x68] sm:$0x1]
        %v5500 = vld [vmem:[%s4260 + $0x6c] sm:$0xe]
        %v5501 = vld [vmem:[%s4260 + $0x70] sm:$0xf]
        %v5502 = vld [vmem:[%s4260 + $0x74] sm:$0x1]
        %v5503 = vld [vmem:[%s4260 + $0x78] sm:$0xe]
        %v5504 = vld [vmem:[%s4260 + $0x7c] sm:$0xf]
        %v5505 = vld [vmem:[%s4260 + $0x80] sm:$0x1]
        %v5506 = vld [vmem:[%s4260 + $0x84] sm:$0xe]
        %v5507 = vld [vmem:[%s4260 + $0x88] sm:$0xf]
        %v5508 = vld [vmem:[%s4260 + $0x8c] sm:$0x1]
        %v5509 = vld [vmem:[%s4260 + $0x90] sm:$0xe]
        %v5510 = vld [vmem:[%s4260 + $0x94] sm:$0xf]
        %v5511 = vld [vmem:[%s4260 + $0x98] sm:$0x1]
        %v5512 = vld [vmem:[%s4260 + $0x9c] sm:$0xe]
        %v5513 = vld [vmem:[%s4260 + $0xa0] sm:$0xf]
        %v5514 = vld [vmem:[%s4260 + $0xa4] sm:$0x1]
        %v5515 = vld [vmem:[%s4260 + $0xa8] sm:$0xe]
        %v5516 = vld [vmem:[%s4260 + $0xac] sm:$0xf]
        %v5517 = vld [vmem:[%s4260 + $0xb0] sm:$0x1]
        %v5518 = vld [vmem:[%s4260 + $0xb4] sm:$0xe]
        %v5519 = vld [vmem:[%s4260 + $0xb8] sm:$0xf]
        %v5520 = vld [vmem:[%s4260 + $0xbc] sm:$0x1]
        %v5569 = vrot.slane %v5473, 5
        %v5570 = vrot.slane %v5569, 4
        %v5571 = vrot.slane %v5474, 5
        %v5572 = vsel %vm2011, %v5570, %v5571
        %v5573 = vrot.slane %v5571, 4
        %v5574 = vrot.slane %v5475, 5
        %v5575 = vsel %vm2011, %v5573, %v5574
        %v5576 = vrot.slane %v5476, 5
        %v5577 = vrot.slane %v5576, 4
        %v5578 = vrot.slane %v5477, 5
        %v5579 = vsel %vm2011, %v5577, %v5578
        %v5580 = vrot.slane %v5578, 4
        %v5581 = vrot.slane %v5478, 5
        %v5582 = vsel %vm2011, %v5580, %v5581
        %v5583 = vrot.slane %v5479, 5
        %v5584 = vrot.slane %v5583, 4
        %v5585 = vrot.slane %v5480, 5
        %v5586 = vsel %vm2011, %v5584, %v5585
        %v5587 = vrot.slane %v5585, 4
        %v5588 = vrot.slane %v5481, 5
        %v5589 = vsel %vm2011, %v5587, %v5588
        %v5590 = vrot.slane %v5482, 5
        %v5591 = vrot.slane %v5590, 4
        %v5592 = vrot.slane %v5483, 5
        %v5593 = vsel %vm2011, %v5591, %v5592
        %v5594 = vrot.slane %v5592, 4
        %v5595 = vrot.slane %v5484, 5
        %v5596 = vsel %vm2011, %v5594, %v5595
        %v5597 = vrot.slane %v5485, 5
        %v5598 = vrot.slane %v5597, 4
        %v5599 = vrot.slane %v5486, 5
        %v5600 = vsel %vm2011, %v5598, %v5599
        %v5601 = vrot.slane %v5599, 4
        %v5602 = vrot.slane %v5487, 5
        %v5603 = vsel %vm2011, %v5601, %v5602
        %v5604 = vrot.slane %v5488, 5
        %v5605 = vrot.slane %v5604, 4
        %v5606 = vrot.slane %v5489, 5
        %v5607 = vsel %vm2011, %v5605, %v5606
        %v5608 = vrot.slane %v5606, 4
        %v5609 = vrot.slane %v5490, 5
        %v5610 = vsel %vm2011, %v5608, %v5609
        %v5611 = vrot.slane %v5491, 5
        %v5612 = vrot.slane %v5611, 4
        %v5613 = vrot.slane %v5492, 5
        %v5614 = vsel %vm2011, %v5612, %v5613
        %v5615 = vrot.slane %v5613, 4
        %v5616 = vrot.slane %v5493, 5
        %v5617 = vsel %vm2011, %v5615, %v5616
        %v5618 = vrot.slane %v5494, 5
        %v5619 = vrot.slane %v5618, 4
        %v5620 = vrot.slane %v5495, 5
        %v5621 = vsel %vm2011, %v5619, %v5620
        %v5622 = vrot.slane %v5620, 4
        %v5623 = vrot.slane %v5496, 5
        %v5624 = vsel %vm2011, %v5622, %v5623
        %v5625 = vrot.slane %v5497, 5
        %v5626 = vrot.slane %v5625, 4
        %v5627 = vrot.slane %v5498, 5
        %v5628 = vsel %vm2011, %v5626, %v5627
        %v5629 = vrot.slane %v5627, 4
        %v5630 = vrot.slane %v5499, 5
        %v5631 = vsel %vm2011, %v5629, %v5630
        %v5632 = vrot.slane %v5500, 5
        %v5633 = vrot.slane %v5632, 4
        %v5634 = vrot.slane %v5501, 5
        %v5635 = vsel %vm2011, %v5633, %v5634
        %v5636 = vrot.slane %v5634, 4
        %v5637 = vrot.slane %v5502, 5
        %v5638 = vsel %vm2011, %v5636, %v5637
        %v5639 = vrot.slane %v5503, 5
        %v5640 = vrot.slane %v5639, 4
        %v5641 = vrot.slane %v5504, 5
        %v5642 = vsel %vm2011, %v5640, %v5641
        %v5643 = vrot.slane %v5641, 4
        %v5644 = vrot.slane %v5505, 5
        %v5645 = vsel %vm2011, %v5643, %v5644
        %v5646 = vrot.slane %v5506, 5
        %v5647 = vrot.slane %v5646, 4
        %v5648 = vrot.slane %v5507, 5
        %v5649 = vsel %vm2011, %v5647, %v5648
        %v5650 = vrot.slane %v5648, 4
        %v5651 = vrot.slane %v5508, 5
        %v5652 = vsel %vm2011, %v5650, %v5651
        %v5653 = vrot.slane %v5509, 5
        %v5654 = vrot.slane %v5653, 4
        %v5655 = vrot.slane %v5510, 5
        %v5656 = vsel %vm2011, %v5654, %v5655
        %v5657 = vrot.slane %v5655, 4
        %v5658 = vrot.slane %v5511, 5
        %v5659 = vsel %vm2011, %v5657, %v5658
        %v5660 = vrot.slane %v5512, 5
        %v5661 = vrot.slane %v5660, 4
        %v5662 = vrot.slane %v5513, 5
        %v5663 = vsel %vm2011, %v5661, %v5662
        %v5664 = vrot.slane %v5662, 4
        %v5665 = vrot.slane %v5514, 5
        %v5666 = vsel %vm2011, %v5664, %v5665
        %v5667 = vrot.slane %v5515, 5
        %v5668 = vrot.slane %v5667, 4
        %v5669 = vrot.slane %v5516, 5
        %v5670 = vsel %vm2011, %v5668, %v5669
        %v5671 = vrot.slane %v5669, 4
        %v5672 = vrot.slane %v5517, 5
        %v5673 = vsel %vm2011, %v5671, %v5672
        %v5674 = vrot.slane %v5518, 5
        %v5675 = vrot.slane %v5674, 4
        %v5676 = vrot.slane %v5519, 5
        %v5677 = vsel %vm2011, %v5675, %v5676
        %v5678 = vrot.slane %v5676, 4
        %v5679 = vrot.slane %v5520, 5
        %v5680 = vsel %vm2011, %v5678, %v5679
        %s5681 = scalar_lea.vmem %s1, 16
        %v5682 = vld [vmem:[%s5681] sm:$0x3]
        %v5683 = vunpack.c.l.b16 %v5572
        %v5684 = vunpack.c.l.b16 %v5575
        %v5685 = vunpack.c.l.b16 %v5579
        %v5686 = vunpack.c.l.b16 %v5582
        %v5687 = vunpack.c.l.b16 %v5586
        %v5688 = vunpack.c.l.b16 %v5589
        %v5689 = vunpack.c.l.b16 %v5593
        %v5690 = vunpack.c.l.b16 %v5596
        %v5691 = vunpack.c.l.b16 %v5600
        %v5692 = vunpack.c.l.b16 %v5603
        %v5693 = vunpack.c.l.b16 %v5607
        %v5694 = vunpack.c.l.b16 %v5610
        %v5695 = vunpack.c.l.b16 %v5614
        %v5696 = vunpack.c.l.b16 %v5617
        %v5697 = vunpack.c.l.b16 %v5621
        %v5698 = vunpack.c.l.b16 %v5624
        %v5699 = vunpack.c.l.b16 %v5628
        %v5700 = vunpack.c.l.b16 %v5631
        %v5701 = vunpack.c.l.b16 %v5635
        %v5702 = vunpack.c.l.b16 %v5638
        %v5703 = vunpack.c.l.b16 %v5642
        %v5704 = vunpack.c.l.b16 %v5645
        %v5705 = vunpack.c.l.b16 %v5649
        %v5706 = vunpack.c.l.b16 %v5652
        %v5707 = vunpack.c.l.b16 %v5656
        %v5708 = vunpack.c.l.b16 %v5659
        %v5709 = vunpack.c.l.b16 %v5663
        %v5710 = vunpack.c.l.b16 %v5666
        %v5711 = vunpack.c.l.b16 %v5670
        %v5712 = vunpack.c.l.b16 %v5673
        %v5713 = vunpack.c.l.b16 %v5677
        %v5714 = vunpack.c.l.b16 %v5680
        %v5715 = vpack.c.b16 %v5684, %v5683
        %v5716 = vpack.c.b16 %v5686, %v5685
        %v5717 = vpack.c.b16 %v5688, %v5687
        %v5718 = vpack.c.b16 %v5690, %v5689
        %v5719 = vpack.c.b16 %v5692, %v5691
        %v5720 = vpack.c.b16 %v5694, %v5693
        %v5721 = vpack.c.b16 %v5696, %v5695
        %v5722 = vpack.c.b16 %v5698, %v5697
        %v5723 = vpack.c.b16 %v5700, %v5699
        %v5724 = vpack.c.b16 %v5702, %v5701
        %v5725 = vpack.c.b16 %v5704, %v5703
        %v5726 = vpack.c.b16 %v5706, %v5705
        %v5727 = vpack.c.b16 %v5708, %v5707
        %v5728 = vpack.c.b16 %v5710, %v5709
        %v5729 = vpack.c.b16 %v5712, %v5711
        %v5730 = vpack.c.b16 %v5714, %v5713
        %v5732 = vsel %vm874, %v5715, 0
        %v5735 = vsel %vm874, %v5716, 0
        %v5738 = vsel %vm874, %v5717, 0
        %v5741 = vsel %vm874, %v5718, 0
        %v5744 = vsel %vm874, %v5719, 0
        %v5747 = vsel %vm874, %v5720, 0
        %v5750 = vsel %vm874, %v5721, 0
        %v5753 = vsel %vm874, %v5722, 0
        %v5756 = vsel %vm874, %v5723, 0
        %v5759 = vsel %vm874, %v5724, 0
        %v5762 = vsel %vm874, %v5725, 0
        %v5765 = vsel %vm874, %v5726, 0
        %v5768 = vsel %vm874, %v5727, 0
        %v5771 = vsel %vm874, %v5728, 0
        %v5774 = vsel %vm874, %v5729, 0
        %v5777 = vsel %vm874, %v5730, 0
        %v5780 = vsel %vm923, %v5682, 0
        %5782 = vmatprep.subr.bf16.mxu0 0
        %5783 = vmatpush1.bf16.msra.mxu0 %v5780
        %5784 = vmatprep.subr.bf16.mxu0 0
        %5785 = vmatpush1.bf16.msra.mxu0 0
        %5786 = vmatprep.subr.bf16.mxu0 0
        %5787 = vmatpush1.bf16.msra.mxu0 0
        %5788 = vmatprep.subr.bf16.mxu0 0
        %5789 = vmatpush1.bf16.msra.mxu0 0
        %5790 = vmatprep.subr.bf16.mxu0 0
        %5791 = vmatpush1.bf16.msra.mxu0 0
        %5792 = vmatprep.subr.bf16.mxu0 0
        %5793 = vmatpush1.bf16.msra.mxu0 0
        %5794 = vmatprep.subr.bf16.mxu0 0
        %5795 = vmatpush1.bf16.msra.mxu0 0
        %5796 = vmatprep.subr.bf16.mxu0 0
        %5797 = vmatpush1.bf16.msra.mxu0 0
        %5798 = vmatprep.subr.bf16.mxu0 0
        %5799 = vmatpush1.bf16.msra.mxu0 0
        %5800 = vmatprep.subr.bf16.mxu0 0
        %5801 = vmatpush1.bf16.msra.mxu0 0
        %5802 = vmatprep.subr.bf16.mxu0 0
        %5803 = vmatpush1.bf16.msra.mxu0 0
        %5804 = vmatprep.subr.bf16.mxu0 0
        %5805 = vmatpush1.bf16.msra.mxu0 0
        %5806 = vmatprep.subr.bf16.mxu0 0
        %5807 = vmatpush1.bf16.msra.mxu0 0
        %5808 = vmatprep.subr.bf16.mxu0 0
        %5809 = vmatpush1.bf16.msra.mxu0 0
        %5810 = vmatprep.subr.bf16.mxu0 0
        %5811 = vmatpush1.bf16.msra.mxu0 0
        %5812 = vmatprep.subr.bf16.mxu0 0
        %5813 = vmatpush1.bf16.msra.mxu0 0
        %5814 = vmatprep.mubr.bf16.mxu0 0
        %5815 = vmatmul.mubr.bf16.gmra.mrb[0].mxu0 %v5732
        %v5816 = vpop.f32.mrb[0].mxu0
        %v5817 = vadd.f32 0.0, %v5816
        %v5818 = vpop.f32.mrb[0].mxu0
        %v5819 = vpop.f32.mrb[0].mxu0
        %v5820 = vadd.f32 0.0, %v5819
        %v5821 = vpop.f32.mrb[0].mxu0
        %5822 = vmatprep.mubr.bf16.mxu0 0
        %5823 = vmatmul.mubr.bf16.gmra.mrb[0].mxu0 %v5735
        %v5824 = vpop.f32.mrb[0].mxu0
        %v5825 = vadd.f32 0.0, %v5824
        %v5826 = vpop.f32.mrb[0].mxu0
        %v5827 = vpop.f32.mrb[0].mxu0
        %v5828 = vadd.f32 0.0, %v5827
        %v5829 = vpop.f32.mrb[0].mxu0
        %5830 = vmatprep.mubr.bf16.mxu0 0
        %5831 = vmatmul.mubr.bf16.gmra.mrb[0].mxu0 %v5738
        %v5832 = vpop.f32.mrb[0].mxu0
        %v5833 = vadd.f32 0.0, %v5832
        %v5834 = vpop.f32.mrb[0].mxu0
        %v5835 = vpop.f32.mrb[0].mxu0
        %v5836 = vadd.f32 0.0, %v5835
        %v5837 = vpop.f32.mrb[0].mxu0
        %5838 = vmatprep.mubr.bf16.mxu0 0
        %5839 = vmatmul.mubr.bf16.gmra.mrb[0].mxu0 %v5741
        %v5840 = vpop.f32.mrb[0].mxu0
        %v5841 = vadd.f32 0.0, %v5840
        %v5842 = vpop.f32.mrb[0].mxu0
        %v5843 = vpop.f32.mrb[0].mxu0
        %v5844 = vadd.f32 0.0, %v5843
        %v5845 = vpop.f32.mrb[0].mxu0
        %5846 = vmatprep.mubr.bf16.mxu0 0
        %5847 = vmatmul.mubr.bf16.gmra.mrb[0].mxu0 %v5744
        %v5848 = vpop.f32.mrb[0].mxu0
        %v5849 = vadd.f32 0.0, %v5848
        %v5850 = vpop.f32.mrb[0].mxu0
        %v5851 = vpop.f32.mrb[0].mxu0
        %v5852 = vadd.f32 0.0, %v5851
        %v5853 = vpop.f32.mrb[0].mxu0
        %5854 = vmatprep.mubr.bf16.mxu0 0
        %5855 = vmatmul.mubr.bf16.gmra.mrb[0].mxu0 %v5747
        %v5856 = vpop.f32.mrb[0].mxu0
        %v5857 = vadd.f32 0.0, %v5856
        %v5858 = vpop.f32.mrb[0].mxu0
        %v5859 = vpop.f32.mrb[0].mxu0
        %v5860 = vadd.f32 0.0, %v5859
        %v5861 = vpop.f32.mrb[0].mxu0
        %5862 = vmatprep.mubr.bf16.mxu0 0
        %5863 = vmatmul.mubr.bf16.gmra.mrb[0].mxu0 %v5750
        %v5864 = vpop.f32.mrb[0].mxu0
        %v5865 = vadd.f32 0.0, %v5864
        %v5866 = vpop.f32.mrb[0].mxu0
        %v5867 = vpop.f32.mrb[0].mxu0
        %v5868 = vadd.f32 0.0, %v5867
        %v5869 = vpop.f32.mrb[0].mxu0
        %5870 = vmatprep.mubr.bf16.mxu0 0
        %5871 = vmatmul.mubr.bf16.gmra.mrb[0].mxu0 %v5753
        %v5872 = vpop.f32.mrb[0].mxu0
        %v5873 = vadd.f32 0.0, %v5872
        %v5874 = vpop.f32.mrb[0].mxu0
        %v5875 = vpop.f32.mrb[0].mxu0
        %v5876 = vadd.f32 0.0, %v5875
        %v5877 = vpop.f32.mrb[0].mxu0
        %5878 = vmatprep.mubr.bf16.mxu0 0
        %5879 = vmatmul.mubr.bf16.gmra.mrb[0].mxu0 %v5756
        %v5880 = vpop.f32.mrb[0].mxu0
        %v5881 = vadd.f32 0.0, %v5880
        %v5882 = vpop.f32.mrb[0].mxu0
        %v5883 = vpop.f32.mrb[0].mxu0
        %v5884 = vadd.f32 0.0, %v5883
        %v5885 = vpop.f32.mrb[0].mxu0
        %5886 = vmatprep.mubr.bf16.mxu0 0
        %5887 = vmatmul.mubr.bf16.gmra.mrb[0].mxu0 %v5759
        %v5888 = vpop.f32.mrb[0].mxu0
        %v5889 = vadd.f32 0.0, %v5888
        %v5890 = vpop.f32.mrb[0].mxu0
        %v5891 = vpop.f32.mrb[0].mxu0
        %v5892 = vadd.f32 0.0, %v5891
        %v5893 = vpop.f32.mrb[0].mxu0
        %5894 = vmatprep.mubr.bf16.mxu0 0
        %5895 = vmatmul.mubr.bf16.gmra.mrb[0].mxu0 %v5762
        %v5896 = vpop.f32.mrb[0].mxu0
        %v5897 = vadd.f32 0.0, %v5896
        %v5898 = vpop.f32.mrb[0].mxu0
        %v5899 = vpop.f32.mrb[0].mxu0
        %v5900 = vadd.f32 0.0, %v5899
        %v5901 = vpop.f32.mrb[0].mxu0
        %5902 = vmatprep.mubr.bf16.mxu0 0
        %5903 = vmatmul.mubr.bf16.gmra.mrb[0].mxu0 %v5765
        %v5904 = vpop.f32.mrb[0].mxu0
        %v5905 = vadd.f32 0.0, %v5904
        %v5906 = vpop.f32.mrb[0].mxu0
        %v5907 = vpop.f32.mrb[0].mxu0
        %v5908 = vadd.f32 0.0, %v5907
        %v5909 = vpop.f32.mrb[0].mxu0
        %5910 = vmatprep.mubr.bf16.mxu0 0
        %5911 = vmatmul.mubr.bf16.gmra.mrb[0].mxu0 %v5768
        %v5912 = vpop.f32.mrb[0].mxu0
        %v5913 = vadd.f32 0.0, %v5912
        %v5914 = vpop.f32.mrb[0].mxu0
        %v5915 = vpop.f32.mrb[0].mxu0
        %v5916 = vadd.f32 0.0, %v5915
        %v5917 = vpop.f32.mrb[0].mxu0
        %5918 = vmatprep.mubr.bf16.mxu0 0
        %5919 = vmatmul.mubr.bf16.gmra.mrb[0].mxu0 %v5771
        %v5920 = vpop.f32.mrb[0].mxu0
        %v5921 = vadd.f32 0.0, %v5920
        %v5922 = vpop.f32.mrb[0].mxu0
        %v5923 = vpop.f32.mrb[0].mxu0
        %v5924 = vadd.f32 0.0, %v5923
        %v5925 = vpop.f32.mrb[0].mxu0
        %5926 = vmatprep.mubr.bf16.mxu0 0
        %5927 = vmatmul.mubr.bf16.gmra.mrb[0].mxu0 %v5774
        %v5928 = vpop.f32.mrb[0].mxu0
        %v5929 = vadd.f32 0.0, %v5928
        %v5930 = vpop.f32.mrb[0].mxu0
        %v5931 = vpop.f32.mrb[0].mxu0
        %v5932 = vadd.f32 0.0, %v5931
        %v5933 = vpop.f32.mrb[0].mxu0
        %5934 = vmatprep.mubr.bf16.mxu0 0
        %5935 = vmatmul.mubr.bf16.gmra.mrb[0].mxu0 %v5777
        %v5936 = vpop.f32.mrb[0].mxu0
        %v5937 = vadd.f32 0.0, %v5936
        %v5938 = vpop.f32.mrb[0].mxu0
        %v5939 = vpop.f32.mrb[0].mxu0
        %v5940 = vadd.f32 0.0, %v5939
        %v5941 = vpop.f32.mrb[0].mxu0
        %5942 = vdwg.mxu0
        %v5943 = vld [vmem:[#allocation3] sm:$0xff]
        %v5944 = vld [vmem:[#allocation3 + $0x8] sm:$0xff]
        %v5945 = vld [vmem:[#allocation3 + $0x10] sm:$0xff]
        %v5946 = vld [vmem:[#allocation3 + $0x18] sm:$0xff]
        %v5947 = vld [vmem:[#allocation3 + $0x20] sm:$0xff]
        %v5948 = vld [vmem:[#allocation3 + $0x28] sm:$0xff]
        %v5949 = vld [vmem:[#allocation3 + $0x30] sm:$0xff]
        %v5950 = vld [vmem:[#allocation3 + $0x38] sm:$0xff]
        %v5951 = vld [vmem:[#allocation3 + $0x40] sm:$0xff]
        %v5952 = vld [vmem:[#allocation3 + $0x48] sm:$0xff]
        %v5953 = vld [vmem:[#allocation3 + $0x50] sm:$0xff]
        %v5954 = vld [vmem:[#allocation3 + $0x58] sm:$0xff]
        %v5955 = vld [vmem:[#allocation3 + $0x60] sm:$0xff]
        %v5956 = vld [vmem:[#allocation3 + $0x68] sm:$0xff]
        %v5957 = vld [vmem:[#allocation3 + $0x70] sm:$0xff]
        %v5958 = vld [vmem:[#allocation3 + $0x78] sm:$0xff]
        %v5959 = vld [vmem:[#allocation3 + $0x80] sm:$0xff]
        %v5960 = vld [vmem:[#allocation3 + $0x88] sm:$0xff]
        %v5961 = vld [vmem:[#allocation3 + $0x90] sm:$0xff]
        %v5962 = vld [vmem:[#allocation3 + $0x98] sm:$0xff]
        %v5963 = vld [vmem:[#allocation3 + $0xa0] sm:$0xff]
        %v5964 = vld [vmem:[#allocation3 + $0xa8] sm:$0xff]
        %v5965 = vld [vmem:[#allocation3 + $0xb0] sm:$0xff]
        %v5966 = vld [vmem:[#allocation3 + $0xb8] sm:$0xff]
        %v5967 = vld [vmem:[#allocation3 + $0xc0] sm:$0xff]
        %v5968 = vld [vmem:[#allocation3 + $0xc8] sm:$0xff]
        %v5969 = vld [vmem:[#allocation3 + $0xd0] sm:$0xff]
        %v5970 = vld [vmem:[#allocation3 + $0xd8] sm:$0xff]
        %v5971 = vld [vmem:[#allocation3 + $0xe0] sm:$0xff]
        %v5972 = vld [vmem:[#allocation3 + $0xe8] sm:$0xff]
        %v5973 = vld [vmem:[#allocation3 + $0xf0] sm:$0xff]
        %v5974 = vld [vmem:[#allocation3 + $0xf8] sm:$0xff]
        %v5975 = vadd.f32 %v5943, %v5817
        %v5976 = vadd.f32 %v5944, %v5820
        %v5977 = vadd.f32 %v5945, %v5825
        %v5978 = vadd.f32 %v5946, %v5828
        %v5979 = vadd.f32 %v5947, %v5833
        %v5980 = vadd.f32 %v5948, %v5836
        %v5981 = vadd.f32 %v5949, %v5841
        %v5982 = vadd.f32 %v5950, %v5844
        %v5983 = vadd.f32 %v5951, %v5849
        %v5984 = vadd.f32 %v5952, %v5852
        %v5985 = vadd.f32 %v5953, %v5857
        %v5986 = vadd.f32 %v5954, %v5860
        %v5987 = vadd.f32 %v5955, %v5865
        %v5988 = vadd.f32 %v5956, %v5868
        %v5989 = vadd.f32 %v5957, %v5873
        %v5990 = vadd.f32 %v5958, %v5876
        %v5991 = vadd.f32 %v5959, %v5881
        %v5992 = vadd.f32 %v5960, %v5884
        %v5993 = vadd.f32 %v5961, %v5889
        %v5994 = vadd.f32 %v5962, %v5892
        %v5995 = vadd.f32 %v5963, %v5897
        %v5996 = vadd.f32 %v5964, %v5900
        %v5997 = vadd.f32 %v5965, %v5905
        %v5998 = vadd.f32 %v5966, %v5908
        %v5999 = vadd.f32 %v5967, %v5913
        %v6000 = vadd.f32 %v5968, %v5916
        %v6001 = vadd.f32 %v5969, %v5921
        %v6002 = vadd.f32 %v5970, %v5924
        %v6003 = vadd.f32 %v5971, %v5929
        %v6004 = vadd.f32 %v5972, %v5932
        %v6005 = vadd.f32 %v5973, %v5937
        %v6006 = vadd.f32 %v5974, %v5940
        %6007 = vst [vmem:[#allocation3] sm:$0xff] %v5975
        %6008 = vst [vmem:[#allocation3 + $0x8] sm:$0xff] %v5976
        %6009 = vst [vmem:[#allocation3 + $0x10] sm:$0xff] %v5977
        %6010 = vst [vmem:[#allocation3 + $0x18] sm:$0xff] %v5978
        %6011 = vst [vmem:[#allocation3 + $0x20] sm:$0xff] %v5979
        %6012 = vst [vmem:[#allocation3 + $0x28] sm:$0xff] %v5980
        %6013 = vst [vmem:[#allocation3 + $0x30] sm:$0xff] %v5981
        %6014 = vst [vmem:[#allocation3 + $0x38] sm:$0xff] %v5982
        %6015 = vst [vmem:[#allocation3 + $0x40] sm:$0xff] %v5983
        %6016 = vst [vmem:[#allocation3 + $0x48] sm:$0xff] %v5984
        %6017 = vst [vmem:[#allocation3 + $0x50] sm:$0xff] %v5985
        %6018 = vst [vmem:[#allocation3 + $0x58] sm:$0xff] %v5986
        %6019 = vst [vmem:[#allocation3 + $0x60] sm:$0xff] %v5987
        %6020 = vst [vmem:[#allocation3 + $0x68] sm:$0xff] %v5988
        %6021 = vst [vmem:[#allocation3 + $0x70] sm:$0xff] %v5989
        %6022 = vst [vmem:[#allocation3 + $0x78] sm:$0xff] %v5990
        %6023 = vst [vmem:[#allocation3 + $0x80] sm:$0xff] %v5991
        %6024 = vst [vmem:[#allocation3 + $0x88] sm:$0xff] %v5992
        %6025 = vst [vmem:[#allocation3 + $0x90] sm:$0xff] %v5993
        %6026 = vst [vmem:[#allocation3 + $0x98] sm:$0xff] %v5994
        %6027 = vst [vmem:[#allocation3 + $0xa0] sm:$0xff] %v5995
        %6028 = vst [vmem:[#allocation3 + $0xa8] sm:$0xff] %v5996
        %6029 = vst [vmem:[#allocation3 + $0xb0] sm:$0xff] %v5997
        %6030 = vst [vmem:[#allocation3 + $0xb8] sm:$0xff] %v5998
        %6031 = vst [vmem:[#allocation3 + $0xc0] sm:$0xff] %v5999
        %6032 = vst [vmem:[#allocation3 + $0xc8] sm:$0xff] %v6000
        %6033 = vst [vmem:[#allocation3 + $0xd0] sm:$0xff] %v6001
        %6034 = vst [vmem:[#allocation3 + $0xd8] sm:$0xff] %v6002
        %6035 = vst [vmem:[#allocation3 + $0xe0] sm:$0xff] %v6003
        %6036 = vst [vmem:[#allocation3 + $0xe8] sm:$0xff] %v6004
        %6037 = vst [vmem:[#allocation3 + $0xf0] sm:$0xff] %v6005
        %6038 = vst [vmem:[#allocation3 + $0xf8] sm:$0xff] %v6006
        %v6039 = vld [vmem:[#allocation3] sm:$0xff]
        %v6040 = vld [vmem:[#allocation3 + $0x8] sm:$0xff]
        %v6041 = vld [vmem:[#allocation3 + $0x10] sm:$0xff]
        %v6042 = vld [vmem:[#allocation3 + $0x18] sm:$0xff]
        %v6043 = vld [vmem:[#allocation3 + $0x20] sm:$0xff]
        %v6044 = vld [vmem:[#allocation3 + $0x28] sm:$0xff]
        %v6045 = vld [vmem:[#allocation3 + $0x30] sm:$0xff]
        %v6046 = vld [vmem:[#allocation3 + $0x38] sm:$0xff]
        %v6047 = vld [vmem:[#allocation3 + $0x40] sm:$0xff]
        %v6048 = vld [vmem:[#allocation3 + $0x48] sm:$0xff]
        %v6049 = vld [vmem:[#allocation3 + $0x50] sm:$0xff]
        %v6050 = vld [vmem:[#allocation3 + $0x58] sm:$0xff]
        %v6051 = vld [vmem:[#allocation3 + $0x60] sm:$0xff]
        %v6052 = vld [vmem:[#allocation3 + $0x68] sm:$0xff]
        %v6053 = vld [vmem:[#allocation3 + $0x70] sm:$0xff]
        %v6054 = vld [vmem:[#allocation3 + $0x78] sm:$0xff]
        %v6055 = vld [vmem:[#allocation3 + $0x80] sm:$0xff]
        %v6056 = vld [vmem:[#allocation3 + $0x88] sm:$0xff]
        %v6057 = vld [vmem:[#allocation3 + $0x90] sm:$0xff]
        %v6058 = vld [vmem:[#allocation3 + $0x98] sm:$0xff]
        %v6059 = vld [vmem:[#allocation3 + $0xa0] sm:$0xff]
        %v6060 = vld [vmem:[#allocation3 + $0xa8] sm:$0xff]
        %v6061 = vld [vmem:[#allocation3 + $0xb0] sm:$0xff]
        %v6062 = vld [vmem:[#allocation3 + $0xb8] sm:$0xff]
        %v6063 = vld [vmem:[#allocation3 + $0xc0] sm:$0xff]
        %v6064 = vld [vmem:[#allocation3 + $0xc8] sm:$0xff]
        %v6065 = vld [vmem:[#allocation3 + $0xd0] sm:$0xff]
        %v6066 = vld [vmem:[#allocation3 + $0xd8] sm:$0xff]
        %v6067 = vld [vmem:[#allocation3 + $0xe0] sm:$0xff]
        %v6068 = vld [vmem:[#allocation3 + $0xe8] sm:$0xff]
        %v6069 = vld [vmem:[#allocation3 + $0xf0] sm:$0xff]
        %v6070 = vld [vmem:[#allocation3 + $0xf8] sm:$0xff]
        %v6071 = vld [vmem:[%s2] sm:$0x1]
        %v6073 = vlaneseq
        %v6074 = vshrl.u32 %v6073, 7
        %v6075 = vsub.s32 0, %v6074
        %v6076 = vrot.slane %v6071, %v6075
        %v6078 = vadd.f32 %v6039, %v6076
        %v6079 = vadd.f32 %v6040, %v6076
        %v6080 = vadd.f32 %v6041, %v6076
        %v6081 = vadd.f32 %v6042, %v6076
        %v6082 = vadd.f32 %v6043, %v6076
        %v6083 = vadd.f32 %v6044, %v6076
        %v6084 = vadd.f32 %v6045, %v6076
        %v6085 = vadd.f32 %v6046, %v6076
        %v6086 = vadd.f32 %v6047, %v6076
        %v6087 = vadd.f32 %v6048, %v6076
        %v6088 = vadd.f32 %v6049, %v6076
        %v6089 = vadd.f32 %v6050, %v6076
        %v6090 = vadd.f32 %v6051, %v6076
        %v6091 = vadd.f32 %v6052, %v6076
        %v6092 = vadd.f32 %v6053, %v6076
        %v6093 = vadd.f32 %v6054, %v6076
        %v6094 = vadd.f32 %v6055, %v6076
        %v6095 = vadd.f32 %v6056, %v6076
        %v6096 = vadd.f32 %v6057, %v6076
        %v6097 = vadd.f32 %v6058, %v6076
        %v6098 = vadd.f32 %v6059, %v6076
        %v6099 = vadd.f32 %v6060, %v6076
        %v6100 = vadd.f32 %v6061, %v6076
        %v6101 = vadd.f32 %v6062, %v6076
        %v6102 = vadd.f32 %v6063, %v6076
        %v6103 = vadd.f32 %v6064, %v6076
        %v6104 = vadd.f32 %v6065, %v6076
        %v6105 = vadd.f32 %v6066, %v6076
        %v6106 = vadd.f32 %v6067, %v6076
        %v6107 = vadd.f32 %v6068, %v6076
        %v6108 = vadd.f32 %v6069, %v6076
        %v6109 = vadd.f32 %v6070, %v6076
        %v6110 = vmax.f32 %v6078, 0.0
        %v6111 = vmax.f32 %v6079, 0.0
        %v6112 = vmax.f32 %v6080, 0.0
        %v6113 = vmax.f32 %v6081, 0.0
        %v6114 = vmax.f32 %v6082, 0.0
        %v6115 = vmax.f32 %v6083, 0.0
        %v6116 = vmax.f32 %v6084, 0.0
        %v6117 = vmax.f32 %v6085, 0.0
        %v6118 = vmax.f32 %v6086, 0.0
        %v6119 = vmax.f32 %v6087, 0.0
        %v6120 = vmax.f32 %v6088, 0.0
        %v6121 = vmax.f32 %v6089, 0.0
        %v6122 = vmax.f32 %v6090, 0.0
        %v6123 = vmax.f32 %v6091, 0.0
        %v6124 = vmax.f32 %v6092, 0.0
        %v6125 = vmax.f32 %v6093, 0.0
        %v6126 = vmax.f32 %v6094, 0.0
        %v6127 = vmax.f32 %v6095, 0.0
        %v6128 = vmax.f32 %v6096, 0.0
        %v6129 = vmax.f32 %v6097, 0.0
        %v6130 = vmax.f32 %v6098, 0.0
        %v6131 = vmax.f32 %v6099, 0.0
        %v6132 = vmax.f32 %v6100, 0.0
        %v6133 = vmax.f32 %v6101, 0.0
        %v6134 = vmax.f32 %v6102, 0.0
        %v6135 = vmax.f32 %v6103, 0.0
        %v6136 = vmax.f32 %v6104, 0.0
        %v6137 = vmax.f32 %v6105, 0.0
        %v6138 = vmax.f32 %v6106, 0.0
        %v6139 = vmax.f32 %v6107, 0.0
        %v6140 = vmax.f32 %v6108, 0.0
        %v6141 = vmax.f32 %v6109, 0.0
        %v6174 = vcombine.high %v6110, %v6110
        %v6176 = vunpack.c.l.s4 1983009808
        %v6177 = vunpack.c.0.s8 %v6176
        %v6178 = vlaneseq
        %v6179 = vshrl.u32 %v6178, 7
        %v6180 = vsub.s32 %v6177, %v6179
        %v6181 = vrot.slane %v6110, %v6180
        %v6183 = vunpack.c.l.s4 1983009808
        %v6184 = vunpack.c.0.s8 %v6183
        %v6185 = vlaneseq
        %v6186 = vshrl.u32 %v6185, 7
        %v6187 = vsub.s32 %v6184, %v6186
        %v6188 = vrot.slane %v6174, %v6187
        %v6189 = vcombine.high %v6181, %v6181
        %v6190 = vcombine.high %v6188, %v6188
        %v6191 = vcombine.high %v6111, %v6111
        %v6193 = vunpack.c.l.s4 1983009808
        %v6194 = vunpack.c.0.s8 %v6193
        %v6195 = vlaneseq
        %v6196 = vshrl.u32 %v6195, 7
        %v6197 = vsub.s32 %v6194, %v6196
        %v6198 = vrot.slane %v6111, %v6197
        %v6200 = vunpack.c.l.s4 1983009808
        %v6201 = vunpack.c.0.s8 %v6200
        %v6202 = vlaneseq
        %v6203 = vshrl.u32 %v6202, 7
        %v6204 = vsub.s32 %v6201, %v6203
        %v6205 = vrot.slane %v6191, %v6204
        %v6206 = vcombine.high %v6198, %v6198
        %v6207 = vcombine.high %v6205, %v6205
        %v6208 = vcombine.high %v6112, %v6112
        %v6210 = vunpack.c.l.s4 1983009808
        %v6211 = vunpack.c.0.s8 %v6210
        %v6212 = vlaneseq
        %v6213 = vshrl.u32 %v6212, 7
        %v6214 = vsub.s32 %v6211, %v6213
        %v6215 = vrot.slane %v6112, %v6214
        %v6217 = vunpack.c.l.s4 1983009808
        %v6218 = vunpack.c.0.s8 %v6217
        %v6219 = vlaneseq
        %v6220 = vshrl.u32 %v6219, 7
        %v6221 = vsub.s32 %v6218, %v6220
        %v6222 = vrot.slane %v6208, %v6221
        %v6223 = vcombine.high %v6215, %v6215
        %v6224 = vcombine.high %v6222, %v6222
        %v6225 = vcombine.high %v6113, %v6113
        %v6227 = vunpack.c.l.s4 1983009808
        %v6228 = vunpack.c.0.s8 %v6227
        %v6229 = vlaneseq
        %v6230 = vshrl.u32 %v6229, 7
        %v6231 = vsub.s32 %v6228, %v6230
        %v6232 = vrot.slane %v6113, %v6231
        %v6234 = vunpack.c.l.s4 1983009808
        %v6235 = vunpack.c.0.s8 %v6234
        %v6236 = vlaneseq
        %v6237 = vshrl.u32 %v6236, 7
        %v6238 = vsub.s32 %v6235, %v6237
        %v6239 = vrot.slane %v6225, %v6238
        %v6240 = vcombine.high %v6232, %v6232
        %v6241 = vcombine.high %v6239, %v6239
        %v6242 = vcombine.high %v6114, %v6114
        %v6244 = vunpack.c.l.s4 1983009808
        %v6245 = vunpack.c.0.s8 %v6244
        %v6246 = vlaneseq
        %v6247 = vshrl.u32 %v6246, 7
        %v6248 = vsub.s32 %v6245, %v6247
        %v6249 = vrot.slane %v6114, %v6248
        %v6251 = vunpack.c.l.s4 1983009808
        %v6252 = vunpack.c.0.s8 %v6251
        %v6253 = vlaneseq
        %v6254 = vshrl.u32 %v6253, 7
        %v6255 = vsub.s32 %v6252, %v6254
        %v6256 = vrot.slane %v6242, %v6255
        %v6257 = vcombine.high %v6249, %v6249
        %v6258 = vcombine.high %v6256, %v6256
        %v6259 = vcombine.high %v6115, %v6115
        %v6261 = vunpack.c.l.s4 1983009808
        %v6262 = vunpack.c.0.s8 %v6261
        %v6263 = vlaneseq
        %v6264 = vshrl.u32 %v6263, 7
        %v6265 = vsub.s32 %v6262, %v6264
        %v6266 = vrot.slane %v6115, %v6265
        %v6268 = vunpack.c.l.s4 1983009808
        %v6269 = vunpack.c.0.s8 %v6268
        %v6270 = vlaneseq
        %v6271 = vshrl.u32 %v6270, 7
        %v6272 = vsub.s32 %v6269, %v6271
        %v6273 = vrot.slane %v6259, %v6272
        %v6274 = vcombine.high %v6266, %v6266
        %v6275 = vcombine.high %v6273, %v6273
        %v6276 = vcombine.high %v6116, %v6116
        %v6278 = vunpack.c.l.s4 1983009808
        %v6279 = vunpack.c.0.s8 %v6278
        %v6280 = vlaneseq
        %v6281 = vshrl.u32 %v6280, 7
        %v6282 = vsub.s32 %v6279, %v6281
        %v6283 = vrot.slane %v6116, %v6282
        %v6285 = vunpack.c.l.s4 1983009808
        %v6286 = vunpack.c.0.s8 %v6285
        %v6287 = vlaneseq
        %v6288 = vshrl.u32 %v6287, 7
        %v6289 = vsub.s32 %v6286, %v6288
        %v6290 = vrot.slane %v6276, %v6289
        %v6291 = vcombine.high %v6283, %v6283
        %v6292 = vcombine.high %v6290, %v6290
        %v6293 = vcombine.high %v6117, %v6117
        %v6295 = vunpack.c.l.s4 1983009808
        %v6296 = vunpack.c.0.s8 %v6295
        %v6297 = vlaneseq
        %v6298 = vshrl.u32 %v6297, 7
        %v6299 = vsub.s32 %v6296, %v6298
        %v6300 = vrot.slane %v6117, %v6299
        %v6302 = vunpack.c.l.s4 1983009808
        %v6303 = vunpack.c.0.s8 %v6302
        %v6304 = vlaneseq
        %v6305 = vshrl.u32 %v6304, 7
        %v6306 = vsub.s32 %v6303, %v6305
        %v6307 = vrot.slane %v6293, %v6306
        %v6308 = vcombine.high %v6300, %v6300
        %v6309 = vcombine.high %v6307, %v6307
        %v6310 = vcombine.high %v6118, %v6118
        %v6312 = vunpack.c.l.s4 1983009808
        %v6313 = vunpack.c.0.s8 %v6312
        %v6314 = vlaneseq
        %v6315 = vshrl.u32 %v6314, 7
        %v6316 = vsub.s32 %v6313, %v6315
        %v6317 = vrot.slane %v6118, %v6316
        %v6319 = vunpack.c.l.s4 1983009808
        %v6320 = vunpack.c.0.s8 %v6319
        %v6321 = vlaneseq
        %v6322 = vshrl.u32 %v6321, 7
        %v6323 = vsub.s32 %v6320, %v6322
        %v6324 = vrot.slane %v6310, %v6323
        %v6325 = vcombine.high %v6317, %v6317
        %v6326 = vcombine.high %v6324, %v6324
        %v6327 = vcombine.high %v6119, %v6119
        %v6329 = vunpack.c.l.s4 1983009808
        %v6330 = vunpack.c.0.s8 %v6329
        %v6331 = vlaneseq
        %v6332 = vshrl.u32 %v6331, 7
        %v6333 = vsub.s32 %v6330, %v6332
        %v6334 = vrot.slane %v6119, %v6333
        %v6336 = vunpack.c.l.s4 1983009808
        %v6337 = vunpack.c.0.s8 %v6336
        %v6338 = vlaneseq
        %v6339 = vshrl.u32 %v6338, 7
        %v6340 = vsub.s32 %v6337, %v6339
        %v6341 = vrot.slane %v6327, %v6340
        %v6342 = vcombine.high %v6334, %v6334
        %v6343 = vcombine.high %v6341, %v6341
        %v6344 = vcombine.high %v6120, %v6120
        %v6346 = vunpack.c.l.s4 1983009808
        %v6347 = vunpack.c.0.s8 %v6346
        %v6348 = vlaneseq
        %v6349 = vshrl.u32 %v6348, 7
        %v6350 = vsub.s32 %v6347, %v6349
        %v6351 = vrot.slane %v6120, %v6350
        %v6353 = vunpack.c.l.s4 1983009808
        %v6354 = vunpack.c.0.s8 %v6353
        %v6355 = vlaneseq
        %v6356 = vshrl.u32 %v6355, 7
        %v6357 = vsub.s32 %v6354, %v6356
        %v6358 = vrot.slane %v6344, %v6357
        %v6359 = vcombine.high %v6351, %v6351
        %v6360 = vcombine.high %v6358, %v6358
        %v6361 = vcombine.high %v6121, %v6121
        %v6363 = vunpack.c.l.s4 1983009808
        %v6364 = vunpack.c.0.s8 %v6363
        %v6365 = vlaneseq
        %v6366 = vshrl.u32 %v6365, 7
        %v6367 = vsub.s32 %v6364, %v6366
        %v6368 = vrot.slane %v6121, %v6367
        %v6370 = vunpack.c.l.s4 1983009808
        %v6371 = vunpack.c.0.s8 %v6370
        %v6372 = vlaneseq
        %v6373 = vshrl.u32 %v6372, 7
        %v6374 = vsub.s32 %v6371, %v6373
        %v6375 = vrot.slane %v6361, %v6374
        %v6376 = vcombine.high %v6368, %v6368
        %v6377 = vcombine.high %v6375, %v6375
        %v6378 = vcombine.high %v6122, %v6122
        %v6380 = vunpack.c.l.s4 1983009808
        %v6381 = vunpack.c.0.s8 %v6380
        %v6382 = vlaneseq
        %v6383 = vshrl.u32 %v6382, 7
        %v6384 = vsub.s32 %v6381, %v6383
        %v6385 = vrot.slane %v6122, %v6384
        %v6387 = vunpack.c.l.s4 1983009808
        %v6388 = vunpack.c.0.s8 %v6387
        %v6389 = vlaneseq
        %v6390 = vshrl.u32 %v6389, 7
        %v6391 = vsub.s32 %v6388, %v6390
        %v6392 = vrot.slane %v6378, %v6391
        %v6393 = vcombine.high %v6385, %v6385
        %v6394 = vcombine.high %v6392, %v6392
        %v6395 = vcombine.high %v6123, %v6123
        %v6397 = vunpack.c.l.s4 1983009808
        %v6398 = vunpack.c.0.s8 %v6397
        %v6399 = vlaneseq
        %v6400 = vshrl.u32 %v6399, 7
        %v6401 = vsub.s32 %v6398, %v6400
        %v6402 = vrot.slane %v6123, %v6401
        %v6404 = vunpack.c.l.s4 1983009808
        %v6405 = vunpack.c.0.s8 %v6404
        %v6406 = vlaneseq
        %v6407 = vshrl.u32 %v6406, 7
        %v6408 = vsub.s32 %v6405, %v6407
        %v6409 = vrot.slane %v6395, %v6408
        %v6410 = vcombine.high %v6402, %v6402
        %v6411 = vcombine.high %v6409, %v6409
        %v6412 = vcombine.high %v6124, %v6124
        %v6414 = vunpack.c.l.s4 1983009808
        %v6415 = vunpack.c.0.s8 %v6414
        %v6416 = vlaneseq
        %v6417 = vshrl.u32 %v6416, 7
        %v6418 = vsub.s32 %v6415, %v6417
        %v6419 = vrot.slane %v6124, %v6418
        %v6421 = vunpack.c.l.s4 1983009808
        %v6422 = vunpack.c.0.s8 %v6421
        %v6423 = vlaneseq
        %v6424 = vshrl.u32 %v6423, 7
        %v6425 = vsub.s32 %v6422, %v6424
        %v6426 = vrot.slane %v6412, %v6425
        %v6427 = vcombine.high %v6419, %v6419
        %v6428 = vcombine.high %v6426, %v6426
        %v6429 = vcombine.high %v6125, %v6125
        %v6431 = vunpack.c.l.s4 1983009808
        %v6432 = vunpack.c.0.s8 %v6431
        %v6433 = vlaneseq
        %v6434 = vshrl.u32 %v6433, 7
        %v6435 = vsub.s32 %v6432, %v6434
        %v6436 = vrot.slane %v6125, %v6435
        %v6438 = vunpack.c.l.s4 1983009808
        %v6439 = vunpack.c.0.s8 %v6438
        %v6440 = vlaneseq
        %v6441 = vshrl.u32 %v6440, 7
        %v6442 = vsub.s32 %v6439, %v6441
        %v6443 = vrot.slane %v6429, %v6442
        %v6444 = vcombine.high %v6436, %v6436
        %v6445 = vcombine.high %v6443, %v6443
        %v6446 = vcombine.high %v6126, %v6126
        %v6448 = vunpack.c.l.s4 1983009808
        %v6449 = vunpack.c.0.s8 %v6448
        %v6450 = vlaneseq
        %v6451 = vshrl.u32 %v6450, 7
        %v6452 = vsub.s32 %v6449, %v6451
        %v6453 = vrot.slane %v6126, %v6452
        %v6455 = vunpack.c.l.s4 1983009808
        %v6456 = vunpack.c.0.s8 %v6455
        %v6457 = vlaneseq
        %v6458 = vshrl.u32 %v6457, 7
        %v6459 = vsub.s32 %v6456, %v6458
        %v6460 = vrot.slane %v6446, %v6459
        %v6461 = vcombine.high %v6453, %v6453
        %v6462 = vcombine.high %v6460, %v6460
        %v6463 = vcombine.high %v6127, %v6127
        %v6465 = vunpack.c.l.s4 1983009808
        %v6466 = vunpack.c.0.s8 %v6465
        %v6467 = vlaneseq
        %v6468 = vshrl.u32 %v6467, 7
        %v6469 = vsub.s32 %v6466, %v6468
        %v6470 = vrot.slane %v6127, %v6469
        %v6472 = vunpack.c.l.s4 1983009808
        %v6473 = vunpack.c.0.s8 %v6472
        %v6474 = vlaneseq
        %v6475 = vshrl.u32 %v6474, 7
        %v6476 = vsub.s32 %v6473, %v6475
        %v6477 = vrot.slane %v6463, %v6476
        %v6478 = vcombine.high %v6470, %v6470
        %v6479 = vcombine.high %v6477, %v6477
        %v6480 = vcombine.high %v6128, %v6128
        %v6482 = vunpack.c.l.s4 1983009808
        %v6483 = vunpack.c.0.s8 %v6482
        %v6484 = vlaneseq
        %v6485 = vshrl.u32 %v6484, 7
        %v6486 = vsub.s32 %v6483, %v6485
        %v6487 = vrot.slane %v6128, %v6486
        %v6489 = vunpack.c.l.s4 1983009808
        %v6490 = vunpack.c.0.s8 %v6489
        %v6491 = vlaneseq
        %v6492 = vshrl.u32 %v6491, 7
        %v6493 = vsub.s32 %v6490, %v6492
        %v6494 = vrot.slane %v6480, %v6493
        %v6495 = vcombine.high %v6487, %v6487
        %v6496 = vcombine.high %v6494, %v6494
        %v6497 = vcombine.high %v6129, %v6129
        %v6499 = vunpack.c.l.s4 1983009808
        %v6500 = vunpack.c.0.s8 %v6499
        %v6501 = vlaneseq
        %v6502 = vshrl.u32 %v6501, 7
        %v6503 = vsub.s32 %v6500, %v6502
        %v6504 = vrot.slane %v6129, %v6503
        %v6506 = vunpack.c.l.s4 1983009808
        %v6507 = vunpack.c.0.s8 %v6506
        %v6508 = vlaneseq
        %v6509 = vshrl.u32 %v6508, 7
        %v6510 = vsub.s32 %v6507, %v6509
        %v6511 = vrot.slane %v6497, %v6510
        %v6512 = vcombine.high %v6504, %v6504
        %v6513 = vcombine.high %v6511, %v6511
        %v6514 = vcombine.high %v6130, %v6130
        %v6516 = vunpack.c.l.s4 1983009808
        %v6517 = vunpack.c.0.s8 %v6516
        %v6518 = vlaneseq
        %v6519 = vshrl.u32 %v6518, 7
        %v6520 = vsub.s32 %v6517, %v6519
        %v6521 = vrot.slane %v6130, %v6520
        %v6523 = vunpack.c.l.s4 1983009808
        %v6524 = vunpack.c.0.s8 %v6523
        %v6525 = vlaneseq
        %v6526 = vshrl.u32 %v6525, 7
        %v6527 = vsub.s32 %v6524, %v6526
        %v6528 = vrot.slane %v6514, %v6527
        %v6529 = vcombine.high %v6521, %v6521
        %v6530 = vcombine.high %v6528, %v6528
        %v6531 = vcombine.high %v6131, %v6131
        %v6533 = vunpack.c.l.s4 1983009808
        %v6534 = vunpack.c.0.s8 %v6533
        %v6535 = vlaneseq
        %v6536 = vshrl.u32 %v6535, 7
        %v6537 = vsub.s32 %v6534, %v6536
        %v6538 = vrot.slane %v6131, %v6537
        %v6540 = vunpack.c.l.s4 1983009808
        %v6541 = vunpack.c.0.s8 %v6540
        %v6542 = vlaneseq
        %v6543 = vshrl.u32 %v6542, 7
        %v6544 = vsub.s32 %v6541, %v6543
        %v6545 = vrot.slane %v6531, %v6544
        %v6546 = vcombine.high %v6538, %v6538
        %v6547 = vcombine.high %v6545, %v6545
        %v6548 = vcombine.high %v6132, %v6132
        %v6550 = vunpack.c.l.s4 1983009808
        %v6551 = vunpack.c.0.s8 %v6550
        %v6552 = vlaneseq
        %v6553 = vshrl.u32 %v6552, 7
        %v6554 = vsub.s32 %v6551, %v6553
        %v6555 = vrot.slane %v6132, %v6554
        %v6557 = vunpack.c.l.s4 1983009808
        %v6558 = vunpack.c.0.s8 %v6557
        %v6559 = vlaneseq
        %v6560 = vshrl.u32 %v6559, 7
        %v6561 = vsub.s32 %v6558, %v6560
        %v6562 = vrot.slane %v6548, %v6561
        %v6563 = vcombine.high %v6555, %v6555
        %v6564 = vcombine.high %v6562, %v6562
        %v6565 = vcombine.high %v6133, %v6133
        %v6567 = vunpack.c.l.s4 1983009808
        %v6568 = vunpack.c.0.s8 %v6567
        %v6569 = vlaneseq
        %v6570 = vshrl.u32 %v6569, 7
        %v6571 = vsub.s32 %v6568, %v6570
        %v6572 = vrot.slane %v6133, %v6571
        %v6574 = vunpack.c.l.s4 1983009808
        %v6575 = vunpack.c.0.s8 %v6574
        %v6576 = vlaneseq
        %v6577 = vshrl.u32 %v6576, 7
        %v6578 = vsub.s32 %v6575, %v6577
        %v6579 = vrot.slane %v6565, %v6578
        %v6580 = vcombine.high %v6572, %v6572
        %v6581 = vcombine.high %v6579, %v6579
        %v6582 = vcombine.high %v6134, %v6134
        %v6584 = vunpack.c.l.s4 1983009808
        %v6585 = vunpack.c.0.s8 %v6584
        %v6586 = vlaneseq
        %v6587 = vshrl.u32 %v6586, 7
        %v6588 = vsub.s32 %v6585, %v6587
        %v6589 = vrot.slane %v6134, %v6588
        %v6591 = vunpack.c.l.s4 1983009808
        %v6592 = vunpack.c.0.s8 %v6591
        %v6593 = vlaneseq
        %v6594 = vshrl.u32 %v6593, 7
        %v6595 = vsub.s32 %v6592, %v6594
        %v6596 = vrot.slane %v6582, %v6595
        %v6597 = vcombine.high %v6589, %v6589
        %v6598 = vcombine.high %v6596, %v6596
        %v6599 = vcombine.high %v6135, %v6135
        %v6601 = vunpack.c.l.s4 1983009808
        %v6602 = vunpack.c.0.s8 %v6601
        %v6603 = vlaneseq
        %v6604 = vshrl.u32 %v6603, 7
        %v6605 = vsub.s32 %v6602, %v6604
        %v6606 = vrot.slane %v6135, %v6605
        %v6608 = vunpack.c.l.s4 1983009808
        %v6609 = vunpack.c.0.s8 %v6608
        %v6610 = vlaneseq
        %v6611 = vshrl.u32 %v6610, 7
        %v6612 = vsub.s32 %v6609, %v6611
        %v6613 = vrot.slane %v6599, %v6612
        %v6614 = vcombine.high %v6606, %v6606
        %v6615 = vcombine.high %v6613, %v6613
        %v6616 = vcombine.high %v6136, %v6136
        %v6618 = vunpack.c.l.s4 1983009808
        %v6619 = vunpack.c.0.s8 %v6618
        %v6620 = vlaneseq
        %v6621 = vshrl.u32 %v6620, 7
        %v6622 = vsub.s32 %v6619, %v6621
        %v6623 = vrot.slane %v6136, %v6622
        %v6625 = vunpack.c.l.s4 1983009808
        %v6626 = vunpack.c.0.s8 %v6625
        %v6627 = vlaneseq
        %v6628 = vshrl.u32 %v6627, 7
        %v6629 = vsub.s32 %v6626, %v6628
        %v6630 = vrot.slane %v6616, %v6629
        %v6631 = vcombine.high %v6623, %v6623
        %v6632 = vcombine.high %v6630, %v6630
        %v6633 = vcombine.high %v6137, %v6137
        %v6635 = vunpack.c.l.s4 1983009808
        %v6636 = vunpack.c.0.s8 %v6635
        %v6637 = vlaneseq
        %v6638 = vshrl.u32 %v6637, 7
        %v6639 = vsub.s32 %v6636, %v6638
        %v6640 = vrot.slane %v6137, %v6639
        %v6642 = vunpack.c.l.s4 1983009808
        %v6643 = vunpack.c.0.s8 %v6642
        %v6644 = vlaneseq
        %v6645 = vshrl.u32 %v6644, 7
        %v6646 = vsub.s32 %v6643, %v6645
        %v6647 = vrot.slane %v6633, %v6646
        %v6648 = vcombine.high %v6640, %v6640
        %v6649 = vcombine.high %v6647, %v6647
        %v6650 = vcombine.high %v6138, %v6138
        %v6652 = vunpack.c.l.s4 1983009808
        %v6653 = vunpack.c.0.s8 %v6652
        %v6654 = vlaneseq
        %v6655 = vshrl.u32 %v6654, 7
        %v6656 = vsub.s32 %v6653, %v6655
        %v6657 = vrot.slane %v6138, %v6656
        %v6659 = vunpack.c.l.s4 1983009808
        %v6660 = vunpack.c.0.s8 %v6659
        %v6661 = vlaneseq
        %v6662 = vshrl.u32 %v6661, 7
        %v6663 = vsub.s32 %v6660, %v6662
        %v6664 = vrot.slane %v6650, %v6663
        %v6665 = vcombine.high %v6657, %v6657
        %v6666 = vcombine.high %v6664, %v6664
        %v6667 = vcombine.high %v6139, %v6139
        %v6669 = vunpack.c.l.s4 1983009808
        %v6670 = vunpack.c.0.s8 %v6669
        %v6671 = vlaneseq
        %v6672 = vshrl.u32 %v6671, 7
        %v6673 = vsub.s32 %v6670, %v6672
        %v6674 = vrot.slane %v6139, %v6673
        %v6676 = vunpack.c.l.s4 1983009808
        %v6677 = vunpack.c.0.s8 %v6676
        %v6678 = vlaneseq
        %v6679 = vshrl.u32 %v6678, 7
        %v6680 = vsub.s32 %v6677, %v6679
        %v6681 = vrot.slane %v6667, %v6680
        %v6682 = vcombine.high %v6674, %v6674
        %v6683 = vcombine.high %v6681, %v6681
        %v6684 = vcombine.high %v6140, %v6140
        %v6686 = vunpack.c.l.s4 1983009808
        %v6687 = vunpack.c.0.s8 %v6686
        %v6688 = vlaneseq
        %v6689 = vshrl.u32 %v6688, 7
        %v6690 = vsub.s32 %v6687, %v6689
        %v6691 = vrot.slane %v6140, %v6690
        %v6693 = vunpack.c.l.s4 1983009808
        %v6694 = vunpack.c.0.s8 %v6693
        %v6695 = vlaneseq
        %v6696 = vshrl.u32 %v6695, 7
        %v6697 = vsub.s32 %v6694, %v6696
        %v6698 = vrot.slane %v6684, %v6697
        %v6699 = vcombine.high %v6691, %v6691
        %v6700 = vcombine.high %v6698, %v6698
        %v6701 = vcombine.high %v6141, %v6141
        %v6703 = vunpack.c.l.s4 1983009808
        %v6704 = vunpack.c.0.s8 %v6703
        %v6705 = vlaneseq
        %v6706 = vshrl.u32 %v6705, 7
        %v6707 = vsub.s32 %v6704, %v6706
        %v6708 = vrot.slane %v6141, %v6707
        %v6710 = vunpack.c.l.s4 1983009808
        %v6711 = vunpack.c.0.s8 %v6710
        %v6712 = vlaneseq
        %v6713 = vshrl.u32 %v6712, 7
        %v6714 = vsub.s32 %v6711, %v6713
        %v6715 = vrot.slane %v6701, %v6714
        %v6716 = vcombine.high %v6708, %v6708
        %v6717 = vcombine.high %v6715, %v6715
        %v6846 = vrot.slane %v6181, 7
        %v6847 = vrot.slane %v6846, 2
        %v6848 = vrot.slane %v6189, 7
        %v6849 = vrot.slane %v6848, 2
        %v6850 = vrot.slane %v6188, 7
        %v6851 = vrot.slane %v6850, 2
        %v6852 = vrot.slane %v6190, 7
        %v6853 = vrot.slane %v6852, 2
        %v6854 = vrot.slane %v6198, 7
        %v6855 = vrot.slane %v6854, 2
        %v6856 = vrot.slane %v6206, 7
        %v6857 = vrot.slane %v6856, 2
        %v6858 = vrot.slane %v6205, 7
        %v6859 = vrot.slane %v6858, 2
        %v6860 = vrot.slane %v6207, 7
        %v6861 = vrot.slane %v6860, 2
        %v6862 = vrot.slane %v6215, 7
        %v6863 = vrot.slane %v6862, 2
        %v6864 = vrot.slane %v6223, 7
        %v6865 = vrot.slane %v6864, 2
        %v6866 = vrot.slane %v6222, 7
        %v6867 = vrot.slane %v6866, 2
        %v6868 = vrot.slane %v6224, 7
        %v6869 = vrot.slane %v6868, 2
        %v6870 = vrot.slane %v6232, 7
        %v6871 = vrot.slane %v6870, 2
        %v6872 = vrot.slane %v6240, 7
        %v6873 = vrot.slane %v6872, 2
        %v6874 = vrot.slane %v6239, 7
        %v6875 = vrot.slane %v6874, 2
        %v6876 = vrot.slane %v6241, 7
        %v6877 = vrot.slane %v6876, 2
        %v6878 = vrot.slane %v6249, 7
        %v6879 = vrot.slane %v6878, 2
        %v6880 = vrot.slane %v6257, 7
        %v6881 = vrot.slane %v6880, 2
        %v6882 = vrot.slane %v6256, 7
        %v6883 = vrot.slane %v6882, 2
        %v6884 = vrot.slane %v6258, 7
        %v6885 = vrot.slane %v6884, 2
        %v6886 = vrot.slane %v6266, 7
        %v6887 = vrot.slane %v6886, 2
        %v6888 = vrot.slane %v6274, 7
        %v6889 = vrot.slane %v6888, 2
        %v6890 = vrot.slane %v6273, 7
        %v6891 = vrot.slane %v6890, 2
        %v6892 = vrot.slane %v6275, 7
        %v6893 = vrot.slane %v6892, 2
        %v6894 = vrot.slane %v6283, 7
        %v6895 = vrot.slane %v6894, 2
        %v6896 = vrot.slane %v6291, 7
        %v6897 = vrot.slane %v6896, 2
        %v6898 = vrot.slane %v6290, 7
        %v6899 = vrot.slane %v6898, 2
        %v6900 = vrot.slane %v6292, 7
        %v6901 = vrot.slane %v6900, 2
        %v6902 = vrot.slane %v6300, 7
        %v6903 = vrot.slane %v6902, 2
        %v6904 = vrot.slane %v6308, 7
        %v6905 = vrot.slane %v6904, 2
        %v6906 = vrot.slane %v6307, 7
        %v6907 = vrot.slane %v6906, 2
        %v6908 = vrot.slane %v6309, 7
        %v6909 = vrot.slane %v6908, 2
        %v6910 = vrot.slane %v6317, 7
        %v6911 = vrot.slane %v6910, 2
        %v6912 = vrot.slane %v6325, 7
        %v6913 = vrot.slane %v6912, 2
        %v6914 = vrot.slane %v6324, 7
        %v6915 = vrot.slane %v6914, 2
        %v6916 = vrot.slane %v6326, 7
        %v6917 = vrot.slane %v6916, 2
        %v6918 = vrot.slane %v6334, 7
        %v6919 = vrot.slane %v6918, 2
        %v6920 = vrot.slane %v6342, 7
        %v6921 = vrot.slane %v6920, 2
        %v6922 = vrot.slane %v6341, 7
        %v6923 = vrot.slane %v6922, 2
        %v6924 = vrot.slane %v6343, 7
        %v6925 = vrot.slane %v6924, 2
        %v6926 = vrot.slane %v6351, 7
        %v6927 = vrot.slane %v6926, 2
        %v6928 = vrot.slane %v6359, 7
        %v6929 = vrot.slane %v6928, 2
        %v6930 = vrot.slane %v6358, 7
        %v6931 = vrot.slane %v6930, 2
        %v6932 = vrot.slane %v6360, 7
        %v6933 = vrot.slane %v6932, 2
        %v6934 = vrot.slane %v6368, 7
        %v6935 = vrot.slane %v6934, 2
        %v6936 = vrot.slane %v6376, 7
        %v6937 = vrot.slane %v6936, 2
        %v6938 = vrot.slane %v6375, 7
        %v6939 = vrot.slane %v6938, 2
        %v6940 = vrot.slane %v6377, 7
        %v6941 = vrot.slane %v6940, 2
        %v6942 = vrot.slane %v6385, 7
        %v6943 = vrot.slane %v6942, 2
        %v6944 = vrot.slane %v6393, 7
        %v6945 = vrot.slane %v6944, 2
        %v6946 = vrot.slane %v6392, 7
        %v6947 = vrot.slane %v6946, 2
        %v6948 = vrot.slane %v6394, 7
        %v6949 = vrot.slane %v6948, 2
        %v6950 = vrot.slane %v6402, 7
        %v6951 = vrot.slane %v6950, 2
        %v6952 = vrot.slane %v6410, 7
        %v6953 = vrot.slane %v6952, 2
        %v6954 = vrot.slane %v6409, 7
        %v6955 = vrot.slane %v6954, 2
        %v6956 = vrot.slane %v6411, 7
        %v6957 = vrot.slane %v6956, 2
        %v6958 = vrot.slane %v6419, 7
        %v6959 = vrot.slane %v6958, 2
        %v6960 = vrot.slane %v6427, 7
        %v6961 = vrot.slane %v6960, 2
        %v6962 = vrot.slane %v6426, 7
        %v6963 = vrot.slane %v6962, 2
        %v6964 = vrot.slane %v6428, 7
        %v6965 = vrot.slane %v6964, 2
        %v6966 = vrot.slane %v6436, 7
        %v6967 = vrot.slane %v6966, 2
        %v6968 = vrot.slane %v6444, 7
        %v6969 = vrot.slane %v6968, 2
        %v6970 = vrot.slane %v6443, 7
        %v6971 = vrot.slane %v6970, 2
        %v6972 = vrot.slane %v6445, 7
        %v6973 = vrot.slane %v6972, 2
        %v6974 = vrot.slane %v6453, 7
        %v6975 = vrot.slane %v6974, 2
        %v6976 = vrot.slane %v6461, 7
        %v6977 = vrot.slane %v6976, 2
        %v6978 = vrot.slane %v6460, 7
        %v6979 = vrot.slane %v6978, 2
        %v6980 = vrot.slane %v6462, 7
        %v6981 = vrot.slane %v6980, 2
        %v6982 = vrot.slane %v6470, 7
        %v6983 = vrot.slane %v6982, 2
        %v6984 = vrot.slane %v6478, 7
        %v6985 = vrot.slane %v6984, 2
        %v6986 = vrot.slane %v6477, 7
        %v6987 = vrot.slane %v6986, 2
        %v6988 = vrot.slane %v6479, 7
        %v6989 = vrot.slane %v6988, 2
        %v6990 = vrot.slane %v6487, 7
        %v6991 = vrot.slane %v6990, 2
        %v6992 = vrot.slane %v6495, 7
        %v6993 = vrot.slane %v6992, 2
        %v6994 = vrot.slane %v6494, 7
        %v6995 = vrot.slane %v6994, 2
        %v6996 = vrot.slane %v6496, 7
        %v6997 = vrot.slane %v6996, 2
        %v6998 = vrot.slane %v6504, 7
        %v6999 = vrot.slane %v6998, 2
        %v7000 = vrot.slane %v6512, 7
        %v7001 = vrot.slane %v7000, 2
        %v7002 = vrot.slane %v6511, 7
        %v7003 = vrot.slane %v7002, 2
        %v7004 = vrot.slane %v6513, 7
        %v7005 = vrot.slane %v7004, 2
        %v7006 = vrot.slane %v6521, 7
        %v7007 = vrot.slane %v7006, 2
        %v7008 = vrot.slane %v6529, 7
        %v7009 = vrot.slane %v7008, 2
        %v7010 = vrot.slane %v6528, 7
        %v7011 = vrot.slane %v7010, 2
        %v7012 = vrot.slane %v6530, 7
        %v7013 = vrot.slane %v7012, 2
        %v7014 = vrot.slane %v6538, 7
        %v7015 = vrot.slane %v7014, 2
        %v7016 = vrot.slane %v6546, 7
        %v7017 = vrot.slane %v7016, 2
        %v7018 = vrot.slane %v6545, 7
        %v7019 = vrot.slane %v7018, 2
        %v7020 = vrot.slane %v6547, 7
        %v7021 = vrot.slane %v7020, 2
        %v7022 = vrot.slane %v6555, 7
        %v7023 = vrot.slane %v7022, 2
        %v7024 = vrot.slane %v6563, 7
        %v7025 = vrot.slane %v7024, 2
        %v7026 = vrot.slane %v6562, 7
        %v7027 = vrot.slane %v7026, 2
        %v7028 = vrot.slane %v6564, 7
        %v7029 = vrot.slane %v7028, 2
        %v7030 = vrot.slane %v6572, 7
        %v7031 = vrot.slane %v7030, 2
        %v7032 = vrot.slane %v6580, 7
        %v7033 = vrot.slane %v7032, 2
        %v7034 = vrot.slane %v6579, 7
        %v7035 = vrot.slane %v7034, 2
        %v7036 = vrot.slane %v6581, 7
        %v7037 = vrot.slane %v7036, 2
        %v7038 = vrot.slane %v6589, 7
        %v7039 = vrot.slane %v7038, 2
        %v7040 = vrot.slane %v6597, 7
        %v7041 = vrot.slane %v7040, 2
        %v7042 = vrot.slane %v6596, 7
        %v7043 = vrot.slane %v7042, 2
        %v7044 = vrot.slane %v6598, 7
        %v7045 = vrot.slane %v7044, 2
        %v7046 = vrot.slane %v6606, 7
        %v7047 = vrot.slane %v7046, 2
        %v7048 = vrot.slane %v6614, 7
        %v7049 = vrot.slane %v7048, 2
        %v7050 = vrot.slane %v6613, 7
        %v7051 = vrot.slane %v7050, 2
        %v7052 = vrot.slane %v6615, 7
        %v7053 = vrot.slane %v7052, 2
        %v7054 = vrot.slane %v6623, 7
        %v7055 = vrot.slane %v7054, 2
        %v7056 = vrot.slane %v6631, 7
        %v7057 = vrot.slane %v7056, 2
        %v7058 = vrot.slane %v6630, 7
        %v7059 = vrot.slane %v7058, 2
        %v7060 = vrot.slane %v6632, 7
        %v7061 = vrot.slane %v7060, 2
        %v7062 = vrot.slane %v6640, 7
        %v7063 = vrot.slane %v7062, 2
        %v7064 = vrot.slane %v6648, 7
        %v7065 = vrot.slane %v7064, 2
        %v7066 = vrot.slane %v6647, 7
        %v7067 = vrot.slane %v7066, 2
        %v7068 = vrot.slane %v6649, 7
        %v7069 = vrot.slane %v7068, 2
        %v7070 = vrot.slane %v6657, 7
        %v7071 = vrot.slane %v7070, 2
        %v7072 = vrot.slane %v6665, 7
        %v7073 = vrot.slane %v7072, 2
        %v7074 = vrot.slane %v6664, 7
        %v7075 = vrot.slane %v7074, 2
        %v7076 = vrot.slane %v6666, 7
        %v7077 = vrot.slane %v7076, 2
        %v7078 = vrot.slane %v6674, 7
        %v7079 = vrot.slane %v7078, 2
        %v7080 = vrot.slane %v6682, 7
        %v7081 = vrot.slane %v7080, 2
        %v7082 = vrot.slane %v6681, 7
        %v7083 = vrot.slane %v7082, 2
        %v7084 = vrot.slane %v6683, 7
        %v7085 = vrot.slane %v7084, 2
        %v7086 = vrot.slane %v6691, 7
        %v7087 = vrot.slane %v7086, 2
        %v7088 = vrot.slane %v6699, 7
        %v7089 = vrot.slane %v7088, 2
        %v7090 = vrot.slane %v6698, 7
        %v7091 = vrot.slane %v7090, 2
        %v7092 = vrot.slane %v6700, 7
        %v7093 = vrot.slane %v7092, 2
        %v7094 = vrot.slane %v6708, 7
        %v7095 = vrot.slane %v7094, 2
        %v7096 = vrot.slane %v6716, 7
        %v7097 = vrot.slane %v7096, 2
        %v7098 = vrot.slane %v6715, 7
        %v7099 = vrot.slane %v7098, 2
        %v7100 = vrot.slane %v6717, 7
        %v7101 = vrot.slane %v7100, 2
        %v7230 = vmax.f32 %v6181, %v6847
        %v7231 = vmax.f32 %v6189, %v6849
        %v7232 = vmax.f32 %v6188, %v6851
        %v7233 = vmax.f32 %v6190, %v6853
        %v7234 = vmax.f32 %v6198, %v6855
        %v7235 = vmax.f32 %v6206, %v6857
        %v7236 = vmax.f32 %v6205, %v6859
        %v7237 = vmax.f32 %v6207, %v6861
        %v7238 = vmax.f32 %v6215, %v6863
        %v7239 = vmax.f32 %v6223, %v6865
        %v7240 = vmax.f32 %v6222, %v6867
        %v7241 = vmax.f32 %v6224, %v6869
        %v7242 = vmax.f32 %v6232, %v6871
        %v7243 = vmax.f32 %v6240, %v6873
        %v7244 = vmax.f32 %v6239, %v6875
        %v7245 = vmax.f32 %v6241, %v6877
        %v7246 = vmax.f32 %v6249, %v6879
        %v7247 = vmax.f32 %v6257, %v6881
        %v7248 = vmax.f32 %v6256, %v6883
        %v7249 = vmax.f32 %v6258, %v6885
        %v7250 = vmax.f32 %v6266, %v6887
        %v7251 = vmax.f32 %v6274, %v6889
        %v7252 = vmax.f32 %v6273, %v6891
        %v7253 = vmax.f32 %v6275, %v6893
        %v7254 = vmax.f32 %v6283, %v6895
        %v7255 = vmax.f32 %v6291, %v6897
        %v7256 = vmax.f32 %v6290, %v6899
        %v7257 = vmax.f32 %v6292, %v6901
        %v7258 = vmax.f32 %v6300, %v6903
        %v7259 = vmax.f32 %v6308, %v6905
        %v7260 = vmax.f32 %v6307, %v6907
        %v7261 = vmax.f32 %v6309, %v6909
        %v7262 = vmax.f32 %v6317, %v6911
        %v7263 = vmax.f32 %v6325, %v6913
        %v7264 = vmax.f32 %v6324, %v6915
        %v7265 = vmax.f32 %v6326, %v6917
        %v7266 = vmax.f32 %v6334, %v6919
        %v7267 = vmax.f32 %v6342, %v6921
        %v7268 = vmax.f32 %v6341, %v6923
        %v7269 = vmax.f32 %v6343, %v6925
        %v7270 = vmax.f32 %v6351, %v6927
        %v7271 = vmax.f32 %v6359, %v6929
        %v7272 = vmax.f32 %v6358, %v6931
        %v7273 = vmax.f32 %v6360, %v6933
        %v7274 = vmax.f32 %v6368, %v6935
        %v7275 = vmax.f32 %v6376, %v6937
        %v7276 = vmax.f32 %v6375, %v6939
        %v7277 = vmax.f32 %v6377, %v6941
        %v7278 = vmax.f32 %v6385, %v6943
        %v7279 = vmax.f32 %v6393, %v6945
        %v7280 = vmax.f32 %v6392, %v6947
        %v7281 = vmax.f32 %v6394, %v6949
        %v7282 = vmax.f32 %v6402, %v6951
        %v7283 = vmax.f32 %v6410, %v6953
        %v7284 = vmax.f32 %v6409, %v6955
        %v7285 = vmax.f32 %v6411, %v6957
        %v7286 = vmax.f32 %v6419, %v6959
        %v7287 = vmax.f32 %v6427, %v6961
        %v7288 = vmax.f32 %v6426, %v6963
        %v7289 = vmax.f32 %v6428, %v6965
        %v7290 = vmax.f32 %v6436, %v6967
        %v7291 = vmax.f32 %v6444, %v6969
        %v7292 = vmax.f32 %v6443, %v6971
        %v7293 = vmax.f32 %v6445, %v6973
        %v7294 = vmax.f32 %v6453, %v6975
        %v7295 = vmax.f32 %v6461, %v6977
        %v7296 = vmax.f32 %v6460, %v6979
        %v7297 = vmax.f32 %v6462, %v6981
        %v7298 = vmax.f32 %v6470, %v6983
        %v7299 = vmax.f32 %v6478, %v6985
        %v7300 = vmax.f32 %v6477, %v6987
        %v7301 = vmax.f32 %v6479, %v6989
        %v7302 = vmax.f32 %v6487, %v6991
        %v7303 = vmax.f32 %v6495, %v6993
        %v7304 = vmax.f32 %v6494, %v6995
        %v7305 = vmax.f32 %v6496, %v6997
        %v7306 = vmax.f32 %v6504, %v6999
        %v7307 = vmax.f32 %v6512, %v7001
        %v7308 = vmax.f32 %v6511, %v7003
        %v7309 = vmax.f32 %v6513, %v7005
        %v7310 = vmax.f32 %v6521, %v7007
        %v7311 = vmax.f32 %v6529, %v7009
        %v7312 = vmax.f32 %v6528, %v7011
        %v7313 = vmax.f32 %v6530, %v7013
        %v7314 = vmax.f32 %v6538, %v7015
        %v7315 = vmax.f32 %v6546, %v7017
        %v7316 = vmax.f32 %v6545, %v7019
        %v7317 = vmax.f32 %v6547, %v7021
        %v7318 = vmax.f32 %v6555, %v7023
        %v7319 = vmax.f32 %v6563, %v7025
        %v7320 = vmax.f32 %v6562, %v7027
        %v7321 = vmax.f32 %v6564, %v7029
        %v7322 = vmax.f32 %v6572, %v7031
        %v7323 = vmax.f32 %v6580, %v7033
        %v7324 = vmax.f32 %v6579, %v7035
        %v7325 = vmax.f32 %v6581, %v7037
        %v7326 = vmax.f32 %v6589, %v7039
        %v7327 = vmax.f32 %v6597, %v7041
        %v7328 = vmax.f32 %v6596, %v7043
        %v7329 = vmax.f32 %v6598, %v7045
        %v7330 = vmax.f32 %v6606, %v7047
        %v7331 = vmax.f32 %v6614, %v7049
        %v7332 = vmax.f32 %v6613, %v7051
        %v7333 = vmax.f32 %v6615, %v7053
        %v7334 = vmax.f32 %v6623, %v7055
        %v7335 = vmax.f32 %v6631, %v7057
        %v7336 = vmax.f32 %v6630, %v7059
        %v7337 = vmax.f32 %v6632, %v7061
        %v7338 = vmax.f32 %v6640, %v7063
        %v7339 = vmax.f32 %v6648, %v7065
        %v7340 = vmax.f32 %v6647, %v7067
        %v7341 = vmax.f32 %v6649, %v7069
        %v7342 = vmax.f32 %v6657, %v7071
        %v7343 = vmax.f32 %v6665, %v7073
        %v7344 = vmax.f32 %v6664, %v7075
        %v7345 = vmax.f32 %v6666, %v7077
        %v7346 = vmax.f32 %v6674, %v7079
        %v7347 = vmax.f32 %v6682, %v7081
        %v7348 = vmax.f32 %v6681, %v7083
        %v7349 = vmax.f32 %v6683, %v7085
        %v7350 = vmax.f32 %v6691, %v7087
        %v7351 = vmax.f32 %v6699, %v7089
        %v7352 = vmax.f32 %v6698, %v7091
        %v7353 = vmax.f32 %v6700, %v7093
        %v7354 = vmax.f32 %v6708, %v7095
        %v7355 = vmax.f32 %v6716, %v7097
        %v7356 = vmax.f32 %v6715, %v7099
        %v7357 = vmax.f32 %v6717, %v7101
        %v7358 = vmax.f32 %v7230, %v7238
        %v7359 = vmax.f32 %v7231, %v7239
        %v7360 = vmax.f32 %v7232, %v7240
        %v7361 = vmax.f32 %v7233, %v7241
        %v7362 = vmax.f32 %v7234, %v7242
        %v7363 = vmax.f32 %v7235, %v7243
        %v7364 = vmax.f32 %v7236, %v7244
        %v7365 = vmax.f32 %v7237, %v7245
        %v7366 = vmax.f32 %v7246, %v7254
        %v7367 = vmax.f32 %v7247, %v7255
        %v7368 = vmax.f32 %v7248, %v7256
        %v7369 = vmax.f32 %v7249, %v7257
        %v7370 = vmax.f32 %v7250, %v7258
        %v7371 = vmax.f32 %v7251, %v7259
        %v7372 = vmax.f32 %v7252, %v7260
        %v7373 = vmax.f32 %v7253, %v7261
        %v7374 = vmax.f32 %v7262, %v7270
        %v7375 = vmax.f32 %v7263, %v7271
        %v7376 = vmax.f32 %v7264, %v7272
        %v7377 = vmax.f32 %v7265, %v7273
        %v7378 = vmax.f32 %v7266, %v7274
        %v7379 = vmax.f32 %v7267, %v7275
        %v7380 = vmax.f32 %v7268, %v7276
        %v7381 = vmax.f32 %v7269, %v7277
        %v7382 = vmax.f32 %v7278, %v7286
        %v7383 = vmax.f32 %v7279, %v7287
        %v7384 = vmax.f32 %v7280, %v7288
        %v7385 = vmax.f32 %v7281, %v7289
        %v7386 = vmax.f32 %v7282, %v7290
        %v7387 = vmax.f32 %v7283, %v7291
        %v7388 = vmax.f32 %v7284, %v7292
        %v7389 = vmax.f32 %v7285, %v7293
        %v7390 = vmax.f32 %v7294, %v7302
        %v7391 = vmax.f32 %v7295, %v7303
        %v7392 = vmax.f32 %v7296, %v7304
        %v7393 = vmax.f32 %v7297, %v7305
        %v7394 = vmax.f32 %v7298, %v7306
        %v7395 = vmax.f32 %v7299, %v7307
        %v7396 = vmax.f32 %v7300, %v7308
        %v7397 = vmax.f32 %v7301, %v7309
        %v7398 = vmax.f32 %v7310, %v7318
        %v7399 = vmax.f32 %v7311, %v7319
        %v7400 = vmax.f32 %v7312, %v7320
        %v7401 = vmax.f32 %v7313, %v7321
        %v7402 = vmax.f32 %v7314, %v7322
        %v7403 = vmax.f32 %v7315, %v7323
        %v7404 = vmax.f32 %v7316, %v7324
        %v7405 = vmax.f32 %v7317, %v7325
        %v7406 = vmax.f32 %v7326, %v7334
        %v7407 = vmax.f32 %v7327, %v7335
        %v7408 = vmax.f32 %v7328, %v7336
        %v7409 = vmax.f32 %v7329, %v7337
        %v7410 = vmax.f32 %v7330, %v7338
        %v7411 = vmax.f32 %v7331, %v7339
        %v7412 = vmax.f32 %v7332, %v7340
        %v7413 = vmax.f32 %v7333, %v7341
        %v7414 = vmax.f32 %v7342, %v7350
        %v7415 = vmax.f32 %v7343, %v7351
        %v7416 = vmax.f32 %v7344, %v7352
        %v7417 = vmax.f32 %v7345, %v7353
        %v7418 = vmax.f32 %v7346, %v7354
        %v7419 = vmax.f32 %v7347, %v7355
        %v7420 = vmax.f32 %v7348, %v7356
        %v7421 = vmax.f32 %v7349, %v7357
        %v7422 = vpack.c.bf16 %v7358, %v7358
        %v7423 = vpack.c.bf16 %v7359, %v7359
        %v7424 = vpack.c.bf16 %v7360, %v7360
        %v7425 = vpack.c.bf16 %v7361, %v7361
        %v7426 = vpack.c.bf16 %v7362, %v7362
        %v7427 = vpack.c.bf16 %v7363, %v7363
        %v7428 = vpack.c.bf16 %v7364, %v7364
        %v7429 = vpack.c.bf16 %v7365, %v7365
        %v7430 = vpack.c.bf16 %v7366, %v7366
        %v7431 = vpack.c.bf16 %v7367, %v7367
        %v7432 = vpack.c.bf16 %v7368, %v7368
        %v7433 = vpack.c.bf16 %v7369, %v7369
        %v7434 = vpack.c.bf16 %v7370, %v7370
        %v7435 = vpack.c.bf16 %v7371, %v7371
        %v7436 = vpack.c.bf16 %v7372, %v7372
        %v7437 = vpack.c.bf16 %v7373, %v7373
        %v7438 = vpack.c.bf16 %v7374, %v7374
        %v7439 = vpack.c.bf16 %v7375, %v7375
        %v7440 = vpack.c.bf16 %v7376, %v7376
        %v7441 = vpack.c.bf16 %v7377, %v7377
        %v7442 = vpack.c.bf16 %v7378, %v7378
        %v7443 = vpack.c.bf16 %v7379, %v7379
        %v7444 = vpack.c.bf16 %v7380, %v7380
        %v7445 = vpack.c.bf16 %v7381, %v7381
        %v7446 = vpack.c.bf16 %v7382, %v7382
        %v7447 = vpack.c.bf16 %v7383, %v7383
        %v7448 = vpack.c.bf16 %v7384, %v7384
        %v7449 = vpack.c.bf16 %v7385, %v7385
        %v7450 = vpack.c.bf16 %v7386, %v7386
        %v7451 = vpack.c.bf16 %v7387, %v7387
        %v7452 = vpack.c.bf16 %v7388, %v7388
        %v7453 = vpack.c.bf16 %v7389, %v7389
        %v7454 = vpack.c.bf16 %v7390, %v7390
        %v7455 = vpack.c.bf16 %v7391, %v7391
        %v7456 = vpack.c.bf16 %v7392, %v7392
        %v7457 = vpack.c.bf16 %v7393, %v7393
        %v7458 = vpack.c.bf16 %v7394, %v7394
        %v7459 = vpack.c.bf16 %v7395, %v7395
        %v7460 = vpack.c.bf16 %v7396, %v7396
        %v7461 = vpack.c.bf16 %v7397, %v7397
        %v7462 = vpack.c.bf16 %v7398, %v7398
        %v7463 = vpack.c.bf16 %v7399, %v7399
        %v7464 = vpack.c.bf16 %v7400, %v7400
        %v7465 = vpack.c.bf16 %v7401, %v7401
        %v7466 = vpack.c.bf16 %v7402, %v7402
        %v7467 = vpack.c.bf16 %v7403, %v7403
        %v7468 = vpack.c.bf16 %v7404, %v7404
        %v7469 = vpack.c.bf16 %v7405, %v7405
        %v7470 = vpack.c.bf16 %v7406, %v7406
        %v7471 = vpack.c.bf16 %v7407, %v7407
        %v7472 = vpack.c.bf16 %v7408, %v7408
        %v7473 = vpack.c.bf16 %v7409, %v7409
        %v7474 = vpack.c.bf16 %v7410, %v7410
        %v7475 = vpack.c.bf16 %v7411, %v7411
        %v7476 = vpack.c.bf16 %v7412, %v7412
        %v7477 = vpack.c.bf16 %v7413, %v7413
        %v7478 = vpack.c.bf16 %v7414, %v7414
        %v7479 = vpack.c.bf16 %v7415, %v7415
        %v7480 = vpack.c.bf16 %v7416, %v7416
        %v7481 = vpack.c.bf16 %v7417, %v7417
        %v7482 = vpack.c.bf16 %v7418, %v7418
        %v7483 = vpack.c.bf16 %v7419, %v7419
        %v7484 = vpack.c.bf16 %v7420, %v7420
        %v7485 = vpack.c.bf16 %v7421, %v7421
        %v7550 = vunpack.c.l.b16 %v7422
        %v7551 = vunpack.c.l.b16 %v7423
        %v7552 = vunpack.c.l.b16 %v7424
        %v7553 = vunpack.c.l.b16 %v7425
        %v7554 = vunpack.c.l.b16 %v7426
        %v7555 = vunpack.c.l.b16 %v7427
        %v7556 = vunpack.c.l.b16 %v7428
        %v7557 = vunpack.c.l.b16 %v7429
        %v7558 = vunpack.c.l.b16 %v7430
        %v7559 = vunpack.c.l.b16 %v7431
        %v7560 = vunpack.c.l.b16 %v7432
        %v7561 = vunpack.c.l.b16 %v7433
        %v7562 = vunpack.c.l.b16 %v7434
        %v7563 = vunpack.c.l.b16 %v7435
        %v7564 = vunpack.c.l.b16 %v7436
        %v7565 = vunpack.c.l.b16 %v7437
        %v7566 = vunpack.c.l.b16 %v7438
        %v7567 = vunpack.c.l.b16 %v7439
        %v7568 = vunpack.c.l.b16 %v7440
        %v7569 = vunpack.c.l.b16 %v7441
        %v7570 = vunpack.c.l.b16 %v7442
        %v7571 = vunpack.c.l.b16 %v7443
        %v7572 = vunpack.c.l.b16 %v7444
        %v7573 = vunpack.c.l.b16 %v7445
        %v7574 = vunpack.c.l.b16 %v7446
        %v7575 = vunpack.c.l.b16 %v7447
        %v7576 = vunpack.c.l.b16 %v7448
        %v7577 = vunpack.c.l.b16 %v7449
        %v7578 = vunpack.c.l.b16 %v7450
        %v7579 = vunpack.c.l.b16 %v7451
        %v7580 = vunpack.c.l.b16 %v7452
        %v7581 = vunpack.c.l.b16 %v7453
        %v7582 = vunpack.c.l.b16 %v7454
        %v7583 = vunpack.c.l.b16 %v7455
        %v7584 = vunpack.c.l.b16 %v7456
        %v7585 = vunpack.c.l.b16 %v7457
        %v7586 = vunpack.c.l.b16 %v7458
        %v7587 = vunpack.c.l.b16 %v7459
        %v7588 = vunpack.c.l.b16 %v7460
        %v7589 = vunpack.c.l.b16 %v7461
        %v7590 = vunpack.c.l.b16 %v7462
        %v7591 = vunpack.c.l.b16 %v7463
        %v7592 = vunpack.c.l.b16 %v7464
        %v7593 = vunpack.c.l.b16 %v7465
        %v7594 = vunpack.c.l.b16 %v7466
        %v7595 = vunpack.c.l.b16 %v7467
        %v7596 = vunpack.c.l.b16 %v7468
        %v7597 = vunpack.c.l.b16 %v7469
        %v7598 = vunpack.c.l.b16 %v7470
        %v7599 = vunpack.c.l.b16 %v7471
        %v7600 = vunpack.c.l.b16 %v7472
        %v7601 = vunpack.c.l.b16 %v7473
        %v7602 = vunpack.c.l.b16 %v7474
        %v7603 = vunpack.c.l.b16 %v7475
        %v7604 = vunpack.c.l.b16 %v7476
        %v7605 = vunpack.c.l.b16 %v7477
        %v7606 = vunpack.c.l.b16 %v7478
        %v7607 = vunpack.c.l.b16 %v7479
        %v7608 = vunpack.c.l.b16 %v7480
        %v7609 = vunpack.c.l.b16 %v7481
        %v7610 = vunpack.c.l.b16 %v7482
        %v7611 = vunpack.c.l.b16 %v7483
        %v7612 = vunpack.c.l.b16 %v7484
        %v7613 = vunpack.c.l.b16 %v7485
        %v7614 = vpack.c.b16 %v7550, %v7550
        %v7615 = vpack.c.b16 %v7551, %v7551
        %v7616 = vpack.c.b16 %v7552, %v7552
        %v7617 = vpack.c.b16 %v7553, %v7553
        %v7618 = vpack.c.b16 %v7554, %v7554
        %v7619 = vpack.c.b16 %v7555, %v7555
        %v7620 = vpack.c.b16 %v7556, %v7556
        %v7621 = vpack.c.b16 %v7557, %v7557
        %v7622 = vpack.c.b16 %v7558, %v7558
        %v7623 = vpack.c.b16 %v7559, %v7559
        %v7624 = vpack.c.b16 %v7560, %v7560
        %v7625 = vpack.c.b16 %v7561, %v7561
        %v7626 = vpack.c.b16 %v7562, %v7562
        %v7627 = vpack.c.b16 %v7563, %v7563
        %v7628 = vpack.c.b16 %v7564, %v7564
        %v7629 = vpack.c.b16 %v7565, %v7565
        %v7630 = vpack.c.b16 %v7566, %v7566
        %v7631 = vpack.c.b16 %v7567, %v7567
        %v7632 = vpack.c.b16 %v7568, %v7568
        %v7633 = vpack.c.b16 %v7569, %v7569
        %v7634 = vpack.c.b16 %v7570, %v7570
        %v7635 = vpack.c.b16 %v7571, %v7571
        %v7636 = vpack.c.b16 %v7572, %v7572
        %v7637 = vpack.c.b16 %v7573, %v7573
        %v7638 = vpack.c.b16 %v7574, %v7574
        %v7639 = vpack.c.b16 %v7575, %v7575
        %v7640 = vpack.c.b16 %v7576, %v7576
        %v7641 = vpack.c.b16 %v7577, %v7577
        %v7642 = vpack.c.b16 %v7578, %v7578
        %v7643 = vpack.c.b16 %v7579, %v7579
        %v7644 = vpack.c.b16 %v7580, %v7580
        %v7645 = vpack.c.b16 %v7581, %v7581
        %v7646 = vpack.c.b16 %v7582, %v7582
        %v7647 = vpack.c.b16 %v7583, %v7583
        %v7648 = vpack.c.b16 %v7584, %v7584
        %v7649 = vpack.c.b16 %v7585, %v7585
        %v7650 = vpack.c.b16 %v7586, %v7586
        %v7651 = vpack.c.b16 %v7587, %v7587
        %v7652 = vpack.c.b16 %v7588, %v7588
        %v7653 = vpack.c.b16 %v7589, %v7589
        %v7654 = vpack.c.b16 %v7590, %v7590
        %v7655 = vpack.c.b16 %v7591, %v7591
        %v7656 = vpack.c.b16 %v7592, %v7592
        %v7657 = vpack.c.b16 %v7593, %v7593
        %v7658 = vpack.c.b16 %v7594, %v7594
        %v7659 = vpack.c.b16 %v7595, %v7595
        %v7660 = vpack.c.b16 %v7596, %v7596
        %v7661 = vpack.c.b16 %v7597, %v7597
        %v7662 = vpack.c.b16 %v7598, %v7598
        %v7663 = vpack.c.b16 %v7599, %v7599
        %v7664 = vpack.c.b16 %v7600, %v7600
        %v7665 = vpack.c.b16 %v7601, %v7601
        %v7666 = vpack.c.b16 %v7602, %v7602
        %v7667 = vpack.c.b16 %v7603, %v7603
        %v7668 = vpack.c.b16 %v7604, %v7604
        %v7669 = vpack.c.b16 %v7605, %v7605
        %v7670 = vpack.c.b16 %v7606, %v7606
        %v7671 = vpack.c.b16 %v7607, %v7607
        %v7672 = vpack.c.b16 %v7608, %v7608
        %v7673 = vpack.c.b16 %v7609, %v7609
        %v7674 = vpack.c.b16 %v7610, %v7610
        %v7675 = vpack.c.b16 %v7611, %v7611
        %v7676 = vpack.c.b16 %v7612, %v7612
        %v7677 = vpack.c.b16 %v7613, %v7613
        %v7678 = vunpack.c.l.b16 %v7614
        %v7679 = vunpack.c.l.b16 %v7615
        %v7680 = vunpack.c.l.b16 %v7616
        %v7681 = vunpack.c.l.b16 %v7617
        %v7682 = vunpack.c.l.b16 %v7618
        %v7683 = vunpack.c.l.b16 %v7619
        %v7684 = vunpack.c.l.b16 %v7620
        %v7685 = vunpack.c.l.b16 %v7621
        %v7686 = vunpack.c.l.b16 %v7622
        %v7687 = vunpack.c.l.b16 %v7623
        %v7688 = vunpack.c.l.b16 %v7624
        %v7689 = vunpack.c.l.b16 %v7625
        %v7690 = vunpack.c.l.b16 %v7626
        %v7691 = vunpack.c.l.b16 %v7627
        %v7692 = vunpack.c.l.b16 %v7628
        %v7693 = vunpack.c.l.b16 %v7629
        %v7694 = vunpack.c.l.b16 %v7630
        %v7695 = vunpack.c.l.b16 %v7631
        %v7696 = vunpack.c.l.b16 %v7632
        %v7697 = vunpack.c.l.b16 %v7633
        %v7698 = vunpack.c.l.b16 %v7634
        %v7699 = vunpack.c.l.b16 %v7635
        %v7700 = vunpack.c.l.b16 %v7636
        %v7701 = vunpack.c.l.b16 %v7637
        %v7702 = vunpack.c.l.b16 %v7638
        %v7703 = vunpack.c.l.b16 %v7639
        %v7704 = vunpack.c.l.b16 %v7640
        %v7705 = vunpack.c.l.b16 %v7641
        %v7706 = vunpack.c.l.b16 %v7642
        %v7707 = vunpack.c.l.b16 %v7643
        %v7708 = vunpack.c.l.b16 %v7644
        %v7709 = vunpack.c.l.b16 %v7645
        %v7710 = vunpack.c.l.b16 %v7646
        %v7711 = vunpack.c.l.b16 %v7647
        %v7712 = vunpack.c.l.b16 %v7648
        %v7713 = vunpack.c.l.b16 %v7649
        %v7714 = vunpack.c.l.b16 %v7650
        %v7715 = vunpack.c.l.b16 %v7651
        %v7716 = vunpack.c.l.b16 %v7652
        %v7717 = vunpack.c.l.b16 %v7653
        %v7718 = vunpack.c.l.b16 %v7654
        %v7719 = vunpack.c.l.b16 %v7655
        %v7720 = vunpack.c.l.b16 %v7656
        %v7721 = vunpack.c.l.b16 %v7657
        %v7722 = vunpack.c.l.b16 %v7658
        %v7723 = vunpack.c.l.b16 %v7659
        %v7724 = vunpack.c.l.b16 %v7660
        %v7725 = vunpack.c.l.b16 %v7661
        %v7726 = vunpack.c.l.b16 %v7662
        %v7727 = vunpack.c.l.b16 %v7663
        %v7728 = vunpack.c.l.b16 %v7664
        %v7729 = vunpack.c.l.b16 %v7665
        %v7730 = vunpack.c.l.b16 %v7666
        %v7731 = vunpack.c.l.b16 %v7667
        %v7732 = vunpack.c.l.b16 %v7668
        %v7733 = vunpack.c.l.b16 %v7669
        %v7734 = vunpack.c.l.b16 %v7670
        %v7735 = vunpack.c.l.b16 %v7671
        %v7736 = vunpack.c.l.b16 %v7672
        %v7737 = vunpack.c.l.b16 %v7673
        %v7738 = vunpack.c.l.b16 %v7674
        %v7739 = vunpack.c.l.b16 %v7675
        %v7740 = vunpack.c.l.b16 %v7676
        %v7741 = vunpack.c.l.b16 %v7677
        %v7742 = vrot.slane %v7679, 7
        %vm7743 = vcmask 1041409
        %v7744 = vsel %vm7743, %v7742, %v7678
        %v7745 = vrot.slane %v7680, 6
        %vm7746 = vcmask 1042434
        %v7747 = vsel %vm7746, %v7745, %v7744
        %v7748 = vrot.slane %v7681, 5
        %vm7749 = vcmask 1043459
        %v7750 = vsel %vm7749, %v7748, %v7747
        %v7751 = vrot.slane %v7682, 4
        %vm7752 = vcmask 1044484
        %v7753 = vsel %vm7752, %v7751, %v7750
        %v7754 = vrot.slane %v7683, 3
        %vm7755 = vcmask 1045509
        %v7756 = vsel %vm7755, %v7754, %v7753
        %v7757 = vrot.slane %v7684, 2
        %vm7758 = vcmask 1046534
        %v7759 = vsel %vm7758, %v7757, %v7756
        %v7760 = vrot.slane %v7685, 1
        %vm7761 = vcmask 1047559
        %v7762 = vsel %vm7761, %v7760, %v7759
        %v7763 = vrot.slane %v7687, 7
        %v7764 = vsel %vm7743, %v7763, %v7686
        %v7765 = vrot.slane %v7688, 6
        %v7766 = vsel %vm7746, %v7765, %v7764
        %v7767 = vrot.slane %v7689, 5
        %v7768 = vsel %vm7749, %v7767, %v7766
        %v7769 = vrot.slane %v7690, 4
        %v7770 = vsel %vm7752, %v7769, %v7768
        %v7771 = vrot.slane %v7691, 3
        %v7772 = vsel %vm7755, %v7771, %v7770
        %v7773 = vrot.slane %v7692, 2
        %v7774 = vsel %vm7758, %v7773, %v7772
        %v7775 = vrot.slane %v7693, 1
        %v7776 = vsel %vm7761, %v7775, %v7774
        %v7777 = vrot.slane %v7695, 7
        %v7778 = vsel %vm7743, %v7777, %v7694
        %v7779 = vrot.slane %v7696, 6
        %v7780 = vsel %vm7746, %v7779, %v7778
        %v7781 = vrot.slane %v7697, 5
        %v7782 = vsel %vm7749, %v7781, %v7780
        %v7783 = vrot.slane %v7698, 4
        %v7784 = vsel %vm7752, %v7783, %v7782
        %v7785 = vrot.slane %v7699, 3
        %v7786 = vsel %vm7755, %v7785, %v7784
        %v7787 = vrot.slane %v7700, 2
        %v7788 = vsel %vm7758, %v7787, %v7786
        %v7789 = vrot.slane %v7701, 1
        %v7790 = vsel %vm7761, %v7789, %v7788
        %v7791 = vrot.slane %v7703, 7
        %v7792 = vsel %vm7743, %v7791, %v7702
        %v7793 = vrot.slane %v7704, 6
        %v7794 = vsel %vm7746, %v7793, %v7792
        %v7795 = vrot.slane %v7705, 5
        %v7796 = vsel %vm7749, %v7795, %v7794
        %v7797 = vrot.slane %v7706, 4
        %v7798 = vsel %vm7752, %v7797, %v7796
        %v7799 = vrot.slane %v7707, 3
        %v7800 = vsel %vm7755, %v7799, %v7798
        %v7801 = vrot.slane %v7708, 2
        %v7802 = vsel %vm7758, %v7801, %v7800
        %v7803 = vrot.slane %v7709, 1
        %v7804 = vsel %vm7761, %v7803, %v7802
        %v7805 = vrot.slane %v7711, 7
        %v7806 = vsel %vm7743, %v7805, %v7710
        %v7807 = vrot.slane %v7712, 6
        %v7808 = vsel %vm7746, %v7807, %v7806
        %v7809 = vrot.slane %v7713, 5
        %v7810 = vsel %vm7749, %v7809, %v7808
        %v7811 = vrot.slane %v7714, 4
        %v7812 = vsel %vm7752, %v7811, %v7810
        %v7813 = vrot.slane %v7715, 3
        %v7814 = vsel %vm7755, %v7813, %v7812
        %v7815 = vrot.slane %v7716, 2
        %v7816 = vsel %vm7758, %v7815, %v7814
        %v7817 = vrot.slane %v7717, 1
        %v7818 = vsel %vm7761, %v7817, %v7816
        %v7819 = vrot.slane %v7719, 7
        %v7820 = vsel %vm7743, %v7819, %v7718
        %v7821 = vrot.slane %v7720, 6
        %v7822 = vsel %vm7746, %v7821, %v7820
        %v7823 = vrot.slane %v7721, 5
        %v7824 = vsel %vm7749, %v7823, %v7822
        %v7825 = vrot.slane %v7722, 4
        %v7826 = vsel %vm7752, %v7825, %v7824
        %v7827 = vrot.slane %v7723, 3
        %v7828 = vsel %vm7755, %v7827, %v7826
        %v7829 = vrot.slane %v7724, 2
        %v7830 = vsel %vm7758, %v7829, %v7828
        %v7831 = vrot.slane %v7725, 1
        %v7832 = vsel %vm7761, %v7831, %v7830
        %v7833 = vrot.slane %v7727, 7
        %v7834 = vsel %vm7743, %v7833, %v7726
        %v7835 = vrot.slane %v7728, 6
        %v7836 = vsel %vm7746, %v7835, %v7834
        %v7837 = vrot.slane %v7729, 5
        %v7838 = vsel %vm7749, %v7837, %v7836
        %v7839 = vrot.slane %v7730, 4
        %v7840 = vsel %vm7752, %v7839, %v7838
        %v7841 = vrot.slane %v7731, 3
        %v7842 = vsel %vm7755, %v7841, %v7840
        %v7843 = vrot.slane %v7732, 2
        %v7844 = vsel %vm7758, %v7843, %v7842
        %v7845 = vrot.slane %v7733, 1
        %v7846 = vsel %vm7761, %v7845, %v7844
        %v7847 = vrot.slane %v7735, 7
        %v7848 = vsel %vm7743, %v7847, %v7734
        %v7849 = vrot.slane %v7736, 6
        %v7850 = vsel %vm7746, %v7849, %v7848
        %v7851 = vrot.slane %v7737, 5
        %v7852 = vsel %vm7749, %v7851, %v7850
        %v7853 = vrot.slane %v7738, 4
        %v7854 = vsel %vm7752, %v7853, %v7852
        %v7855 = vrot.slane %v7739, 3
        %v7856 = vsel %vm7755, %v7855, %v7854
        %v7857 = vrot.slane %v7740, 2
        %v7858 = vsel %vm7758, %v7857, %v7856
        %v7859 = vrot.slane %v7741, 1
        %v7860 = vsel %vm7761, %v7859, %v7858
        %v7861 = vpack.c.b16 %v7762, %v7762
        %v7862 = vpack.c.b16 %v7776, %v7776
        %v7863 = vpack.c.b16 %v7790, %v7790
        %v7864 = vpack.c.b16 %v7804, %v7804
        %v7865 = vpack.c.b16 %v7818, %v7818
        %v7866 = vpack.c.b16 %v7832, %v7832
        %v7867 = vpack.c.b16 %v7846, %v7846
        %v7868 = vpack.c.b16 %v7860, %v7860
        %7877 = vst [vmem:[%s163] sm:$0xf] %v7861
        %7878 = vst [vmem:[%s163 + $0x4] sm:$0xf] %v7862
        %7879 = vst [vmem:[%s163 + $0x8] sm:$0xf] %v7863
        %7880 = vst [vmem:[%s163 + $0xc] sm:$0xf] %v7864
        %7881 = vst [vmem:[%s163 + $0x10] sm:$0xf] %v7865
        %7882 = vst [vmem:[%s163 + $0x14] sm:$0xf] %v7866
        %7883 = vst [vmem:[%s163 + $0x18] sm:$0xf] %v7867
        %7884 = vst [vmem:[%s163 + $0x1c] sm:$0xf] %v7868
        %s7885 = sand.u32 %s93, 1
        %s7886 = scalar_lea.sflag [#allocation5], %s7885
        %s7887 = sand.u32 %s93, 1
        %s7888 = smul.addr %s7887, 32
        %s7889 = scalar_lea.vmem [#allocation4], %s7888
        // Predicated region
        $region33: #{tpu_custom_call.1} parent=31 // pred_check
          %p7890 = pneg %p103
        $region34: #{tpu_custom_call.1} parent=31 // pred_check_branch
          %7892 = sbr.rel (%p7890) target = $region36
        $region35: #{tpu_custom_call.1} parent=31 // pred_region
          %s7894 = ssub.s32 512, 512
          %7895 = vsyncadd %s7886, %s7894
          %s7896 = smul.addr %s17, 8
          %s7897 = smul.addr %s7896, 64
          %s7898 = scalar_lea.hbm %s3, %s7897
          %s7899 = sshll.u32 %s7889, 4
          %s7900 = int_to_ptr.vmem [resolvable:$true] %s7899
          %7905 = dma.vmem_to_hbm [thread:$0]  %s7900, 512, %s7898, %s7886, 64, 64, 4
        $region36: #{tpu_custom_call.1} parent=31 // pred_fallthru
          _
      $region32: #{tpu_custom_call.1} parent=5 // pred_fallthru
        _
      %p7906 = scmp.le.s32.totalorder 2, %s12
      // Predicated region
      $region37: #{tpu_custom_call.1} parent=5 // pred_check
        %p7907 = pneg %p7906
      $region38: #{tpu_custom_call.1} parent=5 // pred_check_branch
        %7909 = sbr.rel (%p7907) target = $region40
      $region39: #{tpu_custom_call.1} parent=5 // pred_region
        %s7910 = ssub.s32 %s12, 2
        // Predicated region
        $region41: #{tpu_custom_call.1} parent=39 // pred_check
          %p7911 = pneg %p109
        $region42: #{tpu_custom_call.1} parent=39 // pred_check_branch
          %7913 = sbr.rel (%p7911) target = $region44
        $region43: #{tpu_custom_call.1} parent=39 // pred_region
          %s7914 = sand.u32 %s94, 1
          %s7915 = scalar_lea.sflag [#allocation5], %s7914
          %s7916 = sand.u32 %s94, 1
          %s7917 = smul.addr %s7916, 32
          %s7918 = scalar_lea.vmem [#allocation4], %s7917
          %7919 = dma.done %s7915, 512
        $region44: #{tpu_custom_call.1} parent=39 // pred_fallthru
          _
      $region40: #{tpu_custom_call.1} parent=5 // pred_fallthru
        _
    $region6: #{tpu_custom_call.1} parent=1 // loop_footer
      %s16 = sadd.s32 1, %s12
    $region7: #{tpu_custom_call.1} parent=1 // loop_footer_branch
      %11 = sbr.rel target = $region3
    $region8: #{tpu_custom_call.1} parent=1 // loop_exit
      _
    %7920 = vsyncpa [#allocation5], 1
    %s7921 = scalar_lea.sflag [#allocation5], 1
    %7922 = vsyncpa %s7921, 1

</llo_original>
